<compile_context>
chip_gen: v7x
topology: tpu7x:2x2x1
jax: 0.10.0
libtpu: 0.0.40
codegen_flags: <defaults>
</compile_context>

<pallas_src>
import functools

import jax
import jax.numpy as jnp
import numpy as np
from jax.experimental import pallas as pl
from jax.experimental.pallas import tpu as pltpu


# =====================  fused bidirectional-LSTM kernel  =====================

def _bilstm_kernel(x_ref,
                   wih0f_ref, whh0f_ref, b0f_ref,
                   wih0b_ref, whh0b_ref, b0b_ref,
                   wih1f_ref, whh1f_ref, b1f_ref,
                   wih1b_ref, whh1b_ref, b1b_ref,
                   out_ref, hn_ref, cn_ref,
                   xp0f_ref, xp0b_ref, xp1f_ref, xp1b_ref, l0_ref,
                   *, t_steps, bp, hid):
    """2-layer bidirectional LSTM, single invocation (no grid).

    x_ref:    (T*Bp, D)    bf16, time-major, batch padded to Bp (multiple of 8)
    wih*_ref: (Din, 4H)    bf16  (= W_ih^T), gate order (i, f, g, o)
    whh*_ref: (H, 4H)      bf16  (= W_hh^T)
    b*_ref:   (1, 4H)      f32   (= b_ih + b_hh)
    out_ref:  (T*Bp, 2H)   f32   layer-1 output [fwd | bwd]
    hn_ref / cn_ref: (4, Bp, H) f32  final states [l0f, l0b, l1f, l1b]
    """
    H = hid

    def x_projection(src_bf16, wih_ref, b_ref, dst_ref):
        # one big MXU matmul for all timesteps: (T*Bp, Din) @ (Din, 4H)
        dst_ref[...] = jnp.dot(src_bf16, wih_ref[...],
                               preferred_element_type=jnp.float32) + b_ref[...]

    def run_direction(xp_ref, whh_ref, dst_ref, *, reverse, dst_col, slot):
        whh = whh_ref[...]                                        # (H, 4H) bf16

        def step(t, carry):
            h, c = carry                                          # (Bp, H) f32
            tt = (t_steps - 1 - t) if reverse else t
            row = pl.multiple_of(tt * bp, bp)
            gates = xp_ref[pl.ds(row, bp), :] + jnp.dot(
                h.astype(jnp.bfloat16), whh,
                preferred_element_type=jnp.float32)               # (Bp, 4H) f32
            i = jax.nn.sigmoid(gates[:, 0 * H:1 * H])
            f = jax.nn.sigmoid(gates[:, 1 * H:2 * H])
            g = jnp.tanh(gates[:, 2 * H:3 * H])
            o = jax.nn.sigmoid(gates[:, 3 * H:4 * H])
            c_new = f * c + i * g
            h_new = o * jnp.tanh(c_new)
            dst_ref[pl.ds(row, bp), pl.ds(dst_col, H)] = h_new
            return h_new, c_new

        h0 = jnp.zeros((bp, H), jnp.float32)
        c0 = jnp.zeros((bp, H), jnp.float32)
        h_fin, c_fin = jax.lax.fori_loop(0, t_steps, step, (h0, c0),
                                         unroll=True)
        hn_ref[slot] = h_fin
        cn_ref[slot] = c_fin

    # ---------------- layer 0 ----------------
    x_bf = x_ref[...]                                             # (T*Bp, D) bf16
    x_projection(x_bf, wih0f_ref, b0f_ref, xp0f_ref)
    x_projection(x_bf, wih0b_ref, b0b_ref, xp0b_ref)
    run_direction(xp0f_ref, whh0f_ref, l0_ref, reverse=False, dst_col=0, slot=0)
    run_direction(xp0b_ref, whh0b_ref, l0_ref, reverse=True, dst_col=H, slot=1)

    # ---------------- layer 1 ----------------
    # TODO(synk): inter-layer nn.Dropout (module arg Dropout) is identity here;
    # the reference module default is Dropout=0 so this matches exactly.
    l0_bf = l0_ref[...].astype(jnp.bfloat16)                      # (T*Bp, 2H)
    x_projection(l0_bf, wih1f_ref, b1f_ref, xp1f_ref)
    x_projection(l0_bf, wih1b_ref, b1b_ref, xp1b_ref)
    run_direction(xp1f_ref, whh1f_ref, out_ref, reverse=False, dst_col=0, slot=2)
    run_direction(xp1b_ref, whh1b_ref, out_ref, reverse=True, dst_col=H, slot=3)


# =====================  wrapper  =====================

def bidirectional_lstm_forward(x, params, *, hidden, n_layers=2):
    """Matches nn.LSTM(..., num_layers=2, bidirectional=True, batch_first=True).

    x: (B, T, D) float32.  Returns (output (B,T,2H), (h_n (4,B,H), c_n (4,B,H))).
    """
    assert n_layers == 2
    B, T, D = x.shape
    H = hidden
    Bp = ((B + 7) // 8) * 8                      # pad batch to sublane multiple

    # time-major, batch-padded, bf16 for the MXU
    x_pad = jnp.zeros((T, Bp, D), jnp.float32).at[:, :B, :].set(
        jnp.transpose(x, (1, 0, 2)))
    x_tm = x_pad.reshape(T * Bp, D).astype(jnp.bfloat16)

    def prep(layer, rev):
        sfx = f"l{layer}" + ("_reverse" if rev else "")
        w_ih = jnp.transpose(params[f"weight_ih_{sfx}"]).astype(jnp.bfloat16)  # (Din, 4H)
        w_hh = jnp.transpose(params[f"weight_hh_{sfx}"]).astype(jnp.bfloat16)  # (H, 4H)
        b = (params[f"bias_ih_{sfx}"] + params[f"bias_hh_{sfx}"]
             ).reshape(1, 4 * H).astype(jnp.float32)
        return w_ih, w_hh, b

    w0f, w0b = prep(0, False), prep(0, True)
    w1f, w1b = prep(1, False), prep(1, True)

    out_flat, hn, cn = pl.pallas_call(
        functools.partial(_bilstm_kernel, t_steps=T, bp=Bp, hid=H),
        out_shape=(
            jax.ShapeDtypeStruct((T * Bp, 2 * H), jnp.float32),
            jax.ShapeDtypeStruct((2 * n_layers, Bp, H), jnp.float32),
            jax.ShapeDtypeStruct((2 * n_layers, Bp, H), jnp.float32),
        ),
        scratch_shapes=[
            pltpu.VMEM((T * Bp, 4 * H), jnp.float32),   # xproj layer-0 fwd
            pltpu.VMEM((T * Bp, 4 * H), jnp.float32),   # xproj layer-0 bwd
            pltpu.VMEM((T * Bp, 4 * H), jnp.float32),   # xproj layer-1 fwd
            pltpu.VMEM((T * Bp, 4 * H), jnp.float32),   # xproj layer-1 bwd
            pltpu.VMEM((T * Bp, 2 * H), jnp.float32),   # layer-0 output
        ],
        compiler_params=pltpu.CompilerParams(vmem_limit_bytes=32 * 1024 * 1024),
    )(x_tm, *w0f, *w0b, *w1f, *w1b)

    out = out_flat.reshape(T, Bp, 2 * H)[:, :B, :].transpose(1, 0, 2)   # (B,T,2H)
    h_n = hn[:, :B, :]
    c_n = cn[:, :B, :]
    return out, (h_n, c_n)


# =====================  parameter init & pure-JAX reference  =====================

def init_lstm_params(key, input_size, hidden, n_layers=2):
    """PyTorch-style U(-1/sqrt(H), 1/sqrt(H)) init, PyTorch parameter names."""
    p = {}
    bound = 1.0 / np.sqrt(hidden)
    keys = iter(jax.random.split(key, 8 * n_layers * 2))

    def u(shape):
        return jax.random.uniform(next(keys), shape, jnp.float32, -bound, bound)

    for layer in range(n_layers):
        din = input_size if layer == 0 else 2 * hidden
        for sfx in (f"l{layer}", f"l{layer}_reverse"):
            p[f"weight_ih_{sfx}"] = u((4 * hidden, din))
            p[f"weight_hh_{sfx}"] = u((4 * hidden, hidden))
            p[f"bias_ih_{sfx}"] = u((4 * hidden,))
            p[f"bias_hh_{sfx}"] = u((4 * hidden,))
    return p


def lstm_reference(x, params, *, hidden, n_layers=2):
    """Pure-JAX (f32) reference of nn.LSTM(bidirectional, batch_first)."""
    B, T, _ = x.shape
    H = hidden

    def cell(xs, w_ih, w_hh, b_ih, b_hh, reverse):
        h = jnp.zeros((B, H), jnp.float32)
        c = jnp.zeros((B, H), jnp.float32)
        outs = [None] * T
        order = range(T - 1, -1, -1) if reverse else range(T)
        for t in order:
            g = xs[:, t, :] @ w_ih.T + b_ih + h @ w_hh.T + b_hh
            i = jax.nn.sigmoid(g[:, :H])
            f = jax.nn.sigmoid(g[:, H:2 * H])
            gg = jnp.tanh(g[:, 2 * H:3 * H])
            o = jax.nn.sigmoid(g[:, 3 * H:])
            c = f * c + i * gg
            h = o * jnp.tanh(c)
            outs[t] = h
        return jnp.stack(outs, axis=1), h, c

    layer_in = x
    hs, cs = [], []
    for layer in range(n_layers):
        outs = []
        for sfx, rev in ((f"l{layer}", False), (f"l{layer}_reverse", True)):
            o, h, c = cell(layer_in,
                           params[f"weight_ih_{sfx}"], params[f"weight_hh_{sfx}"],
                           params[f"bias_ih_{sfx}"], params[f"bias_hh_{sfx}"], rev)
            outs.append(o)
            hs.append(h)
            cs.append(c)
        layer_in = jnp.concatenate(outs, axis=-1)
    return layer_in, (jnp.stack(hs, 0), jnp.stack(cs, 0))


# =====================  demo / self-check  =====================

if __name__ == "__main__":
    B, T, D, H = 2, 12, 64, 128   # small shapes; module defaults n_layers=2, bidirectional

    root = jax.random.PRNGKey(0)
    kp, kx = jax.random.split(root)
    params = init_lstm_params(kp, D, H)
    x = jax.random.normal(kx, (B, T, D), jnp.float32)

    fwd = jax.jit(functools.partial(bidirectional_lstm_forward, hidden=H))
    out, (h_n, c_n) = fwd(x, params)
    jax.block_until_ready((out, h_n, c_n))

    assert out.shape == (B, T, 2 * H) and out.dtype == jnp.float32
    assert h_n.shape == (4, B, H) and c_n.shape == (4, B, H)

    # correctness vs f32 pure-JAX reference (bf16 MXU operands -> loose tolerance)
    with jax.default_matmul_precision("float32"):
        ref_out, (ref_h, ref_c) = lstm_reference(x, params, hidden=H)
    np.testing.assert_allclose(np.asarray(out), np.asarray(ref_out), atol=5e-2, rtol=5e-2)
    np.testing.assert_allclose(np.asarray(h_n), np.asarray(ref_h), atol=5e-2, rtol=5e-2)
    np.testing.assert_allclose(np.asarray(c_n), np.asarray(ref_c), atol=5e-2, rtol=5e-2)

    print("KERNEL_OK")
</pallas_src>

<mosaic_0001>
module attributes {stable_mosaic.version = 11 : i64} {
  func.func @_bilstm_kernel(%arg0: memref<96x64xbf16, #tpu.memory_space<vmem>>, %arg1: memref<64x512xbf16, #tpu.memory_space<vmem>>, %arg2: memref<128x512xbf16, #tpu.memory_space<vmem>>, %arg3: memref<1x512xf32, #tpu.memory_space<vmem>>, %arg4: memref<64x512xbf16, #tpu.memory_space<vmem>>, %arg5: memref<128x512xbf16, #tpu.memory_space<vmem>>, %arg6: memref<1x512xf32, #tpu.memory_space<vmem>>, %arg7: memref<256x512xbf16, #tpu.memory_space<vmem>>, %arg8: memref<128x512xbf16, #tpu.memory_space<vmem>>, %arg9: memref<1x512xf32, #tpu.memory_space<vmem>>, %arg10: memref<256x512xbf16, #tpu.memory_space<vmem>>, %arg11: memref<128x512xbf16, #tpu.memory_space<vmem>>, %arg12: memref<1x512xf32, #tpu.memory_space<vmem>>, %arg13: memref<96x256xf32, #tpu.memory_space<vmem>>, %arg14: memref<4x8x128xf32, #tpu.memory_space<vmem>>, %arg15: memref<4x8x128xf32, #tpu.memory_space<vmem>>, %arg16: memref<96x512xf32, #tpu.memory_space<vmem>>, %arg17: memref<96x512xf32, #tpu.memory_space<vmem>>, %arg18: memref<96x512xf32, #tpu.memory_space<vmem>>, %arg19: memref<96x512xf32, #tpu.memory_space<vmem>>, %arg20: memref<96x256xf32, #tpu.memory_space<vmem>>) attributes {dimension_semantics = [], scalar_prefetch = 0 : i64, scratch_operands = 5 : i64, tpu.core_type = #tpu.core_type<tc>} {
    %c0 = arith.constant 0 : index
    %c0_0 = arith.constant 0 : index
    %0 = vector.load %arg0[%c0, %c0_0] : memref<96x64xbf16, #tpu.memory_space<vmem>>, vector<96x64xbf16>
    %c0_1 = arith.constant 0 : index
    %c0_2 = arith.constant 0 : index
    %1 = vector.load %arg1[%c0_1, %c0_2] : memref<64x512xbf16, #tpu.memory_space<vmem>>, vector<64x512xbf16>
    %cst = arith.constant dense<0.000000e+00> : vector<96x512xf32>
    %2 = tpu.matmul %0, %1, %cst {dimension_numbers = #tpu.dot_dimension_numbers<[1], [0], [0], [1], [0, 0, 1, 1], [], []>} : vector<96x64xbf16>, vector<64x512xbf16>, vector<96x512xf32> -> vector<96x512xf32>
    %c0_3 = arith.constant 0 : index
    %c0_4 = arith.constant 0 : index
    %3 = vector.load %arg3[%c0_3, %c0_4] : memref<1x512xf32, #tpu.memory_space<vmem>>, vector<1x512xf32>
    %4 = vector.broadcast %3 : vector<1x512xf32> to vector<96x512xf32>
    %5 = arith.addf %2, %4 : vector<96x512xf32>
    %c0_5 = arith.constant 0 : index
    %c0_6 = arith.constant 0 : index
    %6 = vector.load %arg16[%c0_5, %c0_6] : memref<96x512xf32, #tpu.memory_space<vmem>>, vector<96x512xf32>
    tpu.vector_store %arg16[%c0_5, %c0_6], %5 {strides = array<i32>} : memref<96x512xf32, #tpu.memory_space<vmem>>, vector<96x512xf32>,
    %c0_7 = arith.constant 0 : index
    %c0_8 = arith.constant 0 : index
    %7 = vector.load %arg4[%c0_7, %c0_8] : memref<64x512xbf16, #tpu.memory_space<vmem>>, vector<64x512xbf16>
    %cst_9 = arith.constant dense<0.000000e+00> : vector<96x512xf32>
    %8 = tpu.matmul %0, %7, %cst_9 {dimension_numbers = #tpu.dot_dimension_numbers<[1], [0], [0], [1], [0, 0, 1, 1], [], []>} : vector<96x64xbf16>, vector<64x512xbf16>, vector<96x512xf32> -> vector<96x512xf32>
    %c0_10 = arith.constant 0 : index
    %c0_11 = arith.constant 0 : index
    %9 = vector.load %arg6[%c0_10, %c0_11] : memref<1x512xf32, #tpu.memory_space<vmem>>, vector<1x512xf32>
    %10 = vector.broadcast %9 : vector<1x512xf32> to vector<96x512xf32>
    %11 = arith.addf %8, %10 : vector<96x512xf32>
    %c0_12 = arith.constant 0 : index
    %c0_13 = arith.constant 0 : index
    %12 = vector.load %arg17[%c0_12, %c0_13] : memref<96x512xf32, #tpu.memory_space<vmem>>, vector<96x512xf32>
    tpu.vector_store %arg17[%c0_12, %c0_13], %11 {strides = array<i32>} : memref<96x512xf32, #tpu.memory_space<vmem>>, vector<96x512xf32>,
    %c0_14 = arith.constant 0 : index
    %c0_15 = arith.constant 0 : index
    %13 = vector.load %arg2[%c0_14, %c0_15] : memref<128x512xbf16, #tpu.memory_space<vmem>>, vector<128x512xbf16>
    %cst_16 = arith.constant 0.000000e+00 : f32
    %14 = vector.broadcast %cst_16 : f32 to vector<8x128xf32>
    %cst_17 = arith.constant 0.000000e+00 : f32
    %15 = vector.broadcast %cst_17 : f32 to vector<8x128xf32>
    %c0_i32 = arith.constant 0 : i32
    %c8_i32 = arith.constant 8 : i32
    %16 = arith.muli %c0_i32, %c8_i32 : i32
    %17 = tpu.assume_multiple %16, 8 : i32
    %18 = arith.index_cast %17 : i32 to index
    %c0_18 = arith.constant 0 : index
    %19 = vector.load %arg16[%18, %c0_18] : memref<96x512xf32, #tpu.memory_space<vmem>>, vector<8x512xf32>
    %20 = arith.truncf %14 : vector<8x128xf32> to vector<8x128xbf16>
    %cst_19 = arith.constant dense<0.000000e+00> : vector<8x512xf32>
    %21 = tpu.matmul %20, %13, %cst_19 {dimension_numbers = #tpu.dot_dimension_numbers<[1], [0], [0], [1], [0, 0, 1, 1], [], []>} : vector<8x128xbf16>, vector<128x512xbf16>, vector<8x512xf32> -> vector<8x512xf32>
    %22 = arith.addf %19, %21 : vector<8x512xf32>
    %23 = vector.extract_strided_slice %22 {offsets = [0, 0], sizes = [8, 128], strides = [1, 1]} : vector<8x512xf32> to vector<8x128xf32>
    %24 = arith.negf %23 : vector<8x128xf32>
    %25 = math.exp %24 : vector<8x128xf32>
    %cst_20 = arith.constant 1.000000e+00 : f32
    %26 = vector.broadcast %cst_20 : f32 to vector<8x128xf32>
    %27 = arith.addf %26, %25 : vector<8x128xf32>
    %28 = arith.divf %26, %27 : vector<8x128xf32>
    %29 = vector.extract_strided_slice %22 {offsets = [0, 128], sizes = [8, 128], strides = [1, 1]} : vector<8x512xf32> to vector<8x128xf32>
    %30 = arith.negf %29 : vector<8x128xf32>
    %31 = math.exp %30 : vector<8x128xf32>
    %cst_21 = arith.constant 1.000000e+00 : f32
    %32 = vector.broadcast %cst_21 : f32 to vector<8x128xf32>
    %33 = arith.addf %32, %31 : vector<8x128xf32>
    %34 = arith.divf %32, %33 : vector<8x128xf32>
    %35 = vector.extract_strided_slice %22 {offsets = [0, 256], sizes = [8, 128], strides = [1, 1]} : vector<8x512xf32> to vector<8x128xf32>
    %36 = math.tanh %35 : vector<8x128xf32>
    %37 = vector.extract_strided_slice %22 {offsets = [0, 384], sizes = [8, 128], strides = [1, 1]} : vector<8x512xf32> to vector<8x128xf32>
    %38 = arith.negf %37 : vector<8x128xf32>
    %39 = math.exp %38 : vector<8x128xf32>
    %cst_22 = arith.constant 1.000000e+00 : f32
    %40 = vector.broadcast %cst_22 : f32 to vector<8x128xf32>
    %41 = arith.addf %40, %39 : vector<8x128xf32>
    %42 = arith.divf %40, %41 : vector<8x128xf32>
    %43 = arith.mulf %34, %15 : vector<8x128xf32>
    %44 = arith.mulf %28, %36 : vector<8x128xf32>
    %45 = arith.addf %43, %44 : vector<8x128xf32>
    %46 = math.tanh %45 : vector<8x128xf32>
    %47 = arith.mulf %42, %46 : vector<8x128xf32>
    %48 = arith.index_cast %17 : i32 to index
    %c0_23 = arith.constant 0 : index
    %49 = vector.load %arg20[%48, %c0_23] : memref<96x256xf32, #tpu.memory_space<vmem>>, vector<8x128xf32>
    tpu.vector_store %arg20[%48, %c0_23], %47 {strides = array<i32>} : memref<96x256xf32, #tpu.memory_space<vmem>>, vector<8x128xf32>,
    %c1_i32 = arith.constant 1 : i32
    %c8_i32_24 = arith.constant 8 : i32
    %50 = arith.muli %c1_i32, %c8_i32_24 : i32
    %51 = tpu.assume_multiple %50, 8 : i32
    %52 = arith.index_cast %51 : i32 to index
    %c0_25 = arith.constant 0 : index
    %53 = vector.load %arg16[%52, %c0_25] : memref<96x512xf32, #tpu.memory_space<vmem>>, vector<8x512xf32>
    %54 = arith.truncf %47 : vector<8x128xf32> to vector<8x128xbf16>
    %cst_26 = arith.constant dense<0.000000e+00> : vector<8x512xf32>
    %55 = tpu.matmul %54, %13, %cst_26 {dimension_numbers = #tpu.dot_dimension_numbers<[1], [0], [0], [1], [0, 0, 1, 1], [], []>} : vector<8x128xbf16>, vector<128x512xbf16>, vector<8x512xf32> -> vector<8x512xf32>
    %56 = arith.addf %53, %55 : vector<8x512xf32>
    %57 = vector.extract_strided_slice %56 {offsets = [0, 0], sizes = [8, 128], strides = [1, 1]} : vector<8x512xf32> to vector<8x128xf32>
    %58 = arith.negf %57 : vector<8x128xf32>
    %59 = math.exp %58 : vector<8x128xf32>
    %cst_27 = arith.constant 1.000000e+00 : f32
    %60 = vector.broadcast %cst_27 : f32 to vector<8x128xf32>
    %61 = arith.addf %60, %59 : vector<8x128xf32>
    %62 = arith.divf %60, %61 : vector<8x128xf32>
    %63 = vector.extract_strided_slice %56 {offsets = [0, 128], sizes = [8, 128], strides = [1, 1]} : vector<8x512xf32> to vector<8x128xf32>
    %64 = arith.negf %63 : vector<8x128xf32>
    %65 = math.exp %64 : vector<8x128xf32>
    %cst_28 = arith.constant 1.000000e+00 : f32
    %66 = vector.broadcast %cst_28 : f32 to vector<8x128xf32>
    %67 = arith.addf %66, %65 : vector<8x128xf32>
    %68 = arith.divf %66, %67 : vector<8x128xf32>
    %69 = vector.extract_strided_slice %56 {offsets = [0, 256], sizes = [8, 128], strides = [1, 1]} : vector<8x512xf32> to vector<8x128xf32>
    %70 = math.tanh %69 : vector<8x128xf32>
    %71 = vector.extract_strided_slice %56 {offsets = [0, 384], sizes = [8, 128], strides = [1, 1]} : vector<8x512xf32> to vector<8x128xf32>
    %72 = arith.negf %71 : vector<8x128xf32>
    %73 = math.exp %72 : vector<8x128xf32>
    %cst_29 = arith.constant 1.000000e+00 : f32
    %74 = vector.broadcast %cst_29 : f32 to vector<8x128xf32>
    %75 = arith.addf %74, %73 : vector<8x128xf32>
    %76 = arith.divf %74, %75 : vector<8x128xf32>
    %77 = arith.mulf %68, %45 : vector<8x128xf32>
    %78 = arith.mulf %62, %70 : vector<8x128xf32>
    %79 = arith.addf %77, %78 : vector<8x128xf32>
    %80 = math.tanh %79 : vector<8x128xf32>
    %81 = arith.mulf %76, %80 : vector<8x128xf32>
    %82 = arith.index_cast %51 : i32 to index
    %c0_30 = arith.constant 0 : index
    %83 = vector.load %arg20[%82, %c0_30] : memref<96x256xf32, #tpu.memory_space<vmem>>, vector<8x128xf32>
    tpu.vector_store %arg20[%82, %c0_30], %81 {strides = array<i32>} : memref<96x256xf32, #tpu.memory_space<vmem>>, vector<8x128xf32>,
    %c2_i32 = arith.constant 2 : i32
    %c8_i32_31 = arith.constant 8 : i32
    %84 = arith.muli %c2_i32, %c8_i32_31 : i32
    %85 = tpu.assume_multiple %84, 8 : i32
    %86 = arith.index_cast %85 : i32 to index
    %c0_32 = arith.constant 0 : index
    %87 = vector.load %arg16[%86, %c0_32] : memref<96x512xf32, #tpu.memory_space<vmem>>, vector<8x512xf32>
    %88 = arith.truncf %81 : vector<8x128xf32> to vector<8x128xbf16>
    %cst_33 = arith.constant dense<0.000000e+00> : vector<8x512xf32>
    %89 = tpu.matmul %88, %13, %cst_33 {dimension_numbers = #tpu.dot_dimension_numbers<[1], [0], [0], [1], [0, 0, 1, 1], [], []>} : vector<8x128xbf16>, vector<128x512xbf16>, vector<8x512xf32> -> vector<8x512xf32>
    %90 = arith.addf %87, %89 : vector<8x512xf32>
    %91 = vector.extract_strided_slice %90 {offsets = [0, 0], sizes = [8, 128], strides = [1, 1]} : vector<8x512xf32> to vector<8x128xf32>
    %92 = arith.negf %91 : vector<8x128xf32>
    %93 = math.exp %92 : vector<8x128xf32>
    %cst_34 = arith.constant 1.000000e+00 : f32
    %94 = vector.broadcast %cst_34 : f32 to vector<8x128xf32>
    %95 = arith.addf %94, %93 : vector<8x128xf32>
    %96 = arith.divf %94, %95 : vector<8x128xf32>
    %97 = vector.extract_strided_slice %90 {offsets = [0, 128], sizes = [8, 128], strides = [1, 1]} : vector<8x512xf32> to vector<8x128xf32>
    %98 = arith.negf %97 : vector<8x128xf32>
    %99 = math.exp %98 : vector<8x128xf32>
    %cst_35 = arith.constant 1.000000e+00 : f32
    %100 = vector.broadcast %cst_35 : f32 to vector<8x128xf32>
    %101 = arith.addf %100, %99 : vector<8x128xf32>
    %102 = arith.divf %100, %101 : vector<8x128xf32>
    %103 = vector.extract_strided_slice %90 {offsets = [0, 256], sizes = [8, 128], strides = [1, 1]} : vector<8x512xf32> to vector<8x128xf32>
    %104 = math.tanh %103 : vector<8x128xf32>
    %105 = vector.extract_strided_slice %90 {offsets = [0, 384], sizes = [8, 128], strides = [1, 1]} : vector<8x512xf32> to vector<8x128xf32>
    %106 = arith.negf %105 : vector<8x128xf32>
    %107 = math.exp %106 : vector<8x128xf32>
    %cst_36 = arith.constant 1.000000e+00 : f32
    %108 = vector.broadcast %cst_36 : f32 to vector<8x128xf32>
    %109 = arith.addf %108, %107 : vector<8x128xf32>
    %110 = arith.divf %108, %109 : vector<8x128xf32>
    %111 = arith.mulf %102, %79 : vector<8x128xf32>
    %112 = arith.mulf %96, %104 : vector<8x128xf32>
    %113 = arith.addf %111, %112 : vector<8x128xf32>
    %114 = math.tanh %113 : vector<8x128xf32>
    %115 = arith.mulf %110, %114 : vector<8x128xf32>
    %116 = arith.index_cast %85 : i32 to index
    %c0_37 = arith.constant 0 : index
    %117 = vector.load %arg20[%116, %c0_37] : memref<96x256xf32, #tpu.memory_space<vmem>>, vector<8x128xf32>
    tpu.vector_store %arg20[%116, %c0_37], %115 {strides = array<i32>} : memref<96x256xf32, #tpu.memory_space<vmem>>, vector<8x128xf32>,
    %c3_i32 = arith.constant 3 : i32
    %c8_i32_38 = arith.constant 8 : i32
    %118 = arith.muli %c3_i32, %c8_i32_38 : i32
    %119 = tpu.assume_multiple %118, 8 : i32
    %120 = arith.index_cast %119 : i32 to index
    %c0_39 = arith.constant 0 : index
    %121 = vector.load %arg16[%120, %c0_39] : memref<96x512xf32, #tpu.memory_space<vmem>>, vector<8x512xf32>
    %122 = arith.truncf %115 : vector<8x128xf32> to vector<8x128xbf16>
    %cst_40 = arith.constant dense<0.000000e+00> : vector<8x512xf32>
    %123 = tpu.matmul %122, %13, %cst_40 {dimension_numbers = #tpu.dot_dimension_numbers<[1], [0], [0], [1], [0, 0, 1, 1], [], []>} : vector<8x128xbf16>, vector<128x512xbf16>, vector<8x512xf32> -> vector<8x512xf32>
    %124 = arith.addf %121, %123 : vector<8x512xf32>
    %125 = vector.extract_strided_slice %124 {offsets = [0, 0], sizes = [8, 128], strides = [1, 1]} : vector<8x512xf32> to vector<8x128xf32>
    %126 = arith.negf %125 : vector<8x128xf32>
    %127 = math.exp %126 : vector<8x128xf32>
    %cst_41 = arith.constant 1.000000e+00 : f32
    %128 = vector.broadcast %cst_41 : f32 to vector<8x128xf32>
    %129 = arith.addf %128, %127 : vector<8x128xf32>
    %130 = arith.divf %128, %129 : vector<8x128xf32>
    %131 = vector.extract_strided_slice %124 {offsets = [0, 128], sizes = [8, 128], strides = [1, 1]} : vector<8x512xf32> to vector<8x128xf32>
    %132 = arith.negf %131 : vector<8x128xf32>
    %133 = math.exp %132 : vector<8x128xf32>
    %cst_42 = arith.constant 1.000000e+00 : f32
    %134 = vector.broadcast %cst_42 : f32 to vector<8x128xf32>
    %135 = arith.addf %134, %133 : vector<8x128xf32>
    %136 = arith.divf %134, %135 : vector<8x128xf32>
    %137 = vector.extract_strided_slice %124 {offsets = [0, 256], sizes = [8, 128], strides = [1, 1]} : vector<8x512xf32> to vector<8x128xf32>
    %138 = math.tanh %137 : vector<8x128xf32>
    %139 = vector.extract_strided_slice %124 {offsets = [0, 384], sizes = [8, 128], strides = [1, 1]} : vector<8x512xf32> to vector<8x128xf32>
    %140 = arith.negf %139 : vector<8x128xf32>
    %141 = math.exp %140 : vector<8x128xf32>
    %cst_43 = arith.constant 1.000000e+00 : f32
    %142 = vector.broadcast %cst_43 : f32 to vector<8x128xf32>
    %143 = arith.addf %142, %141 : vector<8x128xf32>
    %144 = arith.divf %142, %143 : vector<8x128xf32>
    %145 = arith.mulf %136, %113 : vector<8x128xf32>
    %146 = arith.mulf %130, %138 : vector<8x128xf32>
    %147 = arith.addf %145, %146 : vector<8x128xf32>
    %148 = math.tanh %147 : vector<8x128xf32>
    %149 = arith.mulf %144, %148 : vector<8x128xf32>
    %150 = arith.index_cast %119 : i32 to index
    %c0_44 = arith.constant 0 : index
    %151 = vector.load %arg20[%150, %c0_44] : memref<96x256xf32, #tpu.memory_space<vmem>>, vector<8x128xf32>
    tpu.vector_store %arg20[%150, %c0_44], %149 {strides = array<i32>} : memref<96x256xf32, #tpu.memory_space<vmem>>, vector<8x128xf32>,
    %c4_i32 = arith.constant 4 : i32
    %c8_i32_45 = arith.constant 8 : i32
    %152 = arith.muli %c4_i32, %c8_i32_45 : i32
    %153 = tpu.assume_multiple %152, 8 : i32
    %154 = arith.index_cast %153 : i32 to index
    %c0_46 = arith.constant 0 : index
    %155 = vector.load %arg16[%154, %c0_46] : memref<96x512xf32, #tpu.memory_space<vmem>>, vector<8x512xf32>
    %156 = arith.truncf %149 : vector<8x128xf32> to vector<8x128xbf16>
    %cst_47 = arith.constant dense<0.000000e+00> : vector<8x512xf32>
    %157 = tpu.matmul %156, %13, %cst_47 {dimension_numbers = #tpu.dot_dimension_numbers<[1], [0], [0], [1], [0, 0, 1, 1], [], []>} : vector<8x128xbf16>, vector<128x512xbf16>, vector<8x512xf32> -> vector<8x512xf32>
    %158 = arith.addf %155, %157 : vector<8x512xf32>
    %159 = vector.extract_strided_slice %158 {offsets = [0, 0], sizes = [8, 128], strides = [1, 1]} : vector<8x512xf32> to vector<8x128xf32>
    %160 = arith.negf %159 : vector<8x128xf32>
    %161 = math.exp %160 : vector<8x128xf32>
    %cst_48 = arith.constant 1.000000e+00 : f32
    %162 = vector.broadcast %cst_48 : f32 to vector<8x128xf32>
    %163 = arith.addf %162, %161 : vector<8x128xf32>
    %164 = arith.divf %162, %163 : vector<8x128xf32>
    %165 = vector.extract_strided_slice %158 {offsets = [0, 128], sizes = [8, 128], strides = [1, 1]} : vector<8x512xf32> to vector<8x128xf32>
    %166 = arith.negf %165 : vector<8x128xf32>
    %167 = math.exp %166 : vector<8x128xf32>
    %cst_49 = arith.constant 1.000000e+00 : f32
    %168 = vector.broadcast %cst_49 : f32 to vector<8x128xf32>
    %169 = arith.addf %168, %167 : vector<8x128xf32>
    %170 = arith.divf %168, %169 : vector<8x128xf32>
    %171 = vector.extract_strided_slice %158 {offsets = [0, 256], sizes = [8, 128], strides = [1, 1]} : vector<8x512xf32> to vector<8x128xf32>
    %172 = math.tanh %171 : vector<8x128xf32>
    %173 = vector.extract_strided_slice %158 {offsets = [0, 384], sizes = [8, 128], strides = [1, 1]} : vector<8x512xf32> to vector<8x128xf32>
    %174 = arith.negf %173 : vector<8x128xf32>
    %175 = math.exp %174 : vector<8x128xf32>
    %cst_50 = arith.constant 1.000000e+00 : f32
    %176 = vector.broadcast %cst_50 : f32 to vector<8x128xf32>
    %177 = arith.addf %176, %175 : vector<8x128xf32>
    %178 = arith.divf %176, %177 : vector<8x128xf32>
    %179 = arith.mulf %170, %147 : vector<8x128xf32>
    %180 = arith.mulf %164, %172 : vector<8x128xf32>
    %181 = arith.addf %179, %180 : vector<8x128xf32>
    %182 = math.tanh %181 : vector<8x128xf32>
    %183 = arith.mulf %178, %182 : vector<8x128xf32>
    %184 = arith.index_cast %153 : i32 to index
    %c0_51 = arith.constant 0 : index
    %185 = vector.load %arg20[%184, %c0_51] : memref<96x256xf32, #tpu.memory_space<vmem>>, vector<8x128xf32>
    tpu.vector_store %arg20[%184, %c0_51], %183 {strides = array<i32>} : memref<96x256xf32, #tpu.memory_space<vmem>>, vector<8x128xf32>,
    %c5_i32 = arith.constant 5 : i32
    %c8_i32_52 = arith.constant 8 : i32
    %186 = arith.muli %c5_i32, %c8_i32_52 : i32
    %187 = tpu.assume_multiple %186, 8 : i32
    %188 = arith.index_cast %187 : i32 to index
    %c0_53 = arith.constant 0 : index
    %189 = vector.load %arg16[%188, %c0_53] : memref<96x512xf32, #tpu.memory_space<vmem>>, vector<8x512xf32>
    %190 = arith.truncf %183 : vector<8x128xf32> to vector<8x128xbf16>
    %cst_54 = arith.constant dense<0.000000e+00> : vector<8x512xf32>
    %191 = tpu.matmul %190, %13, %cst_54 {dimension_numbers = #tpu.dot_dimension_numbers<[1], [0], [0], [1], [0, 0, 1, 1], [], []>} : vector<8x128xbf16>, vector<128x512xbf16>, vector<8x512xf32> -> vector<8x512xf32>
    %192 = arith.addf %189, %191 : vector<8x512xf32>
    %193 = vector.extract_strided_slice %192 {offsets = [0, 0], sizes = [8, 128], strides = [1, 1]} : vector<8x512xf32> to vector<8x128xf32>
    %194 = arith.negf %193 : vector<8x128xf32>
    %195 = math.exp %194 : vector<8x128xf32>
    %cst_55 = arith.constant 1.000000e+00 : f32
    %196 = vector.broadcast %cst_55 : f32 to vector<8x128xf32>
    %197 = arith.addf %196, %195 : vector<8x128xf32>
    %198 = arith.divf %196, %197 : vector<8x128xf32>
    %199 = vector.extract_strided_slice %192 {offsets = [0, 128], sizes = [8, 128], strides = [1, 1]} : vector<8x512xf32> to vector<8x128xf32>
    %200 = arith.negf %199 : vector<8x128xf32>
    %201 = math.exp %200 : vector<8x128xf32>
    %cst_56 = arith.constant 1.000000e+00 : f32
    %202 = vector.broadcast %cst_56 : f32 to vector<8x128xf32>
    %203 = arith.addf %202, %201 : vector<8x128xf32>
    %204 = arith.divf %202, %203 : vector<8x128xf32>
    %205 = vector.extract_strided_slice %192 {offsets = [0, 256], sizes = [8, 128], strides = [1, 1]} : vector<8x512xf32> to vector<8x128xf32>
    %206 = math.tanh %205 : vector<8x128xf32>
    %207 = vector.extract_strided_slice %192 {offsets = [0, 384], sizes = [8, 128], strides = [1, 1]} : vector<8x512xf32> to vector<8x128xf32>
    %208 = arith.negf %207 : vector<8x128xf32>
    %209 = math.exp %208 : vector<8x128xf32>
    %cst_57 = arith.constant 1.000000e+00 : f32
    %210 = vector.broadcast %cst_57 : f32 to vector<8x128xf32>
    %211 = arith.addf %210, %209 : vector<8x128xf32>
    %212 = arith.divf %210, %211 : vector<8x128xf32>
    %213 = arith.mulf %204, %181 : vector<8x128xf32>
    %214 = arith.mulf %198, %206 : vector<8x128xf32>
    %215 = arith.addf %213, %214 : vector<8x128xf32>
    %216 = math.tanh %215 : vector<8x128xf32>
    %217 = arith.mulf %212, %216 : vector<8x128xf32>
    %218 = arith.index_cast %187 : i32 to index
    %c0_58 = arith.constant 0 : index
    %219 = vector.load %arg20[%218, %c0_58] : memref<96x256xf32, #tpu.memory_space<vmem>>, vector<8x128xf32>
    tpu.vector_store %arg20[%218, %c0_58], %217 {strides = array<i32>} : memref<96x256xf32, #tpu.memory_space<vmem>>, vector<8x128xf32>,
    %c6_i32 = arith.constant 6 : i32
    %c8_i32_59 = arith.constant 8 : i32
    %220 = arith.muli %c6_i32, %c8_i32_59 : i32
    %221 = tpu.assume_multiple %220, 8 : i32
    %222 = arith.index_cast %221 : i32 to index
    %c0_60 = arith.constant 0 : index
    %223 = vector.load %arg16[%222, %c0_60] : memref<96x512xf32, #tpu.memory_space<vmem>>, vector<8x512xf32>
    %224 = arith.truncf %217 : vector<8x128xf32> to vector<8x128xbf16>
    %cst_61 = arith.constant dense<0.000000e+00> : vector<8x512xf32>
    %225 = tpu.matmul %224, %13, %cst_61 {dimension_numbers = #tpu.dot_dimension_numbers<[1], [0], [0], [1], [0, 0, 1, 1], [], []>} : vector<8x128xbf16>, vector<128x512xbf16>, vector<8x512xf32> -> vector<8x512xf32>
    %226 = arith.addf %223, %225 : vector<8x512xf32>
    %227 = vector.extract_strided_slice %226 {offsets = [0, 0], sizes = [8, 128], strides = [1, 1]} : vector<8x512xf32> to vector<8x128xf32>
    %228 = arith.negf %227 : vector<8x128xf32>
    %229 = math.exp %228 : vector<8x128xf32>
    %cst_62 = arith.constant 1.000000e+00 : f32
    %230 = vector.broadcast %cst_62 : f32 to vector<8x128xf32>
    %231 = arith.addf %230, %229 : vector<8x128xf32>
    %232 = arith.divf %230, %231 : vector<8x128xf32>
    %233 = vector.extract_strided_slice %226 {offsets = [0, 128], sizes = [8, 128], strides = [1, 1]} : vector<8x512xf32> to vector<8x128xf32>
    %234 = arith.negf %233 : vector<8x128xf32>
    %235 = math.exp %234 : vector<8x128xf32>
    %cst_63 = arith.constant 1.000000e+00 : f32
    %236 = vector.broadcast %cst_63 : f32 to vector<8x128xf32>
    %237 = arith.addf %236, %235 : vector<8x128xf32>
    %238 = arith.divf %236, %237 : vector<8x128xf32>
    %239 = vector.extract_strided_slice %226 {offsets = [0, 256], sizes = [8, 128], strides = [1, 1]} : vector<8x512xf32> to vector<8x128xf32>
    %240 = math.tanh %239 : vector<8x128xf32>
    %241 = vector.extract_strided_slice %226 {offsets = [0, 384], sizes = [8, 128], strides = [1, 1]} : vector<8x512xf32> to vector<8x128xf32>
    %242 = arith.negf %241 : vector<8x128xf32>
    %243 = math.exp %242 : vector<8x128xf32>
    %cst_64 = arith.constant 1.000000e+00 : f32
    %244 = vector.broadcast %cst_64 : f32 to vector<8x128xf32>
    %245 = arith.addf %244, %243 : vector<8x128xf32>
    %246 = arith.divf %244, %245 : vector<8x128xf32>
    %247 = arith.mulf %238, %215 : vector<8x128xf32>
    %248 = arith.mulf %232, %240 : vector<8x128xf32>
    %249 = arith.addf %247, %248 : vector<8x128xf32>
    %250 = math.tanh %249 : vector<8x128xf32>
    %251 = arith.mulf %246, %250 : vector<8x128xf32>
    %252 = arith.index_cast %221 : i32 to index
    %c0_65 = arith.constant 0 : index
    %253 = vector.load %arg20[%252, %c0_65] : memref<96x256xf32, #tpu.memory_space<vmem>>, vector<8x128xf32>
    tpu.vector_store %arg20[%252, %c0_65], %251 {strides = array<i32>} : memref<96x256xf32, #tpu.memory_space<vmem>>, vector<8x128xf32>,
    %c7_i32 = arith.constant 7 : i32
    %c8_i32_66 = arith.constant 8 : i32
    %254 = arith.muli %c7_i32, %c8_i32_66 : i32
    %255 = tpu.assume_multiple %254, 8 : i32
    %256 = arith.index_cast %255 : i32 to index
    %c0_67 = arith.constant 0 : index
    %257 = vector.load %arg16[%256, %c0_67] : memref<96x512xf32, #tpu.memory_space<vmem>>, vector<8x512xf32>
    %258 = arith.truncf %251 : vector<8x128xf32> to vector<8x128xbf16>
    %cst_68 = arith.constant dense<0.000000e+00> : vector<8x512xf32>
    %259 = tpu.matmul %258, %13, %cst_68 {dimension_numbers = #tpu.dot_dimension_numbers<[1], [0], [0], [1], [0, 0, 1, 1], [], []>} : vector<8x128xbf16>, vector<128x512xbf16>, vector<8x512xf32> -> vector<8x512xf32>
    %260 = arith.addf %257, %259 : vector<8x512xf32>
    %261 = vector.extract_strided_slice %260 {offsets = [0, 0], sizes = [8, 128], strides = [1, 1]} : vector<8x512xf32> to vector<8x128xf32>
    %262 = arith.negf %261 : vector<8x128xf32>
    %263 = math.exp %262 : vector<8x128xf32>
    %cst_69 = arith.constant 1.000000e+00 : f32
    %264 = vector.broadcast %cst_69 : f32 to vector<8x128xf32>
    %265 = arith.addf %264, %263 : vector<8x128xf32>
    %266 = arith.divf %264, %265 : vector<8x128xf32>
    %267 = vector.extract_strided_slice %260 {offsets = [0, 128], sizes = [8, 128], strides = [1, 1]} : vector<8x512xf32> to vector<8x128xf32>
    %268 = arith.negf %267 : vector<8x128xf32>
    %269 = math.exp %268 : vector<8x128xf32>
    %cst_70 = arith.constant 1.000000e+00 : f32
    %270 = vector.broadcast %cst_70 : f32 to vector<8x128xf32>
    %271 = arith.addf %270, %269 : vector<8x128xf32>
    %272 = arith.divf %270, %271 : vector<8x128xf32>
    %273 = vector.extract_strided_slice %260 {offsets = [0, 256], sizes = [8, 128], strides = [1, 1]} : vector<8x512xf32> to vector<8x128xf32>
    %274 = math.tanh %273 : vector<8x128xf32>
    %275 = vector.extract_strided_slice %260 {offsets = [0, 384], sizes = [8, 128], strides = [1, 1]} : vector<8x512xf32> to vector<8x128xf32>
    %276 = arith.negf %275 : vector<8x128xf32>
    %277 = math.exp %276 : vector<8x128xf32>
    %cst_71 = arith.constant 1.000000e+00 : f32
    %278 = vector.broadcast %cst_71 : f32 to vector<8x128xf32>
    %279 = arith.addf %278, %277 : vector<8x128xf32>
    %280 = arith.divf %278, %279 : vector<8x128xf32>
    %281 = arith.mulf %272, %249 : vector<8x128xf32>
    %282 = arith.mulf %266, %274 : vector<8x128xf32>
    %283 = arith.addf %281, %282 : vector<8x128xf32>
    %284 = math.tanh %283 : vector<8x128xf32>
    %285 = arith.mulf %280, %284 : vector<8x128xf32>
    %286 = arith.index_cast %255 : i32 to index
    %c0_72 = arith.constant 0 : index
    %287 = vector.load %arg20[%286, %c0_72] : memref<96x256xf32, #tpu.memory_space<vmem>>, vector<8x128xf32>
    tpu.vector_store %arg20[%286, %c0_72], %285 {strides = array<i32>} : memref<96x256xf32, #tpu.memory_space<vmem>>, vector<8x128xf32>,
    %c8_i32_73 = arith.constant 8 : i32
    %c8_i32_74 = arith.constant 8 : i32
    %288 = arith.muli %c8_i32_73, %c8_i32_74 : i32
    %289 = tpu.assume_multiple %288, 8 : i32
    %290 = arith.index_cast %289 : i32 to index
    %c0_75 = arith.constant 0 : index
    %291 = vector.load %arg16[%290, %c0_75] : memref<96x512xf32, #tpu.memory_space<vmem>>, vector<8x512xf32>
    %292 = arith.truncf %285 : vector<8x128xf32> to vector<8x128xbf16>
    %cst_76 = arith.constant dense<0.000000e+00> : vector<8x512xf32>
    %293 = tpu.matmul %292, %13, %cst_76 {dimension_numbers = #tpu.dot_dimension_numbers<[1], [0], [0], [1], [0, 0, 1, 1], [], []>} : vector<8x128xbf16>, vector<128x512xbf16>, vector<8x512xf32> -> vector<8x512xf32>
    %294 = arith.addf %291, %293 : vector<8x512xf32>
    %295 = vector.extract_strided_slice %294 {offsets = [0, 0], sizes = [8, 128], strides = [1, 1]} : vector<8x512xf32> to vector<8x128xf32>
    %296 = arith.negf %295 : vector<8x128xf32>
    %297 = math.exp %296 : vector<8x128xf32>
    %cst_77 = arith.constant 1.000000e+00 : f32
    %298 = vector.broadcast %cst_77 : f32 to vector<8x128xf32>
    %299 = arith.addf %298, %297 : vector<8x128xf32>
    %300 = arith.divf %298, %299 : vector<8x128xf32>
    %301 = vector.extract_strided_slice %294 {offsets = [0, 128], sizes = [8, 128], strides = [1, 1]} : vector<8x512xf32> to vector<8x128xf32>
    %302 = arith.negf %301 : vector<8x128xf32>
    %303 = math.exp %302 : vector<8x128xf32>
    %cst_78 = arith.constant 1.000000e+00 : f32
    %304 = vector.broadcast %cst_78 : f32 to vector<8x128xf32>
    %305 = arith.addf %304, %303 : vector<8x128xf32>
    %306 = arith.divf %304, %305 : vector<8x128xf32>
    %307 = vector.extract_strided_slice %294 {offsets = [0, 256], sizes = [8, 128], strides = [1, 1]} : vector<8x512xf32> to vector<8x128xf32>
    %308 = math.tanh %307 : vector<8x128xf32>
    %309 = vector.extract_strided_slice %294 {offsets = [0, 384], sizes = [8, 128], strides = [1, 1]} : vector<8x512xf32> to vector<8x128xf32>
    %310 = arith.negf %309 : vector<8x128xf32>
    %311 = math.exp %310 : vector<8x128xf32>
    %cst_79 = arith.constant 1.000000e+00 : f32
    %312 = vector.broadcast %cst_79 : f32 to vector<8x128xf32>
    %313 = arith.addf %312, %311 : vector<8x128xf32>
    %314 = arith.divf %312, %313 : vector<8x128xf32>
    %315 = arith.mulf %306, %283 : vector<8x128xf32>
    %316 = arith.mulf %300, %308 : vector<8x128xf32>
    %317 = arith.addf %315, %316 : vector<8x128xf32>
    %318 = math.tanh %317 : vector<8x128xf32>
    %319 = arith.mulf %314, %318 : vector<8x128xf32>
    %320 = arith.index_cast %289 : i32 to index
    %c0_80 = arith.constant 0 : index
    %321 = vector.load %arg20[%320, %c0_80] : memref<96x256xf32, #tpu.memory_space<vmem>>, vector<8x128xf32>
    tpu.vector_store %arg20[%320, %c0_80], %319 {strides = array<i32>} : memref<96x256xf32, #tpu.memory_space<vmem>>, vector<8x128xf32>,
    %c9_i32 = arith.constant 9 : i32
    %c8_i32_81 = arith.constant 8 : i32
    %322 = arith.muli %c9_i32, %c8_i32_81 : i32
    %323 = tpu.assume_multiple %322, 8 : i32
    %324 = arith.index_cast %323 : i32 to index
    %c0_82 = arith.constant 0 : index
    %325 = vector.load %arg16[%324, %c0_82] : memref<96x512xf32, #tpu.memory_space<vmem>>, vector<8x512xf32>
    %326 = arith.truncf %319 : vector<8x128xf32> to vector<8x128xbf16>
    %cst_83 = arith.constant dense<0.000000e+00> : vector<8x512xf32>
    %327 = tpu.matmul %326, %13, %cst_83 {dimension_numbers = #tpu.dot_dimension_numbers<[1], [0], [0], [1], [0, 0, 1, 1], [], []>} : vector<8x128xbf16>, vector<128x512xbf16>, vector<8x512xf32> -> vector<8x512xf32>
    %328 = arith.addf %325, %327 : vector<8x512xf32>
    %329 = vector.extract_strided_slice %328 {offsets = [0, 0], sizes = [8, 128], strides = [1, 1]} : vector<8x512xf32> to vector<8x128xf32>
    %330 = arith.negf %329 : vector<8x128xf32>
    %331 = math.exp %330 : vector<8x128xf32>
    %cst_84 = arith.constant 1.000000e+00 : f32
    %332 = vector.broadcast %cst_84 : f32 to vector<8x128xf32>
    %333 = arith.addf %332, %331 : vector<8x128xf32>
    %334 = arith.divf %332, %333 : vector<8x128xf32>
    %335 = vector.extract_strided_slice %328 {offsets = [0, 128], sizes = [8, 128], strides = [1, 1]} : vector<8x512xf32> to vector<8x128xf32>
    %336 = arith.negf %335 : vector<8x128xf32>
    %337 = math.exp %336 : vector<8x128xf32>
    %cst_85 = arith.constant 1.000000e+00 : f32
    %338 = vector.broadcast %cst_85 : f32 to vector<8x128xf32>
    %339 = arith.addf %338, %337 : vector<8x128xf32>
    %340 = arith.divf %338, %339 : vector<8x128xf32>
    %341 = vector.extract_strided_slice %328 {offsets = [0, 256], sizes = [8, 128], strides = [1, 1]} : vector<8x512xf32> to vector<8x128xf32>
    %342 = math.tanh %341 : vector<8x128xf32>
    %343 = vector.extract_strided_slice %328 {offsets = [0, 384], sizes = [8, 128], strides = [1, 1]} : vector<8x512xf32> to vector<8x128xf32>
    %344 = arith.negf %343 : vector<8x128xf32>
    %345 = math.exp %344 : vector<8x128xf32>
    %cst_86 = arith.constant 1.000000e+00 : f32
    %346 = vector.broadcast %cst_86 : f32 to vector<8x128xf32>
    %347 = arith.addf %346, %345 : vector<8x128xf32>
    %348 = arith.divf %346, %347 : vector<8x128xf32>
    %349 = arith.mulf %340, %317 : vector<8x128xf32>
    %350 = arith.mulf %334, %342 : vector<8x128xf32>
    %351 = arith.addf %349, %350 : vector<8x128xf32>
    %352 = math.tanh %351 : vector<8x128xf32>
    %353 = arith.mulf %348, %352 : vector<8x128xf32>
    %354 = arith.index_cast %323 : i32 to index
    %c0_87 = arith.constant 0 : index
    %355 = vector.load %arg20[%354, %c0_87] : memref<96x256xf32, #tpu.memory_space<vmem>>, vector<8x128xf32>
    tpu.vector_store %arg20[%354, %c0_87], %353 {strides = array<i32>} : memref<96x256xf32, #tpu.memory_space<vmem>>, vector<8x128xf32>,
    %c10_i32 = arith.constant 10 : i32
    %c8_i32_88 = arith.constant 8 : i32
    %356 = arith.muli %c10_i32, %c8_i32_88 : i32
    %357 = tpu.assume_multiple %356, 8 : i32
    %358 = arith.index_cast %357 : i32 to index
    %c0_89 = arith.constant 0 : index
    %359 = vector.load %arg16[%358, %c0_89] : memref<96x512xf32, #tpu.memory_space<vmem>>, vector<8x512xf32>
    %360 = arith.truncf %353 : vector<8x128xf32> to vector<8x128xbf16>
    %cst_90 = arith.constant dense<0.000000e+00> : vector<8x512xf32>
    %361 = tpu.matmul %360, %13, %cst_90 {dimension_numbers = #tpu.dot_dimension_numbers<[1], [0], [0], [1], [0, 0, 1, 1], [], []>} : vector<8x128xbf16>, vector<128x512xbf16>, vector<8x512xf32> -> vector<8x512xf32>
    %362 = arith.addf %359, %361 : vector<8x512xf32>
    %363 = vector.extract_strided_slice %362 {offsets = [0, 0], sizes = [8, 128], strides = [1, 1]} : vector<8x512xf32> to vector<8x128xf32>
    %364 = arith.negf %363 : vector<8x128xf32>
    %365 = math.exp %364 : vector<8x128xf32>
    %cst_91 = arith.constant 1.000000e+00 : f32
    %366 = vector.broadcast %cst_91 : f32 to vector<8x128xf32>
    %367 = arith.addf %366, %365 : vector<8x128xf32>
    %368 = arith.divf %366, %367 : vector<8x128xf32>
    %369 = vector.extract_strided_slice %362 {offsets = [0, 128], sizes = [8, 128], strides = [1, 1]} : vector<8x512xf32> to vector<8x128xf32>
    %370 = arith.negf %369 : vector<8x128xf32>
    %371 = math.exp %370 : vector<8x128xf32>
    %cst_92 = arith.constant 1.000000e+00 : f32
    %372 = vector.broadcast %cst_92 : f32 to vector<8x128xf32>
    %373 = arith.addf %372, %371 : vector<8x128xf32>
    %374 = arith.divf %372, %373 : vector<8x128xf32>
    %375 = vector.extract_strided_slice %362 {offsets = [0, 256], sizes = [8, 128], strides = [1, 1]} : vector<8x512xf32> to vector<8x128xf32>
    %376 = math.tanh %375 : vector<8x128xf32>
    %377 = vector.extract_strided_slice %362 {offsets = [0, 384], sizes = [8, 128], strides = [1, 1]} : vector<8x512xf32> to vector<8x128xf32>
    %378 = arith.negf %377 : vector<8x128xf32>
    %379 = math.exp %378 : vector<8x128xf32>
    %cst_93 = arith.constant 1.000000e+00 : f32
    %380 = vector.broadcast %cst_93 : f32 to vector<8x128xf32>
    %381 = arith.addf %380, %379 : vector<8x128xf32>
    %382 = arith.divf %380, %381 : vector<8x128xf32>
    %383 = arith.mulf %374, %351 : vector<8x128xf32>
    %384 = arith.mulf %368, %376 : vector<8x128xf32>
    %385 = arith.addf %383, %384 : vector<8x128xf32>
    %386 = math.tanh %385 : vector<8x128xf32>
    %387 = arith.mulf %382, %386 : vector<8x128xf32>
    %388 = arith.index_cast %357 : i32 to index
    %c0_94 = arith.constant 0 : index
    %389 = vector.load %arg20[%388, %c0_94] : memref<96x256xf32, #tpu.memory_space<vmem>>, vector<8x128xf32>
    tpu.vector_store %arg20[%388, %c0_94], %387 {strides = array<i32>} : memref<96x256xf32, #tpu.memory_space<vmem>>, vector<8x128xf32>,
    %c11_i32 = arith.constant 11 : i32
    %c8_i32_95 = arith.constant 8 : i32
    %390 = arith.muli %c11_i32, %c8_i32_95 : i32
    %391 = tpu.assume_multiple %390, 8 : i32
    %392 = arith.index_cast %391 : i32 to index
    %c0_96 = arith.constant 0 : index
    %393 = vector.load %arg16[%392, %c0_96] : memref<96x512xf32, #tpu.memory_space<vmem>>, vector<8x512xf32>
    %394 = arith.truncf %387 : vector<8x128xf32> to vector<8x128xbf16>
    %cst_97 = arith.constant dense<0.000000e+00> : vector<8x512xf32>
    %395 = tpu.matmul %394, %13, %cst_97 {dimension_numbers = #tpu.dot_dimension_numbers<[1], [0], [0], [1], [0, 0, 1, 1], [], []>} : vector<8x128xbf16>, vector<128x512xbf16>, vector<8x512xf32> -> vector<8x512xf32>
    %396 = arith.addf %393, %395 : vector<8x512xf32>
    %397 = vector.extract_strided_slice %396 {offsets = [0, 0], sizes = [8, 128], strides = [1, 1]} : vector<8x512xf32> to vector<8x128xf32>
    %398 = arith.negf %397 : vector<8x128xf32>
    %399 = math.exp %398 : vector<8x128xf32>
    %cst_98 = arith.constant 1.000000e+00 : f32
    %400 = vector.broadcast %cst_98 : f32 to vector<8x128xf32>
    %401 = arith.addf %400, %399 : vector<8x128xf32>
    %402 = arith.divf %400, %401 : vector<8x128xf32>
    %403 = vector.extract_strided_slice %396 {offsets = [0, 128], sizes = [8, 128], strides = [1, 1]} : vector<8x512xf32> to vector<8x128xf32>
    %404 = arith.negf %403 : vector<8x128xf32>
    %405 = math.exp %404 : vector<8x128xf32>
    %cst_99 = arith.constant 1.000000e+00 : f32
    %406 = vector.broadcast %cst_99 : f32 to vector<8x128xf32>
    %407 = arith.addf %406, %405 : vector<8x128xf32>
    %408 = arith.divf %406, %407 : vector<8x128xf32>
    %409 = vector.extract_strided_slice %396 {offsets = [0, 256], sizes = [8, 128], strides = [1, 1]} : vector<8x512xf32> to vector<8x128xf32>
    %410 = math.tanh %409 : vector<8x128xf32>
    %411 = vector.extract_strided_slice %396 {offsets = [0, 384], sizes = [8, 128], strides = [1, 1]} : vector<8x512xf32> to vector<8x128xf32>
    %412 = arith.negf %411 : vector<8x128xf32>
    %413 = math.exp %412 : vector<8x128xf32>
    %cst_100 = arith.constant 1.000000e+00 : f32
    %414 = vector.broadcast %cst_100 : f32 to vector<8x128xf32>
    %415 = arith.addf %414, %413 : vector<8x128xf32>
    %416 = arith.divf %414, %415 : vector<8x128xf32>
    %417 = arith.mulf %408, %385 : vector<8x128xf32>
    %418 = arith.mulf %402, %410 : vector<8x128xf32>
    %419 = arith.addf %417, %418 : vector<8x128xf32>
    %420 = math.tanh %419 : vector<8x128xf32>
    %421 = arith.mulf %416, %420 : vector<8x128xf32>
    %422 = arith.index_cast %391 : i32 to index
    %c0_101 = arith.constant 0 : index
    %423 = vector.load %arg20[%422, %c0_101] : memref<96x256xf32, #tpu.memory_space<vmem>>, vector<8x128xf32>
    tpu.vector_store %arg20[%422, %c0_101], %421 {strides = array<i32>} : memref<96x256xf32, #tpu.memory_space<vmem>>, vector<8x128xf32>,
    %c12_i32 = arith.constant 12 : i32
    %c0_102 = arith.constant 0 : index
    %c0_103 = arith.constant 0 : index
    %c0_104 = arith.constant 0 : index
    %424 = vector.load %arg14[%c0_102, %c0_103, %c0_104] : memref<4x8x128xf32, #tpu.memory_space<vmem>>, vector<1x8x128xf32>
    %425 = vector.shape_cast %424 : vector<1x8x128xf32> to vector<8x128xf32>
    %426 = vector.shape_cast %421 : vector<8x128xf32> to vector<1x8x128xf32>
    tpu.vector_store %arg14[%c0_102, %c0_103, %c0_104], %426 {strides = array<i32>} : memref<4x8x128xf32, #tpu.memory_space<vmem>>, vector<1x8x128xf32>,
    %c0_105 = arith.constant 0 : index
    %c0_106 = arith.constant 0 : index
    %c0_107 = arith.constant 0 : index
    %427 = vector.load %arg15[%c0_105, %c0_106, %c0_107] : memref<4x8x128xf32, #tpu.memory_space<vmem>>, vector<1x8x128xf32>
    %428 = vector.shape_cast %427 : vector<1x8x128xf32> to vector<8x128xf32>
    %429 = vector.shape_cast %419 : vector<8x128xf32> to vector<1x8x128xf32>
    tpu.vector_store %arg15[%c0_105, %c0_106, %c0_107], %429 {strides = array<i32>} : memref<4x8x128xf32, #tpu.memory_space<vmem>>, vector<1x8x128xf32>,
    %c0_108 = arith.constant 0 : index
    %c0_109 = arith.constant 0 : index
    %430 = vector.load %arg5[%c0_108, %c0_109] : memref<128x512xbf16, #tpu.memory_space<vmem>>, vector<128x512xbf16>
    %cst_110 = arith.constant 0.000000e+00 : f32
    %431 = vector.broadcast %cst_110 : f32 to vector<8x128xf32>
    %cst_111 = arith.constant 0.000000e+00 : f32
    %432 = vector.broadcast %cst_111 : f32 to vector<8x128xf32>
    %c0_i32_112 = arith.constant 0 : i32
    %c11_i32_113 = arith.constant 11 : i32
    %433 = arith.subi %c11_i32_113, %c0_i32_112 : i32
    %c8_i32_114 = arith.constant 8 : i32
    %434 = arith.muli %433, %c8_i32_114 : i32
    %435 = tpu.assume_multiple %434, 8 : i32
    %436 = arith.index_cast %435 : i32 to index
    %c0_115 = arith.constant 0 : index
    %437 = vector.load %arg17[%436, %c0_115] : memref<96x512xf32, #tpu.memory_space<vmem>>, vector<8x512xf32>
    %438 = arith.truncf %431 : vector<8x128xf32> to vector<8x128xbf16>
    %cst_116 = arith.constant dense<0.000000e+00> : vector<8x512xf32>
    %439 = tpu.matmul %438, %430, %cst_116 {dimension_numbers = #tpu.dot_dimension_numbers<[1], [0], [0], [1], [0, 0, 1, 1], [], []>} : vector<8x128xbf16>, vector<128x512xbf16>, vector<8x512xf32> -> vector<8x512xf32>
    %440 = arith.addf %437, %439 : vector<8x512xf32>
    %441 = vector.extract_strided_slice %440 {offsets = [0, 0], sizes = [8, 128], strides = [1, 1]} : vector<8x512xf32> to vector<8x128xf32>
    %442 = arith.negf %441 : vector<8x128xf32>
    %443 = math.exp %442 : vector<8x128xf32>
    %cst_117 = arith.constant 1.000000e+00 : f32
    %444 = vector.broadcast %cst_117 : f32 to vector<8x128xf32>
    %445 = arith.addf %444, %443 : vector<8x128xf32>
    %446 = arith.divf %444, %445 : vector<8x128xf32>
    %447 = vector.extract_strided_slice %440 {offsets = [0, 128], sizes = [8, 128], strides = [1, 1]} : vector<8x512xf32> to vector<8x128xf32>
    %448 = arith.negf %447 : vector<8x128xf32>
    %449 = math.exp %448 : vector<8x128xf32>
    %cst_118 = arith.constant 1.000000e+00 : f32
    %450 = vector.broadcast %cst_118 : f32 to vector<8x128xf32>
    %451 = arith.addf %450, %449 : vector<8x128xf32>
    %452 = arith.divf %450, %451 : vector<8x128xf32>
    %453 = vector.extract_strided_slice %440 {offsets = [0, 256], sizes = [8, 128], strides = [1, 1]} : vector<8x512xf32> to vector<8x128xf32>
    %454 = math.tanh %453 : vector<8x128xf32>
    %455 = vector.extract_strided_slice %440 {offsets = [0, 384], sizes = [8, 128], strides = [1, 1]} : vector<8x512xf32> to vector<8x128xf32>
    %456 = arith.negf %455 : vector<8x128xf32>
    %457 = math.exp %456 : vector<8x128xf32>
    %cst_119 = arith.constant 1.000000e+00 : f32
    %458 = vector.broadcast %cst_119 : f32 to vector<8x128xf32>
    %459 = arith.addf %458, %457 : vector<8x128xf32>
    %460 = arith.divf %458, %459 : vector<8x128xf32>
    %461 = arith.mulf %452, %432 : vector<8x128xf32>
    %462 = arith.mulf %446, %454 : vector<8x128xf32>
    %463 = arith.addf %461, %462 : vector<8x128xf32>
    %464 = math.tanh %463 : vector<8x128xf32>
    %465 = arith.mulf %460, %464 : vector<8x128xf32>
    %466 = arith.index_cast %435 : i32 to index
    %c128 = arith.constant 128 : index
    %467 = vector.load %arg20[%466, %c128] : memref<96x256xf32, #tpu.memory_space<vmem>>, vector<8x128xf32>
    tpu.vector_store %arg20[%466, %c128], %465 {strides = array<i32>} : memref<96x256xf32, #tpu.memory_space<vmem>>, vector<8x128xf32>,
    %c1_i32_120 = arith.constant 1 : i32
    %c11_i32_121 = arith.constant 11 : i32
    %468 = arith.subi %c11_i32_121, %c1_i32_120 : i32
    %c8_i32_122 = arith.constant 8 : i32
    %469 = arith.muli %468, %c8_i32_122 : i32
    %470 = tpu.assume_multiple %469, 8 : i32
    %471 = arith.index_cast %470 : i32 to index
    %c0_123 = arith.constant 0 : index
    %472 = vector.load %arg17[%471, %c0_123] : memref<96x512xf32, #tpu.memory_space<vmem>>, vector<8x512xf32>
    %473 = arith.truncf %465 : vector<8x128xf32> to vector<8x128xbf16>
    %cst_124 = arith.constant dense<0.000000e+00> : vector<8x512xf32>
    %474 = tpu.matmul %473, %430, %cst_124 {dimension_numbers = #tpu.dot_dimension_numbers<[1], [0], [0], [1], [0, 0, 1, 1], [], []>} : vector<8x128xbf16>, vector<128x512xbf16>, vector<8x512xf32> -> vector<8x512xf32>
    %475 = arith.addf %472, %474 : vector<8x512xf32>
    %476 = vector.extract_strided_slice %475 {offsets = [0, 0], sizes = [8, 128], strides = [1, 1]} : vector<8x512xf32> to vector<8x128xf32>
    %477 = arith.negf %476 : vector<8x128xf32>
    %478 = math.exp %477 : vector<8x128xf32>
    %cst_125 = arith.constant 1.000000e+00 : f32
    %479 = vector.broadcast %cst_125 : f32 to vector<8x128xf32>
    %480 = arith.addf %479, %478 : vector<8x128xf32>
    %481 = arith.divf %479, %480 : vector<8x128xf32>
    %482 = vector.extract_strided_slice %475 {offsets = [0, 128], sizes = [8, 128], strides = [1, 1]} : vector<8x512xf32> to vector<8x128xf32>
    %483 = arith.negf %482 : vector<8x128xf32>
    %484 = math.exp %483 : vector<8x128xf32>
    %cst_126 = arith.constant 1.000000e+00 : f32
    %485 = vector.broadcast %cst_126 : f32 to vector<8x128xf32>
    %486 = arith.addf %485, %484 : vector<8x128xf32>
    %487 = arith.divf %485, %486 : vector<8x128xf32>
    %488 = vector.extract_strided_slice %475 {offsets = [0, 256], sizes = [8, 128], strides = [1, 1]} : vector<8x512xf32> to vector<8x128xf32>
    %489 = math.tanh %488 : vector<8x128xf32>
    %490 = vector.extract_strided_slice %475 {offsets = [0, 384], sizes = [8, 128], strides = [1, 1]} : vector<8x512xf32> to vector<8x128xf32>
    %491 = arith.negf %490 : vector<8x128xf32>
    %492 = math.exp %491 : vector<8x128xf32>
    %cst_127 = arith.constant 1.000000e+00 : f32
    %493 = vector.broadcast %cst_127 : f32 to vector<8x128xf32>
    %494 = arith.addf %493, %492 : vector<8x128xf32>
    %495 = arith.divf %493, %494 : vector<8x128xf32>
    %496 = arith.mulf %487, %463 : vector<8x128xf32>
    %497 = arith.mulf %481, %489 : vector<8x128xf32>
    %498 = arith.addf %496, %497 : vector<8x128xf32>
    %499 = math.tanh %498 : vector<8x128xf32>
    %500 = arith.mulf %495, %499 : vector<8x128xf32>
    %501 = arith.index_cast %470 : i32 to index
    %c128_128 = arith.constant 128 : index
    %502 = vector.load %arg20[%501, %c128_128] : memref<96x256xf32, #tpu.memory_space<vmem>>, vector<8x128xf32>
    tpu.vector_store %arg20[%501, %c128_128], %500 {strides = array<i32>} : memref<96x256xf32, #tpu.memory_space<vmem>>, vector<8x128xf32>,
    %c2_i32_129 = arith.constant 2 : i32
    %c11_i32_130 = arith.constant 11 : i32
    %503 = arith.subi %c11_i32_130, %c2_i32_129 : i32
    %c8_i32_131 = arith.constant 8 : i32
    %504 = arith.muli %503, %c8_i32_131 : i32
    %505 = tpu.assume_multiple %504, 8 : i32
    %506 = arith.index_cast %505 : i32 to index
    %c0_132 = arith.constant 0 : index
    %507 = vector.load %arg17[%506, %c0_132] : memref<96x512xf32, #tpu.memory_space<vmem>>, vector<8x512xf32>
    %508 = arith.truncf %500 : vector<8x128xf32> to vector<8x128xbf16>
    %cst_133 = arith.constant dense<0.000000e+00> : vector<8x512xf32>
    %509 = tpu.matmul %508, %430, %cst_133 {dimension_numbers = #tpu.dot_dimension_numbers<[1], [0], [0], [1], [0, 0, 1, 1], [], []>} : vector<8x128xbf16>, vector<128x512xbf16>, vector<8x512xf32> -> vector<8x512xf32>
    %510 = arith.addf %507, %509 : vector<8x512xf32>
    %511 = vector.extract_strided_slice %510 {offsets = [0, 0], sizes = [8, 128], strides = [1, 1]} : vector<8x512xf32> to vector<8x128xf32>
    %512 = arith.negf %511 : vector<8x128xf32>
    %513 = math.exp %512 : vector<8x128xf32>
    %cst_134 = arith.constant 1.000000e+00 : f32
    %514 = vector.broadcast %cst_134 : f32 to vector<8x128xf32>
    %515 = arith.addf %514, %513 : vector<8x128xf32>
    %516 = arith.divf %514, %515 : vector<8x128xf32>
    %517 = vector.extract_strided_slice %510 {offsets = [0, 128], sizes = [8, 128], strides = [1, 1]} : vector<8x512xf32> to vector<8x128xf32>
    %518 = arith.negf %517 : vector<8x128xf32>
    %519 = math.exp %518 : vector<8x128xf32>
    %cst_135 = arith.constant 1.000000e+00 : f32
    %520 = vector.broadcast %cst_135 : f32 to vector<8x128xf32>
    %521 = arith.addf %520, %519 : vector<8x128xf32>
    %522 = arith.divf %520, %521 : vector<8x128xf32>
    %523 = vector.extract_strided_slice %510 {offsets = [0, 256], sizes = [8, 128], strides = [1, 1]} : vector<8x512xf32> to vector<8x128xf32>
    %524 = math.tanh %523 : vector<8x128xf32>
    %525 = vector.extract_strided_slice %510 {offsets = [0, 384], sizes = [8, 128], strides = [1, 1]} : vector<8x512xf32> to vector<8x128xf32>
    %526 = arith.negf %525 : vector<8x128xf32>
    %527 = math.exp %526 : vector<8x128xf32>
    %cst_136 = arith.constant 1.000000e+00 : f32
    %528 = vector.broadcast %cst_136 : f32 to vector<8x128xf32>
    %529 = arith.addf %528, %527 : vector<8x128xf32>
    %530 = arith.divf %528, %529 : vector<8x128xf32>
    %531 = arith.mulf %522, %498 : vector<8x128xf32>
    %532 = arith.mulf %516, %524 : vector<8x128xf32>
    %533 = arith.addf %531, %532 : vector<8x128xf32>
    %534 = math.tanh %533 : vector<8x128xf32>
    %535 = arith.mulf %530, %534 : vector<8x128xf32>
    %536 = arith.index_cast %505 : i32 to index
    %c128_137 = arith.constant 128 : index
    %537 = vector.load %arg20[%536, %c128_137] : memref<96x256xf32, #tpu.memory_space<vmem>>, vector<8x128xf32>
    tpu.vector_store %arg20[%536, %c128_137], %535 {strides = array<i32>} : memref<96x256xf32, #tpu.memory_space<vmem>>, vector<8x128xf32>,
    %c3_i32_138 = arith.constant 3 : i32
    %c11_i32_139 = arith.constant 11 : i32
    %538 = arith.subi %c11_i32_139, %c3_i32_138 : i32
    %c8_i32_140 = arith.constant 8 : i32
    %539 = arith.muli %538, %c8_i32_140 : i32
    %540 = tpu.assume_multiple %539, 8 : i32
    %541 = arith.index_cast %540 : i32 to index
    %c0_141 = arith.constant 0 : index
    %542 = vector.load %arg17[%541, %c0_141] : memref<96x512xf32, #tpu.memory_space<vmem>>, vector<8x512xf32>
    %543 = arith.truncf %535 : vector<8x128xf32> to vector<8x128xbf16>
    %cst_142 = arith.constant dense<0.000000e+00> : vector<8x512xf32>
    %544 = tpu.matmul %543, %430, %cst_142 {dimension_numbers = #tpu.dot_dimension_numbers<[1], [0], [0], [1], [0, 0, 1, 1], [], []>} : vector<8x128xbf16>, vector<128x512xbf16>, vector<8x512xf32> -> vector<8x512xf32>
    %545 = arith.addf %542, %544 : vector<8x512xf32>
    %546 = vector.extract_strided_slice %545 {offsets = [0, 0], sizes = [8, 128], strides = [1, 1]} : vector<8x512xf32> to vector<8x128xf32>
    %547 = arith.negf %546 : vector<8x128xf32>
    %548 = math.exp %547 : vector<8x128xf32>
    %cst_143 = arith.constant 1.000000e+00 : f32
    %549 = vector.broadcast %cst_143 : f32 to vector<8x128xf32>
    %550 = arith.addf %549, %548 : vector<8x128xf32>
    %551 = arith.divf %549, %550 : vector<8x128xf32>
    %552 = vector.extract_strided_slice %545 {offsets = [0, 128], sizes = [8, 128], strides = [1, 1]} : vector<8x512xf32> to vector<8x128xf32>
    %553 = arith.negf %552 : vector<8x128xf32>
    %554 = math.exp %553 : vector<8x128xf32>
    %cst_144 = arith.constant 1.000000e+00 : f32
    %555 = vector.broadcast %cst_144 : f32 to vector<8x128xf32>
    %556 = arith.addf %555, %554 : vector<8x128xf32>
    %557 = arith.divf %555, %556 : vector<8x128xf32>
    %558 = vector.extract_strided_slice %545 {offsets = [0, 256], sizes = [8, 128], strides = [1, 1]} : vector<8x512xf32> to vector<8x128xf32>
    %559 = math.tanh %558 : vector<8x128xf32>
    %560 = vector.extract_strided_slice %545 {offsets = [0, 384], sizes = [8, 128], strides = [1, 1]} : vector<8x512xf32> to vector<8x128xf32>
    %561 = arith.negf %560 : vector<8x128xf32>
    %562 = math.exp %561 : vector<8x128xf32>
    %cst_145 = arith.constant 1.000000e+00 : f32
    %563 = vector.broadcast %cst_145 : f32 to vector<8x128xf32>
    %564 = arith.addf %563, %562 : vector<8x128xf32>
    %565 = arith.divf %563, %564 : vector<8x128xf32>
    %566 = arith.mulf %557, %533 : vector<8x128xf32>
    %567 = arith.mulf %551, %559 : vector<8x128xf32>
    %568 = arith.addf %566, %567 : vector<8x128xf32>
    %569 = math.tanh %568 : vector<8x128xf32>
    %570 = arith.mulf %565, %569 : vector<8x128xf32>
    %571 = arith.index_cast %540 : i32 to index
    %c128_146 = arith.constant 128 : index
    %572 = vector.load %arg20[%571, %c128_146] : memref<96x256xf32, #tpu.memory_space<vmem>>, vector<8x128xf32>
    tpu.vector_store %arg20[%571, %c128_146], %570 {strides = array<i32>} : memref<96x256xf32, #tpu.memory_space<vmem>>, vector<8x128xf32>,
    %c4_i32_147 = arith.constant 4 : i32
    %c11_i32_148 = arith.constant 11 : i32
    %573 = arith.subi %c11_i32_148, %c4_i32_147 : i32
    %c8_i32_149 = arith.constant 8 : i32
    %574 = arith.muli %573, %c8_i32_149 : i32
    %575 = tpu.assume_multiple %574, 8 : i32
    %576 = arith.index_cast %575 : i32 to index
    %c0_150 = arith.constant 0 : index
    %577 = vector.load %arg17[%576, %c0_150] : memref<96x512xf32, #tpu.memory_space<vmem>>, vector<8x512xf32>
    %578 = arith.truncf %570 : vector<8x128xf32> to vector<8x128xbf16>
    %cst_151 = arith.constant dense<0.000000e+00> : vector<8x512xf32>
    %579 = tpu.matmul %578, %430, %cst_151 {dimension_numbers = #tpu.dot_dimension_numbers<[1], [0], [0], [1], [0, 0, 1, 1], [], []>} : vector<8x128xbf16>, vector<128x512xbf16>, vector<8x512xf32> -> vector<8x512xf32>
    %580 = arith.addf %577, %579 : vector<8x512xf32>
    %581 = vector.extract_strided_slice %580 {offsets = [0, 0], sizes = [8, 128], strides = [1, 1]} : vector<8x512xf32> to vector<8x128xf32>
    %582 = arith.negf %581 : vector<8x128xf32>
    %583 = math.exp %582 : vector<8x128xf32>
    %cst_152 = arith.constant 1.000000e+00 : f32
    %584 = vector.broadcast %cst_152 : f32 to vector<8x128xf32>
    %585 = arith.addf %584, %583 : vector<8x128xf32>
    %586 = arith.divf %584, %585 : vector<8x128xf32>
    %587 = vector.extract_strided_slice %580 {offsets = [0, 128], sizes = [8, 128], strides = [1, 1]} : vector<8x512xf32> to vector<8x128xf32>
    %588 = arith.negf %587 : vector<8x128xf32>
    %589 = math.exp %588 : vector<8x128xf32>
    %cst_153 = arith.constant 1.000000e+00 : f32
    %590 = vector.broadcast %cst_153 : f32 to vector<8x128xf32>
    %591 = arith.addf %590, %589 : vector<8x128xf32>
    %592 = arith.divf %590, %591 : vector<8x128xf32>
    %593 = vector.extract_strided_slice %580 {offsets = [0, 256], sizes = [8, 128], strides = [1, 1]} : vector<8x512xf32> to vector<8x128xf32>
    %594 = math.tanh %593 : vector<8x128xf32>
    %595 = vector.extract_strided_slice %580 {offsets = [0, 384], sizes = [8, 128], strides = [1, 1]} : vector<8x512xf32> to vector<8x128xf32>
    %596 = arith.negf %595 : vector<8x128xf32>
    %597 = math.exp %596 : vector<8x128xf32>
    %cst_154 = arith.constant 1.000000e+00 : f32
    %598 = vector.broadcast %cst_154 : f32 to vector<8x128xf32>
    %599 = arith.addf %598, %597 : vector<8x128xf32>
    %600 = arith.divf %598, %599 : vector<8x128xf32>
    %601 = arith.mulf %592, %568 : vector<8x128xf32>
    %602 = arith.mulf %586, %594 : vector<8x128xf32>
    %603 = arith.addf %601, %602 : vector<8x128xf32>
    %604 = math.tanh %603 : vector<8x128xf32>
    %605 = arith.mulf %600, %604 : vector<8x128xf32>
    %606 = arith.index_cast %575 : i32 to index
    %c128_155 = arith.constant 128 : index
    %607 = vector.load %arg20[%606, %c128_155] : memref<96x256xf32, #tpu.memory_space<vmem>>, vector<8x128xf32>
    tpu.vector_store %arg20[%606, %c128_155], %605 {strides = array<i32>} : memref<96x256xf32, #tpu.memory_space<vmem>>, vector<8x128xf32>,
    %c5_i32_156 = arith.constant 5 : i32
    %c11_i32_157 = arith.constant 11 : i32
    %608 = arith.subi %c11_i32_157, %c5_i32_156 : i32
    %c8_i32_158 = arith.constant 8 : i32
    %609 = arith.muli %608, %c8_i32_158 : i32
    %610 = tpu.assume_multiple %609, 8 : i32
    %611 = arith.index_cast %610 : i32 to index
    %c0_159 = arith.constant 0 : index
    %612 = vector.load %arg17[%611, %c0_159] : memref<96x512xf32, #tpu.memory_space<vmem>>, vector<8x512xf32>
    %613 = arith.truncf %605 : vector<8x128xf32> to vector<8x128xbf16>
    %cst_160 = arith.constant dense<0.000000e+00> : vector<8x512xf32>
    %614 = tpu.matmul %613, %430, %cst_160 {dimension_numbers = #tpu.dot_dimension_numbers<[1], [0], [0], [1], [0, 0, 1, 1], [], []>} : vector<8x128xbf16>, vector<128x512xbf16>, vector<8x512xf32> -> vector<8x512xf32>
    %615 = arith.addf %612, %614 : vector<8x512xf32>
    %616 = vector.extract_strided_slice %615 {offsets = [0, 0], sizes = [8, 128], strides = [1, 1]} : vector<8x512xf32> to vector<8x128xf32>
    %617 = arith.negf %616 : vector<8x128xf32>
    %618 = math.exp %617 : vector<8x128xf32>
    %cst_161 = arith.constant 1.000000e+00 : f32
    %619 = vector.broadcast %cst_161 : f32 to vector<8x128xf32>
    %620 = arith.addf %619, %618 : vector<8x128xf32>
    %621 = arith.divf %619, %620 : vector<8x128xf32>
    %622 = vector.extract_strided_slice %615 {offsets = [0, 128], sizes = [8, 128], strides = [1, 1]} : vector<8x512xf32> to vector<8x128xf32>
    %623 = arith.negf %622 : vector<8x128xf32>
    %624 = math.exp %623 : vector<8x128xf32>
    %cst_162 = arith.constant 1.000000e+00 : f32
    %625 = vector.broadcast %cst_162 : f32 to vector<8x128xf32>
    %626 = arith.addf %625, %624 : vector<8x128xf32>
    %627 = arith.divf %625, %626 : vector<8x128xf32>
    %628 = vector.extract_strided_slice %615 {offsets = [0, 256], sizes = [8, 128], strides = [1, 1]} : vector<8x512xf32> to vector<8x128xf32>
    %629 = math.tanh %628 : vector<8x128xf32>
    %630 = vector.extract_strided_slice %615 {offsets = [0, 384], sizes = [8, 128], strides = [1, 1]} : vector<8x512xf32> to vector<8x128xf32>
    %631 = arith.negf %630 : vector<8x128xf32>
    %632 = math.exp %631 : vector<8x128xf32>
    %cst_163 = arith.constant 1.000000e+00 : f32
    %633 = vector.broadcast %cst_163 : f32 to vector<8x128xf32>
    %634 = arith.addf %633, %632 : vector<8x128xf32>
    %635 = arith.divf %633, %634 : vector<8x128xf32>
    %636 = arith.mulf %627, %603 : vector<8x128xf32>
    %637 = arith.mulf %621, %629 : vector<8x128xf32>
    %638 = arith.addf %636, %637 : vector<8x128xf32>
    %639 = math.tanh %638 : vector<8x128xf32>
    %640 = arith.mulf %635, %639 : vector<8x128xf32>
    %641 = arith.index_cast %610 : i32 to index
    %c128_164 = arith.constant 128 : index
    %642 = vector.load %arg20[%641, %c128_164] : memref<96x256xf32, #tpu.memory_space<vmem>>, vector<8x128xf32>
    tpu.vector_store %arg20[%641, %c128_164], %640 {strides = array<i32>} : memref<96x256xf32, #tpu.memory_space<vmem>>, vector<8x128xf32>,
    %c6_i32_165 = arith.constant 6 : i32
    %c11_i32_166 = arith.constant 11 : i32
    %643 = arith.subi %c11_i32_166, %c6_i32_165 : i32
    %c8_i32_167 = arith.constant 8 : i32
    %644 = arith.muli %643, %c8_i32_167 : i32
    %645 = tpu.assume_multiple %644, 8 : i32
    %646 = arith.index_cast %645 : i32 to index
    %c0_168 = arith.constant 0 : index
    %647 = vector.load %arg17[%646, %c0_168] : memref<96x512xf32, #tpu.memory_space<vmem>>, vector<8x512xf32>
    %648 = arith.truncf %640 : vector<8x128xf32> to vector<8x128xbf16>
    %cst_169 = arith.constant dense<0.000000e+00> : vector<8x512xf32>
    %649 = tpu.matmul %648, %430, %cst_169 {dimension_numbers = #tpu.dot_dimension_numbers<[1], [0], [0], [1], [0, 0, 1, 1], [], []>} : vector<8x128xbf16>, vector<128x512xbf16>, vector<8x512xf32> -> vector<8x512xf32>
    %650 = arith.addf %647, %649 : vector<8x512xf32>
    %651 = vector.extract_strided_slice %650 {offsets = [0, 0], sizes = [8, 128], strides = [1, 1]} : vector<8x512xf32> to vector<8x128xf32>
    %652 = arith.negf %651 : vector<8x128xf32>
    %653 = math.exp %652 : vector<8x128xf32>
    %cst_170 = arith.constant 1.000000e+00 : f32
    %654 = vector.broadcast %cst_170 : f32 to vector<8x128xf32>
    %655 = arith.addf %654, %653 : vector<8x128xf32>
    %656 = arith.divf %654, %655 : vector<8x128xf32>
    %657 = vector.extract_strided_slice %650 {offsets = [0, 128], sizes = [8, 128], strides = [1, 1]} : vector<8x512xf32> to vector<8x128xf32>
    %658 = arith.negf %657 : vector<8x128xf32>
    %659 = math.exp %658 : vector<8x128xf32>
    %cst_171 = arith.constant 1.000000e+00 : f32
    %660 = vector.broadcast %cst_171 : f32 to vector<8x128xf32>
    %661 = arith.addf %660, %659 : vector<8x128xf32>
    %662 = arith.divf %660, %661 : vector<8x128xf32>
    %663 = vector.extract_strided_slice %650 {offsets = [0, 256], sizes = [8, 128], strides = [1, 1]} : vector<8x512xf32> to vector<8x128xf32>
    %664 = math.tanh %663 : vector<8x128xf32>
    %665 = vector.extract_strided_slice %650 {offsets = [0, 384], sizes = [8, 128], strides = [1, 1]} : vector<8x512xf32> to vector<8x128xf32>
    %666 = arith.negf %665 : vector<8x128xf32>
    %667 = math.exp %666 : vector<8x128xf32>
    %cst_172 = arith.constant 1.000000e+00 : f32
    %668 = vector.broadcast %cst_172 : f32 to vector<8x128xf32>
    %669 = arith.addf %668, %667 : vector<8x128xf32>
    %670 = arith.divf %668, %669 : vector<8x128xf32>
    %671 = arith.mulf %662, %638 : vector<8x128xf32>
    %672 = arith.mulf %656, %664 : vector<8x128xf32>
    %673 = arith.addf %671, %672 : vector<8x128xf32>
    %674 = math.tanh %673 : vector<8x128xf32>
    %675 = arith.mulf %670, %674 : vector<8x128xf32>
    %676 = arith.index_cast %645 : i32 to index
    %c128_173 = arith.constant 128 : index
    %677 = vector.load %arg20[%676, %c128_173] : memref<96x256xf32, #tpu.memory_space<vmem>>, vector<8x128xf32>
    tpu.vector_store %arg20[%676, %c128_173], %675 {strides = array<i32>} : memref<96x256xf32, #tpu.memory_space<vmem>>, vector<8x128xf32>,
    %c7_i32_174 = arith.constant 7 : i32
    %c11_i32_175 = arith.constant 11 : i32
    %678 = arith.subi %c11_i32_175, %c7_i32_174 : i32
    %c8_i32_176 = arith.constant 8 : i32
    %679 = arith.muli %678, %c8_i32_176 : i32
    %680 = tpu.assume_multiple %679, 8 : i32
    %681 = arith.index_cast %680 : i32 to index
    %c0_177 = arith.constant 0 : index
    %682 = vector.load %arg17[%681, %c0_177] : memref<96x512xf32, #tpu.memory_space<vmem>>, vector<8x512xf32>
    %683 = arith.truncf %675 : vector<8x128xf32> to vector<8x128xbf16>
    %cst_178 = arith.constant dense<0.000000e+00> : vector<8x512xf32>
    %684 = tpu.matmul %683, %430, %cst_178 {dimension_numbers = #tpu.dot_dimension_numbers<[1], [0], [0], [1], [0, 0, 1, 1], [], []>} : vector<8x128xbf16>, vector<128x512xbf16>, vector<8x512xf32> -> vector<8x512xf32>
    %685 = arith.addf %682, %684 : vector<8x512xf32>
    %686 = vector.extract_strided_slice %685 {offsets = [0, 0], sizes = [8, 128], strides = [1, 1]} : vector<8x512xf32> to vector<8x128xf32>
    %687 = arith.negf %686 : vector<8x128xf32>
    %688 = math.exp %687 : vector<8x128xf32>
    %cst_179 = arith.constant 1.000000e+00 : f32
    %689 = vector.broadcast %cst_179 : f32 to vector<8x128xf32>
    %690 = arith.addf %689, %688 : vector<8x128xf32>
    %691 = arith.divf %689, %690 : vector<8x128xf32>
    %692 = vector.extract_strided_slice %685 {offsets = [0, 128], sizes = [8, 128], strides = [1, 1]} : vector<8x512xf32> to vector<8x128xf32>
    %693 = arith.negf %692 : vector<8x128xf32>
    %694 = math.exp %693 : vector<8x128xf32>
    %cst_180 = arith.constant 1.000000e+00 : f32
    %695 = vector.broadcast %cst_180 : f32 to vector<8x128xf32>
    %696 = arith.addf %695, %694 : vector<8x128xf32>
    %697 = arith.divf %695, %696 : vector<8x128xf32>
    %698 = vector.extract_strided_slice %685 {offsets = [0, 256], sizes = [8, 128], strides = [1, 1]} : vector<8x512xf32> to vector<8x128xf32>
    %699 = math.tanh %698 : vector<8x128xf32>
    %700 = vector.extract_strided_slice %685 {offsets = [0, 384], sizes = [8, 128], strides = [1, 1]} : vector<8x512xf32> to vector<8x128xf32>
    %701 = arith.negf %700 : vector<8x128xf32>
    %702 = math.exp %701 : vector<8x128xf32>
    %cst_181 = arith.constant 1.000000e+00 : f32
    %703 = vector.broadcast %cst_181 : f32 to vector<8x128xf32>
    %704 = arith.addf %703, %702 : vector<8x128xf32>
    %705 = arith.divf %703, %704 : vector<8x128xf32>
    %706 = arith.mulf %697, %673 : vector<8x128xf32>
    %707 = arith.mulf %691, %699 : vector<8x128xf32>
    %708 = arith.addf %706, %707 : vector<8x128xf32>
    %709 = math.tanh %708 : vector<8x128xf32>
    %710 = arith.mulf %705, %709 : vector<8x128xf32>
    %711 = arith.index_cast %680 : i32 to index
    %c128_182 = arith.constant 128 : index
    %712 = vector.load %arg20[%711, %c128_182] : memref<96x256xf32, #tpu.memory_space<vmem>>, vector<8x128xf32>
    tpu.vector_store %arg20[%711, %c128_182], %710 {strides = array<i32>} : memref<96x256xf32, #tpu.memory_space<vmem>>, vector<8x128xf32>,
    %c8_i32_183 = arith.constant 8 : i32
    %c11_i32_184 = arith.constant 11 : i32
    %713 = arith.subi %c11_i32_184, %c8_i32_183 : i32
    %c8_i32_185 = arith.constant 8 : i32
    %714 = arith.muli %713, %c8_i32_185 : i32
    %715 = tpu.assume_multiple %714, 8 : i32
    %716 = arith.index_cast %715 : i32 to index
    %c0_186 = arith.constant 0 : index
    %717 = vector.load %arg17[%716, %c0_186] : memref<96x512xf32, #tpu.memory_space<vmem>>, vector<8x512xf32>
    %718 = arith.truncf %710 : vector<8x128xf32> to vector<8x128xbf16>
    %cst_187 = arith.constant dense<0.000000e+00> : vector<8x512xf32>
    %719 = tpu.matmul %718, %430, %cst_187 {dimension_numbers = #tpu.dot_dimension_numbers<[1], [0], [0], [1], [0, 0, 1, 1], [], []>} : vector<8x128xbf16>, vector<128x512xbf16>, vector<8x512xf32> -> vector<8x512xf32>
    %720 = arith.addf %717, %719 : vector<8x512xf32>
    %721 = vector.extract_strided_slice %720 {offsets = [0, 0], sizes = [8, 128], strides = [1, 1]} : vector<8x512xf32> to vector<8x128xf32>
    %722 = arith.negf %721 : vector<8x128xf32>
    %723 = math.exp %722 : vector<8x128xf32>
    %cst_188 = arith.constant 1.000000e+00 : f32
    %724 = vector.broadcast %cst_188 : f32 to vector<8x128xf32>
    %725 = arith.addf %724, %723 : vector<8x128xf32>
    %726 = arith.divf %724, %725 : vector<8x128xf32>
    %727 = vector.extract_strided_slice %720 {offsets = [0, 128], sizes = [8, 128], strides = [1, 1]} : vector<8x512xf32> to vector<8x128xf32>
    %728 = arith.negf %727 : vector<8x128xf32>
    %729 = math.exp %728 : vector<8x128xf32>
    %cst_189 = arith.constant 1.000000e+00 : f32
    %730 = vector.broadcast %cst_189 : f32 to vector<8x128xf32>
    %731 = arith.addf %730, %729 : vector<8x128xf32>
    %732 = arith.divf %730, %731 : vector<8x128xf32>
    %733 = vector.extract_strided_slice %720 {offsets = [0, 256], sizes = [8, 128], strides = [1, 1]} : vector<8x512xf32> to vector<8x128xf32>
    %734 = math.tanh %733 : vector<8x128xf32>
    %735 = vector.extract_strided_slice %720 {offsets = [0, 384], sizes = [8, 128], strides = [1, 1]} : vector<8x512xf32> to vector<8x128xf32>
    %736 = arith.negf %735 : vector<8x128xf32>
    %737 = math.exp %736 : vector<8x128xf32>
    %cst_190 = arith.constant 1.000000e+00 : f32
    %738 = vector.broadcast %cst_190 : f32 to vector<8x128xf32>
    %739 = arith.addf %738, %737 : vector<8x128xf32>
    %740 = arith.divf %738, %739 : vector<8x128xf32>
    %741 = arith.mulf %732, %708 : vector<8x128xf32>
    %742 = arith.mulf %726, %734 : vector<8x128xf32>
    %743 = arith.addf %741, %742 : vector<8x128xf32>
    %744 = math.tanh %743 : vector<8x128xf32>
    %745 = arith.mulf %740, %744 : vector<8x128xf32>
    %746 = arith.index_cast %715 : i32 to index
    %c128_191 = arith.constant 128 : index
    %747 = vector.load %arg20[%746, %c128_191] : memref<96x256xf32, #tpu.memory_space<vmem>>, vector<8x128xf32>
    tpu.vector_store %arg20[%746, %c128_191], %745 {strides = array<i32>} : memref<96x256xf32, #tpu.memory_space<vmem>>, vector<8x128xf32>,
    %c9_i32_192 = arith.constant 9 : i32
    %c11_i32_193 = arith.constant 11 : i32
    %748 = arith.subi %c11_i32_193, %c9_i32_192 : i32
    %c8_i32_194 = arith.constant 8 : i32
    %749 = arith.muli %748, %c8_i32_194 : i32
    %750 = tpu.assume_multiple %749, 8 : i32
    %751 = arith.index_cast %750 : i32 to index
    %c0_195 = arith.constant 0 : index
    %752 = vector.load %arg17[%751, %c0_195] : memref<96x512xf32, #tpu.memory_space<vmem>>, vector<8x512xf32>
    %753 = arith.truncf %745 : vector<8x128xf32> to vector<8x128xbf16>
    %cst_196 = arith.constant dense<0.000000e+00> : vector<8x512xf32>
    %754 = tpu.matmul %753, %430, %cst_196 {dimension_numbers = #tpu.dot_dimension_numbers<[1], [0], [0], [1], [0, 0, 1, 1], [], []>} : vector<8x128xbf16>, vector<128x512xbf16>, vector<8x512xf32> -> vector<8x512xf32>
    %755 = arith.addf %752, %754 : vector<8x512xf32>
    %756 = vector.extract_strided_slice %755 {offsets = [0, 0], sizes = [8, 128], strides = [1, 1]} : vector<8x512xf32> to vector<8x128xf32>
    %757 = arith.negf %756 : vector<8x128xf32>
    %758 = math.exp %757 : vector<8x128xf32>
    %cst_197 = arith.constant 1.000000e+00 : f32
    %759 = vector.broadcast %cst_197 : f32 to vector<8x128xf32>
    %760 = arith.addf %759, %758 : vector<8x128xf32>
    %761 = arith.divf %759, %760 : vector<8x128xf32>
    %762 = vector.extract_strided_slice %755 {offsets = [0, 128], sizes = [8, 128], strides = [1, 1]} : vector<8x512xf32> to vector<8x128xf32>
    %763 = arith.negf %762 : vector<8x128xf32>
    %764 = math.exp %763 : vector<8x128xf32>
    %cst_198 = arith.constant 1.000000e+00 : f32
    %765 = vector.broadcast %cst_198 : f32 to vector<8x128xf32>
    %766 = arith.addf %765, %764 : vector<8x128xf32>
    %767 = arith.divf %765, %766 : vector<8x128xf32>
    %768 = vector.extract_strided_slice %755 {offsets = [0, 256], sizes = [8, 128], strides = [1, 1]} : vector<8x512xf32> to vector<8x128xf32>
    %769 = math.tanh %768 : vector<8x128xf32>
    %770 = vector.extract_strided_slice %755 {offsets = [0, 384], sizes = [8, 128], strides = [1, 1]} : vector<8x512xf32> to vector<8x128xf32>
    %771 = arith.negf %770 : vector<8x128xf32>
    %772 = math.exp %771 : vector<8x128xf32>
    %cst_199 = arith.constant 1.000000e+00 : f32
    %773 = vector.broadcast %cst_199 : f32 to vector<8x128xf32>
    %774 = arith.addf %773, %772 : vector<8x128xf32>
    %775 = arith.divf %773, %774 : vector<8x128xf32>
    %776 = arith.mulf %767, %743 : vector<8x128xf32>
    %777 = arith.mulf %761, %769 : vector<8x128xf32>
    %778 = arith.addf %776, %777 : vector<8x128xf32>
    %779 = math.tanh %778 : vector<8x128xf32>
    %780 = arith.mulf %775, %779 : vector<8x128xf32>
    %781 = arith.index_cast %750 : i32 to index
    %c128_200 = arith.constant 128 : index
    %782 = vector.load %arg20[%781, %c128_200] : memref<96x256xf32, #tpu.memory_space<vmem>>, vector<8x128xf32>
    tpu.vector_store %arg20[%781, %c128_200], %780 {strides = array<i32>} : memref<96x256xf32, #tpu.memory_space<vmem>>, vector<8x128xf32>,
    %c10_i32_201 = arith.constant 10 : i32
    %c11_i32_202 = arith.constant 11 : i32
    %783 = arith.subi %c11_i32_202, %c10_i32_201 : i32
    %c8_i32_203 = arith.constant 8 : i32
    %784 = arith.muli %783, %c8_i32_203 : i32
    %785 = tpu.assume_multiple %784, 8 : i32
    %786 = arith.index_cast %785 : i32 to index
    %c0_204 = arith.constant 0 : index
    %787 = vector.load %arg17[%786, %c0_204] : memref<96x512xf32, #tpu.memory_space<vmem>>, vector<8x512xf32>
    %788 = arith.truncf %780 : vector<8x128xf32> to vector<8x128xbf16>
    %cst_205 = arith.constant dense<0.000000e+00> : vector<8x512xf32>
    %789 = tpu.matmul %788, %430, %cst_205 {dimension_numbers = #tpu.dot_dimension_numbers<[1], [0], [0], [1], [0, 0, 1, 1], [], []>} : vector<8x128xbf16>, vector<128x512xbf16>, vector<8x512xf32> -> vector<8x512xf32>
    %790 = arith.addf %787, %789 : vector<8x512xf32>
    %791 = vector.extract_strided_slice %790 {offsets = [0, 0], sizes = [8, 128], strides = [1, 1]} : vector<8x512xf32> to vector<8x128xf32>
    %792 = arith.negf %791 : vector<8x128xf32>
    %793 = math.exp %792 : vector<8x128xf32>
    %cst_206 = arith.constant 1.000000e+00 : f32
    %794 = vector.broadcast %cst_206 : f32 to vector<8x128xf32>
    %795 = arith.addf %794, %793 : vector<8x128xf32>
    %796 = arith.divf %794, %795 : vector<8x128xf32>
    %797 = vector.extract_strided_slice %790 {offsets = [0, 128], sizes = [8, 128], strides = [1, 1]} : vector<8x512xf32> to vector<8x128xf32>
    %798 = arith.negf %797 : vector<8x128xf32>
    %799 = math.exp %798 : vector<8x128xf32>
    %cst_207 = arith.constant 1.000000e+00 : f32
    %800 = vector.broadcast %cst_207 : f32 to vector<8x128xf32>
    %801 = arith.addf %800, %799 : vector<8x128xf32>
    %802 = arith.divf %800, %801 : vector<8x128xf32>
    %803 = vector.extract_strided_slice %790 {offsets = [0, 256], sizes = [8, 128], strides = [1, 1]} : vector<8x512xf32> to vector<8x128xf32>
    %804 = math.tanh %803 : vector<8x128xf32>
    %805 = vector.extract_strided_slice %790 {offsets = [0, 384], sizes = [8, 128], strides = [1, 1]} : vector<8x512xf32> to vector<8x128xf32>
    %806 = arith.negf %805 : vector<8x128xf32>
    %807 = math.exp %806 : vector<8x128xf32>
    %cst_208 = arith.constant 1.000000e+00 : f32
    %808 = vector.broadcast %cst_208 : f32 to vector<8x128xf32>
    %809 = arith.addf %808, %807 : vector<8x128xf32>
    %810 = arith.divf %808, %809 : vector<8x128xf32>
    %811 = arith.mulf %802, %778 : vector<8x128xf32>
    %812 = arith.mulf %796, %804 : vector<8x128xf32>
    %813 = arith.addf %811, %812 : vector<8x128xf32>
    %814 = math.tanh %813 : vector<8x128xf32>
    %815 = arith.mulf %810, %814 : vector<8x128xf32>
    %816 = arith.index_cast %785 : i32 to index
    %c128_209 = arith.constant 128 : index
    %817 = vector.load %arg20[%816, %c128_209] : memref<96x256xf32, #tpu.memory_space<vmem>>, vector<8x128xf32>
    tpu.vector_store %arg20[%816, %c128_209], %815 {strides = array<i32>} : memref<96x256xf32, #tpu.memory_space<vmem>>, vector<8x128xf32>,
    %c11_i32_210 = arith.constant 11 : i32
    %c11_i32_211 = arith.constant 11 : i32
    %818 = arith.subi %c11_i32_211, %c11_i32_210 : i32
    %c8_i32_212 = arith.constant 8 : i32
    %819 = arith.muli %818, %c8_i32_212 : i32
    %820 = tpu.assume_multiple %819, 8 : i32
    %821 = arith.index_cast %820 : i32 to index
    %c0_213 = arith.constant 0 : index
    %822 = vector.load %arg17[%821, %c0_213] : memref<96x512xf32, #tpu.memory_space<vmem>>, vector<8x512xf32>
    %823 = arith.truncf %815 : vector<8x128xf32> to vector<8x128xbf16>
    %cst_214 = arith.constant dense<0.000000e+00> : vector<8x512xf32>
    %824 = tpu.matmul %823, %430, %cst_214 {dimension_numbers = #tpu.dot_dimension_numbers<[1], [0], [0], [1], [0, 0, 1, 1], [], []>} : vector<8x128xbf16>, vector<128x512xbf16>, vector<8x512xf32> -> vector<8x512xf32>
    %825 = arith.addf %822, %824 : vector<8x512xf32>
    %826 = vector.extract_strided_slice %825 {offsets = [0, 0], sizes = [8, 128], strides = [1, 1]} : vector<8x512xf32> to vector<8x128xf32>
    %827 = arith.negf %826 : vector<8x128xf32>
    %828 = math.exp %827 : vector<8x128xf32>
    %cst_215 = arith.constant 1.000000e+00 : f32
    %829 = vector.broadcast %cst_215 : f32 to vector<8x128xf32>
    %830 = arith.addf %829, %828 : vector<8x128xf32>
    %831 = arith.divf %829, %830 : vector<8x128xf32>
    %832 = vector.extract_strided_slice %825 {offsets = [0, 128], sizes = [8, 128], strides = [1, 1]} : vector<8x512xf32> to vector<8x128xf32>
    %833 = arith.negf %832 : vector<8x128xf32>
    %834 = math.exp %833 : vector<8x128xf32>
    %cst_216 = arith.constant 1.000000e+00 : f32
    %835 = vector.broadcast %cst_216 : f32 to vector<8x128xf32>
    %836 = arith.addf %835, %834 : vector<8x128xf32>
    %837 = arith.divf %835, %836 : vector<8x128xf32>
    %838 = vector.extract_strided_slice %825 {offsets = [0, 256], sizes = [8, 128], strides = [1, 1]} : vector<8x512xf32> to vector<8x128xf32>
    %839 = math.tanh %838 : vector<8x128xf32>
    %840 = vector.extract_strided_slice %825 {offsets = [0, 384], sizes = [8, 128], strides = [1, 1]} : vector<8x512xf32> to vector<8x128xf32>
    %841 = arith.negf %840 : vector<8x128xf32>
    %842 = math.exp %841 : vector<8x128xf32>
    %cst_217 = arith.constant 1.000000e+00 : f32
    %843 = vector.broadcast %cst_217 : f32 to vector<8x128xf32>
    %844 = arith.addf %843, %842 : vector<8x128xf32>
    %845 = arith.divf %843, %844 : vector<8x128xf32>
    %846 = arith.mulf %837, %813 : vector<8x128xf32>
    %847 = arith.mulf %831, %839 : vector<8x128xf32>
    %848 = arith.addf %846, %847 : vector<8x128xf32>
    %849 = math.tanh %848 : vector<8x128xf32>
    %850 = arith.mulf %845, %849 : vector<8x128xf32>
    %851 = arith.index_cast %820 : i32 to index
    %c128_218 = arith.constant 128 : index
    %852 = vector.load %arg20[%851, %c128_218] : memref<96x256xf32, #tpu.memory_space<vmem>>, vector<8x128xf32>
    tpu.vector_store %arg20[%851, %c128_218], %850 {strides = array<i32>} : memref<96x256xf32, #tpu.memory_space<vmem>>, vector<8x128xf32>,
    %c12_i32_219 = arith.constant 12 : i32
    %c1 = arith.constant 1 : index
    %c0_220 = arith.constant 0 : index
    %c0_221 = arith.constant 0 : index
    %853 = vector.load %arg14[%c1, %c0_220, %c0_221] : memref<4x8x128xf32, #tpu.memory_space<vmem>>, vector<1x8x128xf32>
    %854 = vector.shape_cast %853 : vector<1x8x128xf32> to vector<8x128xf32>
    %855 = vector.shape_cast %850 : vector<8x128xf32> to vector<1x8x128xf32>
    tpu.vector_store %arg14[%c1, %c0_220, %c0_221], %855 {strides = array<i32>} : memref<4x8x128xf32, #tpu.memory_space<vmem>>, vector<1x8x128xf32>,
    %c1_222 = arith.constant 1 : index
    %c0_223 = arith.constant 0 : index
    %c0_224 = arith.constant 0 : index
    %856 = vector.load %arg15[%c1_222, %c0_223, %c0_224] : memref<4x8x128xf32, #tpu.memory_space<vmem>>, vector<1x8x128xf32>
    %857 = vector.shape_cast %856 : vector<1x8x128xf32> to vector<8x128xf32>
    %858 = vector.shape_cast %848 : vector<8x128xf32> to vector<1x8x128xf32>
    tpu.vector_store %arg15[%c1_222, %c0_223, %c0_224], %858 {strides = array<i32>} : memref<4x8x128xf32, #tpu.memory_space<vmem>>, vector<1x8x128xf32>,
    %c0_225 = arith.constant 0 : index
    %c0_226 = arith.constant 0 : index
    %859 = vector.load %arg20[%c0_225, %c0_226] : memref<96x256xf32, #tpu.memory_space<vmem>>, vector<96x256xf32>
    %860 = arith.truncf %859 : vector<96x256xf32> to vector<96x256xbf16>
    %c0_227 = arith.constant 0 : index
    %c0_228 = arith.constant 0 : index
    %861 = vector.load %arg7[%c0_227, %c0_228] : memref<256x512xbf16, #tpu.memory_space<vmem>>, vector<256x512xbf16>
    %cst_229 = arith.constant dense<0.000000e+00> : vector<96x512xf32>
    %862 = tpu.matmul %860, %861, %cst_229 {dimension_numbers = #tpu.dot_dimension_numbers<[1], [0], [0], [1], [0, 0, 1, 1], [], []>} : vector<96x256xbf16>, vector<256x512xbf16>, vector<96x512xf32> -> vector<96x512xf32>
    %c0_230 = arith.constant 0 : index
    %c0_231 = arith.constant 0 : index
    %863 = vector.load %arg9[%c0_230, %c0_231] : memref<1x512xf32, #tpu.memory_space<vmem>>, vector<1x512xf32>
    %864 = vector.broadcast %863 : vector<1x512xf32> to vector<96x512xf32>
    %865 = arith.addf %862, %864 : vector<96x512xf32>
    %c0_232 = arith.constant 0 : index
    %c0_233 = arith.constant 0 : index
    %866 = vector.load %arg18[%c0_232, %c0_233] : memref<96x512xf32, #tpu.memory_space<vmem>>, vector<96x512xf32>
    tpu.vector_store %arg18[%c0_232, %c0_233], %865 {strides = array<i32>} : memref<96x512xf32, #tpu.memory_space<vmem>>, vector<96x512xf32>,
    %c0_234 = arith.constant 0 : index
    %c0_235 = arith.constant 0 : index
    %867 = vector.load %arg10[%c0_234, %c0_235] : memref<256x512xbf16, #tpu.memory_space<vmem>>, vector<256x512xbf16>
    %cst_236 = arith.constant dense<0.000000e+00> : vector<96x512xf32>
    %868 = tpu.matmul %860, %867, %cst_236 {dimension_numbers = #tpu.dot_dimension_numbers<[1], [0], [0], [1], [0, 0, 1, 1], [], []>} : vector<96x256xbf16>, vector<256x512xbf16>, vector<96x512xf32> -> vector<96x512xf32>
    %c0_237 = arith.constant 0 : index
    %c0_238 = arith.constant 0 : index
    %869 = vector.load %arg12[%c0_237, %c0_238] : memref<1x512xf32, #tpu.memory_space<vmem>>, vector<1x512xf32>
    %870 = vector.broadcast %869 : vector<1x512xf32> to vector<96x512xf32>
    %871 = arith.addf %868, %870 : vector<96x512xf32>
    %c0_239 = arith.constant 0 : index
    %c0_240 = arith.constant 0 : index
    %872 = vector.load %arg19[%c0_239, %c0_240] : memref<96x512xf32, #tpu.memory_space<vmem>>, vector<96x512xf32>
    tpu.vector_store %arg19[%c0_239, %c0_240], %871 {strides = array<i32>} : memref<96x512xf32, #tpu.memory_space<vmem>>, vector<96x512xf32>,
    %c0_241 = arith.constant 0 : index
    %c0_242 = arith.constant 0 : index
    %873 = vector.load %arg8[%c0_241, %c0_242] : memref<128x512xbf16, #tpu.memory_space<vmem>>, vector<128x512xbf16>
    %cst_243 = arith.constant 0.000000e+00 : f32
    %874 = vector.broadcast %cst_243 : f32 to vector<8x128xf32>
    %cst_244 = arith.constant 0.000000e+00 : f32
    %875 = vector.broadcast %cst_244 : f32 to vector<8x128xf32>
    %c0_i32_245 = arith.constant 0 : i32
    %c8_i32_246 = arith.constant 8 : i32
    %876 = arith.muli %c0_i32_245, %c8_i32_246 : i32
    %877 = tpu.assume_multiple %876, 8 : i32
    %878 = arith.index_cast %877 : i32 to index
    %c0_247 = arith.constant 0 : index
    %879 = vector.load %arg18[%878, %c0_247] : memref<96x512xf32, #tpu.memory_space<vmem>>, vector<8x512xf32>
    %880 = arith.truncf %874 : vector<8x128xf32> to vector<8x128xbf16>
    %cst_248 = arith.constant dense<0.000000e+00> : vector<8x512xf32>
    %881 = tpu.matmul %880, %873, %cst_248 {dimension_numbers = #tpu.dot_dimension_numbers<[1], [0], [0], [1], [0, 0, 1, 1], [], []>} : vector<8x128xbf16>, vector<128x512xbf16>, vector<8x512xf32> -> vector<8x512xf32>
    %882 = arith.addf %879, %881 : vector<8x512xf32>
    %883 = vector.extract_strided_slice %882 {offsets = [0, 0], sizes = [8, 128], strides = [1, 1]} : vector<8x512xf32> to vector<8x128xf32>
    %884 = arith.negf %883 : vector<8x128xf32>
    %885 = math.exp %884 : vector<8x128xf32>
    %cst_249 = arith.constant 1.000000e+00 : f32
    %886 = vector.broadcast %cst_249 : f32 to vector<8x128xf32>
    %887 = arith.addf %886, %885 : vector<8x128xf32>
    %888 = arith.divf %886, %887 : vector<8x128xf32>
    %889 = vector.extract_strided_slice %882 {offsets = [0, 128], sizes = [8, 128], strides = [1, 1]} : vector<8x512xf32> to vector<8x128xf32>
    %890 = arith.negf %889 : vector<8x128xf32>
    %891 = math.exp %890 : vector<8x128xf32>
    %cst_250 = arith.constant 1.000000e+00 : f32
    %892 = vector.broadcast %cst_250 : f32 to vector<8x128xf32>
    %893 = arith.addf %892, %891 : vector<8x128xf32>
    %894 = arith.divf %892, %893 : vector<8x128xf32>
    %895 = vector.extract_strided_slice %882 {offsets = [0, 256], sizes = [8, 128], strides = [1, 1]} : vector<8x512xf32> to vector<8x128xf32>
    %896 = math.tanh %895 : vector<8x128xf32>
    %897 = vector.extract_strided_slice %882 {offsets = [0, 384], sizes = [8, 128], strides = [1, 1]} : vector<8x512xf32> to vector<8x128xf32>
    %898 = arith.negf %897 : vector<8x128xf32>
    %899 = math.exp %898 : vector<8x128xf32>
    %cst_251 = arith.constant 1.000000e+00 : f32
    %900 = vector.broadcast %cst_251 : f32 to vector<8x128xf32>
    %901 = arith.addf %900, %899 : vector<8x128xf32>
    %902 = arith.divf %900, %901 : vector<8x128xf32>
    %903 = arith.mulf %894, %875 : vector<8x128xf32>
    %904 = arith.mulf %888, %896 : vector<8x128xf32>
    %905 = arith.addf %903, %904 : vector<8x128xf32>
    %906 = math.tanh %905 : vector<8x128xf32>
    %907 = arith.mulf %902, %906 : vector<8x128xf32>
    %908 = arith.index_cast %877 : i32 to index
    %c0_252 = arith.constant 0 : index
    %909 = vector.load %arg13[%908, %c0_252] : memref<96x256xf32, #tpu.memory_space<vmem>>, vector<8x128xf32>
    tpu.vector_store %arg13[%908, %c0_252], %907 {strides = array<i32>} : memref<96x256xf32, #tpu.memory_space<vmem>>, vector<8x128xf32>,
    %c1_i32_253 = arith.constant 1 : i32
    %c8_i32_254 = arith.constant 8 : i32
    %910 = arith.muli %c1_i32_253, %c8_i32_254 : i32
    %911 = tpu.assume_multiple %910, 8 : i32
    %912 = arith.index_cast %911 : i32 to index
    %c0_255 = arith.constant 0 : index
    %913 = vector.load %arg18[%912, %c0_255] : memref<96x512xf32, #tpu.memory_space<vmem>>, vector<8x512xf32>
    %914 = arith.truncf %907 : vector<8x128xf32> to vector<8x128xbf16>
    %cst_256 = arith.constant dense<0.000000e+00> : vector<8x512xf32>
    %915 = tpu.matmul %914, %873, %cst_256 {dimension_numbers = #tpu.dot_dimension_numbers<[1], [0], [0], [1], [0, 0, 1, 1], [], []>} : vector<8x128xbf16>, vector<128x512xbf16>, vector<8x512xf32> -> vector<8x512xf32>
    %916 = arith.addf %913, %915 : vector<8x512xf32>
    %917 = vector.extract_strided_slice %916 {offsets = [0, 0], sizes = [8, 128], strides = [1, 1]} : vector<8x512xf32> to vector<8x128xf32>
    %918 = arith.negf %917 : vector<8x128xf32>
    %919 = math.exp %918 : vector<8x128xf32>
    %cst_257 = arith.constant 1.000000e+00 : f32
    %920 = vector.broadcast %cst_257 : f32 to vector<8x128xf32>
    %921 = arith.addf %920, %919 : vector<8x128xf32>
    %922 = arith.divf %920, %921 : vector<8x128xf32>
    %923 = vector.extract_strided_slice %916 {offsets = [0, 128], sizes = [8, 128], strides = [1, 1]} : vector<8x512xf32> to vector<8x128xf32>
    %924 = arith.negf %923 : vector<8x128xf32>
    %925 = math.exp %924 : vector<8x128xf32>
    %cst_258 = arith.constant 1.000000e+00 : f32
    %926 = vector.broadcast %cst_258 : f32 to vector<8x128xf32>
    %927 = arith.addf %926, %925 : vector<8x128xf32>
    %928 = arith.divf %926, %927 : vector<8x128xf32>
    %929 = vector.extract_strided_slice %916 {offsets = [0, 256], sizes = [8, 128], strides = [1, 1]} : vector<8x512xf32> to vector<8x128xf32>
    %930 = math.tanh %929 : vector<8x128xf32>
    %931 = vector.extract_strided_slice %916 {offsets = [0, 384], sizes = [8, 128], strides = [1, 1]} : vector<8x512xf32> to vector<8x128xf32>
    %932 = arith.negf %931 : vector<8x128xf32>
    %933 = math.exp %932 : vector<8x128xf32>
    %cst_259 = arith.constant 1.000000e+00 : f32
    %934 = vector.broadcast %cst_259 : f32 to vector<8x128xf32>
    %935 = arith.addf %934, %933 : vector<8x128xf32>
    %936 = arith.divf %934, %935 : vector<8x128xf32>
    %937 = arith.mulf %928, %905 : vector<8x128xf32>
    %938 = arith.mulf %922, %930 : vector<8x128xf32>
    %939 = arith.addf %937, %938 : vector<8x128xf32>
    %940 = math.tanh %939 : vector<8x128xf32>
    %941 = arith.mulf %936, %940 : vector<8x128xf32>
    %942 = arith.index_cast %911 : i32 to index
    %c0_260 = arith.constant 0 : index
    %943 = vector.load %arg13[%942, %c0_260] : memref<96x256xf32, #tpu.memory_space<vmem>>, vector<8x128xf32>
    tpu.vector_store %arg13[%942, %c0_260], %941 {strides = array<i32>} : memref<96x256xf32, #tpu.memory_space<vmem>>, vector<8x128xf32>,
    %c2_i32_261 = arith.constant 2 : i32
    %c8_i32_262 = arith.constant 8 : i32
    %944 = arith.muli %c2_i32_261, %c8_i32_262 : i32
    %945 = tpu.assume_multiple %944, 8 : i32
    %946 = arith.index_cast %945 : i32 to index
    %c0_263 = arith.constant 0 : index
    %947 = vector.load %arg18[%946, %c0_263] : memref<96x512xf32, #tpu.memory_space<vmem>>, vector<8x512xf32>
    %948 = arith.truncf %941 : vector<8x128xf32> to vector<8x128xbf16>
    %cst_264 = arith.constant dense<0.000000e+00> : vector<8x512xf32>
    %949 = tpu.matmul %948, %873, %cst_264 {dimension_numbers = #tpu.dot_dimension_numbers<[1], [0], [0], [1], [0, 0, 1, 1], [], []>} : vector<8x128xbf16>, vector<128x512xbf16>, vector<8x512xf32> -> vector<8x512xf32>
    %950 = arith.addf %947, %949 : vector<8x512xf32>
    %951 = vector.extract_strided_slice %950 {offsets = [0, 0], sizes = [8, 128], strides = [1, 1]} : vector<8x512xf32> to vector<8x128xf32>
    %952 = arith.negf %951 : vector<8x128xf32>
    %953 = math.exp %952 : vector<8x128xf32>
    %cst_265 = arith.constant 1.000000e+00 : f32
    %954 = vector.broadcast %cst_265 : f32 to vector<8x128xf32>
    %955 = arith.addf %954, %953 : vector<8x128xf32>
    %956 = arith.divf %954, %955 : vector<8x128xf32>
    %957 = vector.extract_strided_slice %950 {offsets = [0, 128], sizes = [8, 128], strides = [1, 1]} : vector<8x512xf32> to vector<8x128xf32>
    %958 = arith.negf %957 : vector<8x128xf32>
    %959 = math.exp %958 : vector<8x128xf32>
    %cst_266 = arith.constant 1.000000e+00 : f32
    %960 = vector.broadcast %cst_266 : f32 to vector<8x128xf32>
    %961 = arith.addf %960, %959 : vector<8x128xf32>
    %962 = arith.divf %960, %961 : vector<8x128xf32>
    %963 = vector.extract_strided_slice %950 {offsets = [0, 256], sizes = [8, 128], strides = [1, 1]} : vector<8x512xf32> to vector<8x128xf32>
    %964 = math.tanh %963 : vector<8x128xf32>
    %965 = vector.extract_strided_slice %950 {offsets = [0, 384], sizes = [8, 128], strides = [1, 1]} : vector<8x512xf32> to vector<8x128xf32>
    %966 = arith.negf %965 : vector<8x128xf32>
    %967 = math.exp %966 : vector<8x128xf32>
    %cst_267 = arith.constant 1.000000e+00 : f32
    %968 = vector.broadcast %cst_267 : f32 to vector<8x128xf32>
    %969 = arith.addf %968, %967 : vector<8x128xf32>
    %970 = arith.divf %968, %969 : vector<8x128xf32>
    %971 = arith.mulf %962, %939 : vector<8x128xf32>
    %972 = arith.mulf %956, %964 : vector<8x128xf32>
    %973 = arith.addf %971, %972 : vector<8x128xf32>
    %974 = math.tanh %973 : vector<8x128xf32>
    %975 = arith.mulf %970, %974 : vector<8x128xf32>
    %976 = arith.index_cast %945 : i32 to index
    %c0_268 = arith.constant 0 : index
    %977 = vector.load %arg13[%976, %c0_268] : memref<96x256xf32, #tpu.memory_space<vmem>>, vector<8x128xf32>
    tpu.vector_store %arg13[%976, %c0_268], %975 {strides = array<i32>} : memref<96x256xf32, #tpu.memory_space<vmem>>, vector<8x128xf32>,
    %c3_i32_269 = arith.constant 3 : i32
    %c8_i32_270 = arith.constant 8 : i32
    %978 = arith.muli %c3_i32_269, %c8_i32_270 : i32
    %979 = tpu.assume_multiple %978, 8 : i32
    %980 = arith.index_cast %979 : i32 to index
    %c0_271 = arith.constant 0 : index
    %981 = vector.load %arg18[%980, %c0_271] : memref<96x512xf32, #tpu.memory_space<vmem>>, vector<8x512xf32>
    %982 = arith.truncf %975 : vector<8x128xf32> to vector<8x128xbf16>
    %cst_272 = arith.constant dense<0.000000e+00> : vector<8x512xf32>
    %983 = tpu.matmul %982, %873, %cst_272 {dimension_numbers = #tpu.dot_dimension_numbers<[1], [0], [0], [1], [0, 0, 1, 1], [], []>} : vector<8x128xbf16>, vector<128x512xbf16>, vector<8x512xf32> -> vector<8x512xf32>
    %984 = arith.addf %981, %983 : vector<8x512xf32>
    %985 = vector.extract_strided_slice %984 {offsets = [0, 0], sizes = [8, 128], strides = [1, 1]} : vector<8x512xf32> to vector<8x128xf32>
    %986 = arith.negf %985 : vector<8x128xf32>
    %987 = math.exp %986 : vector<8x128xf32>
    %cst_273 = arith.constant 1.000000e+00 : f32
    %988 = vector.broadcast %cst_273 : f32 to vector<8x128xf32>
    %989 = arith.addf %988, %987 : vector<8x128xf32>
    %990 = arith.divf %988, %989 : vector<8x128xf32>
    %991 = vector.extract_strided_slice %984 {offsets = [0, 128], sizes = [8, 128], strides = [1, 1]} : vector<8x512xf32> to vector<8x128xf32>
    %992 = arith.negf %991 : vector<8x128xf32>
    %993 = math.exp %992 : vector<8x128xf32>
    %cst_274 = arith.constant 1.000000e+00 : f32
    %994 = vector.broadcast %cst_274 : f32 to vector<8x128xf32>
    %995 = arith.addf %994, %993 : vector<8x128xf32>
    %996 = arith.divf %994, %995 : vector<8x128xf32>
    %997 = vector.extract_strided_slice %984 {offsets = [0, 256], sizes = [8, 128], strides = [1, 1]} : vector<8x512xf32> to vector<8x128xf32>
    %998 = math.tanh %997 : vector<8x128xf32>
    %999 = vector.extract_strided_slice %984 {offsets = [0, 384], sizes = [8, 128], strides = [1, 1]} : vector<8x512xf32> to vector<8x128xf32>
    %1000 = arith.negf %999 : vector<8x128xf32>
    %1001 = math.exp %1000 : vector<8x128xf32>
    %cst_275 = arith.constant 1.000000e+00 : f32
    %1002 = vector.broadcast %cst_275 : f32 to vector<8x128xf32>
    %1003 = arith.addf %1002, %1001 : vector<8x128xf32>
    %1004 = arith.divf %1002, %1003 : vector<8x128xf32>
    %1005 = arith.mulf %996, %973 : vector<8x128xf32>
    %1006 = arith.mulf %990, %998 : vector<8x128xf32>
    %1007 = arith.addf %1005, %1006 : vector<8x128xf32>
    %1008 = math.tanh %1007 : vector<8x128xf32>
    %1009 = arith.mulf %1004, %1008 : vector<8x128xf32>
    %1010 = arith.index_cast %979 : i32 to index
    %c0_276 = arith.constant 0 : index
    %1011 = vector.load %arg13[%1010, %c0_276] : memref<96x256xf32, #tpu.memory_space<vmem>>, vector<8x128xf32>
    tpu.vector_store %arg13[%1010, %c0_276], %1009 {strides = array<i32>} : memref<96x256xf32, #tpu.memory_space<vmem>>, vector<8x128xf32>,
    %c4_i32_277 = arith.constant 4 : i32
    %c8_i32_278 = arith.constant 8 : i32
    %1012 = arith.muli %c4_i32_277, %c8_i32_278 : i32
    %1013 = tpu.assume_multiple %1012, 8 : i32
    %1014 = arith.index_cast %1013 : i32 to index
    %c0_279 = arith.constant 0 : index
    %1015 = vector.load %arg18[%1014, %c0_279] : memref<96x512xf32, #tpu.memory_space<vmem>>, vector<8x512xf32>
    %1016 = arith.truncf %1009 : vector<8x128xf32> to vector<8x128xbf16>
    %cst_280 = arith.constant dense<0.000000e+00> : vector<8x512xf32>
    %1017 = tpu.matmul %1016, %873, %cst_280 {dimension_numbers = #tpu.dot_dimension_numbers<[1], [0], [0], [1], [0, 0, 1, 1], [], []>} : vector<8x128xbf16>, vector<128x512xbf16>, vector<8x512xf32> -> vector<8x512xf32>
    %1018 = arith.addf %1015, %1017 : vector<8x512xf32>
    %1019 = vector.extract_strided_slice %1018 {offsets = [0, 0], sizes = [8, 128], strides = [1, 1]} : vector<8x512xf32> to vector<8x128xf32>
    %1020 = arith.negf %1019 : vector<8x128xf32>
    %1021 = math.exp %1020 : vector<8x128xf32>
    %cst_281 = arith.constant 1.000000e+00 : f32
    %1022 = vector.broadcast %cst_281 : f32 to vector<8x128xf32>
    %1023 = arith.addf %1022, %1021 : vector<8x128xf32>
    %1024 = arith.divf %1022, %1023 : vector<8x128xf32>
    %1025 = vector.extract_strided_slice %1018 {offsets = [0, 128], sizes = [8, 128], strides = [1, 1]} : vector<8x512xf32> to vector<8x128xf32>
    %1026 = arith.negf %1025 : vector<8x128xf32>
    %1027 = math.exp %1026 : vector<8x128xf32>
    %cst_282 = arith.constant 1.000000e+00 : f32
    %1028 = vector.broadcast %cst_282 : f32 to vector<8x128xf32>
    %1029 = arith.addf %1028, %1027 : vector<8x128xf32>
    %1030 = arith.divf %1028, %1029 : vector<8x128xf32>
    %1031 = vector.extract_strided_slice %1018 {offsets = [0, 256], sizes = [8, 128], strides = [1, 1]} : vector<8x512xf32> to vector<8x128xf32>
    %1032 = math.tanh %1031 : vector<8x128xf32>
    %1033 = vector.extract_strided_slice %1018 {offsets = [0, 384], sizes = [8, 128], strides = [1, 1]} : vector<8x512xf32> to vector<8x128xf32>
    %1034 = arith.negf %1033 : vector<8x128xf32>
    %1035 = math.exp %1034 : vector<8x128xf32>
    %cst_283 = arith.constant 1.000000e+00 : f32
    %1036 = vector.broadcast %cst_283 : f32 to vector<8x128xf32>
    %1037 = arith.addf %1036, %1035 : vector<8x128xf32>
    %1038 = arith.divf %1036, %1037 : vector<8x128xf32>
    %1039 = arith.mulf %1030, %1007 : vector<8x128xf32>
    %1040 = arith.mulf %1024, %1032 : vector<8x128xf32>
    %1041 = arith.addf %1039, %1040 : vector<8x128xf32>
    %1042 = math.tanh %1041 : vector<8x128xf32>
    %1043 = arith.mulf %1038, %1042 : vector<8x128xf32>
    %1044 = arith.index_cast %1013 : i32 to index
    %c0_284 = arith.constant 0 : index
    %1045 = vector.load %arg13[%1044, %c0_284] : memref<96x256xf32, #tpu.memory_space<vmem>>, vector<8x128xf32>
    tpu.vector_store %arg13[%1044, %c0_284], %1043 {strides = array<i32>} : memref<96x256xf32, #tpu.memory_space<vmem>>, vector<8x128xf32>,
    %c5_i32_285 = arith.constant 5 : i32
    %c8_i32_286 = arith.constant 8 : i32
    %1046 = arith.muli %c5_i32_285, %c8_i32_286 : i32
    %1047 = tpu.assume_multiple %1046, 8 : i32
    %1048 = arith.index_cast %1047 : i32 to index
    %c0_287 = arith.constant 0 : index
    %1049 = vector.load %arg18[%1048, %c0_287] : memref<96x512xf32, #tpu.memory_space<vmem>>, vector<8x512xf32>
    %1050 = arith.truncf %1043 : vector<8x128xf32> to vector<8x128xbf16>
    %cst_288 = arith.constant dense<0.000000e+00> : vector<8x512xf32>
    %1051 = tpu.matmul %1050, %873, %cst_288 {dimension_numbers = #tpu.dot_dimension_numbers<[1], [0], [0], [1], [0, 0, 1, 1], [], []>} : vector<8x128xbf16>, vector<128x512xbf16>, vector<8x512xf32> -> vector<8x512xf32>
    %1052 = arith.addf %1049, %1051 : vector<8x512xf32>
    %1053 = vector.extract_strided_slice %1052 {offsets = [0, 0], sizes = [8, 128], strides = [1, 1]} : vector<8x512xf32> to vector<8x128xf32>
    %1054 = arith.negf %1053 : vector<8x128xf32>
    %1055 = math.exp %1054 : vector<8x128xf32>
    %cst_289 = arith.constant 1.000000e+00 : f32
    %1056 = vector.broadcast %cst_289 : f32 to vector<8x128xf32>
    %1057 = arith.addf %1056, %1055 : vector<8x128xf32>
    %1058 = arith.divf %1056, %1057 : vector<8x128xf32>
    %1059 = vector.extract_strided_slice %1052 {offsets = [0, 128], sizes = [8, 128], strides = [1, 1]} : vector<8x512xf32> to vector<8x128xf32>
    %1060 = arith.negf %1059 : vector<8x128xf32>
    %1061 = math.exp %1060 : vector<8x128xf32>
    %cst_290 = arith.constant 1.000000e+00 : f32
    %1062 = vector.broadcast %cst_290 : f32 to vector<8x128xf32>
    %1063 = arith.addf %1062, %1061 : vector<8x128xf32>
    %1064 = arith.divf %1062, %1063 : vector<8x128xf32>
    %1065 = vector.extract_strided_slice %1052 {offsets = [0, 256], sizes = [8, 128], strides = [1, 1]} : vector<8x512xf32> to vector<8x128xf32>
    %1066 = math.tanh %1065 : vector<8x128xf32>
    %1067 = vector.extract_strided_slice %1052 {offsets = [0, 384], sizes = [8, 128], strides = [1, 1]} : vector<8x512xf32> to vector<8x128xf32>
    %1068 = arith.negf %1067 : vector<8x128xf32>
    %1069 = math.exp %1068 : vector<8x128xf32>
    %cst_291 = arith.constant 1.000000e+00 : f32
    %1070 = vector.broadcast %cst_291 : f32 to vector<8x128xf32>
    %1071 = arith.addf %1070, %1069 : vector<8x128xf32>
    %1072 = arith.divf %1070, %1071 : vector<8x128xf32>
    %1073 = arith.mulf %1064, %1041 : vector<8x128xf32>
    %1074 = arith.mulf %1058, %1066 : vector<8x128xf32>
    %1075 = arith.addf %1073, %1074 : vector<8x128xf32>
    %1076 = math.tanh %1075 : vector<8x128xf32>
    %1077 = arith.mulf %1072, %1076 : vector<8x128xf32>
    %1078 = arith.index_cast %1047 : i32 to index
    %c0_292 = arith.constant 0 : index
    %1079 = vector.load %arg13[%1078, %c0_292] : memref<96x256xf32, #tpu.memory_space<vmem>>, vector<8x128xf32>
    tpu.vector_store %arg13[%1078, %c0_292], %1077 {strides = array<i32>} : memref<96x256xf32, #tpu.memory_space<vmem>>, vector<8x128xf32>,
    %c6_i32_293 = arith.constant 6 : i32
    %c8_i32_294 = arith.constant 8 : i32
    %1080 = arith.muli %c6_i32_293, %c8_i32_294 : i32
    %1081 = tpu.assume_multiple %1080, 8 : i32
    %1082 = arith.index_cast %1081 : i32 to index
    %c0_295 = arith.constant 0 : index
    %1083 = vector.load %arg18[%1082, %c0_295] : memref<96x512xf32, #tpu.memory_space<vmem>>, vector<8x512xf32>
    %1084 = arith.truncf %1077 : vector<8x128xf32> to vector<8x128xbf16>
    %cst_296 = arith.constant dense<0.000000e+00> : vector<8x512xf32>
    %1085 = tpu.matmul %1084, %873, %cst_296 {dimension_numbers = #tpu.dot_dimension_numbers<[1], [0], [0], [1], [0, 0, 1, 1], [], []>} : vector<8x128xbf16>, vector<128x512xbf16>, vector<8x512xf32> -> vector<8x512xf32>
    %1086 = arith.addf %1083, %1085 : vector<8x512xf32>
    %1087 = vector.extract_strided_slice %1086 {offsets = [0, 0], sizes = [8, 128], strides = [1, 1]} : vector<8x512xf32> to vector<8x128xf32>
    %1088 = arith.negf %1087 : vector<8x128xf32>
    %1089 = math.exp %1088 : vector<8x128xf32>
    %cst_297 = arith.constant 1.000000e+00 : f32
    %1090 = vector.broadcast %cst_297 : f32 to vector<8x128xf32>
    %1091 = arith.addf %1090, %1089 : vector<8x128xf32>
    %1092 = arith.divf %1090, %1091 : vector<8x128xf32>
    %1093 = vector.extract_strided_slice %1086 {offsets = [0, 128], sizes = [8, 128], strides = [1, 1]} : vector<8x512xf32> to vector<8x128xf32>
    %1094 = arith.negf %1093 : vector<8x128xf32>
    %1095 = math.exp %1094 : vector<8x128xf32>
    %cst_298 = arith.constant 1.000000e+00 : f32
    %1096 = vector.broadcast %cst_298 : f32 to vector<8x128xf32>
    %1097 = arith.addf %1096, %1095 : vector<8x128xf32>
    %1098 = arith.divf %1096, %1097 : vector<8x128xf32>
    %1099 = vector.extract_strided_slice %1086 {offsets = [0, 256], sizes = [8, 128], strides = [1, 1]} : vector<8x512xf32> to vector<8x128xf32>
    %1100 = math.tanh %1099 : vector<8x128xf32>
    %1101 = vector.extract_strided_slice %1086 {offsets = [0, 384], sizes = [8, 128], strides = [1, 1]} : vector<8x512xf32> to vector<8x128xf32>
    %1102 = arith.negf %1101 : vector<8x128xf32>
    %1103 = math.exp %1102 : vector<8x128xf32>
    %cst_299 = arith.constant 1.000000e+00 : f32
    %1104 = vector.broadcast %cst_299 : f32 to vector<8x128xf32>
    %1105 = arith.addf %1104, %1103 : vector<8x128xf32>
    %1106 = arith.divf %1104, %1105 : vector<8x128xf32>
    %1107 = arith.mulf %1098, %1075 : vector<8x128xf32>
    %1108 = arith.mulf %1092, %1100 : vector<8x128xf32>
    %1109 = arith.addf %1107, %1108 : vector<8x128xf32>
    %1110 = math.tanh %1109 : vector<8x128xf32>
    %1111 = arith.mulf %1106, %1110 : vector<8x128xf32>
    %1112 = arith.index_cast %1081 : i32 to index
    %c0_300 = arith.constant 0 : index
    %1113 = vector.load %arg13[%1112, %c0_300] : memref<96x256xf32, #tpu.memory_space<vmem>>, vector<8x128xf32>
    tpu.vector_store %arg13[%1112, %c0_300], %1111 {strides = array<i32>} : memref<96x256xf32, #tpu.memory_space<vmem>>, vector<8x128xf32>,
    %c7_i32_301 = arith.constant 7 : i32
    %c8_i32_302 = arith.constant 8 : i32
    %1114 = arith.muli %c7_i32_301, %c8_i32_302 : i32
    %1115 = tpu.assume_multiple %1114, 8 : i32
    %1116 = arith.index_cast %1115 : i32 to index
    %c0_303 = arith.constant 0 : index
    %1117 = vector.load %arg18[%1116, %c0_303] : memref<96x512xf32, #tpu.memory_space<vmem>>, vector<8x512xf32>
    %1118 = arith.truncf %1111 : vector<8x128xf32> to vector<8x128xbf16>
    %cst_304 = arith.constant dense<0.000000e+00> : vector<8x512xf32>
    %1119 = tpu.matmul %1118, %873, %cst_304 {dimension_numbers = #tpu.dot_dimension_numbers<[1], [0], [0], [1], [0, 0, 1, 1], [], []>} : vector<8x128xbf16>, vector<128x512xbf16>, vector<8x512xf32> -> vector<8x512xf32>
    %1120 = arith.addf %1117, %1119 : vector<8x512xf32>
    %1121 = vector.extract_strided_slice %1120 {offsets = [0, 0], sizes = [8, 128], strides = [1, 1]} : vector<8x512xf32> to vector<8x128xf32>
    %1122 = arith.negf %1121 : vector<8x128xf32>
    %1123 = math.exp %1122 : vector<8x128xf32>
    %cst_305 = arith.constant 1.000000e+00 : f32
    %1124 = vector.broadcast %cst_305 : f32 to vector<8x128xf32>
    %1125 = arith.addf %1124, %1123 : vector<8x128xf32>
    %1126 = arith.divf %1124, %1125 : vector<8x128xf32>
    %1127 = vector.extract_strided_slice %1120 {offsets = [0, 128], sizes = [8, 128], strides = [1, 1]} : vector<8x512xf32> to vector<8x128xf32>
    %1128 = arith.negf %1127 : vector<8x128xf32>
    %1129 = math.exp %1128 : vector<8x128xf32>
    %cst_306 = arith.constant 1.000000e+00 : f32
    %1130 = vector.broadcast %cst_306 : f32 to vector<8x128xf32>
    %1131 = arith.addf %1130, %1129 : vector<8x128xf32>
    %1132 = arith.divf %1130, %1131 : vector<8x128xf32>
    %1133 = vector.extract_strided_slice %1120 {offsets = [0, 256], sizes = [8, 128], strides = [1, 1]} : vector<8x512xf32> to vector<8x128xf32>
    %1134 = math.tanh %1133 : vector<8x128xf32>
    %1135 = vector.extract_strided_slice %1120 {offsets = [0, 384], sizes = [8, 128], strides = [1, 1]} : vector<8x512xf32> to vector<8x128xf32>
    %1136 = arith.negf %1135 : vector<8x128xf32>
    %1137 = math.exp %1136 : vector<8x128xf32>
    %cst_307 = arith.constant 1.000000e+00 : f32
    %1138 = vector.broadcast %cst_307 : f32 to vector<8x128xf32>
    %1139 = arith.addf %1138, %1137 : vector<8x128xf32>
    %1140 = arith.divf %1138, %1139 : vector<8x128xf32>
    %1141 = arith.mulf %1132, %1109 : vector<8x128xf32>
    %1142 = arith.mulf %1126, %1134 : vector<8x128xf32>
    %1143 = arith.addf %1141, %1142 : vector<8x128xf32>
    %1144 = math.tanh %1143 : vector<8x128xf32>
    %1145 = arith.mulf %1140, %1144 : vector<8x128xf32>
    %1146 = arith.index_cast %1115 : i32 to index
    %c0_308 = arith.constant 0 : index
    %1147 = vector.load %arg13[%1146, %c0_308] : memref<96x256xf32, #tpu.memory_space<vmem>>, vector<8x128xf32>
    tpu.vector_store %arg13[%1146, %c0_308], %1145 {strides = array<i32>} : memref<96x256xf32, #tpu.memory_space<vmem>>, vector<8x128xf32>,
    %c8_i32_309 = arith.constant 8 : i32
    %c8_i32_310 = arith.constant 8 : i32
    %1148 = arith.muli %c8_i32_309, %c8_i32_310 : i32
    %1149 = tpu.assume_multiple %1148, 8 : i32
    %1150 = arith.index_cast %1149 : i32 to index
    %c0_311 = arith.constant 0 : index
    %1151 = vector.load %arg18[%1150, %c0_311] : memref<96x512xf32, #tpu.memory_space<vmem>>, vector<8x512xf32>
    %1152 = arith.truncf %1145 : vector<8x128xf32> to vector<8x128xbf16>
    %cst_312 = arith.constant dense<0.000000e+00> : vector<8x512xf32>
    %1153 = tpu.matmul %1152, %873, %cst_312 {dimension_numbers = #tpu.dot_dimension_numbers<[1], [0], [0], [1], [0, 0, 1, 1], [], []>} : vector<8x128xbf16>, vector<128x512xbf16>, vector<8x512xf32> -> vector<8x512xf32>
    %1154 = arith.addf %1151, %1153 : vector<8x512xf32>
    %1155 = vector.extract_strided_slice %1154 {offsets = [0, 0], sizes = [8, 128], strides = [1, 1]} : vector<8x512xf32> to vector<8x128xf32>
    %1156 = arith.negf %1155 : vector<8x128xf32>
    %1157 = math.exp %1156 : vector<8x128xf32>
    %cst_313 = arith.constant 1.000000e+00 : f32
    %1158 = vector.broadcast %cst_313 : f32 to vector<8x128xf32>
    %1159 = arith.addf %1158, %1157 : vector<8x128xf32>
    %1160 = arith.divf %1158, %1159 : vector<8x128xf32>
    %1161 = vector.extract_strided_slice %1154 {offsets = [0, 128], sizes = [8, 128], strides = [1, 1]} : vector<8x512xf32> to vector<8x128xf32>
    %1162 = arith.negf %1161 : vector<8x128xf32>
    %1163 = math.exp %1162 : vector<8x128xf32>
    %cst_314 = arith.constant 1.000000e+00 : f32
    %1164 = vector.broadcast %cst_314 : f32 to vector<8x128xf32>
    %1165 = arith.addf %1164, %1163 : vector<8x128xf32>
    %1166 = arith.divf %1164, %1165 : vector<8x128xf32>
    %1167 = vector.extract_strided_slice %1154 {offsets = [0, 256], sizes = [8, 128], strides = [1, 1]} : vector<8x512xf32> to vector<8x128xf32>
    %1168 = math.tanh %1167 : vector<8x128xf32>
    %1169 = vector.extract_strided_slice %1154 {offsets = [0, 384], sizes = [8, 128], strides = [1, 1]} : vector<8x512xf32> to vector<8x128xf32>
    %1170 = arith.negf %1169 : vector<8x128xf32>
    %1171 = math.exp %1170 : vector<8x128xf32>
    %cst_315 = arith.constant 1.000000e+00 : f32
    %1172 = vector.broadcast %cst_315 : f32 to vector<8x128xf32>
    %1173 = arith.addf %1172, %1171 : vector<8x128xf32>
    %1174 = arith.divf %1172, %1173 : vector<8x128xf32>
    %1175 = arith.mulf %1166, %1143 : vector<8x128xf32>
    %1176 = arith.mulf %1160, %1168 : vector<8x128xf32>
    %1177 = arith.addf %1175, %1176 : vector<8x128xf32>
    %1178 = math.tanh %1177 : vector<8x128xf32>
    %1179 = arith.mulf %1174, %1178 : vector<8x128xf32>
    %1180 = arith.index_cast %1149 : i32 to index
    %c0_316 = arith.constant 0 : index
    %1181 = vector.load %arg13[%1180, %c0_316] : memref<96x256xf32, #tpu.memory_space<vmem>>, vector<8x128xf32>
    tpu.vector_store %arg13[%1180, %c0_316], %1179 {strides = array<i32>} : memref<96x256xf32, #tpu.memory_space<vmem>>, vector<8x128xf32>,
    %c9_i32_317 = arith.constant 9 : i32
    %c8_i32_318 = arith.constant 8 : i32
    %1182 = arith.muli %c9_i32_317, %c8_i32_318 : i32
    %1183 = tpu.assume_multiple %1182, 8 : i32
    %1184 = arith.index_cast %1183 : i32 to index
    %c0_319 = arith.constant 0 : index
    %1185 = vector.load %arg18[%1184, %c0_319] : memref<96x512xf32, #tpu.memory_space<vmem>>, vector<8x512xf32>
    %1186 = arith.truncf %1179 : vector<8x128xf32> to vector<8x128xbf16>
    %cst_320 = arith.constant dense<0.000000e+00> : vector<8x512xf32>
    %1187 = tpu.matmul %1186, %873, %cst_320 {dimension_numbers = #tpu.dot_dimension_numbers<[1], [0], [0], [1], [0, 0, 1, 1], [], []>} : vector<8x128xbf16>, vector<128x512xbf16>, vector<8x512xf32> -> vector<8x512xf32>
    %1188 = arith.addf %1185, %1187 : vector<8x512xf32>
    %1189 = vector.extract_strided_slice %1188 {offsets = [0, 0], sizes = [8, 128], strides = [1, 1]} : vector<8x512xf32> to vector<8x128xf32>
    %1190 = arith.negf %1189 : vector<8x128xf32>
    %1191 = math.exp %1190 : vector<8x128xf32>
    %cst_321 = arith.constant 1.000000e+00 : f32
    %1192 = vector.broadcast %cst_321 : f32 to vector<8x128xf32>
    %1193 = arith.addf %1192, %1191 : vector<8x128xf32>
    %1194 = arith.divf %1192, %1193 : vector<8x128xf32>
    %1195 = vector.extract_strided_slice %1188 {offsets = [0, 128], sizes = [8, 128], strides = [1, 1]} : vector<8x512xf32> to vector<8x128xf32>
    %1196 = arith.negf %1195 : vector<8x128xf32>
    %1197 = math.exp %1196 : vector<8x128xf32>
    %cst_322 = arith.constant 1.000000e+00 : f32
    %1198 = vector.broadcast %cst_322 : f32 to vector<8x128xf32>
    %1199 = arith.addf %1198, %1197 : vector<8x128xf32>
    %1200 = arith.divf %1198, %1199 : vector<8x128xf32>
    %1201 = vector.extract_strided_slice %1188 {offsets = [0, 256], sizes = [8, 128], strides = [1, 1]} : vector<8x512xf32> to vector<8x128xf32>
    %1202 = math.tanh %1201 : vector<8x128xf32>
    %1203 = vector.extract_strided_slice %1188 {offsets = [0, 384], sizes = [8, 128], strides = [1, 1]} : vector<8x512xf32> to vector<8x128xf32>
    %1204 = arith.negf %1203 : vector<8x128xf32>
    %1205 = math.exp %1204 : vector<8x128xf32>
    %cst_323 = arith.constant 1.000000e+00 : f32
    %1206 = vector.broadcast %cst_323 : f32 to vector<8x128xf32>
    %1207 = arith.addf %1206, %1205 : vector<8x128xf32>
    %1208 = arith.divf %1206, %1207 : vector<8x128xf32>
    %1209 = arith.mulf %1200, %1177 : vector<8x128xf32>
    %1210 = arith.mulf %1194, %1202 : vector<8x128xf32>
    %1211 = arith.addf %1209, %1210 : vector<8x128xf32>
    %1212 = math.tanh %1211 : vector<8x128xf32>
    %1213 = arith.mulf %1208, %1212 : vector<8x128xf32>
    %1214 = arith.index_cast %1183 : i32 to index
    %c0_324 = arith.constant 0 : index
    %1215 = vector.load %arg13[%1214, %c0_324] : memref<96x256xf32, #tpu.memory_space<vmem>>, vector<8x128xf32>
    tpu.vector_store %arg13[%1214, %c0_324], %1213 {strides = array<i32>} : memref<96x256xf32, #tpu.memory_space<vmem>>, vector<8x128xf32>,
    %c10_i32_325 = arith.constant 10 : i32
    %c8_i32_326 = arith.constant 8 : i32
    %1216 = arith.muli %c10_i32_325, %c8_i32_326 : i32
    %1217 = tpu.assume_multiple %1216, 8 : i32
    %1218 = arith.index_cast %1217 : i32 to index
    %c0_327 = arith.constant 0 : index
    %1219 = vector.load %arg18[%1218, %c0_327] : memref<96x512xf32, #tpu.memory_space<vmem>>, vector<8x512xf32>
    %1220 = arith.truncf %1213 : vector<8x128xf32> to vector<8x128xbf16>
    %cst_328 = arith.constant dense<0.000000e+00> : vector<8x512xf32>
    %1221 = tpu.matmul %1220, %873, %cst_328 {dimension_numbers = #tpu.dot_dimension_numbers<[1], [0], [0], [1], [0, 0, 1, 1], [], []>} : vector<8x128xbf16>, vector<128x512xbf16>, vector<8x512xf32> -> vector<8x512xf32>
    %1222 = arith.addf %1219, %1221 : vector<8x512xf32>
    %1223 = vector.extract_strided_slice %1222 {offsets = [0, 0], sizes = [8, 128], strides = [1, 1]} : vector<8x512xf32> to vector<8x128xf32>
    %1224 = arith.negf %1223 : vector<8x128xf32>
    %1225 = math.exp %1224 : vector<8x128xf32>
    %cst_329 = arith.constant 1.000000e+00 : f32
    %1226 = vector.broadcast %cst_329 : f32 to vector<8x128xf32>
    %1227 = arith.addf %1226, %1225 : vector<8x128xf32>
    %1228 = arith.divf %1226, %1227 : vector<8x128xf32>
    %1229 = vector.extract_strided_slice %1222 {offsets = [0, 128], sizes = [8, 128], strides = [1, 1]} : vector<8x512xf32> to vector<8x128xf32>
    %1230 = arith.negf %1229 : vector<8x128xf32>
    %1231 = math.exp %1230 : vector<8x128xf32>
    %cst_330 = arith.constant 1.000000e+00 : f32
    %1232 = vector.broadcast %cst_330 : f32 to vector<8x128xf32>
    %1233 = arith.addf %1232, %1231 : vector<8x128xf32>
    %1234 = arith.divf %1232, %1233 : vector<8x128xf32>
    %1235 = vector.extract_strided_slice %1222 {offsets = [0, 256], sizes = [8, 128], strides = [1, 1]} : vector<8x512xf32> to vector<8x128xf32>
    %1236 = math.tanh %1235 : vector<8x128xf32>
    %1237 = vector.extract_strided_slice %1222 {offsets = [0, 384], sizes = [8, 128], strides = [1, 1]} : vector<8x512xf32> to vector<8x128xf32>
    %1238 = arith.negf %1237 : vector<8x128xf32>
    %1239 = math.exp %1238 : vector<8x128xf32>
    %cst_331 = arith.constant 1.000000e+00 : f32
    %1240 = vector.broadcast %cst_331 : f32 to vector<8x128xf32>
    %1241 = arith.addf %1240, %1239 : vector<8x128xf32>
    %1242 = arith.divf %1240, %1241 : vector<8x128xf32>
    %1243 = arith.mulf %1234, %1211 : vector<8x128xf32>
    %1244 = arith.mulf %1228, %1236 : vector<8x128xf32>
    %1245 = arith.addf %1243, %1244 : vector<8x128xf32>
    %1246 = math.tanh %1245 : vector<8x128xf32>
    %1247 = arith.mulf %1242, %1246 : vector<8x128xf32>
    %1248 = arith.index_cast %1217 : i32 to index
    %c0_332 = arith.constant 0 : index
    %1249 = vector.load %arg13[%1248, %c0_332] : memref<96x256xf32, #tpu.memory_space<vmem>>, vector<8x128xf32>
    tpu.vector_store %arg13[%1248, %c0_332], %1247 {strides = array<i32>} : memref<96x256xf32, #tpu.memory_space<vmem>>, vector<8x128xf32>,
    %c11_i32_333 = arith.constant 11 : i32
    %c8_i32_334 = arith.constant 8 : i32
    %1250 = arith.muli %c11_i32_333, %c8_i32_334 : i32
    %1251 = tpu.assume_multiple %1250, 8 : i32
    %1252 = arith.index_cast %1251 : i32 to index
    %c0_335 = arith.constant 0 : index
    %1253 = vector.load %arg18[%1252, %c0_335] : memref<96x512xf32, #tpu.memory_space<vmem>>, vector<8x512xf32>
    %1254 = arith.truncf %1247 : vector<8x128xf32> to vector<8x128xbf16>
    %cst_336 = arith.constant dense<0.000000e+00> : vector<8x512xf32>
    %1255 = tpu.matmul %1254, %873, %cst_336 {dimension_numbers = #tpu.dot_dimension_numbers<[1], [0], [0], [1], [0, 0, 1, 1], [], []>} : vector<8x128xbf16>, vector<128x512xbf16>, vector<8x512xf32> -> vector<8x512xf32>
    %1256 = arith.addf %1253, %1255 : vector<8x512xf32>
    %1257 = vector.extract_strided_slice %1256 {offsets = [0, 0], sizes = [8, 128], strides = [1, 1]} : vector<8x512xf32> to vector<8x128xf32>
    %1258 = arith.negf %1257 : vector<8x128xf32>
    %1259 = math.exp %1258 : vector<8x128xf32>
    %cst_337 = arith.constant 1.000000e+00 : f32
    %1260 = vector.broadcast %cst_337 : f32 to vector<8x128xf32>
    %1261 = arith.addf %1260, %1259 : vector<8x128xf32>
    %1262 = arith.divf %1260, %1261 : vector<8x128xf32>
    %1263 = vector.extract_strided_slice %1256 {offsets = [0, 128], sizes = [8, 128], strides = [1, 1]} : vector<8x512xf32> to vector<8x128xf32>
    %1264 = arith.negf %1263 : vector<8x128xf32>
    %1265 = math.exp %1264 : vector<8x128xf32>
    %cst_338 = arith.constant 1.000000e+00 : f32
    %1266 = vector.broadcast %cst_338 : f32 to vector<8x128xf32>
    %1267 = arith.addf %1266, %1265 : vector<8x128xf32>
    %1268 = arith.divf %1266, %1267 : vector<8x128xf32>
    %1269 = vector.extract_strided_slice %1256 {offsets = [0, 256], sizes = [8, 128], strides = [1, 1]} : vector<8x512xf32> to vector<8x128xf32>
    %1270 = math.tanh %1269 : vector<8x128xf32>
    %1271 = vector.extract_strided_slice %1256 {offsets = [0, 384], sizes = [8, 128], strides = [1, 1]} : vector<8x512xf32> to vector<8x128xf32>
    %1272 = arith.negf %1271 : vector<8x128xf32>
    %1273 = math.exp %1272 : vector<8x128xf32>
    %cst_339 = arith.constant 1.000000e+00 : f32
    %1274 = vector.broadcast %cst_339 : f32 to vector<8x128xf32>
    %1275 = arith.addf %1274, %1273 : vector<8x128xf32>
    %1276 = arith.divf %1274, %1275 : vector<8x128xf32>
    %1277 = arith.mulf %1268, %1245 : vector<8x128xf32>
    %1278 = arith.mulf %1262, %1270 : vector<8x128xf32>
    %1279 = arith.addf %1277, %1278 : vector<8x128xf32>
    %1280 = math.tanh %1279 : vector<8x128xf32>
    %1281 = arith.mulf %1276, %1280 : vector<8x128xf32>
    %1282 = arith.index_cast %1251 : i32 to index
    %c0_340 = arith.constant 0 : index
    %1283 = vector.load %arg13[%1282, %c0_340] : memref<96x256xf32, #tpu.memory_space<vmem>>, vector<8x128xf32>
    tpu.vector_store %arg13[%1282, %c0_340], %1281 {strides = array<i32>} : memref<96x256xf32, #tpu.memory_space<vmem>>, vector<8x128xf32>,
    %c12_i32_341 = arith.constant 12 : i32
    %c2 = arith.constant 2 : index
    %c0_342 = arith.constant 0 : index
    %c0_343 = arith.constant 0 : index
    %1284 = vector.load %arg14[%c2, %c0_342, %c0_343] : memref<4x8x128xf32, #tpu.memory_space<vmem>>, vector<1x8x128xf32>
    %1285 = vector.shape_cast %1284 : vector<1x8x128xf32> to vector<8x128xf32>
    %1286 = vector.shape_cast %1281 : vector<8x128xf32> to vector<1x8x128xf32>
    tpu.vector_store %arg14[%c2, %c0_342, %c0_343], %1286 {strides = array<i32>} : memref<4x8x128xf32, #tpu.memory_space<vmem>>, vector<1x8x128xf32>,
    %c2_344 = arith.constant 2 : index
    %c0_345 = arith.constant 0 : index
    %c0_346 = arith.constant 0 : index
    %1287 = vector.load %arg15[%c2_344, %c0_345, %c0_346] : memref<4x8x128xf32, #tpu.memory_space<vmem>>, vector<1x8x128xf32>
    %1288 = vector.shape_cast %1287 : vector<1x8x128xf32> to vector<8x128xf32>
    %1289 = vector.shape_cast %1279 : vector<8x128xf32> to vector<1x8x128xf32>
    tpu.vector_store %arg15[%c2_344, %c0_345, %c0_346], %1289 {strides = array<i32>} : memref<4x8x128xf32, #tpu.memory_space<vmem>>, vector<1x8x128xf32>,
    %c0_347 = arith.constant 0 : index
    %c0_348 = arith.constant 0 : index
    %1290 = vector.load %arg11[%c0_347, %c0_348] : memref<128x512xbf16, #tpu.memory_space<vmem>>, vector<128x512xbf16>
    %cst_349 = arith.constant 0.000000e+00 : f32
    %1291 = vector.broadcast %cst_349 : f32 to vector<8x128xf32>
    %cst_350 = arith.constant 0.000000e+00 : f32
    %1292 = vector.broadcast %cst_350 : f32 to vector<8x128xf32>
    %c0_i32_351 = arith.constant 0 : i32
    %c11_i32_352 = arith.constant 11 : i32
    %1293 = arith.subi %c11_i32_352, %c0_i32_351 : i32
    %c8_i32_353 = arith.constant 8 : i32
    %1294 = arith.muli %1293, %c8_i32_353 : i32
    %1295 = tpu.assume_multiple %1294, 8 : i32
    %1296 = arith.index_cast %1295 : i32 to index
    %c0_354 = arith.constant 0 : index
    %1297 = vector.load %arg19[%1296, %c0_354] : memref<96x512xf32, #tpu.memory_space<vmem>>, vector<8x512xf32>
    %1298 = arith.truncf %1291 : vector<8x128xf32> to vector<8x128xbf16>
    %cst_355 = arith.constant dense<0.000000e+00> : vector<8x512xf32>
    %1299 = tpu.matmul %1298, %1290, %cst_355 {dimension_numbers = #tpu.dot_dimension_numbers<[1], [0], [0], [1], [0, 0, 1, 1], [], []>} : vector<8x128xbf16>, vector<128x512xbf16>, vector<8x512xf32> -> vector<8x512xf32>
    %1300 = arith.addf %1297, %1299 : vector<8x512xf32>
    %1301 = vector.extract_strided_slice %1300 {offsets = [0, 0], sizes = [8, 128], strides = [1, 1]} : vector<8x512xf32> to vector<8x128xf32>
    %1302 = arith.negf %1301 : vector<8x128xf32>
    %1303 = math.exp %1302 : vector<8x128xf32>
    %cst_356 = arith.constant 1.000000e+00 : f32
    %1304 = vector.broadcast %cst_356 : f32 to vector<8x128xf32>
    %1305 = arith.addf %1304, %1303 : vector<8x128xf32>
    %1306 = arith.divf %1304, %1305 : vector<8x128xf32>
    %1307 = vector.extract_strided_slice %1300 {offsets = [0, 128], sizes = [8, 128], strides = [1, 1]} : vector<8x512xf32> to vector<8x128xf32>
    %1308 = arith.negf %1307 : vector<8x128xf32>
    %1309 = math.exp %1308 : vector<8x128xf32>
    %cst_357 = arith.constant 1.000000e+00 : f32
    %1310 = vector.broadcast %cst_357 : f32 to vector<8x128xf32>
    %1311 = arith.addf %1310, %1309 : vector<8x128xf32>
    %1312 = arith.divf %1310, %1311 : vector<8x128xf32>
    %1313 = vector.extract_strided_slice %1300 {offsets = [0, 256], sizes = [8, 128], strides = [1, 1]} : vector<8x512xf32> to vector<8x128xf32>
    %1314 = math.tanh %1313 : vector<8x128xf32>
    %1315 = vector.extract_strided_slice %1300 {offsets = [0, 384], sizes = [8, 128], strides = [1, 1]} : vector<8x512xf32> to vector<8x128xf32>
    %1316 = arith.negf %1315 : vector<8x128xf32>
    %1317 = math.exp %1316 : vector<8x128xf32>
    %cst_358 = arith.constant 1.000000e+00 : f32
    %1318 = vector.broadcast %cst_358 : f32 to vector<8x128xf32>
    %1319 = arith.addf %1318, %1317 : vector<8x128xf32>
    %1320 = arith.divf %1318, %1319 : vector<8x128xf32>
    %1321 = arith.mulf %1312, %1292 : vector<8x128xf32>
    %1322 = arith.mulf %1306, %1314 : vector<8x128xf32>
    %1323 = arith.addf %1321, %1322 : vector<8x128xf32>
    %1324 = math.tanh %1323 : vector<8x128xf32>
    %1325 = arith.mulf %1320, %1324 : vector<8x128xf32>
    %1326 = arith.index_cast %1295 : i32 to index
    %c128_359 = arith.constant 128 : index
    %1327 = vector.load %arg13[%1326, %c128_359] : memref<96x256xf32, #tpu.memory_space<vmem>>, vector<8x128xf32>
    tpu.vector_store %arg13[%1326, %c128_359], %1325 {strides = array<i32>} : memref<96x256xf32, #tpu.memory_space<vmem>>, vector<8x128xf32>,
    %c1_i32_360 = arith.constant 1 : i32
    %c11_i32_361 = arith.constant 11 : i32
    %1328 = arith.subi %c11_i32_361, %c1_i32_360 : i32
    %c8_i32_362 = arith.constant 8 : i32
    %1329 = arith.muli %1328, %c8_i32_362 : i32
    %1330 = tpu.assume_multiple %1329, 8 : i32
    %1331 = arith.index_cast %1330 : i32 to index
    %c0_363 = arith.constant 0 : index
    %1332 = vector.load %arg19[%1331, %c0_363] : memref<96x512xf32, #tpu.memory_space<vmem>>, vector<8x512xf32>
    %1333 = arith.truncf %1325 : vector<8x128xf32> to vector<8x128xbf16>
    %cst_364 = arith.constant dense<0.000000e+00> : vector<8x512xf32>
    %1334 = tpu.matmul %1333, %1290, %cst_364 {dimension_numbers = #tpu.dot_dimension_numbers<[1], [0], [0], [1], [0, 0, 1, 1], [], []>} : vector<8x128xbf16>, vector<128x512xbf16>, vector<8x512xf32> -> vector<8x512xf32>
    %1335 = arith.addf %1332, %1334 : vector<8x512xf32>
    %1336 = vector.extract_strided_slice %1335 {offsets = [0, 0], sizes = [8, 128], strides = [1, 1]} : vector<8x512xf32> to vector<8x128xf32>
    %1337 = arith.negf %1336 : vector<8x128xf32>
    %1338 = math.exp %1337 : vector<8x128xf32>
    %cst_365 = arith.constant 1.000000e+00 : f32
    %1339 = vector.broadcast %cst_365 : f32 to vector<8x128xf32>
    %1340 = arith.addf %1339, %1338 : vector<8x128xf32>
    %1341 = arith.divf %1339, %1340 : vector<8x128xf32>
    %1342 = vector.extract_strided_slice %1335 {offsets = [0, 128], sizes = [8, 128], strides = [1, 1]} : vector<8x512xf32> to vector<8x128xf32>
    %1343 = arith.negf %1342 : vector<8x128xf32>
    %1344 = math.exp %1343 : vector<8x128xf32>
    %cst_366 = arith.constant 1.000000e+00 : f32
    %1345 = vector.broadcast %cst_366 : f32 to vector<8x128xf32>
    %1346 = arith.addf %1345, %1344 : vector<8x128xf32>
    %1347 = arith.divf %1345, %1346 : vector<8x128xf32>
    %1348 = vector.extract_strided_slice %1335 {offsets = [0, 256], sizes = [8, 128], strides = [1, 1]} : vector<8x512xf32> to vector<8x128xf32>
    %1349 = math.tanh %1348 : vector<8x128xf32>
    %1350 = vector.extract_strided_slice %1335 {offsets = [0, 384], sizes = [8, 128], strides = [1, 1]} : vector<8x512xf32> to vector<8x128xf32>
    %1351 = arith.negf %1350 : vector<8x128xf32>
    %1352 = math.exp %1351 : vector<8x128xf32>
    %cst_367 = arith.constant 1.000000e+00 : f32
    %1353 = vector.broadcast %cst_367 : f32 to vector<8x128xf32>
    %1354 = arith.addf %1353, %1352 : vector<8x128xf32>
    %1355 = arith.divf %1353, %1354 : vector<8x128xf32>
    %1356 = arith.mulf %1347, %1323 : vector<8x128xf32>
    %1357 = arith.mulf %1341, %1349 : vector<8x128xf32>
    %1358 = arith.addf %1356, %1357 : vector<8x128xf32>
    %1359 = math.tanh %1358 : vector<8x128xf32>
    %1360 = arith.mulf %1355, %1359 : vector<8x128xf32>
    %1361 = arith.index_cast %1330 : i32 to index
    %c128_368 = arith.constant 128 : index
    %1362 = vector.load %arg13[%1361, %c128_368] : memref<96x256xf32, #tpu.memory_space<vmem>>, vector<8x128xf32>
    tpu.vector_store %arg13[%1361, %c128_368], %1360 {strides = array<i32>} : memref<96x256xf32, #tpu.memory_space<vmem>>, vector<8x128xf32>,
    %c2_i32_369 = arith.constant 2 : i32
    %c11_i32_370 = arith.constant 11 : i32
    %1363 = arith.subi %c11_i32_370, %c2_i32_369 : i32
    %c8_i32_371 = arith.constant 8 : i32
    %1364 = arith.muli %1363, %c8_i32_371 : i32
    %1365 = tpu.assume_multiple %1364, 8 : i32
    %1366 = arith.index_cast %1365 : i32 to index
    %c0_372 = arith.constant 0 : index
    %1367 = vector.load %arg19[%1366, %c0_372] : memref<96x512xf32, #tpu.memory_space<vmem>>, vector<8x512xf32>
    %1368 = arith.truncf %1360 : vector<8x128xf32> to vector<8x128xbf16>
    %cst_373 = arith.constant dense<0.000000e+00> : vector<8x512xf32>
    %1369 = tpu.matmul %1368, %1290, %cst_373 {dimension_numbers = #tpu.dot_dimension_numbers<[1], [0], [0], [1], [0, 0, 1, 1], [], []>} : vector<8x128xbf16>, vector<128x512xbf16>, vector<8x512xf32> -> vector<8x512xf32>
    %1370 = arith.addf %1367, %1369 : vector<8x512xf32>
    %1371 = vector.extract_strided_slice %1370 {offsets = [0, 0], sizes = [8, 128], strides = [1, 1]} : vector<8x512xf32> to vector<8x128xf32>
    %1372 = arith.negf %1371 : vector<8x128xf32>
    %1373 = math.exp %1372 : vector<8x128xf32>
    %cst_374 = arith.constant 1.000000e+00 : f32
    %1374 = vector.broadcast %cst_374 : f32 to vector<8x128xf32>
    %1375 = arith.addf %1374, %1373 : vector<8x128xf32>
    %1376 = arith.divf %1374, %1375 : vector<8x128xf32>
    %1377 = vector.extract_strided_slice %1370 {offsets = [0, 128], sizes = [8, 128], strides = [1, 1]} : vector<8x512xf32> to vector<8x128xf32>
    %1378 = arith.negf %1377 : vector<8x128xf32>
    %1379 = math.exp %1378 : vector<8x128xf32>
    %cst_375 = arith.constant 1.000000e+00 : f32
    %1380 = vector.broadcast %cst_375 : f32 to vector<8x128xf32>
    %1381 = arith.addf %1380, %1379 : vector<8x128xf32>
    %1382 = arith.divf %1380, %1381 : vector<8x128xf32>
    %1383 = vector.extract_strided_slice %1370 {offsets = [0, 256], sizes = [8, 128], strides = [1, 1]} : vector<8x512xf32> to vector<8x128xf32>
    %1384 = math.tanh %1383 : vector<8x128xf32>
    %1385 = vector.extract_strided_slice %1370 {offsets = [0, 384], sizes = [8, 128], strides = [1, 1]} : vector<8x512xf32> to vector<8x128xf32>
    %1386 = arith.negf %1385 : vector<8x128xf32>
    %1387 = math.exp %1386 : vector<8x128xf32>
    %cst_376 = arith.constant 1.000000e+00 : f32
    %1388 = vector.broadcast %cst_376 : f32 to vector<8x128xf32>
    %1389 = arith.addf %1388, %1387 : vector<8x128xf32>
    %1390 = arith.divf %1388, %1389 : vector<8x128xf32>
    %1391 = arith.mulf %1382, %1358 : vector<8x128xf32>
    %1392 = arith.mulf %1376, %1384 : vector<8x128xf32>
    %1393 = arith.addf %1391, %1392 : vector<8x128xf32>
    %1394 = math.tanh %1393 : vector<8x128xf32>
    %1395 = arith.mulf %1390, %1394 : vector<8x128xf32>
    %1396 = arith.index_cast %1365 : i32 to index
    %c128_377 = arith.constant 128 : index
    %1397 = vector.load %arg13[%1396, %c128_377] : memref<96x256xf32, #tpu.memory_space<vmem>>, vector<8x128xf32>
    tpu.vector_store %arg13[%1396, %c128_377], %1395 {strides = array<i32>} : memref<96x256xf32, #tpu.memory_space<vmem>>, vector<8x128xf32>,
    %c3_i32_378 = arith.constant 3 : i32
    %c11_i32_379 = arith.constant 11 : i32
    %1398 = arith.subi %c11_i32_379, %c3_i32_378 : i32
    %c8_i32_380 = arith.constant 8 : i32
    %1399 = arith.muli %1398, %c8_i32_380 : i32
    %1400 = tpu.assume_multiple %1399, 8 : i32
    %1401 = arith.index_cast %1400 : i32 to index
    %c0_381 = arith.constant 0 : index
    %1402 = vector.load %arg19[%1401, %c0_381] : memref<96x512xf32, #tpu.memory_space<vmem>>, vector<8x512xf32>
    %1403 = arith.truncf %1395 : vector<8x128xf32> to vector<8x128xbf16>
    %cst_382 = arith.constant dense<0.000000e+00> : vector<8x512xf32>
    %1404 = tpu.matmul %1403, %1290, %cst_382 {dimension_numbers = #tpu.dot_dimension_numbers<[1], [0], [0], [1], [0, 0, 1, 1], [], []>} : vector<8x128xbf16>, vector<128x512xbf16>, vector<8x512xf32> -> vector<8x512xf32>
    %1405 = arith.addf %1402, %1404 : vector<8x512xf32>
    %1406 = vector.extract_strided_slice %1405 {offsets = [0, 0], sizes = [8, 128], strides = [1, 1]} : vector<8x512xf32> to vector<8x128xf32>
    %1407 = arith.negf %1406 : vector<8x128xf32>
    %1408 = math.exp %1407 : vector<8x128xf32>
    %cst_383 = arith.constant 1.000000e+00 : f32
    %1409 = vector.broadcast %cst_383 : f32 to vector<8x128xf32>
    %1410 = arith.addf %1409, %1408 : vector<8x128xf32>
    %1411 = arith.divf %1409, %1410 : vector<8x128xf32>
    %1412 = vector.extract_strided_slice %1405 {offsets = [0, 128], sizes = [8, 128], strides = [1, 1]} : vector<8x512xf32> to vector<8x128xf32>
    %1413 = arith.negf %1412 : vector<8x128xf32>
    %1414 = math.exp %1413 : vector<8x128xf32>
    %cst_384 = arith.constant 1.000000e+00 : f32
    %1415 = vector.broadcast %cst_384 : f32 to vector<8x128xf32>
    %1416 = arith.addf %1415, %1414 : vector<8x128xf32>
    %1417 = arith.divf %1415, %1416 : vector<8x128xf32>
    %1418 = vector.extract_strided_slice %1405 {offsets = [0, 256], sizes = [8, 128], strides = [1, 1]} : vector<8x512xf32> to vector<8x128xf32>
    %1419 = math.tanh %1418 : vector<8x128xf32>
    %1420 = vector.extract_strided_slice %1405 {offsets = [0, 384], sizes = [8, 128], strides = [1, 1]} : vector<8x512xf32> to vector<8x128xf32>
    %1421 = arith.negf %1420 : vector<8x128xf32>
    %1422 = math.exp %1421 : vector<8x128xf32>
    %cst_385 = arith.constant 1.000000e+00 : f32
    %1423 = vector.broadcast %cst_385 : f32 to vector<8x128xf32>
    %1424 = arith.addf %1423, %1422 : vector<8x128xf32>
    %1425 = arith.divf %1423, %1424 : vector<8x128xf32>
    %1426 = arith.mulf %1417, %1393 : vector<8x128xf32>
    %1427 = arith.mulf %1411, %1419 : vector<8x128xf32>
    %1428 = arith.addf %1426, %1427 : vector<8x128xf32>
    %1429 = math.tanh %1428 : vector<8x128xf32>
    %1430 = arith.mulf %1425, %1429 : vector<8x128xf32>
    %1431 = arith.index_cast %1400 : i32 to index
    %c128_386 = arith.constant 128 : index
    %1432 = vector.load %arg13[%1431, %c128_386] : memref<96x256xf32, #tpu.memory_space<vmem>>, vector<8x128xf32>
    tpu.vector_store %arg13[%1431, %c128_386], %1430 {strides = array<i32>} : memref<96x256xf32, #tpu.memory_space<vmem>>, vector<8x128xf32>,
    %c4_i32_387 = arith.constant 4 : i32
    %c11_i32_388 = arith.constant 11 : i32
    %1433 = arith.subi %c11_i32_388, %c4_i32_387 : i32
    %c8_i32_389 = arith.constant 8 : i32
    %1434 = arith.muli %1433, %c8_i32_389 : i32
    %1435 = tpu.assume_multiple %1434, 8 : i32
    %1436 = arith.index_cast %1435 : i32 to index
    %c0_390 = arith.constant 0 : index
    %1437 = vector.load %arg19[%1436, %c0_390] : memref<96x512xf32, #tpu.memory_space<vmem>>, vector<8x512xf32>
    %1438 = arith.truncf %1430 : vector<8x128xf32> to vector<8x128xbf16>
    %cst_391 = arith.constant dense<0.000000e+00> : vector<8x512xf32>
    %1439 = tpu.matmul %1438, %1290, %cst_391 {dimension_numbers = #tpu.dot_dimension_numbers<[1], [0], [0], [1], [0, 0, 1, 1], [], []>} : vector<8x128xbf16>, vector<128x512xbf16>, vector<8x512xf32> -> vector<8x512xf32>
    %1440 = arith.addf %1437, %1439 : vector<8x512xf32>
    %1441 = vector.extract_strided_slice %1440 {offsets = [0, 0], sizes = [8, 128], strides = [1, 1]} : vector<8x512xf32> to vector<8x128xf32>
    %1442 = arith.negf %1441 : vector<8x128xf32>
    %1443 = math.exp %1442 : vector<8x128xf32>
    %cst_392 = arith.constant 1.000000e+00 : f32
    %1444 = vector.broadcast %cst_392 : f32 to vector<8x128xf32>
    %1445 = arith.addf %1444, %1443 : vector<8x128xf32>
    %1446 = arith.divf %1444, %1445 : vector<8x128xf32>
    %1447 = vector.extract_strided_slice %1440 {offsets = [0, 128], sizes = [8, 128], strides = [1, 1]} : vector<8x512xf32> to vector<8x128xf32>
    %1448 = arith.negf %1447 : vector<8x128xf32>
    %1449 = math.exp %1448 : vector<8x128xf32>
    %cst_393 = arith.constant 1.000000e+00 : f32
    %1450 = vector.broadcast %cst_393 : f32 to vector<8x128xf32>
    %1451 = arith.addf %1450, %1449 : vector<8x128xf32>
    %1452 = arith.divf %1450, %1451 : vector<8x128xf32>
    %1453 = vector.extract_strided_slice %1440 {offsets = [0, 256], sizes = [8, 128], strides = [1, 1]} : vector<8x512xf32> to vector<8x128xf32>
    %1454 = math.tanh %1453 : vector<8x128xf32>
    %1455 = vector.extract_strided_slice %1440 {offsets = [0, 384], sizes = [8, 128], strides = [1, 1]} : vector<8x512xf32> to vector<8x128xf32>
    %1456 = arith.negf %1455 : vector<8x128xf32>
    %1457 = math.exp %1456 : vector<8x128xf32>
    %cst_394 = arith.constant 1.000000e+00 : f32
    %1458 = vector.broadcast %cst_394 : f32 to vector<8x128xf32>
    %1459 = arith.addf %1458, %1457 : vector<8x128xf32>
    %1460 = arith.divf %1458, %1459 : vector<8x128xf32>
    %1461 = arith.mulf %1452, %1428 : vector<8x128xf32>
    %1462 = arith.mulf %1446, %1454 : vector<8x128xf32>
    %1463 = arith.addf %1461, %1462 : vector<8x128xf32>
    %1464 = math.tanh %1463 : vector<8x128xf32>
    %1465 = arith.mulf %1460, %1464 : vector<8x128xf32>
    %1466 = arith.index_cast %1435 : i32 to index
    %c128_395 = arith.constant 128 : index
    %1467 = vector.load %arg13[%1466, %c128_395] : memref<96x256xf32, #tpu.memory_space<vmem>>, vector<8x128xf32>
    tpu.vector_store %arg13[%1466, %c128_395], %1465 {strides = array<i32>} : memref<96x256xf32, #tpu.memory_space<vmem>>, vector<8x128xf32>,
    %c5_i32_396 = arith.constant 5 : i32
    %c11_i32_397 = arith.constant 11 : i32
    %1468 = arith.subi %c11_i32_397, %c5_i32_396 : i32
    %c8_i32_398 = arith.constant 8 : i32
    %1469 = arith.muli %1468, %c8_i32_398 : i32
    %1470 = tpu.assume_multiple %1469, 8 : i32
    %1471 = arith.index_cast %1470 : i32 to index
    %c0_399 = arith.constant 0 : index
    %1472 = vector.load %arg19[%1471, %c0_399] : memref<96x512xf32, #tpu.memory_space<vmem>>, vector<8x512xf32>
    %1473 = arith.truncf %1465 : vector<8x128xf32> to vector<8x128xbf16>
    %cst_400 = arith.constant dense<0.000000e+00> : vector<8x512xf32>
    %1474 = tpu.matmul %1473, %1290, %cst_400 {dimension_numbers = #tpu.dot_dimension_numbers<[1], [0], [0], [1], [0, 0, 1, 1], [], []>} : vector<8x128xbf16>, vector<128x512xbf16>, vector<8x512xf32> -> vector<8x512xf32>
    %1475 = arith.addf %1472, %1474 : vector<8x512xf32>
    %1476 = vector.extract_strided_slice %1475 {offsets = [0, 0], sizes = [8, 128], strides = [1, 1]} : vector<8x512xf32> to vector<8x128xf32>
    %1477 = arith.negf %1476 : vector<8x128xf32>
    %1478 = math.exp %1477 : vector<8x128xf32>
    %cst_401 = arith.constant 1.000000e+00 : f32
    %1479 = vector.broadcast %cst_401 : f32 to vector<8x128xf32>
    %1480 = arith.addf %1479, %1478 : vector<8x128xf32>
    %1481 = arith.divf %1479, %1480 : vector<8x128xf32>
    %1482 = vector.extract_strided_slice %1475 {offsets = [0, 128], sizes = [8, 128], strides = [1, 1]} : vector<8x512xf32> to vector<8x128xf32>
    %1483 = arith.negf %1482 : vector<8x128xf32>
    %1484 = math.exp %1483 : vector<8x128xf32>
    %cst_402 = arith.constant 1.000000e+00 : f32
    %1485 = vector.broadcast %cst_402 : f32 to vector<8x128xf32>
    %1486 = arith.addf %1485, %1484 : vector<8x128xf32>
    %1487 = arith.divf %1485, %1486 : vector<8x128xf32>
    %1488 = vector.extract_strided_slice %1475 {offsets = [0, 256], sizes = [8, 128], strides = [1, 1]} : vector<8x512xf32> to vector<8x128xf32>
    %1489 = math.tanh %1488 : vector<8x128xf32>
    %1490 = vector.extract_strided_slice %1475 {offsets = [0, 384], sizes = [8, 128], strides = [1, 1]} : vector<8x512xf32> to vector<8x128xf32>
    %1491 = arith.negf %1490 : vector<8x128xf32>
    %1492 = math.exp %1491 : vector<8x128xf32>
    %cst_403 = arith.constant 1.000000e+00 : f32
    %1493 = vector.broadcast %cst_403 : f32 to vector<8x128xf32>
    %1494 = arith.addf %1493, %1492 : vector<8x128xf32>
    %1495 = arith.divf %1493, %1494 : vector<8x128xf32>
    %1496 = arith.mulf %1487, %1463 : vector<8x128xf32>
    %1497 = arith.mulf %1481, %1489 : vector<8x128xf32>
    %1498 = arith.addf %1496, %1497 : vector<8x128xf32>
    %1499 = math.tanh %1498 : vector<8x128xf32>
    %1500 = arith.mulf %1495, %1499 : vector<8x128xf32>
    %1501 = arith.index_cast %1470 : i32 to index
    %c128_404 = arith.constant 128 : index
    %1502 = vector.load %arg13[%1501, %c128_404] : memref<96x256xf32, #tpu.memory_space<vmem>>, vector<8x128xf32>
    tpu.vector_store %arg13[%1501, %c128_404], %1500 {strides = array<i32>} : memref<96x256xf32, #tpu.memory_space<vmem>>, vector<8x128xf32>,
    %c6_i32_405 = arith.constant 6 : i32
    %c11_i32_406 = arith.constant 11 : i32
    %1503 = arith.subi %c11_i32_406, %c6_i32_405 : i32
    %c8_i32_407 = arith.constant 8 : i32
    %1504 = arith.muli %1503, %c8_i32_407 : i32
    %1505 = tpu.assume_multiple %1504, 8 : i32
    %1506 = arith.index_cast %1505 : i32 to index
    %c0_408 = arith.constant 0 : index
    %1507 = vector.load %arg19[%1506, %c0_408] : memref<96x512xf32, #tpu.memory_space<vmem>>, vector<8x512xf32>
    %1508 = arith.truncf %1500 : vector<8x128xf32> to vector<8x128xbf16>
    %cst_409 = arith.constant dense<0.000000e+00> : vector<8x512xf32>
    %1509 = tpu.matmul %1508, %1290, %cst_409 {dimension_numbers = #tpu.dot_dimension_numbers<[1], [0], [0], [1], [0, 0, 1, 1], [], []>} : vector<8x128xbf16>, vector<128x512xbf16>, vector<8x512xf32> -> vector<8x512xf32>
    %1510 = arith.addf %1507, %1509 : vector<8x512xf32>
    %1511 = vector.extract_strided_slice %1510 {offsets = [0, 0], sizes = [8, 128], strides = [1, 1]} : vector<8x512xf32> to vector<8x128xf32>
    %1512 = arith.negf %1511 : vector<8x128xf32>
    %1513 = math.exp %1512 : vector<8x128xf32>
    %cst_410 = arith.constant 1.000000e+00 : f32
    %1514 = vector.broadcast %cst_410 : f32 to vector<8x128xf32>
    %1515 = arith.addf %1514, %1513 : vector<8x128xf32>
    %1516 = arith.divf %1514, %1515 : vector<8x128xf32>
    %1517 = vector.extract_strided_slice %1510 {offsets = [0, 128], sizes = [8, 128], strides = [1, 1]} : vector<8x512xf32> to vector<8x128xf32>
    %1518 = arith.negf %1517 : vector<8x128xf32>
    %1519 = math.exp %1518 : vector<8x128xf32>
    %cst_411 = arith.constant 1.000000e+00 : f32
    %1520 = vector.broadcast %cst_411 : f32 to vector<8x128xf32>
    %1521 = arith.addf %1520, %1519 : vector<8x128xf32>
    %1522 = arith.divf %1520, %1521 : vector<8x128xf32>
    %1523 = vector.extract_strided_slice %1510 {offsets = [0, 256], sizes = [8, 128], strides = [1, 1]} : vector<8x512xf32> to vector<8x128xf32>
    %1524 = math.tanh %1523 : vector<8x128xf32>
    %1525 = vector.extract_strided_slice %1510 {offsets = [0, 384], sizes = [8, 128], strides = [1, 1]} : vector<8x512xf32> to vector<8x128xf32>
    %1526 = arith.negf %1525 : vector<8x128xf32>
    %1527 = math.exp %1526 : vector<8x128xf32>
    %cst_412 = arith.constant 1.000000e+00 : f32
    %1528 = vector.broadcast %cst_412 : f32 to vector<8x128xf32>
    %1529 = arith.addf %1528, %1527 : vector<8x128xf32>
    %1530 = arith.divf %1528, %1529 : vector<8x128xf32>
    %1531 = arith.mulf %1522, %1498 : vector<8x128xf32>
    %1532 = arith.mulf %1516, %1524 : vector<8x128xf32>
    %1533 = arith.addf %1531, %1532 : vector<8x128xf32>
    %1534 = math.tanh %1533 : vector<8x128xf32>
    %1535 = arith.mulf %1530, %1534 : vector<8x128xf32>
    %1536 = arith.index_cast %1505 : i32 to index
    %c128_413 = arith.constant 128 : index
    %1537 = vector.load %arg13[%1536, %c128_413] : memref<96x256xf32, #tpu.memory_space<vmem>>, vector<8x128xf32>
    tpu.vector_store %arg13[%1536, %c128_413], %1535 {strides = array<i32>} : memref<96x256xf32, #tpu.memory_space<vmem>>, vector<8x128xf32>,
    %c7_i32_414 = arith.constant 7 : i32
    %c11_i32_415 = arith.constant 11 : i32
    %1538 = arith.subi %c11_i32_415, %c7_i32_414 : i32
    %c8_i32_416 = arith.constant 8 : i32
    %1539 = arith.muli %1538, %c8_i32_416 : i32
    %1540 = tpu.assume_multiple %1539, 8 : i32
    %1541 = arith.index_cast %1540 : i32 to index
    %c0_417 = arith.constant 0 : index
    %1542 = vector.load %arg19[%1541, %c0_417] : memref<96x512xf32, #tpu.memory_space<vmem>>, vector<8x512xf32>
    %1543 = arith.truncf %1535 : vector<8x128xf32> to vector<8x128xbf16>
    %cst_418 = arith.constant dense<0.000000e+00> : vector<8x512xf32>
    %1544 = tpu.matmul %1543, %1290, %cst_418 {dimension_numbers = #tpu.dot_dimension_numbers<[1], [0], [0], [1], [0, 0, 1, 1], [], []>} : vector<8x128xbf16>, vector<128x512xbf16>, vector<8x512xf32> -> vector<8x512xf32>
    %1545 = arith.addf %1542, %1544 : vector<8x512xf32>
    %1546 = vector.extract_strided_slice %1545 {offsets = [0, 0], sizes = [8, 128], strides = [1, 1]} : vector<8x512xf32> to vector<8x128xf32>
    %1547 = arith.negf %1546 : vector<8x128xf32>
    %1548 = math.exp %1547 : vector<8x128xf32>
    %cst_419 = arith.constant 1.000000e+00 : f32
    %1549 = vector.broadcast %cst_419 : f32 to vector<8x128xf32>
    %1550 = arith.addf %1549, %1548 : vector<8x128xf32>
    %1551 = arith.divf %1549, %1550 : vector<8x128xf32>
    %1552 = vector.extract_strided_slice %1545 {offsets = [0, 128], sizes = [8, 128], strides = [1, 1]} : vector<8x512xf32> to vector<8x128xf32>
    %1553 = arith.negf %1552 : vector<8x128xf32>
    %1554 = math.exp %1553 : vector<8x128xf32>
    %cst_420 = arith.constant 1.000000e+00 : f32
    %1555 = vector.broadcast %cst_420 : f32 to vector<8x128xf32>
    %1556 = arith.addf %1555, %1554 : vector<8x128xf32>
    %1557 = arith.divf %1555, %1556 : vector<8x128xf32>
    %1558 = vector.extract_strided_slice %1545 {offsets = [0, 256], sizes = [8, 128], strides = [1, 1]} : vector<8x512xf32> to vector<8x128xf32>
    %1559 = math.tanh %1558 : vector<8x128xf32>
    %1560 = vector.extract_strided_slice %1545 {offsets = [0, 384], sizes = [8, 128], strides = [1, 1]} : vector<8x512xf32> to vector<8x128xf32>
    %1561 = arith.negf %1560 : vector<8x128xf32>
    %1562 = math.exp %1561 : vector<8x128xf32>
    %cst_421 = arith.constant 1.000000e+00 : f32
    %1563 = vector.broadcast %cst_421 : f32 to vector<8x128xf32>
    %1564 = arith.addf %1563, %1562 : vector<8x128xf32>
    %1565 = arith.divf %1563, %1564 : vector<8x128xf32>
    %1566 = arith.mulf %1557, %1533 : vector<8x128xf32>
    %1567 = arith.mulf %1551, %1559 : vector<8x128xf32>
    %1568 = arith.addf %1566, %1567 : vector<8x128xf32>
    %1569 = math.tanh %1568 : vector<8x128xf32>
    %1570 = arith.mulf %1565, %1569 : vector<8x128xf32>
    %1571 = arith.index_cast %1540 : i32 to index
    %c128_422 = arith.constant 128 : index
    %1572 = vector.load %arg13[%1571, %c128_422] : memref<96x256xf32, #tpu.memory_space<vmem>>, vector<8x128xf32>
    tpu.vector_store %arg13[%1571, %c128_422], %1570 {strides = array<i32>} : memref<96x256xf32, #tpu.memory_space<vmem>>, vector<8x128xf32>,
    %c8_i32_423 = arith.constant 8 : i32
    %c11_i32_424 = arith.constant 11 : i32
    %1573 = arith.subi %c11_i32_424, %c8_i32_423 : i32
    %c8_i32_425 = arith.constant 8 : i32
    %1574 = arith.muli %1573, %c8_i32_425 : i32
    %1575 = tpu.assume_multiple %1574, 8 : i32
    %1576 = arith.index_cast %1575 : i32 to index
    %c0_426 = arith.constant 0 : index
    %1577 = vector.load %arg19[%1576, %c0_426] : memref<96x512xf32, #tpu.memory_space<vmem>>, vector<8x512xf32>
    %1578 = arith.truncf %1570 : vector<8x128xf32> to vector<8x128xbf16>
    %cst_427 = arith.constant dense<0.000000e+00> : vector<8x512xf32>
    %1579 = tpu.matmul %1578, %1290, %cst_427 {dimension_numbers = #tpu.dot_dimension_numbers<[1], [0], [0], [1], [0, 0, 1, 1], [], []>} : vector<8x128xbf16>, vector<128x512xbf16>, vector<8x512xf32> -> vector<8x512xf32>
    %1580 = arith.addf %1577, %1579 : vector<8x512xf32>
    %1581 = vector.extract_strided_slice %1580 {offsets = [0, 0], sizes = [8, 128], strides = [1, 1]} : vector<8x512xf32> to vector<8x128xf32>
    %1582 = arith.negf %1581 : vector<8x128xf32>
    %1583 = math.exp %1582 : vector<8x128xf32>
    %cst_428 = arith.constant 1.000000e+00 : f32
    %1584 = vector.broadcast %cst_428 : f32 to vector<8x128xf32>
    %1585 = arith.addf %1584, %1583 : vector<8x128xf32>
    %1586 = arith.divf %1584, %1585 : vector<8x128xf32>
    %1587 = vector.extract_strided_slice %1580 {offsets = [0, 128], sizes = [8, 128], strides = [1, 1]} : vector<8x512xf32> to vector<8x128xf32>
    %1588 = arith.negf %1587 : vector<8x128xf32>
    %1589 = math.exp %1588 : vector<8x128xf32>
    %cst_429 = arith.constant 1.000000e+00 : f32
    %1590 = vector.broadcast %cst_429 : f32 to vector<8x128xf32>
    %1591 = arith.addf %1590, %1589 : vector<8x128xf32>
    %1592 = arith.divf %1590, %1591 : vector<8x128xf32>
    %1593 = vector.extract_strided_slice %1580 {offsets = [0, 256], sizes = [8, 128], strides = [1, 1]} : vector<8x512xf32> to vector<8x128xf32>
    %1594 = math.tanh %1593 : vector<8x128xf32>
    %1595 = vector.extract_strided_slice %1580 {offsets = [0, 384], sizes = [8, 128], strides = [1, 1]} : vector<8x512xf32> to vector<8x128xf32>
    %1596 = arith.negf %1595 : vector<8x128xf32>
    %1597 = math.exp %1596 : vector<8x128xf32>
    %cst_430 = arith.constant 1.000000e+00 : f32
    %1598 = vector.broadcast %cst_430 : f32 to vector<8x128xf32>
    %1599 = arith.addf %1598, %1597 : vector<8x128xf32>
    %1600 = arith.divf %1598, %1599 : vector<8x128xf32>
    %1601 = arith.mulf %1592, %1568 : vector<8x128xf32>
    %1602 = arith.mulf %1586, %1594 : vector<8x128xf32>
    %1603 = arith.addf %1601, %1602 : vector<8x128xf32>
    %1604 = math.tanh %1603 : vector<8x128xf32>
    %1605 = arith.mulf %1600, %1604 : vector<8x128xf32>
    %1606 = arith.index_cast %1575 : i32 to index
    %c128_431 = arith.constant 128 : index
    %1607 = vector.load %arg13[%1606, %c128_431] : memref<96x256xf32, #tpu.memory_space<vmem>>, vector<8x128xf32>
    tpu.vector_store %arg13[%1606, %c128_431], %1605 {strides = array<i32>} : memref<96x256xf32, #tpu.memory_space<vmem>>, vector<8x128xf32>,
    %c9_i32_432 = arith.constant 9 : i32
    %c11_i32_433 = arith.constant 11 : i32
    %1608 = arith.subi %c11_i32_433, %c9_i32_432 : i32
    %c8_i32_434 = arith.constant 8 : i32
    %1609 = arith.muli %1608, %c8_i32_434 : i32
    %1610 = tpu.assume_multiple %1609, 8 : i32
    %1611 = arith.index_cast %1610 : i32 to index
    %c0_435 = arith.constant 0 : index
    %1612 = vector.load %arg19[%1611, %c0_435] : memref<96x512xf32, #tpu.memory_space<vmem>>, vector<8x512xf32>
    %1613 = arith.truncf %1605 : vector<8x128xf32> to vector<8x128xbf16>
    %cst_436 = arith.constant dense<0.000000e+00> : vector<8x512xf32>
    %1614 = tpu.matmul %1613, %1290, %cst_436 {dimension_numbers = #tpu.dot_dimension_numbers<[1], [0], [0], [1], [0, 0, 1, 1], [], []>} : vector<8x128xbf16>, vector<128x512xbf16>, vector<8x512xf32> -> vector<8x512xf32>
    %1615 = arith.addf %1612, %1614 : vector<8x512xf32>
    %1616 = vector.extract_strided_slice %1615 {offsets = [0, 0], sizes = [8, 128], strides = [1, 1]} : vector<8x512xf32> to vector<8x128xf32>
    %1617 = arith.negf %1616 : vector<8x128xf32>
    %1618 = math.exp %1617 : vector<8x128xf32>
    %cst_437 = arith.constant 1.000000e+00 : f32
    %1619 = vector.broadcast %cst_437 : f32 to vector<8x128xf32>
    %1620 = arith.addf %1619, %1618 : vector<8x128xf32>
    %1621 = arith.divf %1619, %1620 : vector<8x128xf32>
    %1622 = vector.extract_strided_slice %1615 {offsets = [0, 128], sizes = [8, 128], strides = [1, 1]} : vector<8x512xf32> to vector<8x128xf32>
    %1623 = arith.negf %1622 : vector<8x128xf32>
    %1624 = math.exp %1623 : vector<8x128xf32>
    %cst_438 = arith.constant 1.000000e+00 : f32
    %1625 = vector.broadcast %cst_438 : f32 to vector<8x128xf32>
    %1626 = arith.addf %1625, %1624 : vector<8x128xf32>
    %1627 = arith.divf %1625, %1626 : vector<8x128xf32>
    %1628 = vector.extract_strided_slice %1615 {offsets = [0, 256], sizes = [8, 128], strides = [1, 1]} : vector<8x512xf32> to vector<8x128xf32>
    %1629 = math.tanh %1628 : vector<8x128xf32>
    %1630 = vector.extract_strided_slice %1615 {offsets = [0, 384], sizes = [8, 128], strides = [1, 1]} : vector<8x512xf32> to vector<8x128xf32>
    %1631 = arith.negf %1630 : vector<8x128xf32>
    %1632 = math.exp %1631 : vector<8x128xf32>
    %cst_439 = arith.constant 1.000000e+00 : f32
    %1633 = vector.broadcast %cst_439 : f32 to vector<8x128xf32>
    %1634 = arith.addf %1633, %1632 : vector<8x128xf32>
    %1635 = arith.divf %1633, %1634 : vector<8x128xf32>
    %1636 = arith.mulf %1627, %1603 : vector<8x128xf32>
    %1637 = arith.mulf %1621, %1629 : vector<8x128xf32>
    %1638 = arith.addf %1636, %1637 : vector<8x128xf32>
    %1639 = math.tanh %1638 : vector<8x128xf32>
    %1640 = arith.mulf %1635, %1639 : vector<8x128xf32>
    %1641 = arith.index_cast %1610 : i32 to index
    %c128_440 = arith.constant 128 : index
    %1642 = vector.load %arg13[%1641, %c128_440] : memref<96x256xf32, #tpu.memory_space<vmem>>, vector<8x128xf32>
    tpu.vector_store %arg13[%1641, %c128_440], %1640 {strides = array<i32>} : memref<96x256xf32, #tpu.memory_space<vmem>>, vector<8x128xf32>,
    %c10_i32_441 = arith.constant 10 : i32
    %c11_i32_442 = arith.constant 11 : i32
    %1643 = arith.subi %c11_i32_442, %c10_i32_441 : i32
    %c8_i32_443 = arith.constant 8 : i32
    %1644 = arith.muli %1643, %c8_i32_443 : i32
    %1645 = tpu.assume_multiple %1644, 8 : i32
    %1646 = arith.index_cast %1645 : i32 to index
    %c0_444 = arith.constant 0 : index
    %1647 = vector.load %arg19[%1646, %c0_444] : memref<96x512xf32, #tpu.memory_space<vmem>>, vector<8x512xf32>
    %1648 = arith.truncf %1640 : vector<8x128xf32> to vector<8x128xbf16>
    %cst_445 = arith.constant dense<0.000000e+00> : vector<8x512xf32>
    %1649 = tpu.matmul %1648, %1290, %cst_445 {dimension_numbers = #tpu.dot_dimension_numbers<[1], [0], [0], [1], [0, 0, 1, 1], [], []>} : vector<8x128xbf16>, vector<128x512xbf16>, vector<8x512xf32> -> vector<8x512xf32>
    %1650 = arith.addf %1647, %1649 : vector<8x512xf32>
    %1651 = vector.extract_strided_slice %1650 {offsets = [0, 0], sizes = [8, 128], strides = [1, 1]} : vector<8x512xf32> to vector<8x128xf32>
    %1652 = arith.negf %1651 : vector<8x128xf32>
    %1653 = math.exp %1652 : vector<8x128xf32>
    %cst_446 = arith.constant 1.000000e+00 : f32
    %1654 = vector.broadcast %cst_446 : f32 to vector<8x128xf32>
    %1655 = arith.addf %1654, %1653 : vector<8x128xf32>
    %1656 = arith.divf %1654, %1655 : vector<8x128xf32>
    %1657 = vector.extract_strided_slice %1650 {offsets = [0, 128], sizes = [8, 128], strides = [1, 1]} : vector<8x512xf32> to vector<8x128xf32>
    %1658 = arith.negf %1657 : vector<8x128xf32>
    %1659 = math.exp %1658 : vector<8x128xf32>
    %cst_447 = arith.constant 1.000000e+00 : f32
    %1660 = vector.broadcast %cst_447 : f32 to vector<8x128xf32>
    %1661 = arith.addf %1660, %1659 : vector<8x128xf32>
    %1662 = arith.divf %1660, %1661 : vector<8x128xf32>
    %1663 = vector.extract_strided_slice %1650 {offsets = [0, 256], sizes = [8, 128], strides = [1, 1]} : vector<8x512xf32> to vector<8x128xf32>
    %1664 = math.tanh %1663 : vector<8x128xf32>
    %1665 = vector.extract_strided_slice %1650 {offsets = [0, 384], sizes = [8, 128], strides = [1, 1]} : vector<8x512xf32> to vector<8x128xf32>
    %1666 = arith.negf %1665 : vector<8x128xf32>
    %1667 = math.exp %1666 : vector<8x128xf32>
    %cst_448 = arith.constant 1.000000e+00 : f32
    %1668 = vector.broadcast %cst_448 : f32 to vector<8x128xf32>
    %1669 = arith.addf %1668, %1667 : vector<8x128xf32>
    %1670 = arith.divf %1668, %1669 : vector<8x128xf32>
    %1671 = arith.mulf %1662, %1638 : vector<8x128xf32>
    %1672 = arith.mulf %1656, %1664 : vector<8x128xf32>
    %1673 = arith.addf %1671, %1672 : vector<8x128xf32>
    %1674 = math.tanh %1673 : vector<8x128xf32>
    %1675 = arith.mulf %1670, %1674 : vector<8x128xf32>
    %1676 = arith.index_cast %1645 : i32 to index
    %c128_449 = arith.constant 128 : index
    %1677 = vector.load %arg13[%1676, %c128_449] : memref<96x256xf32, #tpu.memory_space<vmem>>, vector<8x128xf32>
    tpu.vector_store %arg13[%1676, %c128_449], %1675 {strides = array<i32>} : memref<96x256xf32, #tpu.memory_space<vmem>>, vector<8x128xf32>,
    %c11_i32_450 = arith.constant 11 : i32
    %c11_i32_451 = arith.constant 11 : i32
    %1678 = arith.subi %c11_i32_451, %c11_i32_450 : i32
    %c8_i32_452 = arith.constant 8 : i32
    %1679 = arith.muli %1678, %c8_i32_452 : i32
    %1680 = tpu.assume_multiple %1679, 8 : i32
    %1681 = arith.index_cast %1680 : i32 to index
    %c0_453 = arith.constant 0 : index
    %1682 = vector.load %arg19[%1681, %c0_453] : memref<96x512xf32, #tpu.memory_space<vmem>>, vector<8x512xf32>
    %1683 = arith.truncf %1675 : vector<8x128xf32> to vector<8x128xbf16>
    %cst_454 = arith.constant dense<0.000000e+00> : vector<8x512xf32>
    %1684 = tpu.matmul %1683, %1290, %cst_454 {dimension_numbers = #tpu.dot_dimension_numbers<[1], [0], [0], [1], [0, 0, 1, 1], [], []>} : vector<8x128xbf16>, vector<128x512xbf16>, vector<8x512xf32> -> vector<8x512xf32>
    %1685 = arith.addf %1682, %1684 : vector<8x512xf32>
    %1686 = vector.extract_strided_slice %1685 {offsets = [0, 0], sizes = [8, 128], strides = [1, 1]} : vector<8x512xf32> to vector<8x128xf32>
    %1687 = arith.negf %1686 : vector<8x128xf32>
    %1688 = math.exp %1687 : vector<8x128xf32>
    %cst_455 = arith.constant 1.000000e+00 : f32
    %1689 = vector.broadcast %cst_455 : f32 to vector<8x128xf32>
    %1690 = arith.addf %1689, %1688 : vector<8x128xf32>
    %1691 = arith.divf %1689, %1690 : vector<8x128xf32>
    %1692 = vector.extract_strided_slice %1685 {offsets = [0, 128], sizes = [8, 128], strides = [1, 1]} : vector<8x512xf32> to vector<8x128xf32>
    %1693 = arith.negf %1692 : vector<8x128xf32>
    %1694 = math.exp %1693 : vector<8x128xf32>
    %cst_456 = arith.constant 1.000000e+00 : f32
    %1695 = vector.broadcast %cst_456 : f32 to vector<8x128xf32>
    %1696 = arith.addf %1695, %1694 : vector<8x128xf32>
    %1697 = arith.divf %1695, %1696 : vector<8x128xf32>
    %1698 = vector.extract_strided_slice %1685 {offsets = [0, 256], sizes = [8, 128], strides = [1, 1]} : vector<8x512xf32> to vector<8x128xf32>
    %1699 = math.tanh %1698 : vector<8x128xf32>
    %1700 = vector.extract_strided_slice %1685 {offsets = [0, 384], sizes = [8, 128], strides = [1, 1]} : vector<8x512xf32> to vector<8x128xf32>
    %1701 = arith.negf %1700 : vector<8x128xf32>
    %1702 = math.exp %1701 : vector<8x128xf32>
    %cst_457 = arith.constant 1.000000e+00 : f32
    %1703 = vector.broadcast %cst_457 : f32 to vector<8x128xf32>
    %1704 = arith.addf %1703, %1702 : vector<8x128xf32>
    %1705 = arith.divf %1703, %1704 : vector<8x128xf32>
    %1706 = arith.mulf %1697, %1673 : vector<8x128xf32>
    %1707 = arith.mulf %1691, %1699 : vector<8x128xf32>
    %1708 = arith.addf %1706, %1707 : vector<8x128xf32>
    %1709 = math.tanh %1708 : vector<8x128xf32>
    %1710 = arith.mulf %1705, %1709 : vector<8x128xf32>
    %1711 = arith.index_cast %1680 : i32 to index
    %c128_458 = arith.constant 128 : index
    %1712 = vector.load %arg13[%1711, %c128_458] : memref<96x256xf32, #tpu.memory_space<vmem>>, vector<8x128xf32>
    tpu.vector_store %arg13[%1711, %c128_458], %1710 {strides = array<i32>} : memref<96x256xf32, #tpu.memory_space<vmem>>, vector<8x128xf32>,
    %c12_i32_459 = arith.constant 12 : i32
    %c3 = arith.constant 3 : index
    %c0_460 = arith.constant 0 : index
    %c0_461 = arith.constant 0 : index
    %1713 = vector.load %arg14[%c3, %c0_460, %c0_461] : memref<4x8x128xf32, #tpu.memory_space<vmem>>, vector<1x8x128xf32>
    %1714 = vector.shape_cast %1713 : vector<1x8x128xf32> to vector<8x128xf32>
    %1715 = vector.shape_cast %1710 : vector<8x128xf32> to vector<1x8x128xf32>
    tpu.vector_store %arg14[%c3, %c0_460, %c0_461], %1715 {strides = array<i32>} : memref<4x8x128xf32, #tpu.memory_space<vmem>>, vector<1x8x128xf32>,
    %c3_462 = arith.constant 3 : index
    %c0_463 = arith.constant 0 : index
    %c0_464 = arith.constant 0 : index
    %1716 = vector.load %arg15[%c3_462, %c0_463, %c0_464] : memref<4x8x128xf32, #tpu.memory_space<vmem>>, vector<1x8x128xf32>
    %1717 = vector.shape_cast %1716 : vector<1x8x128xf32> to vector<8x128xf32>
    %1718 = vector.shape_cast %1708 : vector<8x128xf32> to vector<1x8x128xf32>
    tpu.vector_store %arg15[%c3_462, %c0_463, %c0_464], %1718 {strides = array<i32>} : memref<4x8x128xf32, #tpu.memory_space<vmem>>, vector<1x8x128xf32>,
    return
  }
}

</mosaic_0001>

<llo_original>
// kernel: bidirectional_lstm_forward.1
$region0: #{bidirectional_lstm_forward.1}
  #allocation0 [shape = 'u32[]', space=smem, size = 0x4, offset = 0x4, fixed_abs, tag = 'smem constant byte address 0x4 - core index']
  #allocation1 [shape = 'u32[144,128]{1,0:T(1,128)}', space=vmem, size = 0x12000, scoped, tag = 'internal scratch']
  #allocation2 [shape = 'f32[96,512]{1,0:T(8,128)}', space=vmem, size = 0x30000, scoped, tag = 'scratch operand']
  #allocation3 [shape = 'f32[96,512]{1,0:T(8,128)}', space=vmem, size = 0x30000, scoped, tag = 'scratch operand']
  #allocation4 [shape = 'f32[96,512]{1,0:T(8,128)}', space=vmem, size = 0x30000, scoped, tag = 'scratch operand']
  #allocation5 [shape = 'f32[96,512]{1,0:T(8,128)}', space=vmem, size = 0x30000, scoped, tag = 'scratch operand']
  #allocation6 [shape = 'f32[96,256]{1,0:T(8,128)}', space=vmem, size = 0x18000, scoped, tag = 'scratch operand']
  %s0 = inlined_call_operand.vmem [shape: bf16[96,64], index: 0, kind: input, shape index: {}]
  %s1 = inlined_call_operand.vmem [shape: bf16[64,512], index: 1, kind: input, shape index: {}]
  %s2 = inlined_call_operand.vmem [shape: bf16[128,512], index: 2, kind: input, shape index: {}]
  %s3 = inlined_call_operand.vmem [shape: f32[1,512], index: 3, kind: input, shape index: {}]
  %s4 = inlined_call_operand.vmem [shape: bf16[64,512], index: 4, kind: input, shape index: {}]
  %s5 = inlined_call_operand.vmem [shape: bf16[128,512], index: 5, kind: input, shape index: {}]
  %s6 = inlined_call_operand.vmem [shape: f32[1,512], index: 6, kind: input, shape index: {}]
  %s7 = inlined_call_operand.vmem [shape: bf16[256,512], index: 7, kind: input, shape index: {}]
  %s8 = inlined_call_operand.vmem [shape: bf16[128,512], index: 8, kind: input, shape index: {}]
  %s9 = inlined_call_operand.vmem [shape: f32[1,512], index: 9, kind: input, shape index: {}]
  %s10 = inlined_call_operand.vmem [shape: bf16[256,512], index: 10, kind: input, shape index: {}]
  %s11 = inlined_call_operand.vmem [shape: bf16[128,512], index: 11, kind: input, shape index: {}]
  %s12 = inlined_call_operand.vmem [shape: f32[1,512], index: 12, kind: input, shape index: {}]
  %s13 = inlined_call_operand.vmem [shape: f32[96,256], index: 13, kind: output, shape index: {0}]
  %s14 = inlined_call_operand.vmem [shape: f32[4,8,128], index: 14, kind: output, shape index: {1}]
  %s15 = inlined_call_operand.vmem [shape: f32[4,8,128], index: 15, kind: output, shape index: {2}]
  %16 = xla_tuple %s13, %s14, %s15
  %s17 = sld [smem:[#allocation0]]
  $region78: #{bidirectional_lstm_forward.1} parent=0
    _
  %s19 = ssub.s32 1, %s17
  %s20 = scalar_select 0, %s19, %s17
  // Predicated region
  $region2: #{bidirectional_lstm_forward.1} parent=0 // pred_check
    _
  $region3: #{bidirectional_lstm_forward.1} parent=0 // pred_check_branch
    %22 = sbr.rel (0) target = $region5
  $region4: #{bidirectional_lstm_forward.1} parent=0 // pred_region
    _
  $region5: #{bidirectional_lstm_forward.1} parent=0 // pred_fallthru
    _
  // Predicated region
  $region6: #{bidirectional_lstm_forward.1} parent=0 // pred_check
    _
  $region7: #{bidirectional_lstm_forward.1} parent=0 // pred_check_branch
    %24 = sbr.rel (0) target = $region9
  $region8: #{bidirectional_lstm_forward.1} parent=0 // pred_region
    _
  $region9: #{bidirectional_lstm_forward.1} parent=0 // pred_fallthru
    _
  // Predicated region
  $region10: #{bidirectional_lstm_forward.1} parent=0 // pred_check
    _
  $region11: #{bidirectional_lstm_forward.1} parent=0 // pred_check_branch
    %26 = sbr.rel (0) target = $region13
  $region12: #{bidirectional_lstm_forward.1} parent=0 // pred_region
    _
  $region13: #{bidirectional_lstm_forward.1} parent=0 // pred_fallthru
    _
  // Predicated region
  $region14: #{bidirectional_lstm_forward.1} parent=0 // pred_check
    _
  $region15: #{bidirectional_lstm_forward.1} parent=0 // pred_check_branch
    %28 = sbr.rel (0) target = $region17
  $region16: #{bidirectional_lstm_forward.1} parent=0 // pred_region
    _
  $region17: #{bidirectional_lstm_forward.1} parent=0 // pred_fallthru
    _
  // Predicated region
  $region18: #{bidirectional_lstm_forward.1} parent=0 // pred_check
    _
  $region19: #{bidirectional_lstm_forward.1} parent=0 // pred_check_branch
    %30 = sbr.rel (0) target = $region21
  $region20: #{bidirectional_lstm_forward.1} parent=0 // pred_region
    _
  $region21: #{bidirectional_lstm_forward.1} parent=0 // pred_fallthru
    _
  // Predicated region
  $region22: #{bidirectional_lstm_forward.1} parent=0 // pred_check
    _
  $region23: #{bidirectional_lstm_forward.1} parent=0 // pred_check_branch
    %32 = sbr.rel (0) target = $region25
  $region24: #{bidirectional_lstm_forward.1} parent=0 // pred_region
    _
  $region25: #{bidirectional_lstm_forward.1} parent=0 // pred_fallthru
    _
  // Predicated region
  $region26: #{bidirectional_lstm_forward.1} parent=0 // pred_check
    _
  $region27: #{bidirectional_lstm_forward.1} parent=0 // pred_check_branch
    %34 = sbr.rel (0) target = $region29
  $region28: #{bidirectional_lstm_forward.1} parent=0 // pred_region
    _
  $region29: #{bidirectional_lstm_forward.1} parent=0 // pred_fallthru
    _
  // Predicated region
  $region30: #{bidirectional_lstm_forward.1} parent=0 // pred_check
    _
  $region31: #{bidirectional_lstm_forward.1} parent=0 // pred_check_branch
    %36 = sbr.rel (0) target = $region33
  $region32: #{bidirectional_lstm_forward.1} parent=0 // pred_region
    _
  $region33: #{bidirectional_lstm_forward.1} parent=0 // pred_fallthru
    _
  // Predicated region
  $region34: #{bidirectional_lstm_forward.1} parent=0 // pred_check
    _
  $region35: #{bidirectional_lstm_forward.1} parent=0 // pred_check_branch
    %38 = sbr.rel (0) target = $region37
  $region36: #{bidirectional_lstm_forward.1} parent=0 // pred_region
    _
  $region37: #{bidirectional_lstm_forward.1} parent=0 // pred_fallthru
    _
  // Predicated region
  $region38: #{bidirectional_lstm_forward.1} parent=0 // pred_check
    _
  $region39: #{bidirectional_lstm_forward.1} parent=0 // pred_check_branch
    %40 = sbr.rel (0) target = $region41
  $region40: #{bidirectional_lstm_forward.1} parent=0 // pred_region
    _
  $region41: #{bidirectional_lstm_forward.1} parent=0 // pred_fallthru
    _
  // Predicated region
  $region42: #{bidirectional_lstm_forward.1} parent=0 // pred_check
    _
  $region43: #{bidirectional_lstm_forward.1} parent=0 // pred_check_branch
    %42 = sbr.rel (0) target = $region45
  $region44: #{bidirectional_lstm_forward.1} parent=0 // pred_region
    _
  $region45: #{bidirectional_lstm_forward.1} parent=0 // pred_fallthru
    _
  // Predicated region
  $region46: #{bidirectional_lstm_forward.1} parent=0 // pred_check
    _
  $region47: #{bidirectional_lstm_forward.1} parent=0 // pred_check_branch
    %44 = sbr.rel (0) target = $region49
  $region48: #{bidirectional_lstm_forward.1} parent=0 // pred_region
    _
  $region49: #{bidirectional_lstm_forward.1} parent=0 // pred_fallthru
    _
  // Predicated region
  $region50: #{bidirectional_lstm_forward.1} parent=0 // pred_check
    _
  $region51: #{bidirectional_lstm_forward.1} parent=0 // pred_check_branch
    %46 = sbr.rel (0) target = $region53
  $region52: #{bidirectional_lstm_forward.1} parent=0 // pred_region
    _
  $region53: #{bidirectional_lstm_forward.1} parent=0 // pred_fallthru
    _
  %v48 = vld [vmem:[%s0] sm:$0xf]
  %v49 = vld [vmem:[%s0 + $0x4] sm:$0xf]
  %v50 = vld [vmem:[%s0 + $0x8] sm:$0xf]
  %v51 = vld [vmem:[%s0 + $0xc] sm:$0xf]
  %v52 = vld [vmem:[%s0 + $0x10] sm:$0xf]
  %v53 = vld [vmem:[%s0 + $0x14] sm:$0xf]
  %v54 = vld [vmem:[%s0 + $0x18] sm:$0xf]
  %v55 = vld [vmem:[%s0 + $0x1c] sm:$0xf]
  %v56 = vld [vmem:[%s0 + $0x20] sm:$0xf]
  %v57 = vld [vmem:[%s0 + $0x24] sm:$0xf]
  %v58 = vld [vmem:[%s0 + $0x28] sm:$0xf]
  %v59 = vld [vmem:[%s0 + $0x2c] sm:$0xf]
  %v60 = vld [vmem:[%s1] sm:$0xff]
  %v61 = vld [vmem:[%s1 + $0x8] sm:$0xff]
  %v62 = vld [vmem:[%s1 + $0x10] sm:$0xff]
  %v63 = vld [vmem:[%s1 + $0x18] sm:$0xff]
  %v64 = vld [vmem:[%s1 + $0x20] sm:$0xff]
  %v65 = vld [vmem:[%s1 + $0x28] sm:$0xff]
  %v66 = vld [vmem:[%s1 + $0x30] sm:$0xff]
  %v67 = vld [vmem:[%s1 + $0x38] sm:$0xff]
  %v68 = vld [vmem:[%s1 + $0x40] sm:$0xff]
  %v69 = vld [vmem:[%s1 + $0x48] sm:$0xff]
  %v70 = vld [vmem:[%s1 + $0x50] sm:$0xff]
  %v71 = vld [vmem:[%s1 + $0x58] sm:$0xff]
  %v72 = vld [vmem:[%s1 + $0x60] sm:$0xff]
  %v73 = vld [vmem:[%s1 + $0x68] sm:$0xff]
  %v74 = vld [vmem:[%s1 + $0x70] sm:$0xff]
  %v75 = vld [vmem:[%s1 + $0x78] sm:$0xff]
  %v76 = vld [vmem:[%s3] sm:$0xf]
  %v78 = vlaneseq
  %v79 = vshrl.u32 %v78, 7
  %v80 = vsub.s32 0, %v79
  %v81 = vrot.slane %v76, %v80
  %v82 = vlaneseq
  %v83 = vshrl.u32 %v82, 7
  %v84 = vsub.s32 1, %v83
  %v85 = vrot.slane %v76, %v84
  %v86 = vlaneseq
  %v87 = vshrl.u32 %v86, 7
  %v88 = vsub.s32 2, %v87
  %v89 = vrot.slane %v76, %v88
  %v90 = vlaneseq
  %v91 = vshrl.u32 %v90, 7
  %v92 = vsub.s32 3, %v91
  %v93 = vrot.slane %v76, %v92
  %v110 = vunpack.c.l.b16 %v48
  %v111 = vunpack.c.l.b16 %v49
  %v112 = vunpack.c.l.b16 %v50
  %v113 = vunpack.c.l.b16 %v51
  %v114 = vunpack.c.l.b16 %v52
  %v115 = vunpack.c.l.b16 %v53
  %v116 = vunpack.c.l.b16 %v54
  %v117 = vunpack.c.l.b16 %v55
  %v118 = vunpack.c.l.b16 %v56
  %v119 = vunpack.c.l.b16 %v57
  %v120 = vunpack.c.l.b16 %v58
  %v121 = vunpack.c.l.b16 %v59
  %v122 = vpack.c.b16 %v111, %v110
  %v123 = vpack.c.b16 %v113, %v112
  %v124 = vpack.c.b16 %v115, %v114
  %v125 = vpack.c.b16 %v117, %v116
  %v126 = vpack.c.b16 %v119, %v118
  %v127 = vpack.c.b16 %v121, %v120
  %v144 = vunpack.c.l.b16 %v60
  %v145 = vunpack.c.h.b16 %v60
  %v146 = vunpack.c.l.b16 %v61
  %v147 = vunpack.c.h.b16 %v61
  %v148 = vunpack.c.l.b16 %v62
  %v149 = vunpack.c.h.b16 %v62
  %v150 = vunpack.c.l.b16 %v63
  %v151 = vunpack.c.h.b16 %v63
  %v152 = vunpack.c.l.b16 %v64
  %v153 = vunpack.c.h.b16 %v64
  %v154 = vunpack.c.l.b16 %v65
  %v155 = vunpack.c.h.b16 %v65
  %v156 = vunpack.c.l.b16 %v66
  %v157 = vunpack.c.h.b16 %v66
  %v158 = vunpack.c.l.b16 %v67
  %v159 = vunpack.c.h.b16 %v67
  %v160 = vunpack.c.l.b16 %v68
  %v161 = vunpack.c.h.b16 %v68
  %v162 = vunpack.c.l.b16 %v69
  %v163 = vunpack.c.h.b16 %v69
  %v164 = vunpack.c.l.b16 %v70
  %v165 = vunpack.c.h.b16 %v70
  %v166 = vunpack.c.l.b16 %v71
  %v167 = vunpack.c.h.b16 %v71
  %v168 = vunpack.c.l.b16 %v72
  %v169 = vunpack.c.h.b16 %v72
  %v170 = vunpack.c.l.b16 %v73
  %v171 = vunpack.c.h.b16 %v73
  %v172 = vunpack.c.l.b16 %v74
  %v173 = vunpack.c.h.b16 %v74
  %v174 = vunpack.c.l.b16 %v75
  %v175 = vunpack.c.h.b16 %v75
  %v176 = vpack.c.b16 %v148, %v144
  %v177 = vpack.c.b16 %v149, %v145
  %v178 = vpack.c.b16 %v150, %v146
  %v179 = vpack.c.b16 %v151, %v147
  %v180 = vpack.c.b16 %v156, %v152
  %v181 = vpack.c.b16 %v157, %v153
  %v182 = vpack.c.b16 %v158, %v154
  %v183 = vpack.c.b16 %v159, %v155
  %v184 = vpack.c.b16 %v164, %v160
  %v185 = vpack.c.b16 %v165, %v161
  %v186 = vpack.c.b16 %v166, %v162
  %v187 = vpack.c.b16 %v167, %v163
  %v188 = vpack.c.b16 %v172, %v168
  %v189 = vpack.c.b16 %v173, %v169
  %v190 = vpack.c.b16 %v174, %v170
  %v191 = vpack.c.b16 %v175, %v171
  %vm208 = vcmask 523264
  %v210 = vsel %vm208, %v122, 0
  %v213 = vsel %vm208, %v123, 0
  %v216 = vsel %vm208, %v124, 0
  %v219 = vsel %vm208, %v125, 0
  %v222 = vsel %vm208, %v126, 0
  %v225 = vsel %vm208, %v127, 0
  %227 = vmatprep.subr.bf16.mxu0 %v177
  %228 = vmatpush1.bf16.msra.mxu0 %v176
  %229 = vmatprep.subr.bf16.mxu0 %v181
  %230 = vmatpush1.bf16.msra.mxu0 %v180
  %231 = vmatprep.subr.bf16.mxu0 %v185
  %232 = vmatpush1.bf16.msra.mxu0 %v184
  %233 = vmatprep.subr.bf16.mxu0 %v189
  %234 = vmatpush1.bf16.msra.mxu0 %v188
  %235 = vmatprep.subr.bf16.mxu0 0
  %236 = vmatpush1.bf16.msra.mxu0 0
  %237 = vmatprep.subr.bf16.mxu0 0
  %238 = vmatpush1.bf16.msra.mxu0 0
  %239 = vmatprep.subr.bf16.mxu0 0
  %240 = vmatpush1.bf16.msra.mxu0 0
  %241 = vmatprep.subr.bf16.mxu0 0
  %242 = vmatpush1.bf16.msra.mxu0 0
  %243 = vmatprep.subr.bf16.mxu0 0
  %244 = vmatpush1.bf16.msra.mxu0 0
  %245 = vmatprep.subr.bf16.mxu0 0
  %246 = vmatpush1.bf16.msra.mxu0 0
  %247 = vmatprep.subr.bf16.mxu0 0
  %248 = vmatpush1.bf16.msra.mxu0 0
  %249 = vmatprep.subr.bf16.mxu0 0
  %250 = vmatpush1.bf16.msra.mxu0 0
  %251 = vmatprep.subr.bf16.mxu0 0
  %252 = vmatpush1.bf16.msra.mxu0 0
  %253 = vmatprep.subr.bf16.mxu0 0
  %254 = vmatpush1.bf16.msra.mxu0 0
  %255 = vmatprep.subr.bf16.mxu0 0
  %256 = vmatpush1.bf16.msra.mxu0 0
  %257 = vmatprep.subr.bf16.mxu0 0
  %258 = vmatpush1.bf16.msra.mxu0 0
  %259 = vmatprep.mubr.bf16.mxu0 0
  %260 = vmatmul.mubr.bf16.gmra.mrb[0].mxu0 %v210
  %v261 = vpop.f32.mrb[0].mxu0
  %v262 = vadd.f32 %v81, %v261
  %v263 = vpop.f32.mrb[0].mxu0
  %v264 = vadd.f32 %v85, %v263
  %v265 = vpop.f32.mrb[0].mxu0
  %v266 = vadd.f32 %v81, %v265
  %v267 = vpop.f32.mrb[0].mxu0
  %v268 = vadd.f32 %v85, %v267
  %269 = vmatprep.mubr.bf16.mxu0 0
  %270 = vmatmul.mubr.bf16.gmra.mrb[0].mxu0 %v213
  %v271 = vpop.f32.mrb[0].mxu0
  %v272 = vadd.f32 %v81, %v271
  %v273 = vpop.f32.mrb[0].mxu0
  %v274 = vadd.f32 %v85, %v273
  %v275 = vpop.f32.mrb[0].mxu0
  %v276 = vadd.f32 %v81, %v275
  %v277 = vpop.f32.mrb[0].mxu0
  %v278 = vadd.f32 %v85, %v277
  %279 = vmatprep.mubr.bf16.mxu0 0
  %280 = vmatmul.mubr.bf16.gmra.mrb[0].mxu0 %v216
  %v281 = vpop.f32.mrb[0].mxu0
  %v282 = vadd.f32 %v81, %v281
  %v283 = vpop.f32.mrb[0].mxu0
  %v284 = vadd.f32 %v85, %v283
  %v285 = vpop.f32.mrb[0].mxu0
  %v286 = vadd.f32 %v81, %v285
  %v287 = vpop.f32.mrb[0].mxu0
  %v288 = vadd.f32 %v85, %v287
  %289 = vmatprep.mubr.bf16.mxu0 0
  %290 = vmatmul.mubr.bf16.gmra.mrb[0].mxu0 %v219
  %v291 = vpop.f32.mrb[0].mxu0
  %v292 = vadd.f32 %v81, %v291
  %v293 = vpop.f32.mrb[0].mxu0
  %v294 = vadd.f32 %v85, %v293
  %v295 = vpop.f32.mrb[0].mxu0
  %v296 = vadd.f32 %v81, %v295
  %v297 = vpop.f32.mrb[0].mxu0
  %v298 = vadd.f32 %v85, %v297
  %299 = vmatprep.mubr.bf16.mxu0 0
  %300 = vmatmul.mubr.bf16.gmra.mrb[0].mxu0 %v222
  %v301 = vpop.f32.mrb[0].mxu0
  %v302 = vadd.f32 %v81, %v301
  %v303 = vpop.f32.mrb[0].mxu0
  %v304 = vadd.f32 %v85, %v303
  %v305 = vpop.f32.mrb[0].mxu0
  %v306 = vadd.f32 %v81, %v305
  %v307 = vpop.f32.mrb[0].mxu0
  %v308 = vadd.f32 %v85, %v307
  %309 = vmatprep.mubr.bf16.mxu0 0
  %310 = vmatmul.mubr.bf16.gmra.mrb[0].mxu0 %v225
  %v311 = vpop.f32.mrb[0].mxu0
  %v312 = vadd.f32 %v81, %v311
  %v313 = vpop.f32.mrb[0].mxu0
  %v314 = vadd.f32 %v85, %v313
  %v315 = vpop.f32.mrb[0].mxu0
  %v316 = vadd.f32 %v81, %v315
  %v317 = vpop.f32.mrb[0].mxu0
  %v318 = vadd.f32 %v85, %v317
  %319 = vdwg.mxu0
  %320 = vmatprep.subr.bf16.mxu0 %v179
  %321 = vmatpush1.bf16.msra.mxu0 %v178
  %322 = vmatprep.subr.bf16.mxu0 %v183
  %323 = vmatpush1.bf16.msra.mxu0 %v182
  %324 = vmatprep.subr.bf16.mxu0 %v187
  %325 = vmatpush1.bf16.msra.mxu0 %v186
  %326 = vmatprep.subr.bf16.mxu0 %v191
  %327 = vmatpush1.bf16.msra.mxu0 %v190
  %328 = vmatprep.subr.bf16.mxu0 0
  %329 = vmatpush1.bf16.msra.mxu0 0
  %330 = vmatprep.subr.bf16.mxu0 0
  %331 = vmatpush1.bf16.msra.mxu0 0
  %332 = vmatprep.subr.bf16.mxu0 0
  %333 = vmatpush1.bf16.msra.mxu0 0
  %334 = vmatprep.subr.bf16.mxu0 0
  %335 = vmatpush1.bf16.msra.mxu0 0
  %336 = vmatprep.subr.bf16.mxu0 0
  %337 = vmatpush1.bf16.msra.mxu0 0
  %338 = vmatprep.subr.bf16.mxu0 0
  %339 = vmatpush1.bf16.msra.mxu0 0
  %340 = vmatprep.subr.bf16.mxu0 0
  %341 = vmatpush1.bf16.msra.mxu0 0
  %342 = vmatprep.subr.bf16.mxu0 0
  %343 = vmatpush1.bf16.msra.mxu0 0
  %344 = vmatprep.subr.bf16.mxu0 0
  %345 = vmatpush1.bf16.msra.mxu0 0
  %346 = vmatprep.subr.bf16.mxu0 0
  %347 = vmatpush1.bf16.msra.mxu0 0
  %348 = vmatprep.subr.bf16.mxu0 0
  %349 = vmatpush1.bf16.msra.mxu0 0
  %350 = vmatprep.subr.bf16.mxu0 0
  %351 = vmatpush1.bf16.msra.mxu0 0
  %352 = vmatprep.mubr.bf16.mxu0 0
  %353 = vmatmul.mubr.bf16.gmra.mrb[0].mxu0 %v210
  %v354 = vpop.f32.mrb[0].mxu0
  %v355 = vadd.f32 %v89, %v354
  %v356 = vpop.f32.mrb[0].mxu0
  %v357 = vadd.f32 %v93, %v356
  %v358 = vpop.f32.mrb[0].mxu0
  %v359 = vadd.f32 %v89, %v358
  %v360 = vpop.f32.mrb[0].mxu0
  %v361 = vadd.f32 %v93, %v360
  %362 = vmatprep.mubr.bf16.mxu0 0
  %363 = vmatmul.mubr.bf16.gmra.mrb[0].mxu0 %v213
  %v364 = vpop.f32.mrb[0].mxu0
  %v365 = vadd.f32 %v89, %v364
  %v366 = vpop.f32.mrb[0].mxu0
  %v367 = vadd.f32 %v93, %v366
  %v368 = vpop.f32.mrb[0].mxu0
  %v369 = vadd.f32 %v89, %v368
  %v370 = vpop.f32.mrb[0].mxu0
  %v371 = vadd.f32 %v93, %v370
  %372 = vmatprep.mubr.bf16.mxu0 0
  %373 = vmatmul.mubr.bf16.gmra.mrb[0].mxu0 %v216
  %v374 = vpop.f32.mrb[0].mxu0
  %v375 = vadd.f32 %v89, %v374
  %v376 = vpop.f32.mrb[0].mxu0
  %v377 = vadd.f32 %v93, %v376
  %v378 = vpop.f32.mrb[0].mxu0
  %v379 = vadd.f32 %v89, %v378
  %v380 = vpop.f32.mrb[0].mxu0
  %v381 = vadd.f32 %v93, %v380
  %382 = vmatprep.mubr.bf16.mxu0 0
  %383 = vmatmul.mubr.bf16.gmra.mrb[0].mxu0 %v219
  %v384 = vpop.f32.mrb[0].mxu0
  %v385 = vadd.f32 %v89, %v384
  %v386 = vpop.f32.mrb[0].mxu0
  %v387 = vadd.f32 %v93, %v386
  %v388 = vpop.f32.mrb[0].mxu0
  %v389 = vadd.f32 %v89, %v388
  %v390 = vpop.f32.mrb[0].mxu0
  %v391 = vadd.f32 %v93, %v390
  %392 = vmatprep.mubr.bf16.mxu0 0
  %393 = vmatmul.mubr.bf16.gmra.mrb[0].mxu0 %v222
  %v394 = vpop.f32.mrb[0].mxu0
  %v395 = vadd.f32 %v89, %v394
  %v396 = vpop.f32.mrb[0].mxu0
  %v397 = vadd.f32 %v93, %v396
  %v398 = vpop.f32.mrb[0].mxu0
  %v399 = vadd.f32 %v89, %v398
  %v400 = vpop.f32.mrb[0].mxu0
  %v401 = vadd.f32 %v93, %v400
  %402 = vmatprep.mubr.bf16.mxu0 0
  %403 = vmatmul.mubr.bf16.gmra.mrb[0].mxu0 %v225
  %v404 = vpop.f32.mrb[0].mxu0
  %v405 = vadd.f32 %v89, %v404
  %v406 = vpop.f32.mrb[0].mxu0
  %v407 = vadd.f32 %v93, %v406
  %v408 = vpop.f32.mrb[0].mxu0
  %v409 = vadd.f32 %v89, %v408
  %v410 = vpop.f32.mrb[0].mxu0
  %v411 = vadd.f32 %v93, %v410
  %412 = vdwg.mxu0
  %413 = vst [vmem:[#allocation2] sm:$0xff] %v262
  %414 = vst [vmem:[#allocation2 + $0x8] sm:$0xff] %v264
  %415 = vst [vmem:[#allocation2 + $0x10] sm:$0xff] %v355
  %416 = vst [vmem:[#allocation2 + $0x18] sm:$0xff] %v357
  %417 = vst [vmem:[#allocation2 + $0x20] sm:$0xff] %v266
  %418 = vst [vmem:[#allocation2 + $0x28] sm:$0xff] %v268
  %419 = vst [vmem:[#allocation2 + $0x30] sm:$0xff] %v359
  %420 = vst [vmem:[#allocation2 + $0x38] sm:$0xff] %v361
  %421 = vst [vmem:[#allocation2 + $0x40] sm:$0xff] %v272
  %422 = vst [vmem:[#allocation2 + $0x48] sm:$0xff] %v274
  %423 = vst [vmem:[#allocation2 + $0x50] sm:$0xff] %v365
  %424 = vst [vmem:[#allocation2 + $0x58] sm:$0xff] %v367
  %425 = vst [vmem:[#allocation2 + $0x60] sm:$0xff] %v276
  %426 = vst [vmem:[#allocation2 + $0x68] sm:$0xff] %v278
  %427 = vst [vmem:[#allocation2 + $0x70] sm:$0xff] %v369
  %428 = vst [vmem:[#allocation2 + $0x78] sm:$0xff] %v371
  %429 = vst [vmem:[#allocation2 + $0x80] sm:$0xff] %v282
  %430 = vst [vmem:[#allocation2 + $0x88] sm:$0xff] %v284
  %431 = vst [vmem:[#allocation2 + $0x90] sm:$0xff] %v375
  %432 = vst [vmem:[#allocation2 + $0x98] sm:$0xff] %v377
  %433 = vst [vmem:[#allocation2 + $0xa0] sm:$0xff] %v286
  %434 = vst [vmem:[#allocation2 + $0xa8] sm:$0xff] %v288
  %435 = vst [vmem:[#allocation2 + $0xb0] sm:$0xff] %v379
  %436 = vst [vmem:[#allocation2 + $0xb8] sm:$0xff] %v381
  %437 = vst [vmem:[#allocation2 + $0xc0] sm:$0xff] %v292
  %438 = vst [vmem:[#allocation2 + $0xc8] sm:$0xff] %v294
  %439 = vst [vmem:[#allocation2 + $0xd0] sm:$0xff] %v385
  %440 = vst [vmem:[#allocation2 + $0xd8] sm:$0xff] %v387
  %441 = vst [vmem:[#allocation2 + $0xe0] sm:$0xff] %v296
  %442 = vst [vmem:[#allocation2 + $0xe8] sm:$0xff] %v298
  %443 = vst [vmem:[#allocation2 + $0xf0] sm:$0xff] %v389
  %444 = vst [vmem:[#allocation2 + $0xf8] sm:$0xff] %v391
  %445 = vst [vmem:[#allocation2 + $0x100] sm:$0xff] %v302
  %446 = vst [vmem:[#allocation2 + $0x108] sm:$0xff] %v304
  %447 = vst [vmem:[#allocation2 + $0x110] sm:$0xff] %v395
  %448 = vst [vmem:[#allocation2 + $0x118] sm:$0xff] %v397
  %449 = vst [vmem:[#allocation2 + $0x120] sm:$0xff] %v306
  %450 = vst [vmem:[#allocation2 + $0x128] sm:$0xff] %v308
  %451 = vst [vmem:[#allocation2 + $0x130] sm:$0xff] %v399
  %452 = vst [vmem:[#allocation2 + $0x138] sm:$0xff] %v401
  %453 = vst [vmem:[#allocation2 + $0x140] sm:$0xff] %v312
  %454 = vst [vmem:[#allocation2 + $0x148] sm:$0xff] %v314
  %455 = vst [vmem:[#allocation2 + $0x150] sm:$0xff] %v405
  %456 = vst [vmem:[#allocation2 + $0x158] sm:$0xff] %v407
  %457 = vst [vmem:[#allocation2 + $0x160] sm:$0xff] %v316
  %458 = vst [vmem:[#allocation2 + $0x168] sm:$0xff] %v318
  %459 = vst [vmem:[#allocation2 + $0x170] sm:$0xff] %v409
  %460 = vst [vmem:[#allocation2 + $0x178] sm:$0xff] %v411
  %v461 = vld [vmem:[%s4] sm:$0xff]
  %v462 = vld [vmem:[%s4 + $0x8] sm:$0xff]
  %v463 = vld [vmem:[%s4 + $0x10] sm:$0xff]
  %v464 = vld [vmem:[%s4 + $0x18] sm:$0xff]
  %v465 = vld [vmem:[%s4 + $0x20] sm:$0xff]
  %v466 = vld [vmem:[%s4 + $0x28] sm:$0xff]
  %v467 = vld [vmem:[%s4 + $0x30] sm:$0xff]
  %v468 = vld [vmem:[%s4 + $0x38] sm:$0xff]
  %v469 = vld [vmem:[%s4 + $0x40] sm:$0xff]
  %v470 = vld [vmem:[%s4 + $0x48] sm:$0xff]
  %v471 = vld [vmem:[%s4 + $0x50] sm:$0xff]
  %v472 = vld [vmem:[%s4 + $0x58] sm:$0xff]
  %v473 = vld [vmem:[%s4 + $0x60] sm:$0xff]
  %v474 = vld [vmem:[%s4 + $0x68] sm:$0xff]
  %v475 = vld [vmem:[%s4 + $0x70] sm:$0xff]
  %v476 = vld [vmem:[%s4 + $0x78] sm:$0xff]
  %v477 = vld [vmem:[%s6] sm:$0xf]
  %v479 = vlaneseq
  %v480 = vshrl.u32 %v479, 7
  %v481 = vsub.s32 0, %v480
  %v482 = vrot.slane %v477, %v481
  %v483 = vlaneseq
  %v484 = vshrl.u32 %v483, 7
  %v485 = vsub.s32 1, %v484
  %v486 = vrot.slane %v477, %v485
  %v487 = vlaneseq
  %v488 = vshrl.u32 %v487, 7
  %v489 = vsub.s32 2, %v488
  %v490 = vrot.slane %v477, %v489
  %v491 = vlaneseq
  %v492 = vshrl.u32 %v491, 7
  %v493 = vsub.s32 3, %v492
  %v494 = vrot.slane %v477, %v493
  %v515 = vunpack.c.l.b16 %v461
  %v516 = vunpack.c.h.b16 %v461
  %v517 = vunpack.c.l.b16 %v462
  %v518 = vunpack.c.h.b16 %v462
  %v519 = vunpack.c.l.b16 %v463
  %v520 = vunpack.c.h.b16 %v463
  %v521 = vunpack.c.l.b16 %v464
  %v522 = vunpack.c.h.b16 %v464
  %v523 = vunpack.c.l.b16 %v465
  %v524 = vunpack.c.h.b16 %v465
  %v525 = vunpack.c.l.b16 %v466
  %v526 = vunpack.c.h.b16 %v466
  %v527 = vunpack.c.l.b16 %v467
  %v528 = vunpack.c.h.b16 %v467
  %v529 = vunpack.c.l.b16 %v468
  %v530 = vunpack.c.h.b16 %v468
  %v531 = vunpack.c.l.b16 %v469
  %v532 = vunpack.c.h.b16 %v469
  %v533 = vunpack.c.l.b16 %v470
  %v534 = vunpack.c.h.b16 %v470
  %v535 = vunpack.c.l.b16 %v471
  %v536 = vunpack.c.h.b16 %v471
  %v537 = vunpack.c.l.b16 %v472
  %v538 = vunpack.c.h.b16 %v472
  %v539 = vunpack.c.l.b16 %v473
  %v540 = vunpack.c.h.b16 %v473
  %v541 = vunpack.c.l.b16 %v474
  %v542 = vunpack.c.h.b16 %v474
  %v543 = vunpack.c.l.b16 %v475
  %v544 = vunpack.c.h.b16 %v475
  %v545 = vunpack.c.l.b16 %v476
  %v546 = vunpack.c.h.b16 %v476
  %v547 = vpack.c.b16 %v519, %v515
  %v548 = vpack.c.b16 %v520, %v516
  %v549 = vpack.c.b16 %v521, %v517
  %v550 = vpack.c.b16 %v522, %v518
  %v551 = vpack.c.b16 %v527, %v523
  %v552 = vpack.c.b16 %v528, %v524
  %v553 = vpack.c.b16 %v529, %v525
  %v554 = vpack.c.b16 %v530, %v526
  %v555 = vpack.c.b16 %v535, %v531
  %v556 = vpack.c.b16 %v536, %v532
  %v557 = vpack.c.b16 %v537, %v533
  %v558 = vpack.c.b16 %v538, %v534
  %v559 = vpack.c.b16 %v543, %v539
  %v560 = vpack.c.b16 %v544, %v540
  %v561 = vpack.c.b16 %v545, %v541
  %v562 = vpack.c.b16 %v546, %v542
  %579 = vmatprep.subr.bf16.mxu0 %v548
  %580 = vmatpush1.bf16.msra.mxu0 %v547
  %581 = vmatprep.subr.bf16.mxu0 %v552
  %582 = vmatpush1.bf16.msra.mxu0 %v551
  %583 = vmatprep.subr.bf16.mxu0 %v556
  %584 = vmatpush1.bf16.msra.mxu0 %v555
  %585 = vmatprep.subr.bf16.mxu0 %v560
  %586 = vmatpush1.bf16.msra.mxu0 %v559
  %587 = vmatprep.subr.bf16.mxu0 0
  %588 = vmatpush1.bf16.msra.mxu0 0
  %589 = vmatprep.subr.bf16.mxu0 0
  %590 = vmatpush1.bf16.msra.mxu0 0
  %591 = vmatprep.subr.bf16.mxu0 0
  %592 = vmatpush1.bf16.msra.mxu0 0
  %593 = vmatprep.subr.bf16.mxu0 0
  %594 = vmatpush1.bf16.msra.mxu0 0
  %595 = vmatprep.subr.bf16.mxu0 0
  %596 = vmatpush1.bf16.msra.mxu0 0
  %597 = vmatprep.subr.bf16.mxu0 0
  %598 = vmatpush1.bf16.msra.mxu0 0
  %599 = vmatprep.subr.bf16.mxu0 0
  %600 = vmatpush1.bf16.msra.mxu0 0
  %601 = vmatprep.subr.bf16.mxu0 0
  %602 = vmatpush1.bf16.msra.mxu0 0
  %603 = vmatprep.subr.bf16.mxu0 0
  %604 = vmatpush1.bf16.msra.mxu0 0
  %605 = vmatprep.subr.bf16.mxu0 0
  %606 = vmatpush1.bf16.msra.mxu0 0
  %607 = vmatprep.subr.bf16.mxu0 0
  %608 = vmatpush1.bf16.msra.mxu0 0
  %609 = vmatprep.subr.bf16.mxu0 0
  %610 = vmatpush1.bf16.msra.mxu0 0
  %611 = vmatprep.mubr.bf16.mxu0 0
  %612 = vmatmul.mubr.bf16.gmra.mrb[0].mxu0 %v210
  %v613 = vpop.f32.mrb[0].mxu0
  %v614 = vadd.f32 %v482, %v613
  %v615 = vpop.f32.mrb[0].mxu0
  %v616 = vadd.f32 %v486, %v615
  %v617 = vpop.f32.mrb[0].mxu0
  %v618 = vadd.f32 %v482, %v617
  %v619 = vpop.f32.mrb[0].mxu0
  %v620 = vadd.f32 %v486, %v619
  %621 = vmatprep.mubr.bf16.mxu0 0
  %622 = vmatmul.mubr.bf16.gmra.mrb[0].mxu0 %v213
  %v623 = vpop.f32.mrb[0].mxu0
  %v624 = vadd.f32 %v482, %v623
  %v625 = vpop.f32.mrb[0].mxu0
  %v626 = vadd.f32 %v486, %v625
  %v627 = vpop.f32.mrb[0].mxu0
  %v628 = vadd.f32 %v482, %v627
  %v629 = vpop.f32.mrb[0].mxu0
  %v630 = vadd.f32 %v486, %v629
  %631 = vmatprep.mubr.bf16.mxu0 0
  %632 = vmatmul.mubr.bf16.gmra.mrb[0].mxu0 %v216
  %v633 = vpop.f32.mrb[0].mxu0
  %v634 = vadd.f32 %v482, %v633
  %v635 = vpop.f32.mrb[0].mxu0
  %v636 = vadd.f32 %v486, %v635
  %v637 = vpop.f32.mrb[0].mxu0
  %v638 = vadd.f32 %v482, %v637
  %v639 = vpop.f32.mrb[0].mxu0
  %v640 = vadd.f32 %v486, %v639
  %641 = vmatprep.mubr.bf16.mxu0 0
  %642 = vmatmul.mubr.bf16.gmra.mrb[0].mxu0 %v219
  %v643 = vpop.f32.mrb[0].mxu0
  %v644 = vadd.f32 %v482, %v643
  %v645 = vpop.f32.mrb[0].mxu0
  %v646 = vadd.f32 %v486, %v645
  %v647 = vpop.f32.mrb[0].mxu0
  %v648 = vadd.f32 %v482, %v647
  %v649 = vpop.f32.mrb[0].mxu0
  %v650 = vadd.f32 %v486, %v649
  %651 = vmatprep.mubr.bf16.mxu0 0
  %652 = vmatmul.mubr.bf16.gmra.mrb[0].mxu0 %v222
  %v653 = vpop.f32.mrb[0].mxu0
  %v654 = vadd.f32 %v482, %v653
  %v655 = vpop.f32.mrb[0].mxu0
  %v656 = vadd.f32 %v486, %v655
  %v657 = vpop.f32.mrb[0].mxu0
  %v658 = vadd.f32 %v482, %v657
  %v659 = vpop.f32.mrb[0].mxu0
  %v660 = vadd.f32 %v486, %v659
  %661 = vmatprep.mubr.bf16.mxu0 0
  %662 = vmatmul.mubr.bf16.gmra.mrb[0].mxu0 %v225
  %v663 = vpop.f32.mrb[0].mxu0
  %v664 = vadd.f32 %v482, %v663
  %v665 = vpop.f32.mrb[0].mxu0
  %v666 = vadd.f32 %v486, %v665
  %v667 = vpop.f32.mrb[0].mxu0
  %v668 = vadd.f32 %v482, %v667
  %v669 = vpop.f32.mrb[0].mxu0
  %v670 = vadd.f32 %v486, %v669
  %671 = vdwg.mxu0
  %672 = vmatprep.subr.bf16.mxu0 %v550
  %673 = vmatpush1.bf16.msra.mxu0 %v549
  %674 = vmatprep.subr.bf16.mxu0 %v554
  %675 = vmatpush1.bf16.msra.mxu0 %v553
  %676 = vmatprep.subr.bf16.mxu0 %v558
  %677 = vmatpush1.bf16.msra.mxu0 %v557
  %678 = vmatprep.subr.bf16.mxu0 %v562
  %679 = vmatpush1.bf16.msra.mxu0 %v561
  %680 = vmatprep.subr.bf16.mxu0 0
  %681 = vmatpush1.bf16.msra.mxu0 0
  %682 = vmatprep.subr.bf16.mxu0 0
  %683 = vmatpush1.bf16.msra.mxu0 0
  %684 = vmatprep.subr.bf16.mxu0 0
  %685 = vmatpush1.bf16.msra.mxu0 0
  %686 = vmatprep.subr.bf16.mxu0 0
  %687 = vmatpush1.bf16.msra.mxu0 0
  %688 = vmatprep.subr.bf16.mxu0 0
  %689 = vmatpush1.bf16.msra.mxu0 0
  %690 = vmatprep.subr.bf16.mxu0 0
  %691 = vmatpush1.bf16.msra.mxu0 0
  %692 = vmatprep.subr.bf16.mxu0 0
  %693 = vmatpush1.bf16.msra.mxu0 0
  %694 = vmatprep.subr.bf16.mxu0 0
  %695 = vmatpush1.bf16.msra.mxu0 0
  %696 = vmatprep.subr.bf16.mxu0 0
  %697 = vmatpush1.bf16.msra.mxu0 0
  %698 = vmatprep.subr.bf16.mxu0 0
  %699 = vmatpush1.bf16.msra.mxu0 0
  %700 = vmatprep.subr.bf16.mxu0 0
  %701 = vmatpush1.bf16.msra.mxu0 0
  %702 = vmatprep.subr.bf16.mxu0 0
  %703 = vmatpush1.bf16.msra.mxu0 0
  %704 = vmatprep.mubr.bf16.mxu0 0
  %705 = vmatmul.mubr.bf16.gmra.mrb[0].mxu0 %v210
  %v706 = vpop.f32.mrb[0].mxu0
  %v707 = vadd.f32 %v490, %v706
  %v708 = vpop.f32.mrb[0].mxu0
  %v709 = vadd.f32 %v494, %v708
  %v710 = vpop.f32.mrb[0].mxu0
  %v711 = vadd.f32 %v490, %v710
  %v712 = vpop.f32.mrb[0].mxu0
  %v713 = vadd.f32 %v494, %v712
  %714 = vmatprep.mubr.bf16.mxu0 0
  %715 = vmatmul.mubr.bf16.gmra.mrb[0].mxu0 %v213
  %v716 = vpop.f32.mrb[0].mxu0
  %v717 = vadd.f32 %v490, %v716
  %v718 = vpop.f32.mrb[0].mxu0
  %v719 = vadd.f32 %v494, %v718
  %v720 = vpop.f32.mrb[0].mxu0
  %v721 = vadd.f32 %v490, %v720
  %v722 = vpop.f32.mrb[0].mxu0
  %v723 = vadd.f32 %v494, %v722
  %724 = vmatprep.mubr.bf16.mxu0 0
  %725 = vmatmul.mubr.bf16.gmra.mrb[0].mxu0 %v216
  %v726 = vpop.f32.mrb[0].mxu0
  %v727 = vadd.f32 %v490, %v726
  %v728 = vpop.f32.mrb[0].mxu0
  %v729 = vadd.f32 %v494, %v728
  %v730 = vpop.f32.mrb[0].mxu0
  %v731 = vadd.f32 %v490, %v730
  %v732 = vpop.f32.mrb[0].mxu0
  %v733 = vadd.f32 %v494, %v732
  %734 = vmatprep.mubr.bf16.mxu0 0
  %735 = vmatmul.mubr.bf16.gmra.mrb[0].mxu0 %v219
  %v736 = vpop.f32.mrb[0].mxu0
  %v737 = vadd.f32 %v490, %v736
  %v738 = vpop.f32.mrb[0].mxu0
  %v739 = vadd.f32 %v494, %v738
  %v740 = vpop.f32.mrb[0].mxu0
  %v741 = vadd.f32 %v490, %v740
  %v742 = vpop.f32.mrb[0].mxu0
  %v743 = vadd.f32 %v494, %v742
  %744 = vmatprep.mubr.bf16.mxu0 0
  %745 = vmatmul.mubr.bf16.gmra.mrb[0].mxu0 %v222
  %v746 = vpop.f32.mrb[0].mxu0
  %v747 = vadd.f32 %v490, %v746
  %v748 = vpop.f32.mrb[0].mxu0
  %v749 = vadd.f32 %v494, %v748
  %v750 = vpop.f32.mrb[0].mxu0
  %v751 = vadd.f32 %v490, %v750
  %v752 = vpop.f32.mrb[0].mxu0
  %v753 = vadd.f32 %v494, %v752
  %754 = vmatprep.mubr.bf16.mxu0 0
  %755 = vmatmul.mubr.bf16.gmra.mrb[0].mxu0 %v225
  %v756 = vpop.f32.mrb[0].mxu0
  %v757 = vadd.f32 %v490, %v756
  %v758 = vpop.f32.mrb[0].mxu0
  %v759 = vadd.f32 %v494, %v758
  %v760 = vpop.f32.mrb[0].mxu0
  %v761 = vadd.f32 %v490, %v760
  %v762 = vpop.f32.mrb[0].mxu0
  %v763 = vadd.f32 %v494, %v762
  %764 = vdwg.mxu0
  %765 = vst [vmem:[#allocation3] sm:$0xff] %v614
  %766 = vst [vmem:[#allocation3 + $0x8] sm:$0xff] %v616
  %767 = vst [vmem:[#allocation3 + $0x10] sm:$0xff] %v707
  %768 = vst [vmem:[#allocation3 + $0x18] sm:$0xff] %v709
  %769 = vst [vmem:[#allocation3 + $0x20] sm:$0xff] %v618
  %770 = vst [vmem:[#allocation3 + $0x28] sm:$0xff] %v620
  %771 = vst [vmem:[#allocation3 + $0x30] sm:$0xff] %v711
  %772 = vst [vmem:[#allocation3 + $0x38] sm:$0xff] %v713
  %773 = vst [vmem:[#allocation3 + $0x40] sm:$0xff] %v624
  %774 = vst [vmem:[#allocation3 + $0x48] sm:$0xff] %v626
  %775 = vst [vmem:[#allocation3 + $0x50] sm:$0xff] %v717
  %776 = vst [vmem:[#allocation3 + $0x58] sm:$0xff] %v719
  %777 = vst [vmem:[#allocation3 + $0x60] sm:$0xff] %v628
  %778 = vst [vmem:[#allocation3 + $0x68] sm:$0xff] %v630
  %779 = vst [vmem:[#allocation3 + $0x70] sm:$0xff] %v721
  %780 = vst [vmem:[#allocation3 + $0x78] sm:$0xff] %v723
  %781 = vst [vmem:[#allocation3 + $0x80] sm:$0xff] %v634
  %782 = vst [vmem:[#allocation3 + $0x88] sm:$0xff] %v636
  %783 = vst [vmem:[#allocation3 + $0x90] sm:$0xff] %v727
  %784 = vst [vmem:[#allocation3 + $0x98] sm:$0xff] %v729
  %785 = vst [vmem:[#allocation3 + $0xa0] sm:$0xff] %v638
  %786 = vst [vmem:[#allocation3 + $0xa8] sm:$0xff] %v640
  %787 = vst [vmem:[#allocation3 + $0xb0] sm:$0xff] %v731
  %788 = vst [vmem:[#allocation3 + $0xb8] sm:$0xff] %v733
  %789 = vst [vmem:[#allocation3 + $0xc0] sm:$0xff] %v644
  %790 = vst [vmem:[#allocation3 + $0xc8] sm:$0xff] %v646
  %791 = vst [vmem:[#allocation3 + $0xd0] sm:$0xff] %v737
  %792 = vst [vmem:[#allocation3 + $0xd8] sm:$0xff] %v739
  %793 = vst [vmem:[#allocation3 + $0xe0] sm:$0xff] %v648
  %794 = vst [vmem:[#allocation3 + $0xe8] sm:$0xff] %v650
  %795 = vst [vmem:[#allocation3 + $0xf0] sm:$0xff] %v741
  %796 = vst [vmem:[#allocation3 + $0xf8] sm:$0xff] %v743
  %797 = vst [vmem:[#allocation3 + $0x100] sm:$0xff] %v654
  %798 = vst [vmem:[#allocation3 + $0x108] sm:$0xff] %v656
  %799 = vst [vmem:[#allocation3 + $0x110] sm:$0xff] %v747
  %800 = vst [vmem:[#allocation3 + $0x118] sm:$0xff] %v749
  %801 = vst [vmem:[#allocation3 + $0x120] sm:$0xff] %v658
  %802 = vst [vmem:[#allocation3 + $0x128] sm:$0xff] %v660
  %803 = vst [vmem:[#allocation3 + $0x130] sm:$0xff] %v751
  %804 = vst [vmem:[#allocation3 + $0x138] sm:$0xff] %v753
  %805 = vst [vmem:[#allocation3 + $0x140] sm:$0xff] %v664
  %806 = vst [vmem:[#allocation3 + $0x148] sm:$0xff] %v666
  %807 = vst [vmem:[#allocation3 + $0x150] sm:$0xff] %v757
  %808 = vst [vmem:[#allocation3 + $0x158] sm:$0xff] %v759
  %809 = vst [vmem:[#allocation3 + $0x160] sm:$0xff] %v668
  %810 = vst [vmem:[#allocation3 + $0x168] sm:$0xff] %v670
  %811 = vst [vmem:[#allocation3 + $0x170] sm:$0xff] %v761
  %812 = vst [vmem:[#allocation3 + $0x178] sm:$0xff] %v763
  %v813 = vld [vmem:[%s2] sm:$0xff]
  %v814 = vld [vmem:[%s2 + $0x8] sm:$0xff]
  %v815 = vld [vmem:[%s2 + $0x10] sm:$0xff]
  %v816 = vld [vmem:[%s2 + $0x18] sm:$0xff]
  %v817 = vld [vmem:[%s2 + $0x20] sm:$0xff]
  %v818 = vld [vmem:[%s2 + $0x28] sm:$0xff]
  %v819 = vld [vmem:[%s2 + $0x30] sm:$0xff]
  %v820 = vld [vmem:[%s2 + $0x38] sm:$0xff]
  %v821 = vld [vmem:[%s2 + $0x40] sm:$0xff]
  %v822 = vld [vmem:[%s2 + $0x48] sm:$0xff]
  %v823 = vld [vmem:[%s2 + $0x50] sm:$0xff]
  %v824 = vld [vmem:[%s2 + $0x58] sm:$0xff]
  %v825 = vld [vmem:[%s2 + $0x60] sm:$0xff]
  %v826 = vld [vmem:[%s2 + $0x68] sm:$0xff]
  %v827 = vld [vmem:[%s2 + $0x70] sm:$0xff]
  %v828 = vld [vmem:[%s2 + $0x78] sm:$0xff]
  %v829 = vld [vmem:[%s2 + $0x80] sm:$0xff]
  %v830 = vld [vmem:[%s2 + $0x88] sm:$0xff]
  %v831 = vld [vmem:[%s2 + $0x90] sm:$0xff]
  %v832 = vld [vmem:[%s2 + $0x98] sm:$0xff]
  %v833 = vld [vmem:[%s2 + $0xa0] sm:$0xff]
  %v834 = vld [vmem:[%s2 + $0xa8] sm:$0xff]
  %v835 = vld [vmem:[%s2 + $0xb0] sm:$0xff]
  %v836 = vld [vmem:[%s2 + $0xb8] sm:$0xff]
  %v837 = vld [vmem:[%s2 + $0xc0] sm:$0xff]
  %v838 = vld [vmem:[%s2 + $0xc8] sm:$0xff]
  %v839 = vld [vmem:[%s2 + $0xd0] sm:$0xff]
  %v840 = vld [vmem:[%s2 + $0xd8] sm:$0xff]
  %v841 = vld [vmem:[%s2 + $0xe0] sm:$0xff]
  %v842 = vld [vmem:[%s2 + $0xe8] sm:$0xff]
  %v843 = vld [vmem:[%s2 + $0xf0] sm:$0xff]
  %v844 = vld [vmem:[%s2 + $0xf8] sm:$0xff]
  %s845 = smul.u32 0, 4
  %s846 = smul.addr %s845, 8
  %s847 = scalar_lea.vmem [#allocation2], %s846
  %v848 = vld [vmem:[%s847] sm:$0xff]
  %v849 = vld [vmem:[%s847 + $0x8] sm:$0xff]
  %v850 = vld [vmem:[%s847 + $0x10] sm:$0xff]
  %v851 = vld [vmem:[%s847 + $0x18] sm:$0xff]
  %v884 = vunpack.c.l.b16 %v813
  %v885 = vunpack.c.h.b16 %v813
  %v886 = vunpack.c.l.b16 %v814
  %v887 = vunpack.c.h.b16 %v814
  %v888 = vunpack.c.l.b16 %v815
  %v889 = vunpack.c.h.b16 %v815
  %v890 = vunpack.c.l.b16 %v816
  %v891 = vunpack.c.h.b16 %v816
  %v892 = vunpack.c.l.b16 %v817
  %v893 = vunpack.c.h.b16 %v817
  %v894 = vunpack.c.l.b16 %v818
  %v895 = vunpack.c.h.b16 %v818
  %v896 = vunpack.c.l.b16 %v819
  %v897 = vunpack.c.h.b16 %v819
  %v898 = vunpack.c.l.b16 %v820
  %v899 = vunpack.c.h.b16 %v820
  %v900 = vunpack.c.l.b16 %v821
  %v901 = vunpack.c.h.b16 %v821
  %v902 = vunpack.c.l.b16 %v822
  %v903 = vunpack.c.h.b16 %v822
  %v904 = vunpack.c.l.b16 %v823
  %v905 = vunpack.c.h.b16 %v823
  %v906 = vunpack.c.l.b16 %v824
  %v907 = vunpack.c.h.b16 %v824
  %v908 = vunpack.c.l.b16 %v825
  %v909 = vunpack.c.h.b16 %v825
  %v910 = vunpack.c.l.b16 %v826
  %v911 = vunpack.c.h.b16 %v826
  %v912 = vunpack.c.l.b16 %v827
  %v913 = vunpack.c.h.b16 %v827
  %v914 = vunpack.c.l.b16 %v828
  %v915 = vunpack.c.h.b16 %v828
  %v916 = vunpack.c.l.b16 %v829
  %v917 = vunpack.c.h.b16 %v829
  %v918 = vunpack.c.l.b16 %v830
  %v919 = vunpack.c.h.b16 %v830
  %v920 = vunpack.c.l.b16 %v831
  %v921 = vunpack.c.h.b16 %v831
  %v922 = vunpack.c.l.b16 %v832
  %v923 = vunpack.c.h.b16 %v832
  %v924 = vunpack.c.l.b16 %v833
  %v925 = vunpack.c.h.b16 %v833
  %v926 = vunpack.c.l.b16 %v834
  %v927 = vunpack.c.h.b16 %v834
  %v928 = vunpack.c.l.b16 %v835
  %v929 = vunpack.c.h.b16 %v835
  %v930 = vunpack.c.l.b16 %v836
  %v931 = vunpack.c.h.b16 %v836
  %v932 = vunpack.c.l.b16 %v837
  %v933 = vunpack.c.h.b16 %v837
  %v934 = vunpack.c.l.b16 %v838
  %v935 = vunpack.c.h.b16 %v838
  %v936 = vunpack.c.l.b16 %v839
  %v937 = vunpack.c.h.b16 %v839
  %v938 = vunpack.c.l.b16 %v840
  %v939 = vunpack.c.h.b16 %v840
  %v940 = vunpack.c.l.b16 %v841
  %v941 = vunpack.c.h.b16 %v841
  %v942 = vunpack.c.l.b16 %v842
  %v943 = vunpack.c.h.b16 %v842
  %v944 = vunpack.c.l.b16 %v843
  %v945 = vunpack.c.h.b16 %v843
  %v946 = vunpack.c.l.b16 %v844
  %v947 = vunpack.c.h.b16 %v844
  %v948 = vpack.c.b16 %v888, %v884
  %v949 = vpack.c.b16 %v889, %v885
  %v950 = vpack.c.b16 %v890, %v886
  %v951 = vpack.c.b16 %v891, %v887
  %v952 = vpack.c.b16 %v896, %v892
  %v953 = vpack.c.b16 %v897, %v893
  %v954 = vpack.c.b16 %v898, %v894
  %v955 = vpack.c.b16 %v899, %v895
  %v956 = vpack.c.b16 %v904, %v900
  %v957 = vpack.c.b16 %v905, %v901
  %v958 = vpack.c.b16 %v906, %v902
  %v959 = vpack.c.b16 %v907, %v903
  %v960 = vpack.c.b16 %v912, %v908
  %v961 = vpack.c.b16 %v913, %v909
  %v962 = vpack.c.b16 %v914, %v910
  %v963 = vpack.c.b16 %v915, %v911
  %v964 = vpack.c.b16 %v920, %v916
  %v965 = vpack.c.b16 %v921, %v917
  %v966 = vpack.c.b16 %v922, %v918
  %v967 = vpack.c.b16 %v923, %v919
  %v968 = vpack.c.b16 %v928, %v924
  %v969 = vpack.c.b16 %v929, %v925
  %v970 = vpack.c.b16 %v930, %v926
  %v971 = vpack.c.b16 %v931, %v927
  %v972 = vpack.c.b16 %v936, %v932
  %v973 = vpack.c.b16 %v937, %v933
  %v974 = vpack.c.b16 %v938, %v934
  %v975 = vpack.c.b16 %v939, %v935
  %v976 = vpack.c.b16 %v944, %v940
  %v977 = vpack.c.b16 %v945, %v941
  %v978 = vpack.c.b16 %v946, %v942
  %v979 = vpack.c.b16 %v947, %v943
  %1012 = vmatprep.subr.bf16.mxu0 %v949
  %1013 = vmatpush1.bf16.msra.mxu0 %v948
  %1014 = vmatprep.subr.bf16.mxu0 %v953
  %1015 = vmatpush1.bf16.msra.mxu0 %v952
  %1016 = vmatprep.subr.bf16.mxu0 %v957
  %1017 = vmatpush1.bf16.msra.mxu0 %v956
  %1018 = vmatprep.subr.bf16.mxu0 %v961
  %1019 = vmatpush1.bf16.msra.mxu0 %v960
  %1020 = vmatprep.subr.bf16.mxu0 %v965
  %1021 = vmatpush1.bf16.msra.mxu0 %v964
  %1022 = vmatprep.subr.bf16.mxu0 %v969
  %1023 = vmatpush1.bf16.msra.mxu0 %v968
  %1024 = vmatprep.subr.bf16.mxu0 %v973
  %1025 = vmatpush1.bf16.msra.mxu0 %v972
  %1026 = vmatprep.subr.bf16.mxu0 %v977
  %1027 = vmatpush1.bf16.msra.mxu0 %v976
  %1028 = vmatprep.subr.bf16.mxu0 0
  %1029 = vmatpush1.bf16.msra.mxu0 0
  %1030 = vmatprep.subr.bf16.mxu0 0
  %1031 = vmatpush1.bf16.msra.mxu0 0
  %1032 = vmatprep.subr.bf16.mxu0 0
  %1033 = vmatpush1.bf16.msra.mxu0 0
  %1034 = vmatprep.subr.bf16.mxu0 0
  %1035 = vmatpush1.bf16.msra.mxu0 0
  %1036 = vmatprep.subr.bf16.mxu0 0
  %1037 = vmatpush1.bf16.msra.mxu0 0
  %1038 = vmatprep.subr.bf16.mxu0 0
  %1039 = vmatpush1.bf16.msra.mxu0 0
  %1040 = vmatprep.subr.bf16.mxu0 0
  %1041 = vmatpush1.bf16.msra.mxu0 0
  %1042 = vmatprep.subr.bf16.mxu0 0
  %1043 = vmatpush1.bf16.msra.mxu0 0
  %1044 = vmatprep.mubr.bf16.mxu0 0
  %1045 = vmatmul.mubr.bf16.gmra.mrb[0].mxu0 0
  %v1046 = vpop.f32.mrb[0].mxu0
  %v1047 = vadd.f32 0.0, %v1046
  %v1048 = vpop.f32.mrb[0].mxu0
  %v1049 = vadd.f32 0.0, %v1048
  %v1050 = vpop.f32.mrb[0].mxu0
  %v1051 = vpop.f32.mrb[0].mxu0
  %1052 = vdwg.mxu0
  %1053 = vmatprep.subr.bf16.mxu0 %v951
  %1054 = vmatpush1.bf16.msra.mxu0 %v950
  %1055 = vmatprep.subr.bf16.mxu0 %v955
  %1056 = vmatpush1.bf16.msra.mxu0 %v954
  %1057 = vmatprep.subr.bf16.mxu0 %v959
  %1058 = vmatpush1.bf16.msra.mxu0 %v958
  %1059 = vmatprep.subr.bf16.mxu0 %v963
  %1060 = vmatpush1.bf16.msra.mxu0 %v962
  %1061 = vmatprep.subr.bf16.mxu0 %v967
  %1062 = vmatpush1.bf16.msra.mxu0 %v966
  %1063 = vmatprep.subr.bf16.mxu0 %v971
  %1064 = vmatpush1.bf16.msra.mxu0 %v970
  %1065 = vmatprep.subr.bf16.mxu0 %v975
  %1066 = vmatpush1.bf16.msra.mxu0 %v974
  %1067 = vmatprep.subr.bf16.mxu0 %v979
  %1068 = vmatpush1.bf16.msra.mxu0 %v978
  %1069 = vmatprep.subr.bf16.mxu0 0
  %1070 = vmatpush1.bf16.msra.mxu0 0
  %1071 = vmatprep.subr.bf16.mxu0 0
  %1072 = vmatpush1.bf16.msra.mxu0 0
  %1073 = vmatprep.subr.bf16.mxu0 0
  %1074 = vmatpush1.bf16.msra.mxu0 0
  %1075 = vmatprep.subr.bf16.mxu0 0
  %1076 = vmatpush1.bf16.msra.mxu0 0
  %1077 = vmatprep.subr.bf16.mxu0 0
  %1078 = vmatpush1.bf16.msra.mxu0 0
  %1079 = vmatprep.subr.bf16.mxu0 0
  %1080 = vmatpush1.bf16.msra.mxu0 0
  %1081 = vmatprep.subr.bf16.mxu0 0
  %1082 = vmatpush1.bf16.msra.mxu0 0
  %1083 = vmatprep.subr.bf16.mxu0 0
  %1084 = vmatpush1.bf16.msra.mxu0 0
  %1085 = vmatprep.mubr.bf16.mxu0 0
  %1086 = vmatmul.mubr.bf16.gmra.mrb[0].mxu0 0
  %v1087 = vpop.f32.mrb[0].mxu0
  %v1088 = vadd.f32 0.0, %v1087
  %v1089 = vpop.f32.mrb[0].mxu0
  %v1090 = vadd.f32 0.0, %v1089
  %v1091 = vpop.f32.mrb[0].mxu0
  %v1092 = vpop.f32.mrb[0].mxu0
  %1093 = vdwg.mxu0
  %v1094 = vadd.f32 %v848, %v1047
  %v1095 = vadd.f32 %v849, %v1049
  %v1096 = vadd.f32 %v850, %v1088
  %v1097 = vadd.f32 %v851, %v1090
  %v1098 = vxor.u32 %v1094, 2147483648
  %v1099 = vmul.f32 %v1098, 1.442695
  %v1100 = vpow.pop %v1099
  %v1101 = vadd.f32 %v1100, 1.0
  %v1102 = vrcp.pop %v1101
  %v1103 = vmul.f32 1.0, %v1102
  %v1104 = vxor.u32 %v1095, 2147483648
  %v1105 = vmul.f32 %v1104, 1.442695
  %v1106 = vpow.pop %v1105
  %v1107 = vadd.f32 %v1106, 1.0
  %v1108 = vrcp.pop %v1107
  %v1109 = vmul.f32 1.0, %v1108
  %v1110 = vtanh.pop %v1096
  %v1111 = vxor.u32 %v1097, 2147483648
  %v1112 = vmul.f32 %v1111, 1.442695
  %v1113 = vpow.pop %v1112
  %v1114 = vadd.f32 %v1113, 1.0
  %v1115 = vrcp.pop %v1114
  %v1116 = vmul.f32 1.0, %v1115
  %v1117 = vmul.f32 %v1109, 0.0
  %v1118 = vmul.f32 %v1103, %v1110
  %v1119 = vadd.f32 %v1117, %v1118
  %v1120 = vtanh.pop %v1119
  %v1121 = vmul.f32 %v1116, %v1120
  %s1122 = smul.u32 0, 2
  %s1123 = smul.addr %s1122, 8
  %s1124 = scalar_lea.vmem [#allocation6], %s1123
  %1125 = vst [vmem:[%s1124] sm:$0xff] %v1121
  %s1126 = smul.u32 1, 4
  %s1127 = smul.addr %s1126, 8
  %s1128 = scalar_lea.vmem [#allocation2], %s1127
  %v1129 = vld [vmem:[%s1128] sm:$0xff]
  %v1130 = vld [vmem:[%s1128 + $0x8] sm:$0xff]
  %v1131 = vld [vmem:[%s1128 + $0x10] sm:$0xff]
  %v1132 = vld [vmem:[%s1128 + $0x18] sm:$0xff]
  %v1133 = vpack.c.bf16 %v1121, %v1121
  %1134 = vmatprep.subr.bf16.mxu0 %v949
  %1135 = vmatpush1.bf16.msra.mxu0 %v948
  %1136 = vmatprep.subr.bf16.mxu0 %v953
  %1137 = vmatpush1.bf16.msra.mxu0 %v952
  %1138 = vmatprep.subr.bf16.mxu0 %v957
  %1139 = vmatpush1.bf16.msra.mxu0 %v956
  %1140 = vmatprep.subr.bf16.mxu0 %v961
  %1141 = vmatpush1.bf16.msra.mxu0 %v960
  %1142 = vmatprep.subr.bf16.mxu0 %v965
  %1143 = vmatpush1.bf16.msra.mxu0 %v964
  %1144 = vmatprep.subr.bf16.mxu0 %v969
  %1145 = vmatpush1.bf16.msra.mxu0 %v968
  %1146 = vmatprep.subr.bf16.mxu0 %v973
  %1147 = vmatpush1.bf16.msra.mxu0 %v972
  %1148 = vmatprep.subr.bf16.mxu0 %v977
  %1149 = vmatpush1.bf16.msra.mxu0 %v976
  %1150 = vmatprep.subr.bf16.mxu0 0
  %1151 = vmatpush1.bf16.msra.mxu0 0
  %1152 = vmatprep.subr.bf16.mxu0 0
  %1153 = vmatpush1.bf16.msra.mxu0 0
  %1154 = vmatprep.subr.bf16.mxu0 0
  %1155 = vmatpush1.bf16.msra.mxu0 0
  %1156 = vmatprep.subr.bf16.mxu0 0
  %1157 = vmatpush1.bf16.msra.mxu0 0
  %1158 = vmatprep.subr.bf16.mxu0 0
  %1159 = vmatpush1.bf16.msra.mxu0 0
  %1160 = vmatprep.subr.bf16.mxu0 0
  %1161 = vmatpush1.bf16.msra.mxu0 0
  %1162 = vmatprep.subr.bf16.mxu0 0
  %1163 = vmatpush1.bf16.msra.mxu0 0
  %1164 = vmatprep.subr.bf16.mxu0 0
  %1165 = vmatpush1.bf16.msra.mxu0 0
  %1166 = vmatprep.mubr.bf16.mxu0 0
  %1167 = vmatmul.mubr.bf16.gmra.mrb[0].mxu0 %v1133
  %v1168 = vpop.f32.mrb[0].mxu0
  %v1169 = vadd.f32 0.0, %v1168
  %v1170 = vpop.f32.mrb[0].mxu0
  %v1171 = vadd.f32 0.0, %v1170
  %v1172 = vpop.f32.mrb[0].mxu0
  %v1173 = vpop.f32.mrb[0].mxu0
  %1174 = vdwg.mxu0
  %1175 = vmatprep.subr.bf16.mxu0 %v951
  %1176 = vmatpush1.bf16.msra.mxu0 %v950
  %1177 = vmatprep.subr.bf16.mxu0 %v955
  %1178 = vmatpush1.bf16.msra.mxu0 %v954
  %1179 = vmatprep.subr.bf16.mxu0 %v959
  %1180 = vmatpush1.bf16.msra.mxu0 %v958
  %1181 = vmatprep.subr.bf16.mxu0 %v963
  %1182 = vmatpush1.bf16.msra.mxu0 %v962
  %1183 = vmatprep.subr.bf16.mxu0 %v967
  %1184 = vmatpush1.bf16.msra.mxu0 %v966
  %1185 = vmatprep.subr.bf16.mxu0 %v971
  %1186 = vmatpush1.bf16.msra.mxu0 %v970
  %1187 = vmatprep.subr.bf16.mxu0 %v975
  %1188 = vmatpush1.bf16.msra.mxu0 %v974
  %1189 = vmatprep.subr.bf16.mxu0 %v979
  %1190 = vmatpush1.bf16.msra.mxu0 %v978
  %1191 = vmatprep.subr.bf16.mxu0 0
  %1192 = vmatpush1.bf16.msra.mxu0 0
  %1193 = vmatprep.subr.bf16.mxu0 0
  %1194 = vmatpush1.bf16.msra.mxu0 0
  %1195 = vmatprep.subr.bf16.mxu0 0
  %1196 = vmatpush1.bf16.msra.mxu0 0
  %1197 = vmatprep.subr.bf16.mxu0 0
  %1198 = vmatpush1.bf16.msra.mxu0 0
  %1199 = vmatprep.subr.bf16.mxu0 0
  %1200 = vmatpush1.bf16.msra.mxu0 0
  %1201 = vmatprep.subr.bf16.mxu0 0
  %1202 = vmatpush1.bf16.msra.mxu0 0
  %1203 = vmatprep.subr.bf16.mxu0 0
  %1204 = vmatpush1.bf16.msra.mxu0 0
  %1205 = vmatprep.subr.bf16.mxu0 0
  %1206 = vmatpush1.bf16.msra.mxu0 0
  %1207 = vmatprep.mubr.bf16.mxu0 0
  %1208 = vmatmul.mubr.bf16.gmra.mrb[0].mxu0 %v1133
  %v1209 = vpop.f32.mrb[0].mxu0
  %v1210 = vadd.f32 0.0, %v1209
  %v1211 = vpop.f32.mrb[0].mxu0
  %v1212 = vadd.f32 0.0, %v1211
  %v1213 = vpop.f32.mrb[0].mxu0
  %v1214 = vpop.f32.mrb[0].mxu0
  %1215 = vdwg.mxu0
  %v1216 = vadd.f32 %v1129, %v1169
  %v1217 = vadd.f32 %v1130, %v1171
  %v1218 = vadd.f32 %v1131, %v1210
  %v1219 = vadd.f32 %v1132, %v1212
  %v1220 = vxor.u32 %v1216, 2147483648
  %v1221 = vmul.f32 %v1220, 1.442695
  %v1222 = vpow.pop %v1221
  %v1223 = vadd.f32 %v1222, 1.0
  %v1224 = vrcp.pop %v1223
  %v1225 = vmul.f32 1.0, %v1224
  %v1226 = vxor.u32 %v1217, 2147483648
  %v1227 = vmul.f32 %v1226, 1.442695
  %v1228 = vpow.pop %v1227
  %v1229 = vadd.f32 %v1228, 1.0
  %v1230 = vrcp.pop %v1229
  %v1231 = vmul.f32 1.0, %v1230
  %v1232 = vtanh.pop %v1218
  %v1233 = vxor.u32 %v1219, 2147483648
  %v1234 = vmul.f32 %v1233, 1.442695
  %v1235 = vpow.pop %v1234
  %v1236 = vadd.f32 %v1235, 1.0
  %v1237 = vrcp.pop %v1236
  %v1238 = vmul.f32 1.0, %v1237
  %v1239 = vmul.f32 %v1231, %v1119
  %v1240 = vmul.f32 %v1225, %v1232
  %v1241 = vadd.f32 %v1239, %v1240
  %v1242 = vtanh.pop %v1241
  %v1243 = vmul.f32 %v1238, %v1242
  %s1244 = smul.u32 1, 2
  %s1245 = smul.addr %s1244, 8
  %s1246 = scalar_lea.vmem [#allocation6], %s1245
  %1247 = vst [vmem:[%s1246] sm:$0xff] %v1243
  %s1248 = smul.u32 2, 4
  %s1249 = smul.addr %s1248, 8
  %s1250 = scalar_lea.vmem [#allocation2], %s1249
  %v1251 = vld [vmem:[%s1250] sm:$0xff]
  %v1252 = vld [vmem:[%s1250 + $0x8] sm:$0xff]
  %v1253 = vld [vmem:[%s1250 + $0x10] sm:$0xff]
  %v1254 = vld [vmem:[%s1250 + $0x18] sm:$0xff]
  %v1255 = vpack.c.bf16 %v1243, %v1243
  %1256 = vmatprep.subr.bf16.mxu0 %v949
  %1257 = vmatpush1.bf16.msra.mxu0 %v948
  %1258 = vmatprep.subr.bf16.mxu0 %v953
  %1259 = vmatpush1.bf16.msra.mxu0 %v952
  %1260 = vmatprep.subr.bf16.mxu0 %v957
  %1261 = vmatpush1.bf16.msra.mxu0 %v956
  %1262 = vmatprep.subr.bf16.mxu0 %v961
  %1263 = vmatpush1.bf16.msra.mxu0 %v960
  %1264 = vmatprep.subr.bf16.mxu0 %v965
  %1265 = vmatpush1.bf16.msra.mxu0 %v964
  %1266 = vmatprep.subr.bf16.mxu0 %v969
  %1267 = vmatpush1.bf16.msra.mxu0 %v968
  %1268 = vmatprep.subr.bf16.mxu0 %v973
  %1269 = vmatpush1.bf16.msra.mxu0 %v972
  %1270 = vmatprep.subr.bf16.mxu0 %v977
  %1271 = vmatpush1.bf16.msra.mxu0 %v976
  %1272 = vmatprep.subr.bf16.mxu0 0
  %1273 = vmatpush1.bf16.msra.mxu0 0
  %1274 = vmatprep.subr.bf16.mxu0 0
  %1275 = vmatpush1.bf16.msra.mxu0 0
  %1276 = vmatprep.subr.bf16.mxu0 0
  %1277 = vmatpush1.bf16.msra.mxu0 0
  %1278 = vmatprep.subr.bf16.mxu0 0
  %1279 = vmatpush1.bf16.msra.mxu0 0
  %1280 = vmatprep.subr.bf16.mxu0 0
  %1281 = vmatpush1.bf16.msra.mxu0 0
  %1282 = vmatprep.subr.bf16.mxu0 0
  %1283 = vmatpush1.bf16.msra.mxu0 0
  %1284 = vmatprep.subr.bf16.mxu0 0
  %1285 = vmatpush1.bf16.msra.mxu0 0
  %1286 = vmatprep.subr.bf16.mxu0 0
  %1287 = vmatpush1.bf16.msra.mxu0 0
  %1288 = vmatprep.mubr.bf16.mxu0 0
  %1289 = vmatmul.mubr.bf16.gmra.mrb[0].mxu0 %v1255
  %v1290 = vpop.f32.mrb[0].mxu0
  %v1291 = vadd.f32 0.0, %v1290
  %v1292 = vpop.f32.mrb[0].mxu0
  %v1293 = vadd.f32 0.0, %v1292
  %v1294 = vpop.f32.mrb[0].mxu0
  %v1295 = vpop.f32.mrb[0].mxu0
  %1296 = vdwg.mxu0
  %1297 = vmatprep.subr.bf16.mxu0 %v951
  %1298 = vmatpush1.bf16.msra.mxu0 %v950
  %1299 = vmatprep.subr.bf16.mxu0 %v955
  %1300 = vmatpush1.bf16.msra.mxu0 %v954
  %1301 = vmatprep.subr.bf16.mxu0 %v959
  %1302 = vmatpush1.bf16.msra.mxu0 %v958
  %1303 = vmatprep.subr.bf16.mxu0 %v963
  %1304 = vmatpush1.bf16.msra.mxu0 %v962
  %1305 = vmatprep.subr.bf16.mxu0 %v967
  %1306 = vmatpush1.bf16.msra.mxu0 %v966
  %1307 = vmatprep.subr.bf16.mxu0 %v971
  %1308 = vmatpush1.bf16.msra.mxu0 %v970
  %1309 = vmatprep.subr.bf16.mxu0 %v975
  %1310 = vmatpush1.bf16.msra.mxu0 %v974
  %1311 = vmatprep.subr.bf16.mxu0 %v979
  %1312 = vmatpush1.bf16.msra.mxu0 %v978
  %1313 = vmatprep.subr.bf16.mxu0 0
  %1314 = vmatpush1.bf16.msra.mxu0 0
  %1315 = vmatprep.subr.bf16.mxu0 0
  %1316 = vmatpush1.bf16.msra.mxu0 0
  %1317 = vmatprep.subr.bf16.mxu0 0
  %1318 = vmatpush1.bf16.msra.mxu0 0
  %1319 = vmatprep.subr.bf16.mxu0 0
  %1320 = vmatpush1.bf16.msra.mxu0 0
  %1321 = vmatprep.subr.bf16.mxu0 0
  %1322 = vmatpush1.bf16.msra.mxu0 0
  %1323 = vmatprep.subr.bf16.mxu0 0
  %1324 = vmatpush1.bf16.msra.mxu0 0
  %1325 = vmatprep.subr.bf16.mxu0 0
  %1326 = vmatpush1.bf16.msra.mxu0 0
  %1327 = vmatprep.subr.bf16.mxu0 0
  %1328 = vmatpush1.bf16.msra.mxu0 0
  %1329 = vmatprep.mubr.bf16.mxu0 0
  %1330 = vmatmul.mubr.bf16.gmra.mrb[0].mxu0 %v1255
  %v1331 = vpop.f32.mrb[0].mxu0
  %v1332 = vadd.f32 0.0, %v1331
  %v1333 = vpop.f32.mrb[0].mxu0
  %v1334 = vadd.f32 0.0, %v1333
  %v1335 = vpop.f32.mrb[0].mxu0
  %v1336 = vpop.f32.mrb[0].mxu0
  %1337 = vdwg.mxu0
  %v1338 = vadd.f32 %v1251, %v1291
  %v1339 = vadd.f32 %v1252, %v1293
  %v1340 = vadd.f32 %v1253, %v1332
  %v1341 = vadd.f32 %v1254, %v1334
  %v1342 = vxor.u32 %v1338, 2147483648
  %v1343 = vmul.f32 %v1342, 1.442695
  %v1344 = vpow.pop %v1343
  %v1345 = vadd.f32 %v1344, 1.0
  %v1346 = vrcp.pop %v1345
  %v1347 = vmul.f32 1.0, %v1346
  %v1348 = vxor.u32 %v1339, 2147483648
  %v1349 = vmul.f32 %v1348, 1.442695
  %v1350 = vpow.pop %v1349
  %v1351 = vadd.f32 %v1350, 1.0
  %v1352 = vrcp.pop %v1351
  %v1353 = vmul.f32 1.0, %v1352
  %v1354 = vtanh.pop %v1340
  %v1355 = vxor.u32 %v1341, 2147483648
  %v1356 = vmul.f32 %v1355, 1.442695
  %v1357 = vpow.pop %v1356
  %v1358 = vadd.f32 %v1357, 1.0
  %v1359 = vrcp.pop %v1358
  %v1360 = vmul.f32 1.0, %v1359
  %v1361 = vmul.f32 %v1353, %v1241
  %v1362 = vmul.f32 %v1347, %v1354
  %v1363 = vadd.f32 %v1361, %v1362
  %v1364 = vtanh.pop %v1363
  %v1365 = vmul.f32 %v1360, %v1364
  %s1366 = smul.u32 2, 2
  %s1367 = smul.addr %s1366, 8
  %s1368 = scalar_lea.vmem [#allocation6], %s1367
  %1369 = vst [vmem:[%s1368] sm:$0xff] %v1365
  %s1370 = smul.u32 3, 4
  %s1371 = smul.addr %s1370, 8
  %s1372 = scalar_lea.vmem [#allocation2], %s1371
  %v1373 = vld [vmem:[%s1372] sm:$0xff]
  %v1374 = vld [vmem:[%s1372 + $0x8] sm:$0xff]
  %v1375 = vld [vmem:[%s1372 + $0x10] sm:$0xff]
  %v1376 = vld [vmem:[%s1372 + $0x18] sm:$0xff]
  %v1377 = vpack.c.bf16 %v1365, %v1365
  %1378 = vmatprep.subr.bf16.mxu0 %v949
  %1379 = vmatpush1.bf16.msra.mxu0 %v948
  %1380 = vmatprep.subr.bf16.mxu0 %v953
  %1381 = vmatpush1.bf16.msra.mxu0 %v952
  %1382 = vmatprep.subr.bf16.mxu0 %v957
  %1383 = vmatpush1.bf16.msra.mxu0 %v956
  %1384 = vmatprep.subr.bf16.mxu0 %v961
  %1385 = vmatpush1.bf16.msra.mxu0 %v960
  %1386 = vmatprep.subr.bf16.mxu0 %v965
  %1387 = vmatpush1.bf16.msra.mxu0 %v964
  %1388 = vmatprep.subr.bf16.mxu0 %v969
  %1389 = vmatpush1.bf16.msra.mxu0 %v968
  %1390 = vmatprep.subr.bf16.mxu0 %v973
  %1391 = vmatpush1.bf16.msra.mxu0 %v972
  %1392 = vmatprep.subr.bf16.mxu0 %v977
  %1393 = vmatpush1.bf16.msra.mxu0 %v976
  %1394 = vmatprep.subr.bf16.mxu0 0
  %1395 = vmatpush1.bf16.msra.mxu0 0
  %1396 = vmatprep.subr.bf16.mxu0 0
  %1397 = vmatpush1.bf16.msra.mxu0 0
  %1398 = vmatprep.subr.bf16.mxu0 0
  %1399 = vmatpush1.bf16.msra.mxu0 0
  %1400 = vmatprep.subr.bf16.mxu0 0
  %1401 = vmatpush1.bf16.msra.mxu0 0
  %1402 = vmatprep.subr.bf16.mxu0 0
  %1403 = vmatpush1.bf16.msra.mxu0 0
  %1404 = vmatprep.subr.bf16.mxu0 0
  %1405 = vmatpush1.bf16.msra.mxu0 0
  %1406 = vmatprep.subr.bf16.mxu0 0
  %1407 = vmatpush1.bf16.msra.mxu0 0
  %1408 = vmatprep.subr.bf16.mxu0 0
  %1409 = vmatpush1.bf16.msra.mxu0 0
  %1410 = vmatprep.mubr.bf16.mxu0 0
  %1411 = vmatmul.mubr.bf16.gmra.mrb[0].mxu0 %v1377
  %v1412 = vpop.f32.mrb[0].mxu0
  %v1413 = vadd.f32 0.0, %v1412
  %v1414 = vpop.f32.mrb[0].mxu0
  %v1415 = vadd.f32 0.0, %v1414
  %v1416 = vpop.f32.mrb[0].mxu0
  %v1417 = vpop.f32.mrb[0].mxu0
  %1418 = vdwg.mxu0
  %1419 = vmatprep.subr.bf16.mxu0 %v951
  %1420 = vmatpush1.bf16.msra.mxu0 %v950
  %1421 = vmatprep.subr.bf16.mxu0 %v955
  %1422 = vmatpush1.bf16.msra.mxu0 %v954
  %1423 = vmatprep.subr.bf16.mxu0 %v959
  %1424 = vmatpush1.bf16.msra.mxu0 %v958
  %1425 = vmatprep.subr.bf16.mxu0 %v963
  %1426 = vmatpush1.bf16.msra.mxu0 %v962
  %1427 = vmatprep.subr.bf16.mxu0 %v967
  %1428 = vmatpush1.bf16.msra.mxu0 %v966
  %1429 = vmatprep.subr.bf16.mxu0 %v971
  %1430 = vmatpush1.bf16.msra.mxu0 %v970
  %1431 = vmatprep.subr.bf16.mxu0 %v975
  %1432 = vmatpush1.bf16.msra.mxu0 %v974
  %1433 = vmatprep.subr.bf16.mxu0 %v979
  %1434 = vmatpush1.bf16.msra.mxu0 %v978
  %1435 = vmatprep.subr.bf16.mxu0 0
  %1436 = vmatpush1.bf16.msra.mxu0 0
  %1437 = vmatprep.subr.bf16.mxu0 0
  %1438 = vmatpush1.bf16.msra.mxu0 0
  %1439 = vmatprep.subr.bf16.mxu0 0
  %1440 = vmatpush1.bf16.msra.mxu0 0
  %1441 = vmatprep.subr.bf16.mxu0 0
  %1442 = vmatpush1.bf16.msra.mxu0 0
  %1443 = vmatprep.subr.bf16.mxu0 0
  %1444 = vmatpush1.bf16.msra.mxu0 0
  %1445 = vmatprep.subr.bf16.mxu0 0
  %1446 = vmatpush1.bf16.msra.mxu0 0
  %1447 = vmatprep.subr.bf16.mxu0 0
  %1448 = vmatpush1.bf16.msra.mxu0 0
  %1449 = vmatprep.subr.bf16.mxu0 0
  %1450 = vmatpush1.bf16.msra.mxu0 0
  %1451 = vmatprep.mubr.bf16.mxu0 0
  %1452 = vmatmul.mubr.bf16.gmra.mrb[0].mxu0 %v1377
  %v1453 = vpop.f32.mrb[0].mxu0
  %v1454 = vadd.f32 0.0, %v1453
  %v1455 = vpop.f32.mrb[0].mxu0
  %v1456 = vadd.f32 0.0, %v1455
  %v1457 = vpop.f32.mrb[0].mxu0
  %v1458 = vpop.f32.mrb[0].mxu0
  %1459 = vdwg.mxu0
  %v1460 = vadd.f32 %v1373, %v1413
  %v1461 = vadd.f32 %v1374, %v1415
  %v1462 = vadd.f32 %v1375, %v1454
  %v1463 = vadd.f32 %v1376, %v1456
  %v1464 = vxor.u32 %v1460, 2147483648
  %v1465 = vmul.f32 %v1464, 1.442695
  %v1466 = vpow.pop %v1465
  %v1467 = vadd.f32 %v1466, 1.0
  %v1468 = vrcp.pop %v1467
  %v1469 = vmul.f32 1.0, %v1468
  %v1470 = vxor.u32 %v1461, 2147483648
  %v1471 = vmul.f32 %v1470, 1.442695
  %v1472 = vpow.pop %v1471
  %v1473 = vadd.f32 %v1472, 1.0
  %v1474 = vrcp.pop %v1473
  %v1475 = vmul.f32 1.0, %v1474
  %v1476 = vtanh.pop %v1462
  %v1477 = vxor.u32 %v1463, 2147483648
  %v1478 = vmul.f32 %v1477, 1.442695
  %v1479 = vpow.pop %v1478
  %v1480 = vadd.f32 %v1479, 1.0
  %v1481 = vrcp.pop %v1480
  %v1482 = vmul.f32 1.0, %v1481
  %v1483 = vmul.f32 %v1475, %v1363
  %v1484 = vmul.f32 %v1469, %v1476
  %v1485 = vadd.f32 %v1483, %v1484
  %v1486 = vtanh.pop %v1485
  %v1487 = vmul.f32 %v1482, %v1486
  %s1488 = smul.u32 3, 2
  %s1489 = smul.addr %s1488, 8
  %s1490 = scalar_lea.vmem [#allocation6], %s1489
  %1491 = vst [vmem:[%s1490] sm:$0xff] %v1487
  %s1492 = smul.u32 4, 4
  %s1493 = smul.addr %s1492, 8
  %s1494 = scalar_lea.vmem [#allocation2], %s1493
  %v1495 = vld [vmem:[%s1494] sm:$0xff]
  %v1496 = vld [vmem:[%s1494 + $0x8] sm:$0xff]
  %v1497 = vld [vmem:[%s1494 + $0x10] sm:$0xff]
  %v1498 = vld [vmem:[%s1494 + $0x18] sm:$0xff]
  %v1499 = vpack.c.bf16 %v1487, %v1487
  %1500 = vmatprep.subr.bf16.mxu0 %v949
  %1501 = vmatpush1.bf16.msra.mxu0 %v948
  %1502 = vmatprep.subr.bf16.mxu0 %v953
  %1503 = vmatpush1.bf16.msra.mxu0 %v952
  %1504 = vmatprep.subr.bf16.mxu0 %v957
  %1505 = vmatpush1.bf16.msra.mxu0 %v956
  %1506 = vmatprep.subr.bf16.mxu0 %v961
  %1507 = vmatpush1.bf16.msra.mxu0 %v960
  %1508 = vmatprep.subr.bf16.mxu0 %v965
  %1509 = vmatpush1.bf16.msra.mxu0 %v964
  %1510 = vmatprep.subr.bf16.mxu0 %v969
  %1511 = vmatpush1.bf16.msra.mxu0 %v968
  %1512 = vmatprep.subr.bf16.mxu0 %v973
  %1513 = vmatpush1.bf16.msra.mxu0 %v972
  %1514 = vmatprep.subr.bf16.mxu0 %v977
  %1515 = vmatpush1.bf16.msra.mxu0 %v976
  %1516 = vmatprep.subr.bf16.mxu0 0
  %1517 = vmatpush1.bf16.msra.mxu0 0
  %1518 = vmatprep.subr.bf16.mxu0 0
  %1519 = vmatpush1.bf16.msra.mxu0 0
  %1520 = vmatprep.subr.bf16.mxu0 0
  %1521 = vmatpush1.bf16.msra.mxu0 0
  %1522 = vmatprep.subr.bf16.mxu0 0
  %1523 = vmatpush1.bf16.msra.mxu0 0
  %1524 = vmatprep.subr.bf16.mxu0 0
  %1525 = vmatpush1.bf16.msra.mxu0 0
  %1526 = vmatprep.subr.bf16.mxu0 0
  %1527 = vmatpush1.bf16.msra.mxu0 0
  %1528 = vmatprep.subr.bf16.mxu0 0
  %1529 = vmatpush1.bf16.msra.mxu0 0
  %1530 = vmatprep.subr.bf16.mxu0 0
  %1531 = vmatpush1.bf16.msra.mxu0 0
  %1532 = vmatprep.mubr.bf16.mxu0 0
  %1533 = vmatmul.mubr.bf16.gmra.mrb[0].mxu0 %v1499
  %v1534 = vpop.f32.mrb[0].mxu0
  %v1535 = vadd.f32 0.0, %v1534
  %v1536 = vpop.f32.mrb[0].mxu0
  %v1537 = vadd.f32 0.0, %v1536
  %v1538 = vpop.f32.mrb[0].mxu0
  %v1539 = vpop.f32.mrb[0].mxu0
  %1540 = vdwg.mxu0
  %1541 = vmatprep.subr.bf16.mxu0 %v951
  %1542 = vmatpush1.bf16.msra.mxu0 %v950
  %1543 = vmatprep.subr.bf16.mxu0 %v955
  %1544 = vmatpush1.bf16.msra.mxu0 %v954
  %1545 = vmatprep.subr.bf16.mxu0 %v959
  %1546 = vmatpush1.bf16.msra.mxu0 %v958
  %1547 = vmatprep.subr.bf16.mxu0 %v963
  %1548 = vmatpush1.bf16.msra.mxu0 %v962
  %1549 = vmatprep.subr.bf16.mxu0 %v967
  %1550 = vmatpush1.bf16.msra.mxu0 %v966
  %1551 = vmatprep.subr.bf16.mxu0 %v971
  %1552 = vmatpush1.bf16.msra.mxu0 %v970
  %1553 = vmatprep.subr.bf16.mxu0 %v975
  %1554 = vmatpush1.bf16.msra.mxu0 %v974
  %1555 = vmatprep.subr.bf16.mxu0 %v979
  %1556 = vmatpush1.bf16.msra.mxu0 %v978
  %1557 = vmatprep.subr.bf16.mxu0 0
  %1558 = vmatpush1.bf16.msra.mxu0 0
  %1559 = vmatprep.subr.bf16.mxu0 0
  %1560 = vmatpush1.bf16.msra.mxu0 0
  %1561 = vmatprep.subr.bf16.mxu0 0
  %1562 = vmatpush1.bf16.msra.mxu0 0
  %1563 = vmatprep.subr.bf16.mxu0 0
  %1564 = vmatpush1.bf16.msra.mxu0 0
  %1565 = vmatprep.subr.bf16.mxu0 0
  %1566 = vmatpush1.bf16.msra.mxu0 0
  %1567 = vmatprep.subr.bf16.mxu0 0
  %1568 = vmatpush1.bf16.msra.mxu0 0
  %1569 = vmatprep.subr.bf16.mxu0 0
  %1570 = vmatpush1.bf16.msra.mxu0 0
  %1571 = vmatprep.subr.bf16.mxu0 0
  %1572 = vmatpush1.bf16.msra.mxu0 0
  %1573 = vmatprep.mubr.bf16.mxu0 0
  %1574 = vmatmul.mubr.bf16.gmra.mrb[0].mxu0 %v1499
  %v1575 = vpop.f32.mrb[0].mxu0
  %v1576 = vadd.f32 0.0, %v1575
  %v1577 = vpop.f32.mrb[0].mxu0
  %v1578 = vadd.f32 0.0, %v1577
  %v1579 = vpop.f32.mrb[0].mxu0
  %v1580 = vpop.f32.mrb[0].mxu0
  %1581 = vdwg.mxu0
  %v1582 = vadd.f32 %v1495, %v1535
  %v1583 = vadd.f32 %v1496, %v1537
  %v1584 = vadd.f32 %v1497, %v1576
  %v1585 = vadd.f32 %v1498, %v1578
  %v1586 = vxor.u32 %v1582, 2147483648
  %v1587 = vmul.f32 %v1586, 1.442695
  %v1588 = vpow.pop %v1587
  %v1589 = vadd.f32 %v1588, 1.0
  %v1590 = vrcp.pop %v1589
  %v1591 = vmul.f32 1.0, %v1590
  %v1592 = vxor.u32 %v1583, 2147483648
  %v1593 = vmul.f32 %v1592, 1.442695
  %v1594 = vpow.pop %v1593
  %v1595 = vadd.f32 %v1594, 1.0
  %v1596 = vrcp.pop %v1595
  %v1597 = vmul.f32 1.0, %v1596
  %v1598 = vtanh.pop %v1584
  %v1599 = vxor.u32 %v1585, 2147483648
  %v1600 = vmul.f32 %v1599, 1.442695
  %v1601 = vpow.pop %v1600
  %v1602 = vadd.f32 %v1601, 1.0
  %v1603 = vrcp.pop %v1602
  %v1604 = vmul.f32 1.0, %v1603
  %v1605 = vmul.f32 %v1597, %v1485
  %v1606 = vmul.f32 %v1591, %v1598
  %v1607 = vadd.f32 %v1605, %v1606
  %v1608 = vtanh.pop %v1607
  %v1609 = vmul.f32 %v1604, %v1608
  %s1610 = smul.u32 4, 2
  %s1611 = smul.addr %s1610, 8
  %s1612 = scalar_lea.vmem [#allocation6], %s1611
  %1613 = vst [vmem:[%s1612] sm:$0xff] %v1609
  %s1614 = smul.u32 5, 4
  %s1615 = smul.addr %s1614, 8
  %s1616 = scalar_lea.vmem [#allocation2], %s1615
  %v1617 = vld [vmem:[%s1616] sm:$0xff]
  %v1618 = vld [vmem:[%s1616 + $0x8] sm:$0xff]
  %v1619 = vld [vmem:[%s1616 + $0x10] sm:$0xff]
  %v1620 = vld [vmem:[%s1616 + $0x18] sm:$0xff]
  %v1621 = vpack.c.bf16 %v1609, %v1609
  %1622 = vmatprep.subr.bf16.mxu0 %v949
  %1623 = vmatpush1.bf16.msra.mxu0 %v948
  %1624 = vmatprep.subr.bf16.mxu0 %v953
  %1625 = vmatpush1.bf16.msra.mxu0 %v952
  %1626 = vmatprep.subr.bf16.mxu0 %v957
  %1627 = vmatpush1.bf16.msra.mxu0 %v956
  %1628 = vmatprep.subr.bf16.mxu0 %v961
  %1629 = vmatpush1.bf16.msra.mxu0 %v960
  %1630 = vmatprep.subr.bf16.mxu0 %v965
  %1631 = vmatpush1.bf16.msra.mxu0 %v964
  %1632 = vmatprep.subr.bf16.mxu0 %v969
  %1633 = vmatpush1.bf16.msra.mxu0 %v968
  %1634 = vmatprep.subr.bf16.mxu0 %v973
  %1635 = vmatpush1.bf16.msra.mxu0 %v972
  %1636 = vmatprep.subr.bf16.mxu0 %v977
  %1637 = vmatpush1.bf16.msra.mxu0 %v976
  %1638 = vmatprep.subr.bf16.mxu0 0
  %1639 = vmatpush1.bf16.msra.mxu0 0
  %1640 = vmatprep.subr.bf16.mxu0 0
  %1641 = vmatpush1.bf16.msra.mxu0 0
  %1642 = vmatprep.subr.bf16.mxu0 0
  %1643 = vmatpush1.bf16.msra.mxu0 0
  %1644 = vmatprep.subr.bf16.mxu0 0
  %1645 = vmatpush1.bf16.msra.mxu0 0
  %1646 = vmatprep.subr.bf16.mxu0 0
  %1647 = vmatpush1.bf16.msra.mxu0 0
  %1648 = vmatprep.subr.bf16.mxu0 0
  %1649 = vmatpush1.bf16.msra.mxu0 0
  %1650 = vmatprep.subr.bf16.mxu0 0
  %1651 = vmatpush1.bf16.msra.mxu0 0
  %1652 = vmatprep.subr.bf16.mxu0 0
  %1653 = vmatpush1.bf16.msra.mxu0 0
  %1654 = vmatprep.mubr.bf16.mxu0 0
  %1655 = vmatmul.mubr.bf16.gmra.mrb[0].mxu0 %v1621
  %v1656 = vpop.f32.mrb[0].mxu0
  %v1657 = vadd.f32 0.0, %v1656
  %v1658 = vpop.f32.mrb[0].mxu0
  %v1659 = vadd.f32 0.0, %v1658
  %v1660 = vpop.f32.mrb[0].mxu0
  %v1661 = vpop.f32.mrb[0].mxu0
  %1662 = vdwg.mxu0
  %1663 = vmatprep.subr.bf16.mxu0 %v951
  %1664 = vmatpush1.bf16.msra.mxu0 %v950
  %1665 = vmatprep.subr.bf16.mxu0 %v955
  %1666 = vmatpush1.bf16.msra.mxu0 %v954
  %1667 = vmatprep.subr.bf16.mxu0 %v959
  %1668 = vmatpush1.bf16.msra.mxu0 %v958
  %1669 = vmatprep.subr.bf16.mxu0 %v963
  %1670 = vmatpush1.bf16.msra.mxu0 %v962
  %1671 = vmatprep.subr.bf16.mxu0 %v967
  %1672 = vmatpush1.bf16.msra.mxu0 %v966
  %1673 = vmatprep.subr.bf16.mxu0 %v971
  %1674 = vmatpush1.bf16.msra.mxu0 %v970
  %1675 = vmatprep.subr.bf16.mxu0 %v975
  %1676 = vmatpush1.bf16.msra.mxu0 %v974
  %1677 = vmatprep.subr.bf16.mxu0 %v979
  %1678 = vmatpush1.bf16.msra.mxu0 %v978
  %1679 = vmatprep.subr.bf16.mxu0 0
  %1680 = vmatpush1.bf16.msra.mxu0 0
  %1681 = vmatprep.subr.bf16.mxu0 0
  %1682 = vmatpush1.bf16.msra.mxu0 0
  %1683 = vmatprep.subr.bf16.mxu0 0
  %1684 = vmatpush1.bf16.msra.mxu0 0
  %1685 = vmatprep.subr.bf16.mxu0 0
  %1686 = vmatpush1.bf16.msra.mxu0 0
  %1687 = vmatprep.subr.bf16.mxu0 0
  %1688 = vmatpush1.bf16.msra.mxu0 0
  %1689 = vmatprep.subr.bf16.mxu0 0
  %1690 = vmatpush1.bf16.msra.mxu0 0
  %1691 = vmatprep.subr.bf16.mxu0 0
  %1692 = vmatpush1.bf16.msra.mxu0 0
  %1693 = vmatprep.subr.bf16.mxu0 0
  %1694 = vmatpush1.bf16.msra.mxu0 0
  %1695 = vmatprep.mubr.bf16.mxu0 0
  %1696 = vmatmul.mubr.bf16.gmra.mrb[0].mxu0 %v1621
  %v1697 = vpop.f32.mrb[0].mxu0
  %v1698 = vadd.f32 0.0, %v1697
  %v1699 = vpop.f32.mrb[0].mxu0
  %v1700 = vadd.f32 0.0, %v1699
  %v1701 = vpop.f32.mrb[0].mxu0
  %v1702 = vpop.f32.mrb[0].mxu0
  %1703 = vdwg.mxu0
  %v1704 = vadd.f32 %v1617, %v1657
  %v1705 = vadd.f32 %v1618, %v1659
  %v1706 = vadd.f32 %v1619, %v1698
  %v1707 = vadd.f32 %v1620, %v1700
  %v1708 = vxor.u32 %v1704, 2147483648
  %v1709 = vmul.f32 %v1708, 1.442695
  %v1710 = vpow.pop %v1709
  %v1711 = vadd.f32 %v1710, 1.0
  %v1712 = vrcp.pop %v1711
  %v1713 = vmul.f32 1.0, %v1712
  %v1714 = vxor.u32 %v1705, 2147483648
  %v1715 = vmul.f32 %v1714, 1.442695
  %v1716 = vpow.pop %v1715
  %v1717 = vadd.f32 %v1716, 1.0
  %v1718 = vrcp.pop %v1717
  %v1719 = vmul.f32 1.0, %v1718
  %v1720 = vtanh.pop %v1706
  %v1721 = vxor.u32 %v1707, 2147483648
  %v1722 = vmul.f32 %v1721, 1.442695
  %v1723 = vpow.pop %v1722
  %v1724 = vadd.f32 %v1723, 1.0
  %v1725 = vrcp.pop %v1724
  %v1726 = vmul.f32 1.0, %v1725
  %v1727 = vmul.f32 %v1719, %v1607
  %v1728 = vmul.f32 %v1713, %v1720
  %v1729 = vadd.f32 %v1727, %v1728
  %v1730 = vtanh.pop %v1729
  %v1731 = vmul.f32 %v1726, %v1730
  %s1732 = smul.u32 5, 2
  %s1733 = smul.addr %s1732, 8
  %s1734 = scalar_lea.vmem [#allocation6], %s1733
  %1735 = vst [vmem:[%s1734] sm:$0xff] %v1731
  %s1736 = smul.u32 6, 4
  %s1737 = smul.addr %s1736, 8
  %s1738 = scalar_lea.vmem [#allocation2], %s1737
  %v1739 = vld [vmem:[%s1738] sm:$0xff]
  %v1740 = vld [vmem:[%s1738 + $0x8] sm:$0xff]
  %v1741 = vld [vmem:[%s1738 + $0x10] sm:$0xff]
  %v1742 = vld [vmem:[%s1738 + $0x18] sm:$0xff]
  %v1743 = vpack.c.bf16 %v1731, %v1731
  %1744 = vmatprep.subr.bf16.mxu0 %v949
  %1745 = vmatpush1.bf16.msra.mxu0 %v948
  %1746 = vmatprep.subr.bf16.mxu0 %v953
  %1747 = vmatpush1.bf16.msra.mxu0 %v952
  %1748 = vmatprep.subr.bf16.mxu0 %v957
  %1749 = vmatpush1.bf16.msra.mxu0 %v956
  %1750 = vmatprep.subr.bf16.mxu0 %v961
  %1751 = vmatpush1.bf16.msra.mxu0 %v960
  %1752 = vmatprep.subr.bf16.mxu0 %v965
  %1753 = vmatpush1.bf16.msra.mxu0 %v964
  %1754 = vmatprep.subr.bf16.mxu0 %v969
  %1755 = vmatpush1.bf16.msra.mxu0 %v968
  %1756 = vmatprep.subr.bf16.mxu0 %v973
  %1757 = vmatpush1.bf16.msra.mxu0 %v972
  %1758 = vmatprep.subr.bf16.mxu0 %v977
  %1759 = vmatpush1.bf16.msra.mxu0 %v976
  %1760 = vmatprep.subr.bf16.mxu0 0
  %1761 = vmatpush1.bf16.msra.mxu0 0
  %1762 = vmatprep.subr.bf16.mxu0 0
  %1763 = vmatpush1.bf16.msra.mxu0 0
  %1764 = vmatprep.subr.bf16.mxu0 0
  %1765 = vmatpush1.bf16.msra.mxu0 0
  %1766 = vmatprep.subr.bf16.mxu0 0
  %1767 = vmatpush1.bf16.msra.mxu0 0
  %1768 = vmatprep.subr.bf16.mxu0 0
  %1769 = vmatpush1.bf16.msra.mxu0 0
  %1770 = vmatprep.subr.bf16.mxu0 0
  %1771 = vmatpush1.bf16.msra.mxu0 0
  %1772 = vmatprep.subr.bf16.mxu0 0
  %1773 = vmatpush1.bf16.msra.mxu0 0
  %1774 = vmatprep.subr.bf16.mxu0 0
  %1775 = vmatpush1.bf16.msra.mxu0 0
  %1776 = vmatprep.mubr.bf16.mxu0 0
  %1777 = vmatmul.mubr.bf16.gmra.mrb[0].mxu0 %v1743
  %v1778 = vpop.f32.mrb[0].mxu0
  %v1779 = vadd.f32 0.0, %v1778
  %v1780 = vpop.f32.mrb[0].mxu0
  %v1781 = vadd.f32 0.0, %v1780
  %v1782 = vpop.f32.mrb[0].mxu0
  %v1783 = vpop.f32.mrb[0].mxu0
  %1784 = vdwg.mxu0
  %1785 = vmatprep.subr.bf16.mxu0 %v951
  %1786 = vmatpush1.bf16.msra.mxu0 %v950
  %1787 = vmatprep.subr.bf16.mxu0 %v955
  %1788 = vmatpush1.bf16.msra.mxu0 %v954
  %1789 = vmatprep.subr.bf16.mxu0 %v959
  %1790 = vmatpush1.bf16.msra.mxu0 %v958
  %1791 = vmatprep.subr.bf16.mxu0 %v963
  %1792 = vmatpush1.bf16.msra.mxu0 %v962
  %1793 = vmatprep.subr.bf16.mxu0 %v967
  %1794 = vmatpush1.bf16.msra.mxu0 %v966
  %1795 = vmatprep.subr.bf16.mxu0 %v971
  %1796 = vmatpush1.bf16.msra.mxu0 %v970
  %1797 = vmatprep.subr.bf16.mxu0 %v975
  %1798 = vmatpush1.bf16.msra.mxu0 %v974
  %1799 = vmatprep.subr.bf16.mxu0 %v979
  %1800 = vmatpush1.bf16.msra.mxu0 %v978
  %1801 = vmatprep.subr.bf16.mxu0 0
  %1802 = vmatpush1.bf16.msra.mxu0 0
  %1803 = vmatprep.subr.bf16.mxu0 0
  %1804 = vmatpush1.bf16.msra.mxu0 0
  %1805 = vmatprep.subr.bf16.mxu0 0
  %1806 = vmatpush1.bf16.msra.mxu0 0
  %1807 = vmatprep.subr.bf16.mxu0 0
  %1808 = vmatpush1.bf16.msra.mxu0 0
  %1809 = vmatprep.subr.bf16.mxu0 0
  %1810 = vmatpush1.bf16.msra.mxu0 0
  %1811 = vmatprep.subr.bf16.mxu0 0
  %1812 = vmatpush1.bf16.msra.mxu0 0
  %1813 = vmatprep.subr.bf16.mxu0 0
  %1814 = vmatpush1.bf16.msra.mxu0 0
  %1815 = vmatprep.subr.bf16.mxu0 0
  %1816 = vmatpush1.bf16.msra.mxu0 0
  %1817 = vmatprep.mubr.bf16.mxu0 0
  %1818 = vmatmul.mubr.bf16.gmra.mrb[0].mxu0 %v1743
  %v1819 = vpop.f32.mrb[0].mxu0
  %v1820 = vadd.f32 0.0, %v1819
  %v1821 = vpop.f32.mrb[0].mxu0
  %v1822 = vadd.f32 0.0, %v1821
  %v1823 = vpop.f32.mrb[0].mxu0
  %v1824 = vpop.f32.mrb[0].mxu0
  %1825 = vdwg.mxu0
  %v1826 = vadd.f32 %v1739, %v1779
  %v1827 = vadd.f32 %v1740, %v1781
  %v1828 = vadd.f32 %v1741, %v1820
  %v1829 = vadd.f32 %v1742, %v1822
  %v1830 = vxor.u32 %v1826, 2147483648
  %v1831 = vmul.f32 %v1830, 1.442695
  %v1832 = vpow.pop %v1831
  %v1833 = vadd.f32 %v1832, 1.0
  %v1834 = vrcp.pop %v1833
  %v1835 = vmul.f32 1.0, %v1834
  %v1836 = vxor.u32 %v1827, 2147483648
  %v1837 = vmul.f32 %v1836, 1.442695
  %v1838 = vpow.pop %v1837
  %v1839 = vadd.f32 %v1838, 1.0
  %v1840 = vrcp.pop %v1839
  %v1841 = vmul.f32 1.0, %v1840
  %v1842 = vtanh.pop %v1828
  %v1843 = vxor.u32 %v1829, 2147483648
  %v1844 = vmul.f32 %v1843, 1.442695
  %v1845 = vpow.pop %v1844
  %v1846 = vadd.f32 %v1845, 1.0
  %v1847 = vrcp.pop %v1846
  %v1848 = vmul.f32 1.0, %v1847
  %v1849 = vmul.f32 %v1841, %v1729
  %v1850 = vmul.f32 %v1835, %v1842
  %v1851 = vadd.f32 %v1849, %v1850
  %v1852 = vtanh.pop %v1851
  %v1853 = vmul.f32 %v1848, %v1852
  %s1854 = smul.u32 6, 2
  %s1855 = smul.addr %s1854, 8
  %s1856 = scalar_lea.vmem [#allocation6], %s1855
  %1857 = vst [vmem:[%s1856] sm:$0xff] %v1853
  %s1858 = smul.u32 7, 4
  %s1859 = smul.addr %s1858, 8
  %s1860 = scalar_lea.vmem [#allocation2], %s1859
  %v1861 = vld [vmem:[%s1860] sm:$0xff]
  %v1862 = vld [vmem:[%s1860 + $0x8] sm:$0xff]
  %v1863 = vld [vmem:[%s1860 + $0x10] sm:$0xff]
  %v1864 = vld [vmem:[%s1860 + $0x18] sm:$0xff]
  %v1865 = vpack.c.bf16 %v1853, %v1853
  %1866 = vmatprep.subr.bf16.mxu0 %v949
  %1867 = vmatpush1.bf16.msra.mxu0 %v948
  %1868 = vmatprep.subr.bf16.mxu0 %v953
  %1869 = vmatpush1.bf16.msra.mxu0 %v952
  %1870 = vmatprep.subr.bf16.mxu0 %v957
  %1871 = vmatpush1.bf16.msra.mxu0 %v956
  %1872 = vmatprep.subr.bf16.mxu0 %v961
  %1873 = vmatpush1.bf16.msra.mxu0 %v960
  %1874 = vmatprep.subr.bf16.mxu0 %v965
  %1875 = vmatpush1.bf16.msra.mxu0 %v964
  %1876 = vmatprep.subr.bf16.mxu0 %v969
  %1877 = vmatpush1.bf16.msra.mxu0 %v968
  %1878 = vmatprep.subr.bf16.mxu0 %v973
  %1879 = vmatpush1.bf16.msra.mxu0 %v972
  %1880 = vmatprep.subr.bf16.mxu0 %v977
  %1881 = vmatpush1.bf16.msra.mxu0 %v976
  %1882 = vmatprep.subr.bf16.mxu0 0
  %1883 = vmatpush1.bf16.msra.mxu0 0
  %1884 = vmatprep.subr.bf16.mxu0 0
  %1885 = vmatpush1.bf16.msra.mxu0 0
  %1886 = vmatprep.subr.bf16.mxu0 0
  %1887 = vmatpush1.bf16.msra.mxu0 0
  %1888 = vmatprep.subr.bf16.mxu0 0
  %1889 = vmatpush1.bf16.msra.mxu0 0
  %1890 = vmatprep.subr.bf16.mxu0 0
  %1891 = vmatpush1.bf16.msra.mxu0 0
  %1892 = vmatprep.subr.bf16.mxu0 0
  %1893 = vmatpush1.bf16.msra.mxu0 0
  %1894 = vmatprep.subr.bf16.mxu0 0
  %1895 = vmatpush1.bf16.msra.mxu0 0
  %1896 = vmatprep.subr.bf16.mxu0 0
  %1897 = vmatpush1.bf16.msra.mxu0 0
  %1898 = vmatprep.mubr.bf16.mxu0 0
  %1899 = vmatmul.mubr.bf16.gmra.mrb[0].mxu0 %v1865
  %v1900 = vpop.f32.mrb[0].mxu0
  %v1901 = vadd.f32 0.0, %v1900
  %v1902 = vpop.f32.mrb[0].mxu0
  %v1903 = vadd.f32 0.0, %v1902
  %v1904 = vpop.f32.mrb[0].mxu0
  %v1905 = vpop.f32.mrb[0].mxu0
  %1906 = vdwg.mxu0
  %1907 = vmatprep.subr.bf16.mxu0 %v951
  %1908 = vmatpush1.bf16.msra.mxu0 %v950
  %1909 = vmatprep.subr.bf16.mxu0 %v955
  %1910 = vmatpush1.bf16.msra.mxu0 %v954
  %1911 = vmatprep.subr.bf16.mxu0 %v959
  %1912 = vmatpush1.bf16.msra.mxu0 %v958
  %1913 = vmatprep.subr.bf16.mxu0 %v963
  %1914 = vmatpush1.bf16.msra.mxu0 %v962
  %1915 = vmatprep.subr.bf16.mxu0 %v967
  %1916 = vmatpush1.bf16.msra.mxu0 %v966
  %1917 = vmatprep.subr.bf16.mxu0 %v971
  %1918 = vmatpush1.bf16.msra.mxu0 %v970
  %1919 = vmatprep.subr.bf16.mxu0 %v975
  %1920 = vmatpush1.bf16.msra.mxu0 %v974
  %1921 = vmatprep.subr.bf16.mxu0 %v979
  %1922 = vmatpush1.bf16.msra.mxu0 %v978
  %1923 = vmatprep.subr.bf16.mxu0 0
  %1924 = vmatpush1.bf16.msra.mxu0 0
  %1925 = vmatprep.subr.bf16.mxu0 0
  %1926 = vmatpush1.bf16.msra.mxu0 0
  %1927 = vmatprep.subr.bf16.mxu0 0
  %1928 = vmatpush1.bf16.msra.mxu0 0
  %1929 = vmatprep.subr.bf16.mxu0 0
  %1930 = vmatpush1.bf16.msra.mxu0 0
  %1931 = vmatprep.subr.bf16.mxu0 0
  %1932 = vmatpush1.bf16.msra.mxu0 0
  %1933 = vmatprep.subr.bf16.mxu0 0
  %1934 = vmatpush1.bf16.msra.mxu0 0
  %1935 = vmatprep.subr.bf16.mxu0 0
  %1936 = vmatpush1.bf16.msra.mxu0 0
  %1937 = vmatprep.subr.bf16.mxu0 0
  %1938 = vmatpush1.bf16.msra.mxu0 0
  %1939 = vmatprep.mubr.bf16.mxu0 0
  %1940 = vmatmul.mubr.bf16.gmra.mrb[0].mxu0 %v1865
  %v1941 = vpop.f32.mrb[0].mxu0
  %v1942 = vadd.f32 0.0, %v1941
  %v1943 = vpop.f32.mrb[0].mxu0
  %v1944 = vadd.f32 0.0, %v1943
  %v1945 = vpop.f32.mrb[0].mxu0
  %v1946 = vpop.f32.mrb[0].mxu0
  %1947 = vdwg.mxu0
  %v1948 = vadd.f32 %v1861, %v1901
  %v1949 = vadd.f32 %v1862, %v1903
  %v1950 = vadd.f32 %v1863, %v1942
  %v1951 = vadd.f32 %v1864, %v1944
  %v1952 = vxor.u32 %v1948, 2147483648
  %v1953 = vmul.f32 %v1952, 1.442695
  %v1954 = vpow.pop %v1953
  %v1955 = vadd.f32 %v1954, 1.0
  %v1956 = vrcp.pop %v1955
  %v1957 = vmul.f32 1.0, %v1956
  %v1958 = vxor.u32 %v1949, 2147483648
  %v1959 = vmul.f32 %v1958, 1.442695
  %v1960 = vpow.pop %v1959
  %v1961 = vadd.f32 %v1960, 1.0
  %v1962 = vrcp.pop %v1961
  %v1963 = vmul.f32 1.0, %v1962
  %v1964 = vtanh.pop %v1950
  %v1965 = vxor.u32 %v1951, 2147483648
  %v1966 = vmul.f32 %v1965, 1.442695
  %v1967 = vpow.pop %v1966
  %v1968 = vadd.f32 %v1967, 1.0
  %v1969 = vrcp.pop %v1968
  %v1970 = vmul.f32 1.0, %v1969
  %v1971 = vmul.f32 %v1963, %v1851
  %v1972 = vmul.f32 %v1957, %v1964
  %v1973 = vadd.f32 %v1971, %v1972
  %v1974 = vtanh.pop %v1973
  %v1975 = vmul.f32 %v1970, %v1974
  %s1976 = smul.u32 7, 2
  %s1977 = smul.addr %s1976, 8
  %s1978 = scalar_lea.vmem [#allocation6], %s1977
  %1979 = vst [vmem:[%s1978] sm:$0xff] %v1975
  %s1980 = smul.u32 8, 4
  %s1981 = smul.addr %s1980, 8
  %s1982 = scalar_lea.vmem [#allocation2], %s1981
  %v1983 = vld [vmem:[%s1982] sm:$0xff]
  %v1984 = vld [vmem:[%s1982 + $0x8] sm:$0xff]
  %v1985 = vld [vmem:[%s1982 + $0x10] sm:$0xff]
  %v1986 = vld [vmem:[%s1982 + $0x18] sm:$0xff]
  %v1987 = vpack.c.bf16 %v1975, %v1975
  %1988 = vmatprep.subr.bf16.mxu0 %v949
  %1989 = vmatpush1.bf16.msra.mxu0 %v948
  %1990 = vmatprep.subr.bf16.mxu0 %v953
  %1991 = vmatpush1.bf16.msra.mxu0 %v952
  %1992 = vmatprep.subr.bf16.mxu0 %v957
  %1993 = vmatpush1.bf16.msra.mxu0 %v956
  %1994 = vmatprep.subr.bf16.mxu0 %v961
  %1995 = vmatpush1.bf16.msra.mxu0 %v960
  %1996 = vmatprep.subr.bf16.mxu0 %v965
  %1997 = vmatpush1.bf16.msra.mxu0 %v964
  %1998 = vmatprep.subr.bf16.mxu0 %v969
  %1999 = vmatpush1.bf16.msra.mxu0 %v968
  %2000 = vmatprep.subr.bf16.mxu0 %v973
  %2001 = vmatpush1.bf16.msra.mxu0 %v972
  %2002 = vmatprep.subr.bf16.mxu0 %v977
  %2003 = vmatpush1.bf16.msra.mxu0 %v976
  %2004 = vmatprep.subr.bf16.mxu0 0
  %2005 = vmatpush1.bf16.msra.mxu0 0
  %2006 = vmatprep.subr.bf16.mxu0 0
  %2007 = vmatpush1.bf16.msra.mxu0 0
  %2008 = vmatprep.subr.bf16.mxu0 0
  %2009 = vmatpush1.bf16.msra.mxu0 0
  %2010 = vmatprep.subr.bf16.mxu0 0
  %2011 = vmatpush1.bf16.msra.mxu0 0
  %2012 = vmatprep.subr.bf16.mxu0 0
  %2013 = vmatpush1.bf16.msra.mxu0 0
  %2014 = vmatprep.subr.bf16.mxu0 0
  %2015 = vmatpush1.bf16.msra.mxu0 0
  %2016 = vmatprep.subr.bf16.mxu0 0
  %2017 = vmatpush1.bf16.msra.mxu0 0
  %2018 = vmatprep.subr.bf16.mxu0 0
  %2019 = vmatpush1.bf16.msra.mxu0 0
  %2020 = vmatprep.mubr.bf16.mxu0 0
  %2021 = vmatmul.mubr.bf16.gmra.mrb[0].mxu0 %v1987
  %v2022 = vpop.f32.mrb[0].mxu0
  %v2023 = vadd.f32 0.0, %v2022
  %v2024 = vpop.f32.mrb[0].mxu0
  %v2025 = vadd.f32 0.0, %v2024
  %v2026 = vpop.f32.mrb[0].mxu0
  %v2027 = vpop.f32.mrb[0].mxu0
  %2028 = vdwg.mxu0
  %2029 = vmatprep.subr.bf16.mxu0 %v951
  %2030 = vmatpush1.bf16.msra.mxu0 %v950
  %2031 = vmatprep.subr.bf16.mxu0 %v955
  %2032 = vmatpush1.bf16.msra.mxu0 %v954
  %2033 = vmatprep.subr.bf16.mxu0 %v959
  %2034 = vmatpush1.bf16.msra.mxu0 %v958
  %2035 = vmatprep.subr.bf16.mxu0 %v963
  %2036 = vmatpush1.bf16.msra.mxu0 %v962
  %2037 = vmatprep.subr.bf16.mxu0 %v967
  %2038 = vmatpush1.bf16.msra.mxu0 %v966
  %2039 = vmatprep.subr.bf16.mxu0 %v971
  %2040 = vmatpush1.bf16.msra.mxu0 %v970
  %2041 = vmatprep.subr.bf16.mxu0 %v975
  %2042 = vmatpush1.bf16.msra.mxu0 %v974
  %2043 = vmatprep.subr.bf16.mxu0 %v979
  %2044 = vmatpush1.bf16.msra.mxu0 %v978
  %2045 = vmatprep.subr.bf16.mxu0 0
  %2046 = vmatpush1.bf16.msra.mxu0 0
  %2047 = vmatprep.subr.bf16.mxu0 0
  %2048 = vmatpush1.bf16.msra.mxu0 0
  %2049 = vmatprep.subr.bf16.mxu0 0
  %2050 = vmatpush1.bf16.msra.mxu0 0
  %2051 = vmatprep.subr.bf16.mxu0 0
  %2052 = vmatpush1.bf16.msra.mxu0 0
  %2053 = vmatprep.subr.bf16.mxu0 0
  %2054 = vmatpush1.bf16.msra.mxu0 0
  %2055 = vmatprep.subr.bf16.mxu0 0
  %2056 = vmatpush1.bf16.msra.mxu0 0
  %2057 = vmatprep.subr.bf16.mxu0 0
  %2058 = vmatpush1.bf16.msra.mxu0 0
  %2059 = vmatprep.subr.bf16.mxu0 0
  %2060 = vmatpush1.bf16.msra.mxu0 0
  %2061 = vmatprep.mubr.bf16.mxu0 0
  %2062 = vmatmul.mubr.bf16.gmra.mrb[0].mxu0 %v1987
  %v2063 = vpop.f32.mrb[0].mxu0
  %v2064 = vadd.f32 0.0, %v2063
  %v2065 = vpop.f32.mrb[0].mxu0
  %v2066 = vadd.f32 0.0, %v2065
  %v2067 = vpop.f32.mrb[0].mxu0
  %v2068 = vpop.f32.mrb[0].mxu0
  %2069 = vdwg.mxu0
  %v2070 = vadd.f32 %v1983, %v2023
  %v2071 = vadd.f32 %v1984, %v2025
  %v2072 = vadd.f32 %v1985, %v2064
  %v2073 = vadd.f32 %v1986, %v2066
  %v2074 = vxor.u32 %v2070, 2147483648
  %v2075 = vmul.f32 %v2074, 1.442695
  %v2076 = vpow.pop %v2075
  %v2077 = vadd.f32 %v2076, 1.0
  %v2078 = vrcp.pop %v2077
  %v2079 = vmul.f32 1.0, %v2078
  %v2080 = vxor.u32 %v2071, 2147483648
  %v2081 = vmul.f32 %v2080, 1.442695
  %v2082 = vpow.pop %v2081
  %v2083 = vadd.f32 %v2082, 1.0
  %v2084 = vrcp.pop %v2083
  %v2085 = vmul.f32 1.0, %v2084
  %v2086 = vtanh.pop %v2072
  %v2087 = vxor.u32 %v2073, 2147483648
  %v2088 = vmul.f32 %v2087, 1.442695
  %v2089 = vpow.pop %v2088
  %v2090 = vadd.f32 %v2089, 1.0
  %v2091 = vrcp.pop %v2090
  %v2092 = vmul.f32 1.0, %v2091
  %v2093 = vmul.f32 %v2085, %v1973
  %v2094 = vmul.f32 %v2079, %v2086
  %v2095 = vadd.f32 %v2093, %v2094
  %v2096 = vtanh.pop %v2095
  %v2097 = vmul.f32 %v2092, %v2096
  %s2098 = smul.u32 8, 2
  %s2099 = smul.addr %s2098, 8
  %s2100 = scalar_lea.vmem [#allocation6], %s2099
  %2101 = vst [vmem:[%s2100] sm:$0xff] %v2097
  %s2102 = smul.u32 9, 4
  %s2103 = smul.addr %s2102, 8
  %s2104 = scalar_lea.vmem [#allocation2], %s2103
  %v2105 = vld [vmem:[%s2104] sm:$0xff]
  %v2106 = vld [vmem:[%s2104 + $0x8] sm:$0xff]
  %v2107 = vld [vmem:[%s2104 + $0x10] sm:$0xff]
  %v2108 = vld [vmem:[%s2104 + $0x18] sm:$0xff]
  %v2109 = vpack.c.bf16 %v2097, %v2097
  %2110 = vmatprep.subr.bf16.mxu0 %v949
  %2111 = vmatpush1.bf16.msra.mxu0 %v948
  %2112 = vmatprep.subr.bf16.mxu0 %v953
  %2113 = vmatpush1.bf16.msra.mxu0 %v952
  %2114 = vmatprep.subr.bf16.mxu0 %v957
  %2115 = vmatpush1.bf16.msra.mxu0 %v956
  %2116 = vmatprep.subr.bf16.mxu0 %v961
  %2117 = vmatpush1.bf16.msra.mxu0 %v960
  %2118 = vmatprep.subr.bf16.mxu0 %v965
  %2119 = vmatpush1.bf16.msra.mxu0 %v964
  %2120 = vmatprep.subr.bf16.mxu0 %v969
  %2121 = vmatpush1.bf16.msra.mxu0 %v968
  %2122 = vmatprep.subr.bf16.mxu0 %v973
  %2123 = vmatpush1.bf16.msra.mxu0 %v972
  %2124 = vmatprep.subr.bf16.mxu0 %v977
  %2125 = vmatpush1.bf16.msra.mxu0 %v976
  %2126 = vmatprep.subr.bf16.mxu0 0
  %2127 = vmatpush1.bf16.msra.mxu0 0
  %2128 = vmatprep.subr.bf16.mxu0 0
  %2129 = vmatpush1.bf16.msra.mxu0 0
  %2130 = vmatprep.subr.bf16.mxu0 0
  %2131 = vmatpush1.bf16.msra.mxu0 0
  %2132 = vmatprep.subr.bf16.mxu0 0
  %2133 = vmatpush1.bf16.msra.mxu0 0
  %2134 = vmatprep.subr.bf16.mxu0 0
  %2135 = vmatpush1.bf16.msra.mxu0 0
  %2136 = vmatprep.subr.bf16.mxu0 0
  %2137 = vmatpush1.bf16.msra.mxu0 0
  %2138 = vmatprep.subr.bf16.mxu0 0
  %2139 = vmatpush1.bf16.msra.mxu0 0
  %2140 = vmatprep.subr.bf16.mxu0 0
  %2141 = vmatpush1.bf16.msra.mxu0 0
  %2142 = vmatprep.mubr.bf16.mxu0 0
  %2143 = vmatmul.mubr.bf16.gmra.mrb[0].mxu0 %v2109
  %v2144 = vpop.f32.mrb[0].mxu0
  %v2145 = vadd.f32 0.0, %v2144
  %v2146 = vpop.f32.mrb[0].mxu0
  %v2147 = vadd.f32 0.0, %v2146
  %v2148 = vpop.f32.mrb[0].mxu0
  %v2149 = vpop.f32.mrb[0].mxu0
  %2150 = vdwg.mxu0
  %2151 = vmatprep.subr.bf16.mxu0 %v951
  %2152 = vmatpush1.bf16.msra.mxu0 %v950
  %2153 = vmatprep.subr.bf16.mxu0 %v955
  %2154 = vmatpush1.bf16.msra.mxu0 %v954
  %2155 = vmatprep.subr.bf16.mxu0 %v959
  %2156 = vmatpush1.bf16.msra.mxu0 %v958
  %2157 = vmatprep.subr.bf16.mxu0 %v963
  %2158 = vmatpush1.bf16.msra.mxu0 %v962
  %2159 = vmatprep.subr.bf16.mxu0 %v967
  %2160 = vmatpush1.bf16.msra.mxu0 %v966
  %2161 = vmatprep.subr.bf16.mxu0 %v971
  %2162 = vmatpush1.bf16.msra.mxu0 %v970
  %2163 = vmatprep.subr.bf16.mxu0 %v975
  %2164 = vmatpush1.bf16.msra.mxu0 %v974
  %2165 = vmatprep.subr.bf16.mxu0 %v979
  %2166 = vmatpush1.bf16.msra.mxu0 %v978
  %2167 = vmatprep.subr.bf16.mxu0 0
  %2168 = vmatpush1.bf16.msra.mxu0 0
  %2169 = vmatprep.subr.bf16.mxu0 0
  %2170 = vmatpush1.bf16.msra.mxu0 0
  %2171 = vmatprep.subr.bf16.mxu0 0
  %2172 = vmatpush1.bf16.msra.mxu0 0
  %2173 = vmatprep.subr.bf16.mxu0 0
  %2174 = vmatpush1.bf16.msra.mxu0 0
  %2175 = vmatprep.subr.bf16.mxu0 0
  %2176 = vmatpush1.bf16.msra.mxu0 0
  %2177 = vmatprep.subr.bf16.mxu0 0
  %2178 = vmatpush1.bf16.msra.mxu0 0
  %2179 = vmatprep.subr.bf16.mxu0 0
  %2180 = vmatpush1.bf16.msra.mxu0 0
  %2181 = vmatprep.subr.bf16.mxu0 0
  %2182 = vmatpush1.bf16.msra.mxu0 0
  %2183 = vmatprep.mubr.bf16.mxu0 0
  %2184 = vmatmul.mubr.bf16.gmra.mrb[0].mxu0 %v2109
  %v2185 = vpop.f32.mrb[0].mxu0
  %v2186 = vadd.f32 0.0, %v2185
  %v2187 = vpop.f32.mrb[0].mxu0
  %v2188 = vadd.f32 0.0, %v2187
  %v2189 = vpop.f32.mrb[0].mxu0
  %v2190 = vpop.f32.mrb[0].mxu0
  %2191 = vdwg.mxu0
  %v2192 = vadd.f32 %v2105, %v2145
  %v2193 = vadd.f32 %v2106, %v2147
  %v2194 = vadd.f32 %v2107, %v2186
  %v2195 = vadd.f32 %v2108, %v2188
  %v2196 = vxor.u32 %v2192, 2147483648
  %v2197 = vmul.f32 %v2196, 1.442695
  %v2198 = vpow.pop %v2197
  %v2199 = vadd.f32 %v2198, 1.0
  %v2200 = vrcp.pop %v2199
  %v2201 = vmul.f32 1.0, %v2200
  %v2202 = vxor.u32 %v2193, 2147483648
  %v2203 = vmul.f32 %v2202, 1.442695
  %v2204 = vpow.pop %v2203
  %v2205 = vadd.f32 %v2204, 1.0
  %v2206 = vrcp.pop %v2205
  %v2207 = vmul.f32 1.0, %v2206
  %v2208 = vtanh.pop %v2194
  %v2209 = vxor.u32 %v2195, 2147483648
  %v2210 = vmul.f32 %v2209, 1.442695
  %v2211 = vpow.pop %v2210
  %v2212 = vadd.f32 %v2211, 1.0
  %v2213 = vrcp.pop %v2212
  %v2214 = vmul.f32 1.0, %v2213
  %v2215 = vmul.f32 %v2207, %v2095
  %v2216 = vmul.f32 %v2201, %v2208
  %v2217 = vadd.f32 %v2215, %v2216
  %v2218 = vtanh.pop %v2217
  %v2219 = vmul.f32 %v2214, %v2218
  %s2220 = smul.u32 9, 2
  %s2221 = smul.addr %s2220, 8
  %s2222 = scalar_lea.vmem [#allocation6], %s2221
  %2223 = vst [vmem:[%s2222] sm:$0xff] %v2219
  %s2224 = smul.u32 10, 4
  %s2225 = smul.addr %s2224, 8
  %s2226 = scalar_lea.vmem [#allocation2], %s2225
  %v2227 = vld [vmem:[%s2226] sm:$0xff]
  %v2228 = vld [vmem:[%s2226 + $0x8] sm:$0xff]
  %v2229 = vld [vmem:[%s2226 + $0x10] sm:$0xff]
  %v2230 = vld [vmem:[%s2226 + $0x18] sm:$0xff]
  %v2231 = vpack.c.bf16 %v2219, %v2219
  %2232 = vmatprep.subr.bf16.mxu0 %v949
  %2233 = vmatpush1.bf16.msra.mxu0 %v948
  %2234 = vmatprep.subr.bf16.mxu0 %v953
  %2235 = vmatpush1.bf16.msra.mxu0 %v952
  %2236 = vmatprep.subr.bf16.mxu0 %v957
  %2237 = vmatpush1.bf16.msra.mxu0 %v956
  %2238 = vmatprep.subr.bf16.mxu0 %v961
  %2239 = vmatpush1.bf16.msra.mxu0 %v960
  %2240 = vmatprep.subr.bf16.mxu0 %v965
  %2241 = vmatpush1.bf16.msra.mxu0 %v964
  %2242 = vmatprep.subr.bf16.mxu0 %v969
  %2243 = vmatpush1.bf16.msra.mxu0 %v968
  %2244 = vmatprep.subr.bf16.mxu0 %v973
  %2245 = vmatpush1.bf16.msra.mxu0 %v972
  %2246 = vmatprep.subr.bf16.mxu0 %v977
  %2247 = vmatpush1.bf16.msra.mxu0 %v976
  %2248 = vmatprep.subr.bf16.mxu0 0
  %2249 = vmatpush1.bf16.msra.mxu0 0
  %2250 = vmatprep.subr.bf16.mxu0 0
  %2251 = vmatpush1.bf16.msra.mxu0 0
  %2252 = vmatprep.subr.bf16.mxu0 0
  %2253 = vmatpush1.bf16.msra.mxu0 0
  %2254 = vmatprep.subr.bf16.mxu0 0
  %2255 = vmatpush1.bf16.msra.mxu0 0
  %2256 = vmatprep.subr.bf16.mxu0 0
  %2257 = vmatpush1.bf16.msra.mxu0 0
  %2258 = vmatprep.subr.bf16.mxu0 0
  %2259 = vmatpush1.bf16.msra.mxu0 0
  %2260 = vmatprep.subr.bf16.mxu0 0
  %2261 = vmatpush1.bf16.msra.mxu0 0
  %2262 = vmatprep.subr.bf16.mxu0 0
  %2263 = vmatpush1.bf16.msra.mxu0 0
  %2264 = vmatprep.mubr.bf16.mxu0 0
  %2265 = vmatmul.mubr.bf16.gmra.mrb[0].mxu0 %v2231
  %v2266 = vpop.f32.mrb[0].mxu0
  %v2267 = vadd.f32 0.0, %v2266
  %v2268 = vpop.f32.mrb[0].mxu0
  %v2269 = vadd.f32 0.0, %v2268
  %v2270 = vpop.f32.mrb[0].mxu0
  %v2271 = vpop.f32.mrb[0].mxu0
  %2272 = vdwg.mxu0
  %2273 = vmatprep.subr.bf16.mxu0 %v951
  %2274 = vmatpush1.bf16.msra.mxu0 %v950
  %2275 = vmatprep.subr.bf16.mxu0 %v955
  %2276 = vmatpush1.bf16.msra.mxu0 %v954
  %2277 = vmatprep.subr.bf16.mxu0 %v959
  %2278 = vmatpush1.bf16.msra.mxu0 %v958
  %2279 = vmatprep.subr.bf16.mxu0 %v963
  %2280 = vmatpush1.bf16.msra.mxu0 %v962
  %2281 = vmatprep.subr.bf16.mxu0 %v967
  %2282 = vmatpush1.bf16.msra.mxu0 %v966
  %2283 = vmatprep.subr.bf16.mxu0 %v971
  %2284 = vmatpush1.bf16.msra.mxu0 %v970
  %2285 = vmatprep.subr.bf16.mxu0 %v975
  %2286 = vmatpush1.bf16.msra.mxu0 %v974
  %2287 = vmatprep.subr.bf16.mxu0 %v979
  %2288 = vmatpush1.bf16.msra.mxu0 %v978
  %2289 = vmatprep.subr.bf16.mxu0 0
  %2290 = vmatpush1.bf16.msra.mxu0 0
  %2291 = vmatprep.subr.bf16.mxu0 0
  %2292 = vmatpush1.bf16.msra.mxu0 0
  %2293 = vmatprep.subr.bf16.mxu0 0
  %2294 = vmatpush1.bf16.msra.mxu0 0
  %2295 = vmatprep.subr.bf16.mxu0 0
  %2296 = vmatpush1.bf16.msra.mxu0 0
  %2297 = vmatprep.subr.bf16.mxu0 0
  %2298 = vmatpush1.bf16.msra.mxu0 0
  %2299 = vmatprep.subr.bf16.mxu0 0
  %2300 = vmatpush1.bf16.msra.mxu0 0
  %2301 = vmatprep.subr.bf16.mxu0 0
  %2302 = vmatpush1.bf16.msra.mxu0 0
  %2303 = vmatprep.subr.bf16.mxu0 0
  %2304 = vmatpush1.bf16.msra.mxu0 0
  %2305 = vmatprep.mubr.bf16.mxu0 0
  %2306 = vmatmul.mubr.bf16.gmra.mrb[0].mxu0 %v2231
  %v2307 = vpop.f32.mrb[0].mxu0
  %v2308 = vadd.f32 0.0, %v2307
  %v2309 = vpop.f32.mrb[0].mxu0
  %v2310 = vadd.f32 0.0, %v2309
  %v2311 = vpop.f32.mrb[0].mxu0
  %v2312 = vpop.f32.mrb[0].mxu0
  %2313 = vdwg.mxu0
  %v2314 = vadd.f32 %v2227, %v2267
  %v2315 = vadd.f32 %v2228, %v2269
  %v2316 = vadd.f32 %v2229, %v2308
  %v2317 = vadd.f32 %v2230, %v2310
  %v2318 = vxor.u32 %v2314, 2147483648
  %v2319 = vmul.f32 %v2318, 1.442695
  %v2320 = vpow.pop %v2319
  %v2321 = vadd.f32 %v2320, 1.0
  %v2322 = vrcp.pop %v2321
  %v2323 = vmul.f32 1.0, %v2322
  %v2324 = vxor.u32 %v2315, 2147483648
  %v2325 = vmul.f32 %v2324, 1.442695
  %v2326 = vpow.pop %v2325
  %v2327 = vadd.f32 %v2326, 1.0
  %v2328 = vrcp.pop %v2327
  %v2329 = vmul.f32 1.0, %v2328
  %v2330 = vtanh.pop %v2316
  %v2331 = vxor.u32 %v2317, 2147483648
  %v2332 = vmul.f32 %v2331, 1.442695
  %v2333 = vpow.pop %v2332
  %v2334 = vadd.f32 %v2333, 1.0
  %v2335 = vrcp.pop %v2334
  %v2336 = vmul.f32 1.0, %v2335
  %v2337 = vmul.f32 %v2329, %v2217
  %v2338 = vmul.f32 %v2323, %v2330
  %v2339 = vadd.f32 %v2337, %v2338
  %v2340 = vtanh.pop %v2339
  %v2341 = vmul.f32 %v2336, %v2340
  %s2342 = smul.u32 10, 2
  %s2343 = smul.addr %s2342, 8
  %s2344 = scalar_lea.vmem [#allocation6], %s2343
  %2345 = vst [vmem:[%s2344] sm:$0xff] %v2341
  %s2346 = smul.u32 11, 4
  %s2347 = smul.addr %s2346, 8
  %s2348 = scalar_lea.vmem [#allocation2], %s2347
  %v2349 = vld [vmem:[%s2348] sm:$0xff]
  %v2350 = vld [vmem:[%s2348 + $0x8] sm:$0xff]
  %v2351 = vld [vmem:[%s2348 + $0x10] sm:$0xff]
  %v2352 = vld [vmem:[%s2348 + $0x18] sm:$0xff]
  %v2353 = vpack.c.bf16 %v2341, %v2341
  %2354 = vmatprep.subr.bf16.mxu0 %v949
  %2355 = vmatpush1.bf16.msra.mxu0 %v948
  %2356 = vmatprep.subr.bf16.mxu0 %v953
  %2357 = vmatpush1.bf16.msra.mxu0 %v952
  %2358 = vmatprep.subr.bf16.mxu0 %v957
  %2359 = vmatpush1.bf16.msra.mxu0 %v956
  %2360 = vmatprep.subr.bf16.mxu0 %v961
  %2361 = vmatpush1.bf16.msra.mxu0 %v960
  %2362 = vmatprep.subr.bf16.mxu0 %v965
  %2363 = vmatpush1.bf16.msra.mxu0 %v964
  %2364 = vmatprep.subr.bf16.mxu0 %v969
  %2365 = vmatpush1.bf16.msra.mxu0 %v968
  %2366 = vmatprep.subr.bf16.mxu0 %v973
  %2367 = vmatpush1.bf16.msra.mxu0 %v972
  %2368 = vmatprep.subr.bf16.mxu0 %v977
  %2369 = vmatpush1.bf16.msra.mxu0 %v976
  %2370 = vmatprep.subr.bf16.mxu0 0
  %2371 = vmatpush1.bf16.msra.mxu0 0
  %2372 = vmatprep.subr.bf16.mxu0 0
  %2373 = vmatpush1.bf16.msra.mxu0 0
  %2374 = vmatprep.subr.bf16.mxu0 0
  %2375 = vmatpush1.bf16.msra.mxu0 0
  %2376 = vmatprep.subr.bf16.mxu0 0
  %2377 = vmatpush1.bf16.msra.mxu0 0
  %2378 = vmatprep.subr.bf16.mxu0 0
  %2379 = vmatpush1.bf16.msra.mxu0 0
  %2380 = vmatprep.subr.bf16.mxu0 0
  %2381 = vmatpush1.bf16.msra.mxu0 0
  %2382 = vmatprep.subr.bf16.mxu0 0
  %2383 = vmatpush1.bf16.msra.mxu0 0
  %2384 = vmatprep.subr.bf16.mxu0 0
  %2385 = vmatpush1.bf16.msra.mxu0 0
  %2386 = vmatprep.mubr.bf16.mxu0 0
  %2387 = vmatmul.mubr.bf16.gmra.mrb[0].mxu0 %v2353
  %v2388 = vpop.f32.mrb[0].mxu0
  %v2389 = vadd.f32 0.0, %v2388
  %v2390 = vpop.f32.mrb[0].mxu0
  %v2391 = vadd.f32 0.0, %v2390
  %v2392 = vpop.f32.mrb[0].mxu0
  %v2393 = vpop.f32.mrb[0].mxu0
  %2394 = vdwg.mxu0
  %2395 = vmatprep.subr.bf16.mxu0 %v951
  %2396 = vmatpush1.bf16.msra.mxu0 %v950
  %2397 = vmatprep.subr.bf16.mxu0 %v955
  %2398 = vmatpush1.bf16.msra.mxu0 %v954
  %2399 = vmatprep.subr.bf16.mxu0 %v959
  %2400 = vmatpush1.bf16.msra.mxu0 %v958
  %2401 = vmatprep.subr.bf16.mxu0 %v963
  %2402 = vmatpush1.bf16.msra.mxu0 %v962
  %2403 = vmatprep.subr.bf16.mxu0 %v967
  %2404 = vmatpush1.bf16.msra.mxu0 %v966
  %2405 = vmatprep.subr.bf16.mxu0 %v971
  %2406 = vmatpush1.bf16.msra.mxu0 %v970
  %2407 = vmatprep.subr.bf16.mxu0 %v975
  %2408 = vmatpush1.bf16.msra.mxu0 %v974
  %2409 = vmatprep.subr.bf16.mxu0 %v979
  %2410 = vmatpush1.bf16.msra.mxu0 %v978
  %2411 = vmatprep.subr.bf16.mxu0 0
  %2412 = vmatpush1.bf16.msra.mxu0 0
  %2413 = vmatprep.subr.bf16.mxu0 0
  %2414 = vmatpush1.bf16.msra.mxu0 0
  %2415 = vmatprep.subr.bf16.mxu0 0
  %2416 = vmatpush1.bf16.msra.mxu0 0
  %2417 = vmatprep.subr.bf16.mxu0 0
  %2418 = vmatpush1.bf16.msra.mxu0 0
  %2419 = vmatprep.subr.bf16.mxu0 0
  %2420 = vmatpush1.bf16.msra.mxu0 0
  %2421 = vmatprep.subr.bf16.mxu0 0
  %2422 = vmatpush1.bf16.msra.mxu0 0
  %2423 = vmatprep.subr.bf16.mxu0 0
  %2424 = vmatpush1.bf16.msra.mxu0 0
  %2425 = vmatprep.subr.bf16.mxu0 0
  %2426 = vmatpush1.bf16.msra.mxu0 0
  %2427 = vmatprep.mubr.bf16.mxu0 0
  %2428 = vmatmul.mubr.bf16.gmra.mrb[0].mxu0 %v2353
  %v2429 = vpop.f32.mrb[0].mxu0
  %v2430 = vadd.f32 0.0, %v2429
  %v2431 = vpop.f32.mrb[0].mxu0
  %v2432 = vadd.f32 0.0, %v2431
  %v2433 = vpop.f32.mrb[0].mxu0
  %v2434 = vpop.f32.mrb[0].mxu0
  %2435 = vdwg.mxu0
  %v2436 = vadd.f32 %v2349, %v2389
  %v2437 = vadd.f32 %v2350, %v2391
  %v2438 = vadd.f32 %v2351, %v2430
  %v2439 = vadd.f32 %v2352, %v2432
  %v2440 = vxor.u32 %v2436, 2147483648
  %v2441 = vmul.f32 %v2440, 1.442695
  %v2442 = vpow.pop %v2441
  %v2443 = vadd.f32 %v2442, 1.0
  %v2444 = vrcp.pop %v2443
  %v2445 = vmul.f32 1.0, %v2444
  %v2446 = vxor.u32 %v2437, 2147483648
  %v2447 = vmul.f32 %v2446, 1.442695
  %v2448 = vpow.pop %v2447
  %v2449 = vadd.f32 %v2448, 1.0
  %v2450 = vrcp.pop %v2449
  %v2451 = vmul.f32 1.0, %v2450
  %v2452 = vtanh.pop %v2438
  %v2453 = vxor.u32 %v2439, 2147483648
  %v2454 = vmul.f32 %v2453, 1.442695
  %v2455 = vpow.pop %v2454
  %v2456 = vadd.f32 %v2455, 1.0
  %v2457 = vrcp.pop %v2456
  %v2458 = vmul.f32 1.0, %v2457
  %v2459 = vmul.f32 %v2451, %v2339
  %v2460 = vmul.f32 %v2445, %v2452
  %v2461 = vadd.f32 %v2459, %v2460
  %v2462 = vtanh.pop %v2461
  %v2463 = vmul.f32 %v2458, %v2462
  %s2464 = smul.u32 11, 2
  %s2465 = smul.addr %s2464, 8
  %s2466 = scalar_lea.vmem [#allocation6], %s2465
  %2467 = vst [vmem:[%s2466] sm:$0xff] %v2463
  %2468 = vst [vmem:[%s14] sm:$0xff] %v2463
  %2469 = vst [vmem:[%s15] sm:$0xff] %v2461
  %v2470 = vld [vmem:[%s5] sm:$0xff]
  %v2471 = vld [vmem:[%s5 + $0x8] sm:$0xff]
  %v2472 = vld [vmem:[%s5 + $0x10] sm:$0xff]
  %v2473 = vld [vmem:[%s5 + $0x18] sm:$0xff]
  %v2474 = vld [vmem:[%s5 + $0x20] sm:$0xff]
  %v2475 = vld [vmem:[%s5 + $0x28] sm:$0xff]
  %v2476 = vld [vmem:[%s5 + $0x30] sm:$0xff]
  %v2477 = vld [vmem:[%s5 + $0x38] sm:$0xff]
  %v2478 = vld [vmem:[%s5 + $0x40] sm:$0xff]
  %v2479 = vld [vmem:[%s5 + $0x48] sm:$0xff]
  %v2480 = vld [vmem:[%s5 + $0x50] sm:$0xff]
  %v2481 = vld [vmem:[%s5 + $0x58] sm:$0xff]
  %v2482 = vld [vmem:[%s5 + $0x60] sm:$0xff]
  %v2483 = vld [vmem:[%s5 + $0x68] sm:$0xff]
  %v2484 = vld [vmem:[%s5 + $0x70] sm:$0xff]
  %v2485 = vld [vmem:[%s5 + $0x78] sm:$0xff]
  %v2486 = vld [vmem:[%s5 + $0x80] sm:$0xff]
  %v2487 = vld [vmem:[%s5 + $0x88] sm:$0xff]
  %v2488 = vld [vmem:[%s5 + $0x90] sm:$0xff]
  %v2489 = vld [vmem:[%s5 + $0x98] sm:$0xff]
  %v2490 = vld [vmem:[%s5 + $0xa0] sm:$0xff]
  %v2491 = vld [vmem:[%s5 + $0xa8] sm:$0xff]
  %v2492 = vld [vmem:[%s5 + $0xb0] sm:$0xff]
  %v2493 = vld [vmem:[%s5 + $0xb8] sm:$0xff]
  %v2494 = vld [vmem:[%s5 + $0xc0] sm:$0xff]
  %v2495 = vld [vmem:[%s5 + $0xc8] sm:$0xff]
  %v2496 = vld [vmem:[%s5 + $0xd0] sm:$0xff]
  %v2497 = vld [vmem:[%s5 + $0xd8] sm:$0xff]
  %v2498 = vld [vmem:[%s5 + $0xe0] sm:$0xff]
  %v2499 = vld [vmem:[%s5 + $0xe8] sm:$0xff]
  %v2500 = vld [vmem:[%s5 + $0xf0] sm:$0xff]
  %v2501 = vld [vmem:[%s5 + $0xf8] sm:$0xff]
  %s2502 = smul.addr %s2346, 8
  %s2503 = scalar_lea.vmem [#allocation3], %s2502
  %v2504 = vld [vmem:[%s2503] sm:$0xff]
  %v2505 = vld [vmem:[%s2503 + $0x8] sm:$0xff]
  %v2506 = vld [vmem:[%s2503 + $0x10] sm:$0xff]
  %v2507 = vld [vmem:[%s2503 + $0x18] sm:$0xff]
  %v2540 = vunpack.c.l.b16 %v2470
  %v2541 = vunpack.c.h.b16 %v2470
  %v2542 = vunpack.c.l.b16 %v2471
  %v2543 = vunpack.c.h.b16 %v2471
  %v2544 = vunpack.c.l.b16 %v2472
  %v2545 = vunpack.c.h.b16 %v2472
  %v2546 = vunpack.c.l.b16 %v2473
  %v2547 = vunpack.c.h.b16 %v2473
  %v2548 = vunpack.c.l.b16 %v2474
  %v2549 = vunpack.c.h.b16 %v2474
  %v2550 = vunpack.c.l.b16 %v2475
  %v2551 = vunpack.c.h.b16 %v2475
  %v2552 = vunpack.c.l.b16 %v2476
  %v2553 = vunpack.c.h.b16 %v2476
  %v2554 = vunpack.c.l.b16 %v2477
  %v2555 = vunpack.c.h.b16 %v2477
  %v2556 = vunpack.c.l.b16 %v2478
  %v2557 = vunpack.c.h.b16 %v2478
  %v2558 = vunpack.c.l.b16 %v2479
  %v2559 = vunpack.c.h.b16 %v2479
  %v2560 = vunpack.c.l.b16 %v2480
  %v2561 = vunpack.c.h.b16 %v2480
  %v2562 = vunpack.c.l.b16 %v2481
  %v2563 = vunpack.c.h.b16 %v2481
  %v2564 = vunpack.c.l.b16 %v2482
  %v2565 = vunpack.c.h.b16 %v2482
  %v2566 = vunpack.c.l.b16 %v2483
  %v2567 = vunpack.c.h.b16 %v2483
  %v2568 = vunpack.c.l.b16 %v2484
  %v2569 = vunpack.c.h.b16 %v2484
  %v2570 = vunpack.c.l.b16 %v2485
  %v2571 = vunpack.c.h.b16 %v2485
  %v2572 = vunpack.c.l.b16 %v2486
  %v2573 = vunpack.c.h.b16 %v2486
  %v2574 = vunpack.c.l.b16 %v2487
  %v2575 = vunpack.c.h.b16 %v2487
  %v2576 = vunpack.c.l.b16 %v2488
  %v2577 = vunpack.c.h.b16 %v2488
  %v2578 = vunpack.c.l.b16 %v2489
  %v2579 = vunpack.c.h.b16 %v2489
  %v2580 = vunpack.c.l.b16 %v2490
  %v2581 = vunpack.c.h.b16 %v2490
  %v2582 = vunpack.c.l.b16 %v2491
  %v2583 = vunpack.c.h.b16 %v2491
  %v2584 = vunpack.c.l.b16 %v2492
  %v2585 = vunpack.c.h.b16 %v2492
  %v2586 = vunpack.c.l.b16 %v2493
  %v2587 = vunpack.c.h.b16 %v2493
  %v2588 = vunpack.c.l.b16 %v2494
  %v2589 = vunpack.c.h.b16 %v2494
  %v2590 = vunpack.c.l.b16 %v2495
  %v2591 = vunpack.c.h.b16 %v2495
  %v2592 = vunpack.c.l.b16 %v2496
  %v2593 = vunpack.c.h.b16 %v2496
  %v2594 = vunpack.c.l.b16 %v2497
  %v2595 = vunpack.c.h.b16 %v2497
  %v2596 = vunpack.c.l.b16 %v2498
  %v2597 = vunpack.c.h.b16 %v2498
  %v2598 = vunpack.c.l.b16 %v2499
  %v2599 = vunpack.c.h.b16 %v2499
  %v2600 = vunpack.c.l.b16 %v2500
  %v2601 = vunpack.c.h.b16 %v2500
  %v2602 = vunpack.c.l.b16 %v2501
  %v2603 = vunpack.c.h.b16 %v2501
  %v2604 = vpack.c.b16 %v2544, %v2540
  %v2605 = vpack.c.b16 %v2545, %v2541
  %v2606 = vpack.c.b16 %v2546, %v2542
  %v2607 = vpack.c.b16 %v2547, %v2543
  %v2608 = vpack.c.b16 %v2552, %v2548
  %v2609 = vpack.c.b16 %v2553, %v2549
  %v2610 = vpack.c.b16 %v2554, %v2550
  %v2611 = vpack.c.b16 %v2555, %v2551
  %v2612 = vpack.c.b16 %v2560, %v2556
  %v2613 = vpack.c.b16 %v2561, %v2557
  %v2614 = vpack.c.b16 %v2562, %v2558
  %v2615 = vpack.c.b16 %v2563, %v2559
  %v2616 = vpack.c.b16 %v2568, %v2564
  %v2617 = vpack.c.b16 %v2569, %v2565
  %v2618 = vpack.c.b16 %v2570, %v2566
  %v2619 = vpack.c.b16 %v2571, %v2567
  %v2620 = vpack.c.b16 %v2576, %v2572
  %v2621 = vpack.c.b16 %v2577, %v2573
  %v2622 = vpack.c.b16 %v2578, %v2574
  %v2623 = vpack.c.b16 %v2579, %v2575
  %v2624 = vpack.c.b16 %v2584, %v2580
  %v2625 = vpack.c.b16 %v2585, %v2581
  %v2626 = vpack.c.b16 %v2586, %v2582
  %v2627 = vpack.c.b16 %v2587, %v2583
  %v2628 = vpack.c.b16 %v2592, %v2588
  %v2629 = vpack.c.b16 %v2593, %v2589
  %v2630 = vpack.c.b16 %v2594, %v2590
  %v2631 = vpack.c.b16 %v2595, %v2591
  %v2632 = vpack.c.b16 %v2600, %v2596
  %v2633 = vpack.c.b16 %v2601, %v2597
  %v2634 = vpack.c.b16 %v2602, %v2598
  %v2635 = vpack.c.b16 %v2603, %v2599
  %2668 = vmatprep.subr.bf16.mxu0 %v2605
  %2669 = vmatpush1.bf16.msra.mxu0 %v2604
  %2670 = vmatprep.subr.bf16.mxu0 %v2609
  %2671 = vmatpush1.bf16.msra.mxu0 %v2608
  %2672 = vmatprep.subr.bf16.mxu0 %v2613
  %2673 = vmatpush1.bf16.msra.mxu0 %v2612
  %2674 = vmatprep.subr.bf16.mxu0 %v2617
  %2675 = vmatpush1.bf16.msra.mxu0 %v2616
  %2676 = vmatprep.subr.bf16.mxu0 %v2621
  %2677 = vmatpush1.bf16.msra.mxu0 %v2620
  %2678 = vmatprep.subr.bf16.mxu0 %v2625
  %2679 = vmatpush1.bf16.msra.mxu0 %v2624
  %2680 = vmatprep.subr.bf16.mxu0 %v2629
  %2681 = vmatpush1.bf16.msra.mxu0 %v2628
  %2682 = vmatprep.subr.bf16.mxu0 %v2633
  %2683 = vmatpush1.bf16.msra.mxu0 %v2632
  %2684 = vmatprep.subr.bf16.mxu0 0
  %2685 = vmatpush1.bf16.msra.mxu0 0
  %2686 = vmatprep.subr.bf16.mxu0 0
  %2687 = vmatpush1.bf16.msra.mxu0 0
  %2688 = vmatprep.subr.bf16.mxu0 0
  %2689 = vmatpush1.bf16.msra.mxu0 0
  %2690 = vmatprep.subr.bf16.mxu0 0
  %2691 = vmatpush1.bf16.msra.mxu0 0
  %2692 = vmatprep.subr.bf16.mxu0 0
  %2693 = vmatpush1.bf16.msra.mxu0 0
  %2694 = vmatprep.subr.bf16.mxu0 0
  %2695 = vmatpush1.bf16.msra.mxu0 0
  %2696 = vmatprep.subr.bf16.mxu0 0
  %2697 = vmatpush1.bf16.msra.mxu0 0
  %2698 = vmatprep.subr.bf16.mxu0 0
  %2699 = vmatpush1.bf16.msra.mxu0 0
  %2700 = vmatprep.mubr.bf16.mxu0 0
  %2701 = vmatmul.mubr.bf16.gmra.mrb[0].mxu0 0
  %v2702 = vpop.f32.mrb[0].mxu0
  %v2703 = vadd.f32 0.0, %v2702
  %v2704 = vpop.f32.mrb[0].mxu0
  %v2705 = vadd.f32 0.0, %v2704
  %v2706 = vpop.f32.mrb[0].mxu0
  %v2707 = vpop.f32.mrb[0].mxu0
  %2708 = vdwg.mxu0
  %2709 = vmatprep.subr.bf16.mxu0 %v2607
  %2710 = vmatpush1.bf16.msra.mxu0 %v2606
  %2711 = vmatprep.subr.bf16.mxu0 %v2611
  %2712 = vmatpush1.bf16.msra.mxu0 %v2610
  %2713 = vmatprep.subr.bf16.mxu0 %v2615
  %2714 = vmatpush1.bf16.msra.mxu0 %v2614
  %2715 = vmatprep.subr.bf16.mxu0 %v2619
  %2716 = vmatpush1.bf16.msra.mxu0 %v2618
  %2717 = vmatprep.subr.bf16.mxu0 %v2623
  %2718 = vmatpush1.bf16.msra.mxu0 %v2622
  %2719 = vmatprep.subr.bf16.mxu0 %v2627
  %2720 = vmatpush1.bf16.msra.mxu0 %v2626
  %2721 = vmatprep.subr.bf16.mxu0 %v2631
  %2722 = vmatpush1.bf16.msra.mxu0 %v2630
  %2723 = vmatprep.subr.bf16.mxu0 %v2635
  %2724 = vmatpush1.bf16.msra.mxu0 %v2634
  %2725 = vmatprep.subr.bf16.mxu0 0
  %2726 = vmatpush1.bf16.msra.mxu0 0
  %2727 = vmatprep.subr.bf16.mxu0 0
  %2728 = vmatpush1.bf16.msra.mxu0 0
  %2729 = vmatprep.subr.bf16.mxu0 0
  %2730 = vmatpush1.bf16.msra.mxu0 0
  %2731 = vmatprep.subr.bf16.mxu0 0
  %2732 = vmatpush1.bf16.msra.mxu0 0
  %2733 = vmatprep.subr.bf16.mxu0 0
  %2734 = vmatpush1.bf16.msra.mxu0 0
  %2735 = vmatprep.subr.bf16.mxu0 0
  %2736 = vmatpush1.bf16.msra.mxu0 0
  %2737 = vmatprep.subr.bf16.mxu0 0
  %2738 = vmatpush1.bf16.msra.mxu0 0
  %2739 = vmatprep.subr.bf16.mxu0 0
  %2740 = vmatpush1.bf16.msra.mxu0 0
  %2741 = vmatprep.mubr.bf16.mxu0 0
  %2742 = vmatmul.mubr.bf16.gmra.mrb[0].mxu0 0
  %v2743 = vpop.f32.mrb[0].mxu0
  %v2744 = vadd.f32 0.0, %v2743
  %v2745 = vpop.f32.mrb[0].mxu0
  %v2746 = vadd.f32 0.0, %v2745
  %v2747 = vpop.f32.mrb[0].mxu0
  %v2748 = vpop.f32.mrb[0].mxu0
  %2749 = vdwg.mxu0
  %v2750 = vadd.f32 %v2504, %v2703
  %v2751 = vadd.f32 %v2505, %v2705
  %v2752 = vadd.f32 %v2506, %v2744
  %v2753 = vadd.f32 %v2507, %v2746
  %v2754 = vxor.u32 %v2750, 2147483648
  %v2755 = vmul.f32 %v2754, 1.442695
  %v2756 = vpow.pop %v2755
  %v2757 = vadd.f32 %v2756, 1.0
  %v2758 = vrcp.pop %v2757
  %v2759 = vmul.f32 1.0, %v2758
  %v2760 = vxor.u32 %v2751, 2147483648
  %v2761 = vmul.f32 %v2760, 1.442695
  %v2762 = vpow.pop %v2761
  %v2763 = vadd.f32 %v2762, 1.0
  %v2764 = vrcp.pop %v2763
  %v2765 = vmul.f32 1.0, %v2764
  %v2766 = vtanh.pop %v2752
  %v2767 = vxor.u32 %v2753, 2147483648
  %v2768 = vmul.f32 %v2767, 1.442695
  %v2769 = vpow.pop %v2768
  %v2770 = vadd.f32 %v2769, 1.0
  %v2771 = vrcp.pop %v2770
  %v2772 = vmul.f32 1.0, %v2771
  %v2773 = vmul.f32 %v2765, 0.0
  %v2774 = vmul.f32 %v2759, %v2766
  %v2775 = vadd.f32 %v2773, %v2774
  %v2776 = vtanh.pop %v2775
  %v2777 = vmul.f32 %v2772, %v2776
  %2778 = vst [vmem:[%s2466 + $0x8] sm:$0xff] %v2777
  %s2779 = smul.addr %s2224, 8
  %s2780 = scalar_lea.vmem [#allocation3], %s2779
  %v2781 = vld [vmem:[%s2780] sm:$0xff]
  %v2782 = vld [vmem:[%s2780 + $0x8] sm:$0xff]
  %v2783 = vld [vmem:[%s2780 + $0x10] sm:$0xff]
  %v2784 = vld [vmem:[%s2780 + $0x18] sm:$0xff]
  %v2785 = vpack.c.bf16 %v2777, %v2777
  %2786 = vmatprep.subr.bf16.mxu0 %v2605
  %2787 = vmatpush1.bf16.msra.mxu0 %v2604
  %2788 = vmatprep.subr.bf16.mxu0 %v2609
  %2789 = vmatpush1.bf16.msra.mxu0 %v2608
  %2790 = vmatprep.subr.bf16.mxu0 %v2613
  %2791 = vmatpush1.bf16.msra.mxu0 %v2612
  %2792 = vmatprep.subr.bf16.mxu0 %v2617
  %2793 = vmatpush1.bf16.msra.mxu0 %v2616
  %2794 = vmatprep.subr.bf16.mxu0 %v2621
  %2795 = vmatpush1.bf16.msra.mxu0 %v2620
  %2796 = vmatprep.subr.bf16.mxu0 %v2625
  %2797 = vmatpush1.bf16.msra.mxu0 %v2624
  %2798 = vmatprep.subr.bf16.mxu0 %v2629
  %2799 = vmatpush1.bf16.msra.mxu0 %v2628
  %2800 = vmatprep.subr.bf16.mxu0 %v2633
  %2801 = vmatpush1.bf16.msra.mxu0 %v2632
  %2802 = vmatprep.subr.bf16.mxu0 0
  %2803 = vmatpush1.bf16.msra.mxu0 0
  %2804 = vmatprep.subr.bf16.mxu0 0
  %2805 = vmatpush1.bf16.msra.mxu0 0
  %2806 = vmatprep.subr.bf16.mxu0 0
  %2807 = vmatpush1.bf16.msra.mxu0 0
  %2808 = vmatprep.subr.bf16.mxu0 0
  %2809 = vmatpush1.bf16.msra.mxu0 0
  %2810 = vmatprep.subr.bf16.mxu0 0
  %2811 = vmatpush1.bf16.msra.mxu0 0
  %2812 = vmatprep.subr.bf16.mxu0 0
  %2813 = vmatpush1.bf16.msra.mxu0 0
  %2814 = vmatprep.subr.bf16.mxu0 0
  %2815 = vmatpush1.bf16.msra.mxu0 0
  %2816 = vmatprep.subr.bf16.mxu0 0
  %2817 = vmatpush1.bf16.msra.mxu0 0
  %2818 = vmatprep.mubr.bf16.mxu0 0
  %2819 = vmatmul.mubr.bf16.gmra.mrb[0].mxu0 %v2785
  %v2820 = vpop.f32.mrb[0].mxu0
  %v2821 = vadd.f32 0.0, %v2820
  %v2822 = vpop.f32.mrb[0].mxu0
  %v2823 = vadd.f32 0.0, %v2822
  %v2824 = vpop.f32.mrb[0].mxu0
  %v2825 = vpop.f32.mrb[0].mxu0
  %2826 = vdwg.mxu0
  %2827 = vmatprep.subr.bf16.mxu0 %v2607
  %2828 = vmatpush1.bf16.msra.mxu0 %v2606
  %2829 = vmatprep.subr.bf16.mxu0 %v2611
  %2830 = vmatpush1.bf16.msra.mxu0 %v2610
  %2831 = vmatprep.subr.bf16.mxu0 %v2615
  %2832 = vmatpush1.bf16.msra.mxu0 %v2614
  %2833 = vmatprep.subr.bf16.mxu0 %v2619
  %2834 = vmatpush1.bf16.msra.mxu0 %v2618
  %2835 = vmatprep.subr.bf16.mxu0 %v2623
  %2836 = vmatpush1.bf16.msra.mxu0 %v2622
  %2837 = vmatprep.subr.bf16.mxu0 %v2627
  %2838 = vmatpush1.bf16.msra.mxu0 %v2626
  %2839 = vmatprep.subr.bf16.mxu0 %v2631
  %2840 = vmatpush1.bf16.msra.mxu0 %v2630
  %2841 = vmatprep.subr.bf16.mxu0 %v2635
  %2842 = vmatpush1.bf16.msra.mxu0 %v2634
  %2843 = vmatprep.subr.bf16.mxu0 0
  %2844 = vmatpush1.bf16.msra.mxu0 0
  %2845 = vmatprep.subr.bf16.mxu0 0
  %2846 = vmatpush1.bf16.msra.mxu0 0
  %2847 = vmatprep.subr.bf16.mxu0 0
  %2848 = vmatpush1.bf16.msra.mxu0 0
  %2849 = vmatprep.subr.bf16.mxu0 0
  %2850 = vmatpush1.bf16.msra.mxu0 0
  %2851 = vmatprep.subr.bf16.mxu0 0
  %2852 = vmatpush1.bf16.msra.mxu0 0
  %2853 = vmatprep.subr.bf16.mxu0 0
  %2854 = vmatpush1.bf16.msra.mxu0 0
  %2855 = vmatprep.subr.bf16.mxu0 0
  %2856 = vmatpush1.bf16.msra.mxu0 0
  %2857 = vmatprep.subr.bf16.mxu0 0
  %2858 = vmatpush1.bf16.msra.mxu0 0
  %2859 = vmatprep.mubr.bf16.mxu0 0
  %2860 = vmatmul.mubr.bf16.gmra.mrb[0].mxu0 %v2785
  %v2861 = vpop.f32.mrb[0].mxu0
  %v2862 = vadd.f32 0.0, %v2861
  %v2863 = vpop.f32.mrb[0].mxu0
  %v2864 = vadd.f32 0.0, %v2863
  %v2865 = vpop.f32.mrb[0].mxu0
  %v2866 = vpop.f32.mrb[0].mxu0
  %2867 = vdwg.mxu0
  %v2868 = vadd.f32 %v2781, %v2821
  %v2869 = vadd.f32 %v2782, %v2823
  %v2870 = vadd.f32 %v2783, %v2862
  %v2871 = vadd.f32 %v2784, %v2864
  %v2872 = vxor.u32 %v2868, 2147483648
  %v2873 = vmul.f32 %v2872, 1.442695
  %v2874 = vpow.pop %v2873
  %v2875 = vadd.f32 %v2874, 1.0
  %v2876 = vrcp.pop %v2875
  %v2877 = vmul.f32 1.0, %v2876
  %v2878 = vxor.u32 %v2869, 2147483648
  %v2879 = vmul.f32 %v2878, 1.442695
  %v2880 = vpow.pop %v2879
  %v2881 = vadd.f32 %v2880, 1.0
  %v2882 = vrcp.pop %v2881
  %v2883 = vmul.f32 1.0, %v2882
  %v2884 = vtanh.pop %v2870
  %v2885 = vxor.u32 %v2871, 2147483648
  %v2886 = vmul.f32 %v2885, 1.442695
  %v2887 = vpow.pop %v2886
  %v2888 = vadd.f32 %v2887, 1.0
  %v2889 = vrcp.pop %v2888
  %v2890 = vmul.f32 1.0, %v2889
  %v2891 = vmul.f32 %v2883, %v2775
  %v2892 = vmul.f32 %v2877, %v2884
  %v2893 = vadd.f32 %v2891, %v2892
  %v2894 = vtanh.pop %v2893
  %v2895 = vmul.f32 %v2890, %v2894
  %2896 = vst [vmem:[%s2344 + $0x8] sm:$0xff] %v2895
  %s2897 = smul.addr %s2102, 8
  %s2898 = scalar_lea.vmem [#allocation3], %s2897
  %v2899 = vld [vmem:[%s2898] sm:$0xff]
  %v2900 = vld [vmem:[%s2898 + $0x8] sm:$0xff]
  %v2901 = vld [vmem:[%s2898 + $0x10] sm:$0xff]
  %v2902 = vld [vmem:[%s2898 + $0x18] sm:$0xff]
  %v2903 = vpack.c.bf16 %v2895, %v2895
  %2904 = vmatprep.subr.bf16.mxu0 %v2605
  %2905 = vmatpush1.bf16.msra.mxu0 %v2604
  %2906 = vmatprep.subr.bf16.mxu0 %v2609
  %2907 = vmatpush1.bf16.msra.mxu0 %v2608
  %2908 = vmatprep.subr.bf16.mxu0 %v2613
  %2909 = vmatpush1.bf16.msra.mxu0 %v2612
  %2910 = vmatprep.subr.bf16.mxu0 %v2617
  %2911 = vmatpush1.bf16.msra.mxu0 %v2616
  %2912 = vmatprep.subr.bf16.mxu0 %v2621
  %2913 = vmatpush1.bf16.msra.mxu0 %v2620
  %2914 = vmatprep.subr.bf16.mxu0 %v2625
  %2915 = vmatpush1.bf16.msra.mxu0 %v2624
  %2916 = vmatprep.subr.bf16.mxu0 %v2629
  %2917 = vmatpush1.bf16.msra.mxu0 %v2628
  %2918 = vmatprep.subr.bf16.mxu0 %v2633
  %2919 = vmatpush1.bf16.msra.mxu0 %v2632
  %2920 = vmatprep.subr.bf16.mxu0 0
  %2921 = vmatpush1.bf16.msra.mxu0 0
  %2922 = vmatprep.subr.bf16.mxu0 0
  %2923 = vmatpush1.bf16.msra.mxu0 0
  %2924 = vmatprep.subr.bf16.mxu0 0
  %2925 = vmatpush1.bf16.msra.mxu0 0
  %2926 = vmatprep.subr.bf16.mxu0 0
  %2927 = vmatpush1.bf16.msra.mxu0 0
  %2928 = vmatprep.subr.bf16.mxu0 0
  %2929 = vmatpush1.bf16.msra.mxu0 0
  %2930 = vmatprep.subr.bf16.mxu0 0
  %2931 = vmatpush1.bf16.msra.mxu0 0
  %2932 = vmatprep.subr.bf16.mxu0 0
  %2933 = vmatpush1.bf16.msra.mxu0 0
  %2934 = vmatprep.subr.bf16.mxu0 0
  %2935 = vmatpush1.bf16.msra.mxu0 0
  %2936 = vmatprep.mubr.bf16.mxu0 0
  %2937 = vmatmul.mubr.bf16.gmra.mrb[0].mxu0 %v2903
  %v2938 = vpop.f32.mrb[0].mxu0
  %v2939 = vadd.f32 0.0, %v2938
  %v2940 = vpop.f32.mrb[0].mxu0
  %v2941 = vadd.f32 0.0, %v2940
  %v2942 = vpop.f32.mrb[0].mxu0
  %v2943 = vpop.f32.mrb[0].mxu0
  %2944 = vdwg.mxu0
  %2945 = vmatprep.subr.bf16.mxu0 %v2607
  %2946 = vmatpush1.bf16.msra.mxu0 %v2606
  %2947 = vmatprep.subr.bf16.mxu0 %v2611
  %2948 = vmatpush1.bf16.msra.mxu0 %v2610
  %2949 = vmatprep.subr.bf16.mxu0 %v2615
  %2950 = vmatpush1.bf16.msra.mxu0 %v2614
  %2951 = vmatprep.subr.bf16.mxu0 %v2619
  %2952 = vmatpush1.bf16.msra.mxu0 %v2618
  %2953 = vmatprep.subr.bf16.mxu0 %v2623
  %2954 = vmatpush1.bf16.msra.mxu0 %v2622
  %2955 = vmatprep.subr.bf16.mxu0 %v2627
  %2956 = vmatpush1.bf16.msra.mxu0 %v2626
  %2957 = vmatprep.subr.bf16.mxu0 %v2631
  %2958 = vmatpush1.bf16.msra.mxu0 %v2630
  %2959 = vmatprep.subr.bf16.mxu0 %v2635
  %2960 = vmatpush1.bf16.msra.mxu0 %v2634
  %2961 = vmatprep.subr.bf16.mxu0 0
  %2962 = vmatpush1.bf16.msra.mxu0 0
  %2963 = vmatprep.subr.bf16.mxu0 0
  %2964 = vmatpush1.bf16.msra.mxu0 0
  %2965 = vmatprep.subr.bf16.mxu0 0
  %2966 = vmatpush1.bf16.msra.mxu0 0
  %2967 = vmatprep.subr.bf16.mxu0 0
  %2968 = vmatpush1.bf16.msra.mxu0 0
  %2969 = vmatprep.subr.bf16.mxu0 0
  %2970 = vmatpush1.bf16.msra.mxu0 0
  %2971 = vmatprep.subr.bf16.mxu0 0
  %2972 = vmatpush1.bf16.msra.mxu0 0
  %2973 = vmatprep.subr.bf16.mxu0 0
  %2974 = vmatpush1.bf16.msra.mxu0 0
  %2975 = vmatprep.subr.bf16.mxu0 0
  %2976 = vmatpush1.bf16.msra.mxu0 0
  %2977 = vmatprep.mubr.bf16.mxu0 0
  %2978 = vmatmul.mubr.bf16.gmra.mrb[0].mxu0 %v2903
  %v2979 = vpop.f32.mrb[0].mxu0
  %v2980 = vadd.f32 0.0, %v2979
  %v2981 = vpop.f32.mrb[0].mxu0
  %v2982 = vadd.f32 0.0, %v2981
  %v2983 = vpop.f32.mrb[0].mxu0
  %v2984 = vpop.f32.mrb[0].mxu0
  %2985 = vdwg.mxu0
  %v2986 = vadd.f32 %v2899, %v2939
  %v2987 = vadd.f32 %v2900, %v2941
  %v2988 = vadd.f32 %v2901, %v2980
  %v2989 = vadd.f32 %v2902, %v2982
  %v2990 = vxor.u32 %v2986, 2147483648
  %v2991 = vmul.f32 %v2990, 1.442695
  %v2992 = vpow.pop %v2991
  %v2993 = vadd.f32 %v2992, 1.0
  %v2994 = vrcp.pop %v2993
  %v2995 = vmul.f32 1.0, %v2994
  %v2996 = vxor.u32 %v2987, 2147483648
  %v2997 = vmul.f32 %v2996, 1.442695
  %v2998 = vpow.pop %v2997
  %v2999 = vadd.f32 %v2998, 1.0
  %v3000 = vrcp.pop %v2999
  %v3001 = vmul.f32 1.0, %v3000
  %v3002 = vtanh.pop %v2988
  %v3003 = vxor.u32 %v2989, 2147483648
  %v3004 = vmul.f32 %v3003, 1.442695
  %v3005 = vpow.pop %v3004
  %v3006 = vadd.f32 %v3005, 1.0
  %v3007 = vrcp.pop %v3006
  %v3008 = vmul.f32 1.0, %v3007
  %v3009 = vmul.f32 %v3001, %v2893
  %v3010 = vmul.f32 %v2995, %v3002
  %v3011 = vadd.f32 %v3009, %v3010
  %v3012 = vtanh.pop %v3011
  %v3013 = vmul.f32 %v3008, %v3012
  %3014 = vst [vmem:[%s2222 + $0x8] sm:$0xff] %v3013
  %s3015 = smul.addr %s1980, 8
  %s3016 = scalar_lea.vmem [#allocation3], %s3015
  %v3017 = vld [vmem:[%s3016] sm:$0xff]
  %v3018 = vld [vmem:[%s3016 + $0x8] sm:$0xff]
  %v3019 = vld [vmem:[%s3016 + $0x10] sm:$0xff]
  %v3020 = vld [vmem:[%s3016 + $0x18] sm:$0xff]
  %v3021 = vpack.c.bf16 %v3013, %v3013
  %3022 = vmatprep.subr.bf16.mxu0 %v2605
  %3023 = vmatpush1.bf16.msra.mxu0 %v2604
  %3024 = vmatprep.subr.bf16.mxu0 %v2609
  %3025 = vmatpush1.bf16.msra.mxu0 %v2608
  %3026 = vmatprep.subr.bf16.mxu0 %v2613
  %3027 = vmatpush1.bf16.msra.mxu0 %v2612
  %3028 = vmatprep.subr.bf16.mxu0 %v2617
  %3029 = vmatpush1.bf16.msra.mxu0 %v2616
  %3030 = vmatprep.subr.bf16.mxu0 %v2621
  %3031 = vmatpush1.bf16.msra.mxu0 %v2620
  %3032 = vmatprep.subr.bf16.mxu0 %v2625
  %3033 = vmatpush1.bf16.msra.mxu0 %v2624
  %3034 = vmatprep.subr.bf16.mxu0 %v2629
  %3035 = vmatpush1.bf16.msra.mxu0 %v2628
  %3036 = vmatprep.subr.bf16.mxu0 %v2633
  %3037 = vmatpush1.bf16.msra.mxu0 %v2632
  %3038 = vmatprep.subr.bf16.mxu0 0
  %3039 = vmatpush1.bf16.msra.mxu0 0
  %3040 = vmatprep.subr.bf16.mxu0 0
  %3041 = vmatpush1.bf16.msra.mxu0 0
  %3042 = vmatprep.subr.bf16.mxu0 0
  %3043 = vmatpush1.bf16.msra.mxu0 0
  %3044 = vmatprep.subr.bf16.mxu0 0
  %3045 = vmatpush1.bf16.msra.mxu0 0
  %3046 = vmatprep.subr.bf16.mxu0 0
  %3047 = vmatpush1.bf16.msra.mxu0 0
  %3048 = vmatprep.subr.bf16.mxu0 0
  %3049 = vmatpush1.bf16.msra.mxu0 0
  %3050 = vmatprep.subr.bf16.mxu0 0
  %3051 = vmatpush1.bf16.msra.mxu0 0
  %3052 = vmatprep.subr.bf16.mxu0 0
  %3053 = vmatpush1.bf16.msra.mxu0 0
  %3054 = vmatprep.mubr.bf16.mxu0 0
  %3055 = vmatmul.mubr.bf16.gmra.mrb[0].mxu0 %v3021
  %v3056 = vpop.f32.mrb[0].mxu0
  %v3057 = vadd.f32 0.0, %v3056
  %v3058 = vpop.f32.mrb[0].mxu0
  %v3059 = vadd.f32 0.0, %v3058
  %v3060 = vpop.f32.mrb[0].mxu0
  %v3061 = vpop.f32.mrb[0].mxu0
  %3062 = vdwg.mxu0
  %3063 = vmatprep.subr.bf16.mxu0 %v2607
  %3064 = vmatpush1.bf16.msra.mxu0 %v2606
  %3065 = vmatprep.subr.bf16.mxu0 %v2611
  %3066 = vmatpush1.bf16.msra.mxu0 %v2610
  %3067 = vmatprep.subr.bf16.mxu0 %v2615
  %3068 = vmatpush1.bf16.msra.mxu0 %v2614
  %3069 = vmatprep.subr.bf16.mxu0 %v2619
  %3070 = vmatpush1.bf16.msra.mxu0 %v2618
  %3071 = vmatprep.subr.bf16.mxu0 %v2623
  %3072 = vmatpush1.bf16.msra.mxu0 %v2622
  %3073 = vmatprep.subr.bf16.mxu0 %v2627
  %3074 = vmatpush1.bf16.msra.mxu0 %v2626
  %3075 = vmatprep.subr.bf16.mxu0 %v2631
  %3076 = vmatpush1.bf16.msra.mxu0 %v2630
  %3077 = vmatprep.subr.bf16.mxu0 %v2635
  %3078 = vmatpush1.bf16.msra.mxu0 %v2634
  %3079 = vmatprep.subr.bf16.mxu0 0
  %3080 = vmatpush1.bf16.msra.mxu0 0
  %3081 = vmatprep.subr.bf16.mxu0 0
  %3082 = vmatpush1.bf16.msra.mxu0 0
  %3083 = vmatprep.subr.bf16.mxu0 0
  %3084 = vmatpush1.bf16.msra.mxu0 0
  %3085 = vmatprep.subr.bf16.mxu0 0
  %3086 = vmatpush1.bf16.msra.mxu0 0
  %3087 = vmatprep.subr.bf16.mxu0 0
  %3088 = vmatpush1.bf16.msra.mxu0 0
  %3089 = vmatprep.subr.bf16.mxu0 0
  %3090 = vmatpush1.bf16.msra.mxu0 0
  %3091 = vmatprep.subr.bf16.mxu0 0
  %3092 = vmatpush1.bf16.msra.mxu0 0
  %3093 = vmatprep.subr.bf16.mxu0 0
  %3094 = vmatpush1.bf16.msra.mxu0 0
  %3095 = vmatprep.mubr.bf16.mxu0 0
  %3096 = vmatmul.mubr.bf16.gmra.mrb[0].mxu0 %v3021
  %v3097 = vpop.f32.mrb[0].mxu0
  %v3098 = vadd.f32 0.0, %v3097
  %v3099 = vpop.f32.mrb[0].mxu0
  %v3100 = vadd.f32 0.0, %v3099
  %v3101 = vpop.f32.mrb[0].mxu0
  %v3102 = vpop.f32.mrb[0].mxu0
  %3103 = vdwg.mxu0
  %v3104 = vadd.f32 %v3017, %v3057
  %v3105 = vadd.f32 %v3018, %v3059
  %v3106 = vadd.f32 %v3019, %v3098
  %v3107 = vadd.f32 %v3020, %v3100
  %v3108 = vxor.u32 %v3104, 2147483648
  %v3109 = vmul.f32 %v3108, 1.442695
  %v3110 = vpow.pop %v3109
  %v3111 = vadd.f32 %v3110, 1.0
  %v3112 = vrcp.pop %v3111
  %v3113 = vmul.f32 1.0, %v3112
  %v3114 = vxor.u32 %v3105, 2147483648
  %v3115 = vmul.f32 %v3114, 1.442695
  %v3116 = vpow.pop %v3115
  %v3117 = vadd.f32 %v3116, 1.0
  %v3118 = vrcp.pop %v3117
  %v3119 = vmul.f32 1.0, %v3118
  %v3120 = vtanh.pop %v3106
  %v3121 = vxor.u32 %v3107, 2147483648
  %v3122 = vmul.f32 %v3121, 1.442695
  %v3123 = vpow.pop %v3122
  %v3124 = vadd.f32 %v3123, 1.0
  %v3125 = vrcp.pop %v3124
  %v3126 = vmul.f32 1.0, %v3125
  %v3127 = vmul.f32 %v3119, %v3011
  %v3128 = vmul.f32 %v3113, %v3120
  %v3129 = vadd.f32 %v3127, %v3128
  %v3130 = vtanh.pop %v3129
  %v3131 = vmul.f32 %v3126, %v3130
  %3132 = vst [vmem:[%s2100 + $0x8] sm:$0xff] %v3131
  %s3133 = smul.addr %s1858, 8
  %s3134 = scalar_lea.vmem [#allocation3], %s3133
  %v3135 = vld [vmem:[%s3134] sm:$0xff]
  %v3136 = vld [vmem:[%s3134 + $0x8] sm:$0xff]
  %v3137 = vld [vmem:[%s3134 + $0x10] sm:$0xff]
  %v3138 = vld [vmem:[%s3134 + $0x18] sm:$0xff]
  %v3139 = vpack.c.bf16 %v3131, %v3131
  %3140 = vmatprep.subr.bf16.mxu0 %v2605
  %3141 = vmatpush1.bf16.msra.mxu0 %v2604
  %3142 = vmatprep.subr.bf16.mxu0 %v2609
  %3143 = vmatpush1.bf16.msra.mxu0 %v2608
  %3144 = vmatprep.subr.bf16.mxu0 %v2613
  %3145 = vmatpush1.bf16.msra.mxu0 %v2612
  %3146 = vmatprep.subr.bf16.mxu0 %v2617
  %3147 = vmatpush1.bf16.msra.mxu0 %v2616
  %3148 = vmatprep.subr.bf16.mxu0 %v2621
  %3149 = vmatpush1.bf16.msra.mxu0 %v2620
  %3150 = vmatprep.subr.bf16.mxu0 %v2625
  %3151 = vmatpush1.bf16.msra.mxu0 %v2624
  %3152 = vmatprep.subr.bf16.mxu0 %v2629
  %3153 = vmatpush1.bf16.msra.mxu0 %v2628
  %3154 = vmatprep.subr.bf16.mxu0 %v2633
  %3155 = vmatpush1.bf16.msra.mxu0 %v2632
  %3156 = vmatprep.subr.bf16.mxu0 0
  %3157 = vmatpush1.bf16.msra.mxu0 0
  %3158 = vmatprep.subr.bf16.mxu0 0
  %3159 = vmatpush1.bf16.msra.mxu0 0
  %3160 = vmatprep.subr.bf16.mxu0 0
  %3161 = vmatpush1.bf16.msra.mxu0 0
  %3162 = vmatprep.subr.bf16.mxu0 0
  %3163 = vmatpush1.bf16.msra.mxu0 0
  %3164 = vmatprep.subr.bf16.mxu0 0
  %3165 = vmatpush1.bf16.msra.mxu0 0
  %3166 = vmatprep.subr.bf16.mxu0 0
  %3167 = vmatpush1.bf16.msra.mxu0 0
  %3168 = vmatprep.subr.bf16.mxu0 0
  %3169 = vmatpush1.bf16.msra.mxu0 0
  %3170 = vmatprep.subr.bf16.mxu0 0
  %3171 = vmatpush1.bf16.msra.mxu0 0
  %3172 = vmatprep.mubr.bf16.mxu0 0
  %3173 = vmatmul.mubr.bf16.gmra.mrb[0].mxu0 %v3139
  %v3174 = vpop.f32.mrb[0].mxu0
  %v3175 = vadd.f32 0.0, %v3174
  %v3176 = vpop.f32.mrb[0].mxu0
  %v3177 = vadd.f32 0.0, %v3176
  %v3178 = vpop.f32.mrb[0].mxu0
  %v3179 = vpop.f32.mrb[0].mxu0
  %3180 = vdwg.mxu0
  %3181 = vmatprep.subr.bf16.mxu0 %v2607
  %3182 = vmatpush1.bf16.msra.mxu0 %v2606
  %3183 = vmatprep.subr.bf16.mxu0 %v2611
  %3184 = vmatpush1.bf16.msra.mxu0 %v2610
  %3185 = vmatprep.subr.bf16.mxu0 %v2615
  %3186 = vmatpush1.bf16.msra.mxu0 %v2614
  %3187 = vmatprep.subr.bf16.mxu0 %v2619
  %3188 = vmatpush1.bf16.msra.mxu0 %v2618
  %3189 = vmatprep.subr.bf16.mxu0 %v2623
  %3190 = vmatpush1.bf16.msra.mxu0 %v2622
  %3191 = vmatprep.subr.bf16.mxu0 %v2627
  %3192 = vmatpush1.bf16.msra.mxu0 %v2626
  %3193 = vmatprep.subr.bf16.mxu0 %v2631
  %3194 = vmatpush1.bf16.msra.mxu0 %v2630
  %3195 = vmatprep.subr.bf16.mxu0 %v2635
  %3196 = vmatpush1.bf16.msra.mxu0 %v2634
  %3197 = vmatprep.subr.bf16.mxu0 0
  %3198 = vmatpush1.bf16.msra.mxu0 0
  %3199 = vmatprep.subr.bf16.mxu0 0
  %3200 = vmatpush1.bf16.msra.mxu0 0
  %3201 = vmatprep.subr.bf16.mxu0 0
  %3202 = vmatpush1.bf16.msra.mxu0 0
  %3203 = vmatprep.subr.bf16.mxu0 0
  %3204 = vmatpush1.bf16.msra.mxu0 0
  %3205 = vmatprep.subr.bf16.mxu0 0
  %3206 = vmatpush1.bf16.msra.mxu0 0
  %3207 = vmatprep.subr.bf16.mxu0 0
  %3208 = vmatpush1.bf16.msra.mxu0 0
  %3209 = vmatprep.subr.bf16.mxu0 0
  %3210 = vmatpush1.bf16.msra.mxu0 0
  %3211 = vmatprep.subr.bf16.mxu0 0
  %3212 = vmatpush1.bf16.msra.mxu0 0
  %3213 = vmatprep.mubr.bf16.mxu0 0
  %3214 = vmatmul.mubr.bf16.gmra.mrb[0].mxu0 %v3139
  %v3215 = vpop.f32.mrb[0].mxu0
  %v3216 = vadd.f32 0.0, %v3215
  %v3217 = vpop.f32.mrb[0].mxu0
  %v3218 = vadd.f32 0.0, %v3217
  %v3219 = vpop.f32.mrb[0].mxu0
  %v3220 = vpop.f32.mrb[0].mxu0
  %3221 = vdwg.mxu0
  %v3222 = vadd.f32 %v3135, %v3175
  %v3223 = vadd.f32 %v3136, %v3177
  %v3224 = vadd.f32 %v3137, %v3216
  %v3225 = vadd.f32 %v3138, %v3218
  %v3226 = vxor.u32 %v3222, 2147483648
  %v3227 = vmul.f32 %v3226, 1.442695
  %v3228 = vpow.pop %v3227
  %v3229 = vadd.f32 %v3228, 1.0
  %v3230 = vrcp.pop %v3229
  %v3231 = vmul.f32 1.0, %v3230
  %v3232 = vxor.u32 %v3223, 2147483648
  %v3233 = vmul.f32 %v3232, 1.442695
  %v3234 = vpow.pop %v3233
  %v3235 = vadd.f32 %v3234, 1.0
  %v3236 = vrcp.pop %v3235
  %v3237 = vmul.f32 1.0, %v3236
  %v3238 = vtanh.pop %v3224
  %v3239 = vxor.u32 %v3225, 2147483648
  %v3240 = vmul.f32 %v3239, 1.442695
  %v3241 = vpow.pop %v3240
  %v3242 = vadd.f32 %v3241, 1.0
  %v3243 = vrcp.pop %v3242
  %v3244 = vmul.f32 1.0, %v3243
  %v3245 = vmul.f32 %v3237, %v3129
  %v3246 = vmul.f32 %v3231, %v3238
  %v3247 = vadd.f32 %v3245, %v3246
  %v3248 = vtanh.pop %v3247
  %v3249 = vmul.f32 %v3244, %v3248
  %3250 = vst [vmem:[%s1978 + $0x8] sm:$0xff] %v3249
  %s3251 = smul.addr %s1736, 8
  %s3252 = scalar_lea.vmem [#allocation3], %s3251
  %v3253 = vld [vmem:[%s3252] sm:$0xff]
  %v3254 = vld [vmem:[%s3252 + $0x8] sm:$0xff]
  %v3255 = vld [vmem:[%s3252 + $0x10] sm:$0xff]
  %v3256 = vld [vmem:[%s3252 + $0x18] sm:$0xff]
  %v3257 = vpack.c.bf16 %v3249, %v3249
  %3258 = vmatprep.subr.bf16.mxu0 %v2605
  %3259 = vmatpush1.bf16.msra.mxu0 %v2604
  %3260 = vmatprep.subr.bf16.mxu0 %v2609
  %3261 = vmatpush1.bf16.msra.mxu0 %v2608
  %3262 = vmatprep.subr.bf16.mxu0 %v2613
  %3263 = vmatpush1.bf16.msra.mxu0 %v2612
  %3264 = vmatprep.subr.bf16.mxu0 %v2617
  %3265 = vmatpush1.bf16.msra.mxu0 %v2616
  %3266 = vmatprep.subr.bf16.mxu0 %v2621
  %3267 = vmatpush1.bf16.msra.mxu0 %v2620
  %3268 = vmatprep.subr.bf16.mxu0 %v2625
  %3269 = vmatpush1.bf16.msra.mxu0 %v2624
  %3270 = vmatprep.subr.bf16.mxu0 %v2629
  %3271 = vmatpush1.bf16.msra.mxu0 %v2628
  %3272 = vmatprep.subr.bf16.mxu0 %v2633
  %3273 = vmatpush1.bf16.msra.mxu0 %v2632
  %3274 = vmatprep.subr.bf16.mxu0 0
  %3275 = vmatpush1.bf16.msra.mxu0 0
  %3276 = vmatprep.subr.bf16.mxu0 0
  %3277 = vmatpush1.bf16.msra.mxu0 0
  %3278 = vmatprep.subr.bf16.mxu0 0
  %3279 = vmatpush1.bf16.msra.mxu0 0
  %3280 = vmatprep.subr.bf16.mxu0 0
  %3281 = vmatpush1.bf16.msra.mxu0 0
  %3282 = vmatprep.subr.bf16.mxu0 0
  %3283 = vmatpush1.bf16.msra.mxu0 0
  %3284 = vmatprep.subr.bf16.mxu0 0
  %3285 = vmatpush1.bf16.msra.mxu0 0
  %3286 = vmatprep.subr.bf16.mxu0 0
  %3287 = vmatpush1.bf16.msra.mxu0 0
  %3288 = vmatprep.subr.bf16.mxu0 0
  %3289 = vmatpush1.bf16.msra.mxu0 0
  %3290 = vmatprep.mubr.bf16.mxu0 0
  %3291 = vmatmul.mubr.bf16.gmra.mrb[0].mxu0 %v3257
  %v3292 = vpop.f32.mrb[0].mxu0
  %v3293 = vadd.f32 0.0, %v3292
  %v3294 = vpop.f32.mrb[0].mxu0
  %v3295 = vadd.f32 0.0, %v3294
  %v3296 = vpop.f32.mrb[0].mxu0
  %v3297 = vpop.f32.mrb[0].mxu0
  %3298 = vdwg.mxu0
  %3299 = vmatprep.subr.bf16.mxu0 %v2607
  %3300 = vmatpush1.bf16.msra.mxu0 %v2606
  %3301 = vmatprep.subr.bf16.mxu0 %v2611
  %3302 = vmatpush1.bf16.msra.mxu0 %v2610
  %3303 = vmatprep.subr.bf16.mxu0 %v2615
  %3304 = vmatpush1.bf16.msra.mxu0 %v2614
  %3305 = vmatprep.subr.bf16.mxu0 %v2619
  %3306 = vmatpush1.bf16.msra.mxu0 %v2618
  %3307 = vmatprep.subr.bf16.mxu0 %v2623
  %3308 = vmatpush1.bf16.msra.mxu0 %v2622
  %3309 = vmatprep.subr.bf16.mxu0 %v2627
  %3310 = vmatpush1.bf16.msra.mxu0 %v2626
  %3311 = vmatprep.subr.bf16.mxu0 %v2631
  %3312 = vmatpush1.bf16.msra.mxu0 %v2630
  %3313 = vmatprep.subr.bf16.mxu0 %v2635
  %3314 = vmatpush1.bf16.msra.mxu0 %v2634
  %3315 = vmatprep.subr.bf16.mxu0 0
  %3316 = vmatpush1.bf16.msra.mxu0 0
  %3317 = vmatprep.subr.bf16.mxu0 0
  %3318 = vmatpush1.bf16.msra.mxu0 0
  %3319 = vmatprep.subr.bf16.mxu0 0
  %3320 = vmatpush1.bf16.msra.mxu0 0
  %3321 = vmatprep.subr.bf16.mxu0 0
  %3322 = vmatpush1.bf16.msra.mxu0 0
  %3323 = vmatprep.subr.bf16.mxu0 0
  %3324 = vmatpush1.bf16.msra.mxu0 0
  %3325 = vmatprep.subr.bf16.mxu0 0
  %3326 = vmatpush1.bf16.msra.mxu0 0
  %3327 = vmatprep.subr.bf16.mxu0 0
  %3328 = vmatpush1.bf16.msra.mxu0 0
  %3329 = vmatprep.subr.bf16.mxu0 0
  %3330 = vmatpush1.bf16.msra.mxu0 0
  %3331 = vmatprep.mubr.bf16.mxu0 0
  %3332 = vmatmul.mubr.bf16.gmra.mrb[0].mxu0 %v3257
  %v3333 = vpop.f32.mrb[0].mxu0
  %v3334 = vadd.f32 0.0, %v3333
  %v3335 = vpop.f32.mrb[0].mxu0
  %v3336 = vadd.f32 0.0, %v3335
  %v3337 = vpop.f32.mrb[0].mxu0
  %v3338 = vpop.f32.mrb[0].mxu0
  %3339 = vdwg.mxu0
  %v3340 = vadd.f32 %v3253, %v3293
  %v3341 = vadd.f32 %v3254, %v3295
  %v3342 = vadd.f32 %v3255, %v3334
  %v3343 = vadd.f32 %v3256, %v3336
  %v3344 = vxor.u32 %v3340, 2147483648
  %v3345 = vmul.f32 %v3344, 1.442695
  %v3346 = vpow.pop %v3345
  %v3347 = vadd.f32 %v3346, 1.0
  %v3348 = vrcp.pop %v3347
  %v3349 = vmul.f32 1.0, %v3348
  %v3350 = vxor.u32 %v3341, 2147483648
  %v3351 = vmul.f32 %v3350, 1.442695
  %v3352 = vpow.pop %v3351
  %v3353 = vadd.f32 %v3352, 1.0
  %v3354 = vrcp.pop %v3353
  %v3355 = vmul.f32 1.0, %v3354
  %v3356 = vtanh.pop %v3342
  %v3357 = vxor.u32 %v3343, 2147483648
  %v3358 = vmul.f32 %v3357, 1.442695
  %v3359 = vpow.pop %v3358
  %v3360 = vadd.f32 %v3359, 1.0
  %v3361 = vrcp.pop %v3360
  %v3362 = vmul.f32 1.0, %v3361
  %v3363 = vmul.f32 %v3355, %v3247
  %v3364 = vmul.f32 %v3349, %v3356
  %v3365 = vadd.f32 %v3363, %v3364
  %v3366 = vtanh.pop %v3365
  %v3367 = vmul.f32 %v3362, %v3366
  %3368 = vst [vmem:[%s1856 + $0x8] sm:$0xff] %v3367
  %s3369 = smul.addr %s1614, 8
  %s3370 = scalar_lea.vmem [#allocation3], %s3369
  %v3371 = vld [vmem:[%s3370] sm:$0xff]
  %v3372 = vld [vmem:[%s3370 + $0x8] sm:$0xff]
  %v3373 = vld [vmem:[%s3370 + $0x10] sm:$0xff]
  %v3374 = vld [vmem:[%s3370 + $0x18] sm:$0xff]
  %v3375 = vpack.c.bf16 %v3367, %v3367
  %3376 = vmatprep.subr.bf16.mxu0 %v2605
  %3377 = vmatpush1.bf16.msra.mxu0 %v2604
  %3378 = vmatprep.subr.bf16.mxu0 %v2609
  %3379 = vmatpush1.bf16.msra.mxu0 %v2608
  %3380 = vmatprep.subr.bf16.mxu0 %v2613
  %3381 = vmatpush1.bf16.msra.mxu0 %v2612
  %3382 = vmatprep.subr.bf16.mxu0 %v2617
  %3383 = vmatpush1.bf16.msra.mxu0 %v2616
  %3384 = vmatprep.subr.bf16.mxu0 %v2621
  %3385 = vmatpush1.bf16.msra.mxu0 %v2620
  %3386 = vmatprep.subr.bf16.mxu0 %v2625
  %3387 = vmatpush1.bf16.msra.mxu0 %v2624
  %3388 = vmatprep.subr.bf16.mxu0 %v2629
  %3389 = vmatpush1.bf16.msra.mxu0 %v2628
  %3390 = vmatprep.subr.bf16.mxu0 %v2633
  %3391 = vmatpush1.bf16.msra.mxu0 %v2632
  %3392 = vmatprep.subr.bf16.mxu0 0
  %3393 = vmatpush1.bf16.msra.mxu0 0
  %3394 = vmatprep.subr.bf16.mxu0 0
  %3395 = vmatpush1.bf16.msra.mxu0 0
  %3396 = vmatprep.subr.bf16.mxu0 0
  %3397 = vmatpush1.bf16.msra.mxu0 0
  %3398 = vmatprep.subr.bf16.mxu0 0
  %3399 = vmatpush1.bf16.msra.mxu0 0
  %3400 = vmatprep.subr.bf16.mxu0 0
  %3401 = vmatpush1.bf16.msra.mxu0 0
  %3402 = vmatprep.subr.bf16.mxu0 0
  %3403 = vmatpush1.bf16.msra.mxu0 0
  %3404 = vmatprep.subr.bf16.mxu0 0
  %3405 = vmatpush1.bf16.msra.mxu0 0
  %3406 = vmatprep.subr.bf16.mxu0 0
  %3407 = vmatpush1.bf16.msra.mxu0 0
  %3408 = vmatprep.mubr.bf16.mxu0 0
  %3409 = vmatmul.mubr.bf16.gmra.mrb[0].mxu0 %v3375
  %v3410 = vpop.f32.mrb[0].mxu0
  %v3411 = vadd.f32 0.0, %v3410
  %v3412 = vpop.f32.mrb[0].mxu0
  %v3413 = vadd.f32 0.0, %v3412
  %v3414 = vpop.f32.mrb[0].mxu0
  %v3415 = vpop.f32.mrb[0].mxu0
  %3416 = vdwg.mxu0
  %3417 = vmatprep.subr.bf16.mxu0 %v2607
  %3418 = vmatpush1.bf16.msra.mxu0 %v2606
  %3419 = vmatprep.subr.bf16.mxu0 %v2611
  %3420 = vmatpush1.bf16.msra.mxu0 %v2610
  %3421 = vmatprep.subr.bf16.mxu0 %v2615
  %3422 = vmatpush1.bf16.msra.mxu0 %v2614
  %3423 = vmatprep.subr.bf16.mxu0 %v2619
  %3424 = vmatpush1.bf16.msra.mxu0 %v2618
  %3425 = vmatprep.subr.bf16.mxu0 %v2623
  %3426 = vmatpush1.bf16.msra.mxu0 %v2622
  %3427 = vmatprep.subr.bf16.mxu0 %v2627
  %3428 = vmatpush1.bf16.msra.mxu0 %v2626
  %3429 = vmatprep.subr.bf16.mxu0 %v2631
  %3430 = vmatpush1.bf16.msra.mxu0 %v2630
  %3431 = vmatprep.subr.bf16.mxu0 %v2635
  %3432 = vmatpush1.bf16.msra.mxu0 %v2634
  %3433 = vmatprep.subr.bf16.mxu0 0
  %3434 = vmatpush1.bf16.msra.mxu0 0
  %3435 = vmatprep.subr.bf16.mxu0 0
  %3436 = vmatpush1.bf16.msra.mxu0 0
  %3437 = vmatprep.subr.bf16.mxu0 0
  %3438 = vmatpush1.bf16.msra.mxu0 0
  %3439 = vmatprep.subr.bf16.mxu0 0
  %3440 = vmatpush1.bf16.msra.mxu0 0
  %3441 = vmatprep.subr.bf16.mxu0 0
  %3442 = vmatpush1.bf16.msra.mxu0 0
  %3443 = vmatprep.subr.bf16.mxu0 0
  %3444 = vmatpush1.bf16.msra.mxu0 0
  %3445 = vmatprep.subr.bf16.mxu0 0
  %3446 = vmatpush1.bf16.msra.mxu0 0
  %3447 = vmatprep.subr.bf16.mxu0 0
  %3448 = vmatpush1.bf16.msra.mxu0 0
  %3449 = vmatprep.mubr.bf16.mxu0 0
  %3450 = vmatmul.mubr.bf16.gmra.mrb[0].mxu0 %v3375
  %v3451 = vpop.f32.mrb[0].mxu0
  %v3452 = vadd.f32 0.0, %v3451
  %v3453 = vpop.f32.mrb[0].mxu0
  %v3454 = vadd.f32 0.0, %v3453
  %v3455 = vpop.f32.mrb[0].mxu0
  %v3456 = vpop.f32.mrb[0].mxu0
  %3457 = vdwg.mxu0
  %v3458 = vadd.f32 %v3371, %v3411
  %v3459 = vadd.f32 %v3372, %v3413
  %v3460 = vadd.f32 %v3373, %v3452
  %v3461 = vadd.f32 %v3374, %v3454
  %v3462 = vxor.u32 %v3458, 2147483648
  %v3463 = vmul.f32 %v3462, 1.442695
  %v3464 = vpow.pop %v3463
  %v3465 = vadd.f32 %v3464, 1.0
  %v3466 = vrcp.pop %v3465
  %v3467 = vmul.f32 1.0, %v3466
  %v3468 = vxor.u32 %v3459, 2147483648
  %v3469 = vmul.f32 %v3468, 1.442695
  %v3470 = vpow.pop %v3469
  %v3471 = vadd.f32 %v3470, 1.0
  %v3472 = vrcp.pop %v3471
  %v3473 = vmul.f32 1.0, %v3472
  %v3474 = vtanh.pop %v3460
  %v3475 = vxor.u32 %v3461, 2147483648
  %v3476 = vmul.f32 %v3475, 1.442695
  %v3477 = vpow.pop %v3476
  %v3478 = vadd.f32 %v3477, 1.0
  %v3479 = vrcp.pop %v3478
  %v3480 = vmul.f32 1.0, %v3479
  %v3481 = vmul.f32 %v3473, %v3365
  %v3482 = vmul.f32 %v3467, %v3474
  %v3483 = vadd.f32 %v3481, %v3482
  %v3484 = vtanh.pop %v3483
  %v3485 = vmul.f32 %v3480, %v3484
  %3486 = vst [vmem:[%s1734 + $0x8] sm:$0xff] %v3485
  %s3487 = smul.addr %s1492, 8
  %s3488 = scalar_lea.vmem [#allocation3], %s3487
  %v3489 = vld [vmem:[%s3488] sm:$0xff]
  %v3490 = vld [vmem:[%s3488 + $0x8] sm:$0xff]
  %v3491 = vld [vmem:[%s3488 + $0x10] sm:$0xff]
  %v3492 = vld [vmem:[%s3488 + $0x18] sm:$0xff]
  %v3493 = vpack.c.bf16 %v3485, %v3485
  %3494 = vmatprep.subr.bf16.mxu0 %v2605
  %3495 = vmatpush1.bf16.msra.mxu0 %v2604
  %3496 = vmatprep.subr.bf16.mxu0 %v2609
  %3497 = vmatpush1.bf16.msra.mxu0 %v2608
  %3498 = vmatprep.subr.bf16.mxu0 %v2613
  %3499 = vmatpush1.bf16.msra.mxu0 %v2612
  %3500 = vmatprep.subr.bf16.mxu0 %v2617
  %3501 = vmatpush1.bf16.msra.mxu0 %v2616
  %3502 = vmatprep.subr.bf16.mxu0 %v2621
  %3503 = vmatpush1.bf16.msra.mxu0 %v2620
  %3504 = vmatprep.subr.bf16.mxu0 %v2625
  %3505 = vmatpush1.bf16.msra.mxu0 %v2624
  %3506 = vmatprep.subr.bf16.mxu0 %v2629
  %3507 = vmatpush1.bf16.msra.mxu0 %v2628
  %3508 = vmatprep.subr.bf16.mxu0 %v2633
  %3509 = vmatpush1.bf16.msra.mxu0 %v2632
  %3510 = vmatprep.subr.bf16.mxu0 0
  %3511 = vmatpush1.bf16.msra.mxu0 0
  %3512 = vmatprep.subr.bf16.mxu0 0
  %3513 = vmatpush1.bf16.msra.mxu0 0
  %3514 = vmatprep.subr.bf16.mxu0 0
  %3515 = vmatpush1.bf16.msra.mxu0 0
  %3516 = vmatprep.subr.bf16.mxu0 0
  %3517 = vmatpush1.bf16.msra.mxu0 0
  %3518 = vmatprep.subr.bf16.mxu0 0
  %3519 = vmatpush1.bf16.msra.mxu0 0
  %3520 = vmatprep.subr.bf16.mxu0 0
  %3521 = vmatpush1.bf16.msra.mxu0 0
  %3522 = vmatprep.subr.bf16.mxu0 0
  %3523 = vmatpush1.bf16.msra.mxu0 0
  %3524 = vmatprep.subr.bf16.mxu0 0
  %3525 = vmatpush1.bf16.msra.mxu0 0
  %3526 = vmatprep.mubr.bf16.mxu0 0
  %3527 = vmatmul.mubr.bf16.gmra.mrb[0].mxu0 %v3493
  %v3528 = vpop.f32.mrb[0].mxu0
  %v3529 = vadd.f32 0.0, %v3528
  %v3530 = vpop.f32.mrb[0].mxu0
  %v3531 = vadd.f32 0.0, %v3530
  %v3532 = vpop.f32.mrb[0].mxu0
  %v3533 = vpop.f32.mrb[0].mxu0
  %3534 = vdwg.mxu0
  %3535 = vmatprep.subr.bf16.mxu0 %v2607
  %3536 = vmatpush1.bf16.msra.mxu0 %v2606
  %3537 = vmatprep.subr.bf16.mxu0 %v2611
  %3538 = vmatpush1.bf16.msra.mxu0 %v2610
  %3539 = vmatprep.subr.bf16.mxu0 %v2615
  %3540 = vmatpush1.bf16.msra.mxu0 %v2614
  %3541 = vmatprep.subr.bf16.mxu0 %v2619
  %3542 = vmatpush1.bf16.msra.mxu0 %v2618
  %3543 = vmatprep.subr.bf16.mxu0 %v2623
  %3544 = vmatpush1.bf16.msra.mxu0 %v2622
  %3545 = vmatprep.subr.bf16.mxu0 %v2627
  %3546 = vmatpush1.bf16.msra.mxu0 %v2626
  %3547 = vmatprep.subr.bf16.mxu0 %v2631
  %3548 = vmatpush1.bf16.msra.mxu0 %v2630
  %3549 = vmatprep.subr.bf16.mxu0 %v2635
  %3550 = vmatpush1.bf16.msra.mxu0 %v2634
  %3551 = vmatprep.subr.bf16.mxu0 0
  %3552 = vmatpush1.bf16.msra.mxu0 0
  %3553 = vmatprep.subr.bf16.mxu0 0
  %3554 = vmatpush1.bf16.msra.mxu0 0
  %3555 = vmatprep.subr.bf16.mxu0 0
  %3556 = vmatpush1.bf16.msra.mxu0 0
  %3557 = vmatprep.subr.bf16.mxu0 0
  %3558 = vmatpush1.bf16.msra.mxu0 0
  %3559 = vmatprep.subr.bf16.mxu0 0
  %3560 = vmatpush1.bf16.msra.mxu0 0
  %3561 = vmatprep.subr.bf16.mxu0 0
  %3562 = vmatpush1.bf16.msra.mxu0 0
  %3563 = vmatprep.subr.bf16.mxu0 0
  %3564 = vmatpush1.bf16.msra.mxu0 0
  %3565 = vmatprep.subr.bf16.mxu0 0
  %3566 = vmatpush1.bf16.msra.mxu0 0
  %3567 = vmatprep.mubr.bf16.mxu0 0
  %3568 = vmatmul.mubr.bf16.gmra.mrb[0].mxu0 %v3493
  %v3569 = vpop.f32.mrb[0].mxu0
  %v3570 = vadd.f32 0.0, %v3569
  %v3571 = vpop.f32.mrb[0].mxu0
  %v3572 = vadd.f32 0.0, %v3571
  %v3573 = vpop.f32.mrb[0].mxu0
  %v3574 = vpop.f32.mrb[0].mxu0
  %3575 = vdwg.mxu0
  %v3576 = vadd.f32 %v3489, %v3529
  %v3577 = vadd.f32 %v3490, %v3531
  %v3578 = vadd.f32 %v3491, %v3570
  %v3579 = vadd.f32 %v3492, %v3572
  %v3580 = vxor.u32 %v3576, 2147483648
  %v3581 = vmul.f32 %v3580, 1.442695
  %v3582 = vpow.pop %v3581
  %v3583 = vadd.f32 %v3582, 1.0
  %v3584 = vrcp.pop %v3583
  %v3585 = vmul.f32 1.0, %v3584
  %v3586 = vxor.u32 %v3577, 2147483648
  %v3587 = vmul.f32 %v3586, 1.442695
  %v3588 = vpow.pop %v3587
  %v3589 = vadd.f32 %v3588, 1.0
  %v3590 = vrcp.pop %v3589
  %v3591 = vmul.f32 1.0, %v3590
  %v3592 = vtanh.pop %v3578
  %v3593 = vxor.u32 %v3579, 2147483648
  %v3594 = vmul.f32 %v3593, 1.442695
  %v3595 = vpow.pop %v3594
  %v3596 = vadd.f32 %v3595, 1.0
  %v3597 = vrcp.pop %v3596
  %v3598 = vmul.f32 1.0, %v3597
  %v3599 = vmul.f32 %v3591, %v3483
  %v3600 = vmul.f32 %v3585, %v3592
  %v3601 = vadd.f32 %v3599, %v3600
  %v3602 = vtanh.pop %v3601
  %v3603 = vmul.f32 %v3598, %v3602
  %3604 = vst [vmem:[%s1612 + $0x8] sm:$0xff] %v3603
  %s3605 = smul.addr %s1370, 8
  %s3606 = scalar_lea.vmem [#allocation3], %s3605
  %v3607 = vld [vmem:[%s3606] sm:$0xff]
  %v3608 = vld [vmem:[%s3606 + $0x8] sm:$0xff]
  %v3609 = vld [vmem:[%s3606 + $0x10] sm:$0xff]
  %v3610 = vld [vmem:[%s3606 + $0x18] sm:$0xff]
  %v3611 = vpack.c.bf16 %v3603, %v3603
  %3612 = vmatprep.subr.bf16.mxu0 %v2605
  %3613 = vmatpush1.bf16.msra.mxu0 %v2604
  %3614 = vmatprep.subr.bf16.mxu0 %v2609
  %3615 = vmatpush1.bf16.msra.mxu0 %v2608
  %3616 = vmatprep.subr.bf16.mxu0 %v2613
  %3617 = vmatpush1.bf16.msra.mxu0 %v2612
  %3618 = vmatprep.subr.bf16.mxu0 %v2617
  %3619 = vmatpush1.bf16.msra.mxu0 %v2616
  %3620 = vmatprep.subr.bf16.mxu0 %v2621
  %3621 = vmatpush1.bf16.msra.mxu0 %v2620
  %3622 = vmatprep.subr.bf16.mxu0 %v2625
  %3623 = vmatpush1.bf16.msra.mxu0 %v2624
  %3624 = vmatprep.subr.bf16.mxu0 %v2629
  %3625 = vmatpush1.bf16.msra.mxu0 %v2628
  %3626 = vmatprep.subr.bf16.mxu0 %v2633
  %3627 = vmatpush1.bf16.msra.mxu0 %v2632
  %3628 = vmatprep.subr.bf16.mxu0 0
  %3629 = vmatpush1.bf16.msra.mxu0 0
  %3630 = vmatprep.subr.bf16.mxu0 0
  %3631 = vmatpush1.bf16.msra.mxu0 0
  %3632 = vmatprep.subr.bf16.mxu0 0
  %3633 = vmatpush1.bf16.msra.mxu0 0
  %3634 = vmatprep.subr.bf16.mxu0 0
  %3635 = vmatpush1.bf16.msra.mxu0 0
  %3636 = vmatprep.subr.bf16.mxu0 0
  %3637 = vmatpush1.bf16.msra.mxu0 0
  %3638 = vmatprep.subr.bf16.mxu0 0
  %3639 = vmatpush1.bf16.msra.mxu0 0
  %3640 = vmatprep.subr.bf16.mxu0 0
  %3641 = vmatpush1.bf16.msra.mxu0 0
  %3642 = vmatprep.subr.bf16.mxu0 0
  %3643 = vmatpush1.bf16.msra.mxu0 0
  %3644 = vmatprep.mubr.bf16.mxu0 0
  %3645 = vmatmul.mubr.bf16.gmra.mrb[0].mxu0 %v3611
  %v3646 = vpop.f32.mrb[0].mxu0
  %v3647 = vadd.f32 0.0, %v3646
  %v3648 = vpop.f32.mrb[0].mxu0
  %v3649 = vadd.f32 0.0, %v3648
  %v3650 = vpop.f32.mrb[0].mxu0
  %v3651 = vpop.f32.mrb[0].mxu0
  %3652 = vdwg.mxu0
  %3653 = vmatprep.subr.bf16.mxu0 %v2607
  %3654 = vmatpush1.bf16.msra.mxu0 %v2606
  %3655 = vmatprep.subr.bf16.mxu0 %v2611
  %3656 = vmatpush1.bf16.msra.mxu0 %v2610
  %3657 = vmatprep.subr.bf16.mxu0 %v2615
  %3658 = vmatpush1.bf16.msra.mxu0 %v2614
  %3659 = vmatprep.subr.bf16.mxu0 %v2619
  %3660 = vmatpush1.bf16.msra.mxu0 %v2618
  %3661 = vmatprep.subr.bf16.mxu0 %v2623
  %3662 = vmatpush1.bf16.msra.mxu0 %v2622
  %3663 = vmatprep.subr.bf16.mxu0 %v2627
  %3664 = vmatpush1.bf16.msra.mxu0 %v2626
  %3665 = vmatprep.subr.bf16.mxu0 %v2631
  %3666 = vmatpush1.bf16.msra.mxu0 %v2630
  %3667 = vmatprep.subr.bf16.mxu0 %v2635
  %3668 = vmatpush1.bf16.msra.mxu0 %v2634
  %3669 = vmatprep.subr.bf16.mxu0 0
  %3670 = vmatpush1.bf16.msra.mxu0 0
  %3671 = vmatprep.subr.bf16.mxu0 0
  %3672 = vmatpush1.bf16.msra.mxu0 0
  %3673 = vmatprep.subr.bf16.mxu0 0
  %3674 = vmatpush1.bf16.msra.mxu0 0
  %3675 = vmatprep.subr.bf16.mxu0 0
  %3676 = vmatpush1.bf16.msra.mxu0 0
  %3677 = vmatprep.subr.bf16.mxu0 0
  %3678 = vmatpush1.bf16.msra.mxu0 0
  %3679 = vmatprep.subr.bf16.mxu0 0
  %3680 = vmatpush1.bf16.msra.mxu0 0
  %3681 = vmatprep.subr.bf16.mxu0 0
  %3682 = vmatpush1.bf16.msra.mxu0 0
  %3683 = vmatprep.subr.bf16.mxu0 0
  %3684 = vmatpush1.bf16.msra.mxu0 0
  %3685 = vmatprep.mubr.bf16.mxu0 0
  %3686 = vmatmul.mubr.bf16.gmra.mrb[0].mxu0 %v3611
  %v3687 = vpop.f32.mrb[0].mxu0
  %v3688 = vadd.f32 0.0, %v3687
  %v3689 = vpop.f32.mrb[0].mxu0
  %v3690 = vadd.f32 0.0, %v3689
  %v3691 = vpop.f32.mrb[0].mxu0
  %v3692 = vpop.f32.mrb[0].mxu0
  %3693 = vdwg.mxu0
  %v3694 = vadd.f32 %v3607, %v3647
  %v3695 = vadd.f32 %v3608, %v3649
  %v3696 = vadd.f32 %v3609, %v3688
  %v3697 = vadd.f32 %v3610, %v3690
  %v3698 = vxor.u32 %v3694, 2147483648
  %v3699 = vmul.f32 %v3698, 1.442695
  %v3700 = vpow.pop %v3699
  %v3701 = vadd.f32 %v3700, 1.0
  %v3702 = vrcp.pop %v3701
  %v3703 = vmul.f32 1.0, %v3702
  %v3704 = vxor.u32 %v3695, 2147483648
  %v3705 = vmul.f32 %v3704, 1.442695
  %v3706 = vpow.pop %v3705
  %v3707 = vadd.f32 %v3706, 1.0
  %v3708 = vrcp.pop %v3707
  %v3709 = vmul.f32 1.0, %v3708
  %v3710 = vtanh.pop %v3696
  %v3711 = vxor.u32 %v3697, 2147483648
  %v3712 = vmul.f32 %v3711, 1.442695
  %v3713 = vpow.pop %v3712
  %v3714 = vadd.f32 %v3713, 1.0
  %v3715 = vrcp.pop %v3714
  %v3716 = vmul.f32 1.0, %v3715
  %v3717 = vmul.f32 %v3709, %v3601
  %v3718 = vmul.f32 %v3703, %v3710
  %v3719 = vadd.f32 %v3717, %v3718
  %v3720 = vtanh.pop %v3719
  %v3721 = vmul.f32 %v3716, %v3720
  %3722 = vst [vmem:[%s1490 + $0x8] sm:$0xff] %v3721
  %s3723 = smul.addr %s1248, 8
  %s3724 = scalar_lea.vmem [#allocation3], %s3723
  %v3725 = vld [vmem:[%s3724] sm:$0xff]
  %v3726 = vld [vmem:[%s3724 + $0x8] sm:$0xff]
  %v3727 = vld [vmem:[%s3724 + $0x10] sm:$0xff]
  %v3728 = vld [vmem:[%s3724 + $0x18] sm:$0xff]
  %v3729 = vpack.c.bf16 %v3721, %v3721
  %3730 = vmatprep.subr.bf16.mxu0 %v2605
  %3731 = vmatpush1.bf16.msra.mxu0 %v2604
  %3732 = vmatprep.subr.bf16.mxu0 %v2609
  %3733 = vmatpush1.bf16.msra.mxu0 %v2608
  %3734 = vmatprep.subr.bf16.mxu0 %v2613
  %3735 = vmatpush1.bf16.msra.mxu0 %v2612
  %3736 = vmatprep.subr.bf16.mxu0 %v2617
  %3737 = vmatpush1.bf16.msra.mxu0 %v2616
  %3738 = vmatprep.subr.bf16.mxu0 %v2621
  %3739 = vmatpush1.bf16.msra.mxu0 %v2620
  %3740 = vmatprep.subr.bf16.mxu0 %v2625
  %3741 = vmatpush1.bf16.msra.mxu0 %v2624
  %3742 = vmatprep.subr.bf16.mxu0 %v2629
  %3743 = vmatpush1.bf16.msra.mxu0 %v2628
  %3744 = vmatprep.subr.bf16.mxu0 %v2633
  %3745 = vmatpush1.bf16.msra.mxu0 %v2632
  %3746 = vmatprep.subr.bf16.mxu0 0
  %3747 = vmatpush1.bf16.msra.mxu0 0
  %3748 = vmatprep.subr.bf16.mxu0 0
  %3749 = vmatpush1.bf16.msra.mxu0 0
  %3750 = vmatprep.subr.bf16.mxu0 0
  %3751 = vmatpush1.bf16.msra.mxu0 0
  %3752 = vmatprep.subr.bf16.mxu0 0
  %3753 = vmatpush1.bf16.msra.mxu0 0
  %3754 = vmatprep.subr.bf16.mxu0 0
  %3755 = vmatpush1.bf16.msra.mxu0 0
  %3756 = vmatprep.subr.bf16.mxu0 0
  %3757 = vmatpush1.bf16.msra.mxu0 0
  %3758 = vmatprep.subr.bf16.mxu0 0
  %3759 = vmatpush1.bf16.msra.mxu0 0
  %3760 = vmatprep.subr.bf16.mxu0 0
  %3761 = vmatpush1.bf16.msra.mxu0 0
  %3762 = vmatprep.mubr.bf16.mxu0 0
  %3763 = vmatmul.mubr.bf16.gmra.mrb[0].mxu0 %v3729
  %v3764 = vpop.f32.mrb[0].mxu0
  %v3765 = vadd.f32 0.0, %v3764
  %v3766 = vpop.f32.mrb[0].mxu0
  %v3767 = vadd.f32 0.0, %v3766
  %v3768 = vpop.f32.mrb[0].mxu0
  %v3769 = vpop.f32.mrb[0].mxu0
  %3770 = vdwg.mxu0
  %3771 = vmatprep.subr.bf16.mxu0 %v2607
  %3772 = vmatpush1.bf16.msra.mxu0 %v2606
  %3773 = vmatprep.subr.bf16.mxu0 %v2611
  %3774 = vmatpush1.bf16.msra.mxu0 %v2610
  %3775 = vmatprep.subr.bf16.mxu0 %v2615
  %3776 = vmatpush1.bf16.msra.mxu0 %v2614
  %3777 = vmatprep.subr.bf16.mxu0 %v2619
  %3778 = vmatpush1.bf16.msra.mxu0 %v2618
  %3779 = vmatprep.subr.bf16.mxu0 %v2623
  %3780 = vmatpush1.bf16.msra.mxu0 %v2622
  %3781 = vmatprep.subr.bf16.mxu0 %v2627
  %3782 = vmatpush1.bf16.msra.mxu0 %v2626
  %3783 = vmatprep.subr.bf16.mxu0 %v2631
  %3784 = vmatpush1.bf16.msra.mxu0 %v2630
  %3785 = vmatprep.subr.bf16.mxu0 %v2635
  %3786 = vmatpush1.bf16.msra.mxu0 %v2634
  %3787 = vmatprep.subr.bf16.mxu0 0
  %3788 = vmatpush1.bf16.msra.mxu0 0
  %3789 = vmatprep.subr.bf16.mxu0 0
  %3790 = vmatpush1.bf16.msra.mxu0 0
  %3791 = vmatprep.subr.bf16.mxu0 0
  %3792 = vmatpush1.bf16.msra.mxu0 0
  %3793 = vmatprep.subr.bf16.mxu0 0
  %3794 = vmatpush1.bf16.msra.mxu0 0
  %3795 = vmatprep.subr.bf16.mxu0 0
  %3796 = vmatpush1.bf16.msra.mxu0 0
  %3797 = vmatprep.subr.bf16.mxu0 0
  %3798 = vmatpush1.bf16.msra.mxu0 0
  %3799 = vmatprep.subr.bf16.mxu0 0
  %3800 = vmatpush1.bf16.msra.mxu0 0
  %3801 = vmatprep.subr.bf16.mxu0 0
  %3802 = vmatpush1.bf16.msra.mxu0 0
  %3803 = vmatprep.mubr.bf16.mxu0 0
  %3804 = vmatmul.mubr.bf16.gmra.mrb[0].mxu0 %v3729
  %v3805 = vpop.f32.mrb[0].mxu0
  %v3806 = vadd.f32 0.0, %v3805
  %v3807 = vpop.f32.mrb[0].mxu0
  %v3808 = vadd.f32 0.0, %v3807
  %v3809 = vpop.f32.mrb[0].mxu0
  %v3810 = vpop.f32.mrb[0].mxu0
  %3811 = vdwg.mxu0
  %v3812 = vadd.f32 %v3725, %v3765
  %v3813 = vadd.f32 %v3726, %v3767
  %v3814 = vadd.f32 %v3727, %v3806
  %v3815 = vadd.f32 %v3728, %v3808
  %v3816 = vxor.u32 %v3812, 2147483648
  %v3817 = vmul.f32 %v3816, 1.442695
  %v3818 = vpow.pop %v3817
  %v3819 = vadd.f32 %v3818, 1.0
  %v3820 = vrcp.pop %v3819
  %v3821 = vmul.f32 1.0, %v3820
  %v3822 = vxor.u32 %v3813, 2147483648
  %v3823 = vmul.f32 %v3822, 1.442695
  %v3824 = vpow.pop %v3823
  %v3825 = vadd.f32 %v3824, 1.0
  %v3826 = vrcp.pop %v3825
  %v3827 = vmul.f32 1.0, %v3826
  %v3828 = vtanh.pop %v3814
  %v3829 = vxor.u32 %v3815, 2147483648
  %v3830 = vmul.f32 %v3829, 1.442695
  %v3831 = vpow.pop %v3830
  %v3832 = vadd.f32 %v3831, 1.0
  %v3833 = vrcp.pop %v3832
  %v3834 = vmul.f32 1.0, %v3833
  %v3835 = vmul.f32 %v3827, %v3719
  %v3836 = vmul.f32 %v3821, %v3828
  %v3837 = vadd.f32 %v3835, %v3836
  %v3838 = vtanh.pop %v3837
  %v3839 = vmul.f32 %v3834, %v3838
  %3840 = vst [vmem:[%s1368 + $0x8] sm:$0xff] %v3839
  %s3841 = smul.addr %s1126, 8
  %s3842 = scalar_lea.vmem [#allocation3], %s3841
  %v3843 = vld [vmem:[%s3842] sm:$0xff]
  %v3844 = vld [vmem:[%s3842 + $0x8] sm:$0xff]
  %v3845 = vld [vmem:[%s3842 + $0x10] sm:$0xff]
  %v3846 = vld [vmem:[%s3842 + $0x18] sm:$0xff]
  %v3847 = vpack.c.bf16 %v3839, %v3839
  %3848 = vmatprep.subr.bf16.mxu0 %v2605
  %3849 = vmatpush1.bf16.msra.mxu0 %v2604
  %3850 = vmatprep.subr.bf16.mxu0 %v2609
  %3851 = vmatpush1.bf16.msra.mxu0 %v2608
  %3852 = vmatprep.subr.bf16.mxu0 %v2613
  %3853 = vmatpush1.bf16.msra.mxu0 %v2612
  %3854 = vmatprep.subr.bf16.mxu0 %v2617
  %3855 = vmatpush1.bf16.msra.mxu0 %v2616
  %3856 = vmatprep.subr.bf16.mxu0 %v2621
  %3857 = vmatpush1.bf16.msra.mxu0 %v2620
  %3858 = vmatprep.subr.bf16.mxu0 %v2625
  %3859 = vmatpush1.bf16.msra.mxu0 %v2624
  %3860 = vmatprep.subr.bf16.mxu0 %v2629
  %3861 = vmatpush1.bf16.msra.mxu0 %v2628
  %3862 = vmatprep.subr.bf16.mxu0 %v2633
  %3863 = vmatpush1.bf16.msra.mxu0 %v2632
  %3864 = vmatprep.subr.bf16.mxu0 0
  %3865 = vmatpush1.bf16.msra.mxu0 0
  %3866 = vmatprep.subr.bf16.mxu0 0
  %3867 = vmatpush1.bf16.msra.mxu0 0
  %3868 = vmatprep.subr.bf16.mxu0 0
  %3869 = vmatpush1.bf16.msra.mxu0 0
  %3870 = vmatprep.subr.bf16.mxu0 0
  %3871 = vmatpush1.bf16.msra.mxu0 0
  %3872 = vmatprep.subr.bf16.mxu0 0
  %3873 = vmatpush1.bf16.msra.mxu0 0
  %3874 = vmatprep.subr.bf16.mxu0 0
  %3875 = vmatpush1.bf16.msra.mxu0 0
  %3876 = vmatprep.subr.bf16.mxu0 0
  %3877 = vmatpush1.bf16.msra.mxu0 0
  %3878 = vmatprep.subr.bf16.mxu0 0
  %3879 = vmatpush1.bf16.msra.mxu0 0
  %3880 = vmatprep.mubr.bf16.mxu0 0
  %3881 = vmatmul.mubr.bf16.gmra.mrb[0].mxu0 %v3847
  %v3882 = vpop.f32.mrb[0].mxu0
  %v3883 = vadd.f32 0.0, %v3882
  %v3884 = vpop.f32.mrb[0].mxu0
  %v3885 = vadd.f32 0.0, %v3884
  %v3886 = vpop.f32.mrb[0].mxu0
  %v3887 = vpop.f32.mrb[0].mxu0
  %3888 = vdwg.mxu0
  %3889 = vmatprep.subr.bf16.mxu0 %v2607
  %3890 = vmatpush1.bf16.msra.mxu0 %v2606
  %3891 = vmatprep.subr.bf16.mxu0 %v2611
  %3892 = vmatpush1.bf16.msra.mxu0 %v2610
  %3893 = vmatprep.subr.bf16.mxu0 %v2615
  %3894 = vmatpush1.bf16.msra.mxu0 %v2614
  %3895 = vmatprep.subr.bf16.mxu0 %v2619
  %3896 = vmatpush1.bf16.msra.mxu0 %v2618
  %3897 = vmatprep.subr.bf16.mxu0 %v2623
  %3898 = vmatpush1.bf16.msra.mxu0 %v2622
  %3899 = vmatprep.subr.bf16.mxu0 %v2627
  %3900 = vmatpush1.bf16.msra.mxu0 %v2626
  %3901 = vmatprep.subr.bf16.mxu0 %v2631
  %3902 = vmatpush1.bf16.msra.mxu0 %v2630
  %3903 = vmatprep.subr.bf16.mxu0 %v2635
  %3904 = vmatpush1.bf16.msra.mxu0 %v2634
  %3905 = vmatprep.subr.bf16.mxu0 0
  %3906 = vmatpush1.bf16.msra.mxu0 0
  %3907 = vmatprep.subr.bf16.mxu0 0
  %3908 = vmatpush1.bf16.msra.mxu0 0
  %3909 = vmatprep.subr.bf16.mxu0 0
  %3910 = vmatpush1.bf16.msra.mxu0 0
  %3911 = vmatprep.subr.bf16.mxu0 0
  %3912 = vmatpush1.bf16.msra.mxu0 0
  %3913 = vmatprep.subr.bf16.mxu0 0
  %3914 = vmatpush1.bf16.msra.mxu0 0
  %3915 = vmatprep.subr.bf16.mxu0 0
  %3916 = vmatpush1.bf16.msra.mxu0 0
  %3917 = vmatprep.subr.bf16.mxu0 0
  %3918 = vmatpush1.bf16.msra.mxu0 0
  %3919 = vmatprep.subr.bf16.mxu0 0
  %3920 = vmatpush1.bf16.msra.mxu0 0
  %3921 = vmatprep.mubr.bf16.mxu0 0
  %3922 = vmatmul.mubr.bf16.gmra.mrb[0].mxu0 %v3847
  %v3923 = vpop.f32.mrb[0].mxu0
  %v3924 = vadd.f32 0.0, %v3923
  %v3925 = vpop.f32.mrb[0].mxu0
  %v3926 = vadd.f32 0.0, %v3925
  %v3927 = vpop.f32.mrb[0].mxu0
  %v3928 = vpop.f32.mrb[0].mxu0
  %3929 = vdwg.mxu0
  %v3930 = vadd.f32 %v3843, %v3883
  %v3931 = vadd.f32 %v3844, %v3885
  %v3932 = vadd.f32 %v3845, %v3924
  %v3933 = vadd.f32 %v3846, %v3926
  %v3934 = vxor.u32 %v3930, 2147483648
  %v3935 = vmul.f32 %v3934, 1.442695
  %v3936 = vpow.pop %v3935
  %v3937 = vadd.f32 %v3936, 1.0
  %v3938 = vrcp.pop %v3937
  %v3939 = vmul.f32 1.0, %v3938
  %v3940 = vxor.u32 %v3931, 2147483648
  %v3941 = vmul.f32 %v3940, 1.442695
  %v3942 = vpow.pop %v3941
  %v3943 = vadd.f32 %v3942, 1.0
  %v3944 = vrcp.pop %v3943
  %v3945 = vmul.f32 1.0, %v3944
  %v3946 = vtanh.pop %v3932
  %v3947 = vxor.u32 %v3933, 2147483648
  %v3948 = vmul.f32 %v3947, 1.442695
  %v3949 = vpow.pop %v3948
  %v3950 = vadd.f32 %v3949, 1.0
  %v3951 = vrcp.pop %v3950
  %v3952 = vmul.f32 1.0, %v3951
  %v3953 = vmul.f32 %v3945, %v3837
  %v3954 = vmul.f32 %v3939, %v3946
  %v3955 = vadd.f32 %v3953, %v3954
  %v3956 = vtanh.pop %v3955
  %v3957 = vmul.f32 %v3952, %v3956
  %3958 = vst [vmem:[%s1246 + $0x8] sm:$0xff] %v3957
  %s3959 = smul.addr %s845, 8
  %s3960 = scalar_lea.vmem [#allocation3], %s3959
  %v3961 = vld [vmem:[%s3960] sm:$0xff]
  %v3962 = vld [vmem:[%s3960 + $0x8] sm:$0xff]
  %v3963 = vld [vmem:[%s3960 + $0x10] sm:$0xff]
  %v3964 = vld [vmem:[%s3960 + $0x18] sm:$0xff]
  %v3965 = vpack.c.bf16 %v3957, %v3957
  %3966 = vmatprep.subr.bf16.mxu0 %v2605
  %3967 = vmatpush1.bf16.msra.mxu0 %v2604
  %3968 = vmatprep.subr.bf16.mxu0 %v2609
  %3969 = vmatpush1.bf16.msra.mxu0 %v2608
  %3970 = vmatprep.subr.bf16.mxu0 %v2613
  %3971 = vmatpush1.bf16.msra.mxu0 %v2612
  %3972 = vmatprep.subr.bf16.mxu0 %v2617
  %3973 = vmatpush1.bf16.msra.mxu0 %v2616
  %3974 = vmatprep.subr.bf16.mxu0 %v2621
  %3975 = vmatpush1.bf16.msra.mxu0 %v2620
  %3976 = vmatprep.subr.bf16.mxu0 %v2625
  %3977 = vmatpush1.bf16.msra.mxu0 %v2624
  %3978 = vmatprep.subr.bf16.mxu0 %v2629
  %3979 = vmatpush1.bf16.msra.mxu0 %v2628
  %3980 = vmatprep.subr.bf16.mxu0 %v2633
  %3981 = vmatpush1.bf16.msra.mxu0 %v2632
  %3982 = vmatprep.subr.bf16.mxu0 0
  %3983 = vmatpush1.bf16.msra.mxu0 0
  %3984 = vmatprep.subr.bf16.mxu0 0
  %3985 = vmatpush1.bf16.msra.mxu0 0
  %3986 = vmatprep.subr.bf16.mxu0 0
  %3987 = vmatpush1.bf16.msra.mxu0 0
  %3988 = vmatprep.subr.bf16.mxu0 0
  %3989 = vmatpush1.bf16.msra.mxu0 0
  %3990 = vmatprep.subr.bf16.mxu0 0
  %3991 = vmatpush1.bf16.msra.mxu0 0
  %3992 = vmatprep.subr.bf16.mxu0 0
  %3993 = vmatpush1.bf16.msra.mxu0 0
  %3994 = vmatprep.subr.bf16.mxu0 0
  %3995 = vmatpush1.bf16.msra.mxu0 0
  %3996 = vmatprep.subr.bf16.mxu0 0
  %3997 = vmatpush1.bf16.msra.mxu0 0
  %3998 = vmatprep.mubr.bf16.mxu0 0
  %3999 = vmatmul.mubr.bf16.gmra.mrb[0].mxu0 %v3965
  %v4000 = vpop.f32.mrb[0].mxu0
  %v4001 = vadd.f32 0.0, %v4000
  %v4002 = vpop.f32.mrb[0].mxu0
  %v4003 = vadd.f32 0.0, %v4002
  %v4004 = vpop.f32.mrb[0].mxu0
  %v4005 = vpop.f32.mrb[0].mxu0
  %4006 = vdwg.mxu0
  %4007 = vmatprep.subr.bf16.mxu0 %v2607
  %4008 = vmatpush1.bf16.msra.mxu0 %v2606
  %4009 = vmatprep.subr.bf16.mxu0 %v2611
  %4010 = vmatpush1.bf16.msra.mxu0 %v2610
  %4011 = vmatprep.subr.bf16.mxu0 %v2615
  %4012 = vmatpush1.bf16.msra.mxu0 %v2614
  %4013 = vmatprep.subr.bf16.mxu0 %v2619
  %4014 = vmatpush1.bf16.msra.mxu0 %v2618
  %4015 = vmatprep.subr.bf16.mxu0 %v2623
  %4016 = vmatpush1.bf16.msra.mxu0 %v2622
  %4017 = vmatprep.subr.bf16.mxu0 %v2627
  %4018 = vmatpush1.bf16.msra.mxu0 %v2626
  %4019 = vmatprep.subr.bf16.mxu0 %v2631
  %4020 = vmatpush1.bf16.msra.mxu0 %v2630
  %4021 = vmatprep.subr.bf16.mxu0 %v2635
  %4022 = vmatpush1.bf16.msra.mxu0 %v2634
  %4023 = vmatprep.subr.bf16.mxu0 0
  %4024 = vmatpush1.bf16.msra.mxu0 0
  %4025 = vmatprep.subr.bf16.mxu0 0
  %4026 = vmatpush1.bf16.msra.mxu0 0
  %4027 = vmatprep.subr.bf16.mxu0 0
  %4028 = vmatpush1.bf16.msra.mxu0 0
  %4029 = vmatprep.subr.bf16.mxu0 0
  %4030 = vmatpush1.bf16.msra.mxu0 0
  %4031 = vmatprep.subr.bf16.mxu0 0
  %4032 = vmatpush1.bf16.msra.mxu0 0
  %4033 = vmatprep.subr.bf16.mxu0 0
  %4034 = vmatpush1.bf16.msra.mxu0 0
  %4035 = vmatprep.subr.bf16.mxu0 0
  %4036 = vmatpush1.bf16.msra.mxu0 0
  %4037 = vmatprep.subr.bf16.mxu0 0
  %4038 = vmatpush1.bf16.msra.mxu0 0
  %4039 = vmatprep.mubr.bf16.mxu0 0
  %4040 = vmatmul.mubr.bf16.gmra.mrb[0].mxu0 %v3965
  %v4041 = vpop.f32.mrb[0].mxu0
  %v4042 = vadd.f32 0.0, %v4041
  %v4043 = vpop.f32.mrb[0].mxu0
  %v4044 = vadd.f32 0.0, %v4043
  %v4045 = vpop.f32.mrb[0].mxu0
  %v4046 = vpop.f32.mrb[0].mxu0
  %4047 = vdwg.mxu0
  %v4048 = vadd.f32 %v3961, %v4001
  %v4049 = vadd.f32 %v3962, %v4003
  %v4050 = vadd.f32 %v3963, %v4042
  %v4051 = vadd.f32 %v3964, %v4044
  %v4052 = vxor.u32 %v4048, 2147483648
  %v4053 = vmul.f32 %v4052, 1.442695
  %v4054 = vpow.pop %v4053
  %v4055 = vadd.f32 %v4054, 1.0
  %v4056 = vrcp.pop %v4055
  %v4057 = vmul.f32 1.0, %v4056
  %v4058 = vxor.u32 %v4049, 2147483648
  %v4059 = vmul.f32 %v4058, 1.442695
  %v4060 = vpow.pop %v4059
  %v4061 = vadd.f32 %v4060, 1.0
  %v4062 = vrcp.pop %v4061
  %v4063 = vmul.f32 1.0, %v4062
  %v4064 = vtanh.pop %v4050
  %v4065 = vxor.u32 %v4051, 2147483648
  %v4066 = vmul.f32 %v4065, 1.442695
  %v4067 = vpow.pop %v4066
  %v4068 = vadd.f32 %v4067, 1.0
  %v4069 = vrcp.pop %v4068
  %v4070 = vmul.f32 1.0, %v4069
  %v4071 = vmul.f32 %v4063, %v3955
  %v4072 = vmul.f32 %v4057, %v4064
  %v4073 = vadd.f32 %v4071, %v4072
  %v4074 = vtanh.pop %v4073
  %v4075 = vmul.f32 %v4070, %v4074
  %4076 = vst [vmem:[%s1124 + $0x8] sm:$0xff] %v4075
  %s4077 = scalar_lea.vmem %s14, 8
  %4078 = vst [vmem:[%s4077] sm:$0xff] %v4075
  %s4079 = scalar_lea.vmem %s15, 8
  %4080 = vst [vmem:[%s4079] sm:$0xff] %v4073
  %v4081 = vld [vmem:[#allocation6] sm:$0xff]
  %v4082 = vld [vmem:[#allocation6 + $0x8] sm:$0xff]
  %v4083 = vld [vmem:[#allocation6 + $0x10] sm:$0xff]
  %v4084 = vld [vmem:[#allocation6 + $0x18] sm:$0xff]
  %v4085 = vld [vmem:[#allocation6 + $0x20] sm:$0xff]
  %v4086 = vld [vmem:[#allocation6 + $0x28] sm:$0xff]
  %v4087 = vld [vmem:[#allocation6 + $0x30] sm:$0xff]
  %v4088 = vld [vmem:[#allocation6 + $0x38] sm:$0xff]
  %v4089 = vld [vmem:[#allocation6 + $0x40] sm:$0xff]
  %v4090 = vld [vmem:[#allocation6 + $0x48] sm:$0xff]
  %v4091 = vld [vmem:[#allocation6 + $0x50] sm:$0xff]
  %v4092 = vld [vmem:[#allocation6 + $0x58] sm:$0xff]
  %v4093 = vld [vmem:[#allocation6 + $0x60] sm:$0xff]
  %v4094 = vld [vmem:[#allocation6 + $0x68] sm:$0xff]
  %v4095 = vld [vmem:[#allocation6 + $0x70] sm:$0xff]
  %v4096 = vld [vmem:[#allocation6 + $0x78] sm:$0xff]
  %v4097 = vld [vmem:[#allocation6 + $0x80] sm:$0xff]
  %v4098 = vld [vmem:[#allocation6 + $0x88] sm:$0xff]
  %v4099 = vld [vmem:[#allocation6 + $0x90] sm:$0xff]
  %v4100 = vld [vmem:[#allocation6 + $0x98] sm:$0xff]
  %v4101 = vld [vmem:[#allocation6 + $0xa0] sm:$0xff]
  %v4102 = vld [vmem:[#allocation6 + $0xa8] sm:$0xff]
  %v4103 = vld [vmem:[#allocation6 + $0xb0] sm:$0xff]
  %v4104 = vld [vmem:[#allocation6 + $0xb8] sm:$0xff]
  %v4105 = vpack.c.bf16 %v4083, %v4081
  %v4106 = vpack.c.bf16 %v4084, %v4082
  %v4107 = vpack.c.bf16 %v4087, %v4085
  %v4108 = vpack.c.bf16 %v4088, %v4086
  %v4109 = vpack.c.bf16 %v4091, %v4089
  %v4110 = vpack.c.bf16 %v4092, %v4090
  %v4111 = vpack.c.bf16 %v4095, %v4093
  %v4112 = vpack.c.bf16 %v4096, %v4094
  %v4113 = vpack.c.bf16 %v4099, %v4097
  %v4114 = vpack.c.bf16 %v4100, %v4098
  %v4115 = vpack.c.bf16 %v4103, %v4101
  %v4116 = vpack.c.bf16 %v4104, %v4102
  %v4117 = vld [vmem:[%s7] sm:$0xff]
  %v4118 = vld [vmem:[%s7 + $0x8] sm:$0xff]
  %v4119 = vld [vmem:[%s7 + $0x10] sm:$0xff]
  %v4120 = vld [vmem:[%s7 + $0x18] sm:$0xff]
  %v4121 = vld [vmem:[%s7 + $0x20] sm:$0xff]
  %v4122 = vld [vmem:[%s7 + $0x28] sm:$0xff]
  %v4123 = vld [vmem:[%s7 + $0x30] sm:$0xff]
  %v4124 = vld [vmem:[%s7 + $0x38] sm:$0xff]
  %v4125 = vld [vmem:[%s7 + $0x40] sm:$0xff]
  %v4126 = vld [vmem:[%s7 + $0x48] sm:$0xff]
  %v4127 = vld [vmem:[%s7 + $0x50] sm:$0xff]
  %v4128 = vld [vmem:[%s7 + $0x58] sm:$0xff]
  %v4129 = vld [vmem:[%s7 + $0x60] sm:$0xff]
  %v4130 = vld [vmem:[%s7 + $0x68] sm:$0xff]
  %v4131 = vld [vmem:[%s7 + $0x70] sm:$0xff]
  %v4132 = vld [vmem:[%s7 + $0x78] sm:$0xff]
  %v4133 = vld [vmem:[%s7 + $0x80] sm:$0xff]
  %v4134 = vld [vmem:[%s7 + $0x88] sm:$0xff]
  %v4135 = vld [vmem:[%s7 + $0x90] sm:$0xff]
  %v4136 = vld [vmem:[%s7 + $0x98] sm:$0xff]
  %v4137 = vld [vmem:[%s7 + $0xa0] sm:$0xff]
  %v4138 = vld [vmem:[%s7 + $0xa8] sm:$0xff]
  %v4139 = vld [vmem:[%s7 + $0xb0] sm:$0xff]
  %v4140 = vld [vmem:[%s7 + $0xb8] sm:$0xff]
  %v4141 = vld [vmem:[%s7 + $0xc0] sm:$0xff]
  %v4142 = vld [vmem:[%s7 + $0xc8] sm:$0xff]
  %v4143 = vld [vmem:[%s7 + $0xd0] sm:$0xff]
  %v4144 = vld [vmem:[%s7 + $0xd8] sm:$0xff]
  %v4145 = vld [vmem:[%s7 + $0xe0] sm:$0xff]
  %v4146 = vld [vmem:[%s7 + $0xe8] sm:$0xff]
  %v4147 = vld [vmem:[%s7 + $0xf0] sm:$0xff]
  %v4148 = vld [vmem:[%s7 + $0xf8] sm:$0xff]
  %v4149 = vld [vmem:[%s7 + $0x100] sm:$0xff]
  %v4150 = vld [vmem:[%s7 + $0x108] sm:$0xff]
  %v4151 = vld [vmem:[%s7 + $0x110] sm:$0xff]
  %v4152 = vld [vmem:[%s7 + $0x118] sm:$0xff]
  %v4153 = vld [vmem:[%s7 + $0x120] sm:$0xff]
  %v4154 = vld [vmem:[%s7 + $0x128] sm:$0xff]
  %v4155 = vld [vmem:[%s7 + $0x130] sm:$0xff]
  %v4156 = vld [vmem:[%s7 + $0x138] sm:$0xff]
  %v4157 = vld [vmem:[%s7 + $0x140] sm:$0xff]
  %v4158 = vld [vmem:[%s7 + $0x148] sm:$0xff]
  %v4159 = vld [vmem:[%s7 + $0x150] sm:$0xff]
  %v4160 = vld [vmem:[%s7 + $0x158] sm:$0xff]
  %v4161 = vld [vmem:[%s7 + $0x160] sm:$0xff]
  %v4162 = vld [vmem:[%s7 + $0x168] sm:$0xff]
  %v4163 = vld [vmem:[%s7 + $0x170] sm:$0xff]
  %v4164 = vld [vmem:[%s7 + $0x178] sm:$0xff]
  %v4165 = vld [vmem:[%s7 + $0x180] sm:$0xff]
  %v4166 = vld [vmem:[%s7 + $0x188] sm:$0xff]
  %v4167 = vld [vmem:[%s7 + $0x190] sm:$0xff]
  %v4168 = vld [vmem:[%s7 + $0x198] sm:$0xff]
  %v4169 = vld [vmem:[%s7 + $0x1a0] sm:$0xff]
  %v4170 = vld [vmem:[%s7 + $0x1a8] sm:$0xff]
  %v4171 = vld [vmem:[%s7 + $0x1b0] sm:$0xff]
  %v4172 = vld [vmem:[%s7 + $0x1b8] sm:$0xff]
  %v4173 = vld [vmem:[%s7 + $0x1c0] sm:$0xff]
  %v4174 = vld [vmem:[%s7 + $0x1c8] sm:$0xff]
  %v4175 = vld [vmem:[%s7 + $0x1d0] sm:$0xff]
  %v4176 = vld [vmem:[%s7 + $0x1d8] sm:$0xff]
  %v4177 = vld [vmem:[%s7 + $0x1e0] sm:$0xff]
  %v4178 = vld [vmem:[%s7 + $0x1e8] sm:$0xff]
  %v4179 = vld [vmem:[%s7 + $0x1f0] sm:$0xff]
  %v4180 = vld [vmem:[%s7 + $0x1f8] sm:$0xff]
  %v4181 = vld [vmem:[%s9] sm:$0xf]
  %v4183 = vlaneseq
  %v4184 = vshrl.u32 %v4183, 7
  %v4185 = vsub.s32 0, %v4184
  %v4186 = vrot.slane %v4181, %v4185
  %v4187 = vlaneseq
  %v4188 = vshrl.u32 %v4187, 7
  %v4189 = vsub.s32 1, %v4188
  %v4190 = vrot.slane %v4181, %v4189
  %v4191 = vlaneseq
  %v4192 = vshrl.u32 %v4191, 7
  %v4193 = vsub.s32 2, %v4192
  %v4194 = vrot.slane %v4181, %v4193
  %v4195 = vlaneseq
  %v4196 = vshrl.u32 %v4195, 7
  %v4197 = vsub.s32 3, %v4196
  %v4198 = vrot.slane %v4181, %v4197
  %v4267 = vunpack.c.l.b16 %v4117
  %v4268 = vunpack.c.h.b16 %v4117
  %v4269 = vunpack.c.l.b16 %v4118
  %v4270 = vunpack.c.h.b16 %v4118
  %v4271 = vunpack.c.l.b16 %v4119
  %v4272 = vunpack.c.h.b16 %v4119
  %v4273 = vunpack.c.l.b16 %v4120
  %v4274 = vunpack.c.h.b16 %v4120
  %v4275 = vunpack.c.l.b16 %v4121
  %v4276 = vunpack.c.h.b16 %v4121
  %v4277 = vunpack.c.l.b16 %v4122
  %v4278 = vunpack.c.h.b16 %v4122
  %v4279 = vunpack.c.l.b16 %v4123
  %v4280 = vunpack.c.h.b16 %v4123
  %v4281 = vunpack.c.l.b16 %v4124
  %v4282 = vunpack.c.h.b16 %v4124
  %v4283 = vunpack.c.l.b16 %v4125
  %v4284 = vunpack.c.h.b16 %v4125
  %v4285 = vunpack.c.l.b16 %v4126
  %v4286 = vunpack.c.h.b16 %v4126
  %v4287 = vunpack.c.l.b16 %v4127
  %v4288 = vunpack.c.h.b16 %v4127
  %v4289 = vunpack.c.l.b16 %v4128
  %v4290 = vunpack.c.h.b16 %v4128
  %v4291 = vunpack.c.l.b16 %v4129
  %v4292 = vunpack.c.h.b16 %v4129
  %v4293 = vunpack.c.l.b16 %v4130
  %v4294 = vunpack.c.h.b16 %v4130
  %v4295 = vunpack.c.l.b16 %v4131
  %v4296 = vunpack.c.h.b16 %v4131
  %v4297 = vunpack.c.l.b16 %v4132
  %v4298 = vunpack.c.h.b16 %v4132
  %v4299 = vunpack.c.l.b16 %v4133
  %v4300 = vunpack.c.h.b16 %v4133
  %v4301 = vunpack.c.l.b16 %v4134
  %v4302 = vunpack.c.h.b16 %v4134
  %v4303 = vunpack.c.l.b16 %v4135
  %v4304 = vunpack.c.h.b16 %v4135
  %v4305 = vunpack.c.l.b16 %v4136
  %v4306 = vunpack.c.h.b16 %v4136
  %v4307 = vunpack.c.l.b16 %v4137
  %v4308 = vunpack.c.h.b16 %v4137
  %v4309 = vunpack.c.l.b16 %v4138
  %v4310 = vunpack.c.h.b16 %v4138
  %v4311 = vunpack.c.l.b16 %v4139
  %v4312 = vunpack.c.h.b16 %v4139
  %v4313 = vunpack.c.l.b16 %v4140
  %v4314 = vunpack.c.h.b16 %v4140
  %v4315 = vunpack.c.l.b16 %v4141
  %v4316 = vunpack.c.h.b16 %v4141
  %v4317 = vunpack.c.l.b16 %v4142
  %v4318 = vunpack.c.h.b16 %v4142
  %v4319 = vunpack.c.l.b16 %v4143
  %v4320 = vunpack.c.h.b16 %v4143
  %v4321 = vunpack.c.l.b16 %v4144
  %v4322 = vunpack.c.h.b16 %v4144
  %v4323 = vunpack.c.l.b16 %v4145
  %v4324 = vunpack.c.h.b16 %v4145
  %v4325 = vunpack.c.l.b16 %v4146
  %v4326 = vunpack.c.h.b16 %v4146
  %v4327 = vunpack.c.l.b16 %v4147
  %v4328 = vunpack.c.h.b16 %v4147
  %v4329 = vunpack.c.l.b16 %v4148
  %v4330 = vunpack.c.h.b16 %v4148
  %v4331 = vunpack.c.l.b16 %v4149
  %v4332 = vunpack.c.h.b16 %v4149
  %v4333 = vunpack.c.l.b16 %v4150
  %v4334 = vunpack.c.h.b16 %v4150
  %v4335 = vunpack.c.l.b16 %v4151
  %v4336 = vunpack.c.h.b16 %v4151
  %v4337 = vunpack.c.l.b16 %v4152
  %v4338 = vunpack.c.h.b16 %v4152
  %v4339 = vunpack.c.l.b16 %v4153
  %v4340 = vunpack.c.h.b16 %v4153
  %v4341 = vunpack.c.l.b16 %v4154
  %v4342 = vunpack.c.h.b16 %v4154
  %v4343 = vunpack.c.l.b16 %v4155
  %v4344 = vunpack.c.h.b16 %v4155
  %v4345 = vunpack.c.l.b16 %v4156
  %v4346 = vunpack.c.h.b16 %v4156
  %v4347 = vunpack.c.l.b16 %v4157
  %v4348 = vunpack.c.h.b16 %v4157
  %v4349 = vunpack.c.l.b16 %v4158
  %v4350 = vunpack.c.h.b16 %v4158
  %v4351 = vunpack.c.l.b16 %v4159
  %v4352 = vunpack.c.h.b16 %v4159
  %v4353 = vunpack.c.l.b16 %v4160
  %v4354 = vunpack.c.h.b16 %v4160
  %v4355 = vunpack.c.l.b16 %v4161
  %v4356 = vunpack.c.h.b16 %v4161
  %v4357 = vunpack.c.l.b16 %v4162
  %v4358 = vunpack.c.h.b16 %v4162
  %v4359 = vunpack.c.l.b16 %v4163
  %v4360 = vunpack.c.h.b16 %v4163
  %v4361 = vunpack.c.l.b16 %v4164
  %v4362 = vunpack.c.h.b16 %v4164
  %v4363 = vunpack.c.l.b16 %v4165
  %v4364 = vunpack.c.h.b16 %v4165
  %v4365 = vunpack.c.l.b16 %v4166
  %v4366 = vunpack.c.h.b16 %v4166
  %v4367 = vunpack.c.l.b16 %v4167
  %v4368 = vunpack.c.h.b16 %v4167
  %v4369 = vunpack.c.l.b16 %v4168
  %v4370 = vunpack.c.h.b16 %v4168
  %v4371 = vunpack.c.l.b16 %v4169
  %v4372 = vunpack.c.h.b16 %v4169
  %v4373 = vunpack.c.l.b16 %v4170
  %v4374 = vunpack.c.h.b16 %v4170
  %v4375 = vunpack.c.l.b16 %v4171
  %v4376 = vunpack.c.h.b16 %v4171
  %v4377 = vunpack.c.l.b16 %v4172
  %v4378 = vunpack.c.h.b16 %v4172
  %v4379 = vunpack.c.l.b16 %v4173
  %v4380 = vunpack.c.h.b16 %v4173
  %v4381 = vunpack.c.l.b16 %v4174
  %v4382 = vunpack.c.h.b16 %v4174
  %v4383 = vunpack.c.l.b16 %v4175
  %v4384 = vunpack.c.h.b16 %v4175
  %v4385 = vunpack.c.l.b16 %v4176
  %v4386 = vunpack.c.h.b16 %v4176
  %v4387 = vunpack.c.l.b16 %v4177
  %v4388 = vunpack.c.h.b16 %v4177
  %v4389 = vunpack.c.l.b16 %v4178
  %v4390 = vunpack.c.h.b16 %v4178
  %v4391 = vunpack.c.l.b16 %v4179
  %v4392 = vunpack.c.h.b16 %v4179
  %v4393 = vunpack.c.l.b16 %v4180
  %v4394 = vunpack.c.h.b16 %v4180
  %v4395 = vpack.c.b16 %v4271, %v4267
  %v4396 = vpack.c.b16 %v4272, %v4268
  %v4397 = vpack.c.b16 %v4273, %v4269
  %v4398 = vpack.c.b16 %v4274, %v4270
  %v4399 = vpack.c.b16 %v4279, %v4275
  %v4400 = vpack.c.b16 %v4280, %v4276
  %v4401 = vpack.c.b16 %v4281, %v4277
  %v4402 = vpack.c.b16 %v4282, %v4278
  %v4403 = vpack.c.b16 %v4287, %v4283
  %v4404 = vpack.c.b16 %v4288, %v4284
  %v4405 = vpack.c.b16 %v4289, %v4285
  %v4406 = vpack.c.b16 %v4290, %v4286
  %v4407 = vpack.c.b16 %v4295, %v4291
  %v4408 = vpack.c.b16 %v4296, %v4292
  %v4409 = vpack.c.b16 %v4297, %v4293
  %v4410 = vpack.c.b16 %v4298, %v4294
  %v4411 = vpack.c.b16 %v4303, %v4299
  %v4412 = vpack.c.b16 %v4304, %v4300
  %v4413 = vpack.c.b16 %v4305, %v4301
  %v4414 = vpack.c.b16 %v4306, %v4302
  %v4415 = vpack.c.b16 %v4311, %v4307
  %v4416 = vpack.c.b16 %v4312, %v4308
  %v4417 = vpack.c.b16 %v4313, %v4309
  %v4418 = vpack.c.b16 %v4314, %v4310
  %v4419 = vpack.c.b16 %v4319, %v4315
  %v4420 = vpack.c.b16 %v4320, %v4316
  %v4421 = vpack.c.b16 %v4321, %v4317
  %v4422 = vpack.c.b16 %v4322, %v4318
  %v4423 = vpack.c.b16 %v4327, %v4323
  %v4424 = vpack.c.b16 %v4328, %v4324
  %v4425 = vpack.c.b16 %v4329, %v4325
  %v4426 = vpack.c.b16 %v4330, %v4326
  %v4427 = vpack.c.b16 %v4335, %v4331
  %v4428 = vpack.c.b16 %v4336, %v4332
  %v4429 = vpack.c.b16 %v4337, %v4333
  %v4430 = vpack.c.b16 %v4338, %v4334
  %v4431 = vpack.c.b16 %v4343, %v4339
  %v4432 = vpack.c.b16 %v4344, %v4340
  %v4433 = vpack.c.b16 %v4345, %v4341
  %v4434 = vpack.c.b16 %v4346, %v4342
  %v4435 = vpack.c.b16 %v4351, %v4347
  %v4436 = vpack.c.b16 %v4352, %v4348
  %v4437 = vpack.c.b16 %v4353, %v4349
  %v4438 = vpack.c.b16 %v4354, %v4350
  %v4439 = vpack.c.b16 %v4359, %v4355
  %v4440 = vpack.c.b16 %v4360, %v4356
  %v4441 = vpack.c.b16 %v4361, %v4357
  %v4442 = vpack.c.b16 %v4362, %v4358
  %v4443 = vpack.c.b16 %v4367, %v4363
  %v4444 = vpack.c.b16 %v4368, %v4364
  %v4445 = vpack.c.b16 %v4369, %v4365
  %v4446 = vpack.c.b16 %v4370, %v4366
  %v4447 = vpack.c.b16 %v4375, %v4371
  %v4448 = vpack.c.b16 %v4376, %v4372
  %v4449 = vpack.c.b16 %v4377, %v4373
  %v4450 = vpack.c.b16 %v4378, %v4374
  %v4451 = vpack.c.b16 %v4383, %v4379
  %v4452 = vpack.c.b16 %v4384, %v4380
  %v4453 = vpack.c.b16 %v4385, %v4381
  %v4454 = vpack.c.b16 %v4386, %v4382
  %v4455 = vpack.c.b16 %v4391, %v4387
  %v4456 = vpack.c.b16 %v4392, %v4388
  %v4457 = vpack.c.b16 %v4393, %v4389
  %v4458 = vpack.c.b16 %v4394, %v4390
  %4523 = vmatprep.subr.bf16.mxu0 %v4396
  %4524 = vmatpush1.bf16.msra.mxu0 %v4395
  %4525 = vmatprep.subr.bf16.mxu0 %v4400
  %4526 = vmatpush1.bf16.msra.mxu0 %v4399
  %4527 = vmatprep.subr.bf16.mxu0 %v4404
  %4528 = vmatpush1.bf16.msra.mxu0 %v4403
  %4529 = vmatprep.subr.bf16.mxu0 %v4408
  %4530 = vmatpush1.bf16.msra.mxu0 %v4407
  %4531 = vmatprep.subr.bf16.mxu0 %v4412
  %4532 = vmatpush1.bf16.msra.mxu0 %v4411
  %4533 = vmatprep.subr.bf16.mxu0 %v4416
  %4534 = vmatpush1.bf16.msra.mxu0 %v4415
  %4535 = vmatprep.subr.bf16.mxu0 %v4420
  %4536 = vmatpush1.bf16.msra.mxu0 %v4419
  %4537 = vmatprep.subr.bf16.mxu0 %v4424
  %4538 = vmatpush1.bf16.msra.mxu0 %v4423
  %4539 = vmatprep.subr.bf16.mxu0 %v4428
  %4540 = vmatpush1.bf16.msra.mxu0 %v4427
  %4541 = vmatprep.subr.bf16.mxu0 %v4432
  %4542 = vmatpush1.bf16.msra.mxu0 %v4431
  %4543 = vmatprep.subr.bf16.mxu0 %v4436
  %4544 = vmatpush1.bf16.msra.mxu0 %v4435
  %4545 = vmatprep.subr.bf16.mxu0 %v4440
  %4546 = vmatpush1.bf16.msra.mxu0 %v4439
  %4547 = vmatprep.subr.bf16.mxu0 %v4444
  %4548 = vmatpush1.bf16.msra.mxu0 %v4443
  %4549 = vmatprep.subr.bf16.mxu0 %v4448
  %4550 = vmatpush1.bf16.msra.mxu0 %v4447
  %4551 = vmatprep.subr.bf16.mxu0 %v4452
  %4552 = vmatpush1.bf16.msra.mxu0 %v4451
  %4553 = vmatprep.subr.bf16.mxu0 %v4456
  %4554 = vmatpush1.bf16.msra.mxu0 %v4455
  %4555 = vmatprep.mubr.bf16.mxu0 %v4106
  %4556 = vmatmul.mubr.bf16.gmra.mrb[0].mxu0 %v4105
  %v4557 = vpop.f32.mrb[0].mxu0
  %v4558 = vadd.f32 %v4186, %v4557
  %v4559 = vpop.f32.mrb[0].mxu0
  %v4560 = vadd.f32 %v4190, %v4559
  %v4561 = vpop.f32.mrb[0].mxu0
  %v4562 = vadd.f32 %v4186, %v4561
  %v4563 = vpop.f32.mrb[0].mxu0
  %v4564 = vadd.f32 %v4190, %v4563
  %4565 = vmatprep.mubr.bf16.mxu0 %v4108
  %4566 = vmatmul.mubr.bf16.gmra.mrb[0].mxu0 %v4107
  %v4567 = vpop.f32.mrb[0].mxu0
  %v4568 = vadd.f32 %v4186, %v4567
  %v4569 = vpop.f32.mrb[0].mxu0
  %v4570 = vadd.f32 %v4190, %v4569
  %v4571 = vpop.f32.mrb[0].mxu0
  %v4572 = vadd.f32 %v4186, %v4571
  %v4573 = vpop.f32.mrb[0].mxu0
  %v4574 = vadd.f32 %v4190, %v4573
  %4575 = vmatprep.mubr.bf16.mxu0 %v4110
  %4576 = vmatmul.mubr.bf16.gmra.mrb[0].mxu0 %v4109
  %v4577 = vpop.f32.mrb[0].mxu0
  %v4578 = vadd.f32 %v4186, %v4577
  %v4579 = vpop.f32.mrb[0].mxu0
  %v4580 = vadd.f32 %v4190, %v4579
  %v4581 = vpop.f32.mrb[0].mxu0
  %v4582 = vadd.f32 %v4186, %v4581
  %v4583 = vpop.f32.mrb[0].mxu0
  %v4584 = vadd.f32 %v4190, %v4583
  %4585 = vmatprep.mubr.bf16.mxu0 %v4112
  %4586 = vmatmul.mubr.bf16.gmra.mrb[0].mxu0 %v4111
  %v4587 = vpop.f32.mrb[0].mxu0
  %v4588 = vadd.f32 %v4186, %v4587
  %v4589 = vpop.f32.mrb[0].mxu0
  %v4590 = vadd.f32 %v4190, %v4589
  %v4591 = vpop.f32.mrb[0].mxu0
  %v4592 = vadd.f32 %v4186, %v4591
  %v4593 = vpop.f32.mrb[0].mxu0
  %v4594 = vadd.f32 %v4190, %v4593
  %4595 = vmatprep.mubr.bf16.mxu0 %v4114
  %4596 = vmatmul.mubr.bf16.gmra.mrb[0].mxu0 %v4113
  %v4597 = vpop.f32.mrb[0].mxu0
  %v4598 = vadd.f32 %v4186, %v4597
  %v4599 = vpop.f32.mrb[0].mxu0
  %v4600 = vadd.f32 %v4190, %v4599
  %v4601 = vpop.f32.mrb[0].mxu0
  %v4602 = vadd.f32 %v4186, %v4601
  %v4603 = vpop.f32.mrb[0].mxu0
  %v4604 = vadd.f32 %v4190, %v4603
  %4605 = vmatprep.mubr.bf16.mxu0 %v4116
  %4606 = vmatmul.mubr.bf16.gmra.mrb[0].mxu0 %v4115
  %v4607 = vpop.f32.mrb[0].mxu0
  %v4608 = vadd.f32 %v4186, %v4607
  %v4609 = vpop.f32.mrb[0].mxu0
  %v4610 = vadd.f32 %v4190, %v4609
  %v4611 = vpop.f32.mrb[0].mxu0
  %v4612 = vadd.f32 %v4186, %v4611
  %v4613 = vpop.f32.mrb[0].mxu0
  %v4614 = vadd.f32 %v4190, %v4613
  %4615 = vdwg.mxu0
  %4616 = vmatprep.subr.bf16.mxu0 %v4398
  %4617 = vmatpush1.bf16.msra.mxu0 %v4397
  %4618 = vmatprep.subr.bf16.mxu0 %v4402
  %4619 = vmatpush1.bf16.msra.mxu0 %v4401
  %4620 = vmatprep.subr.bf16.mxu0 %v4406
  %4621 = vmatpush1.bf16.msra.mxu0 %v4405
  %4622 = vmatprep.subr.bf16.mxu0 %v4410
  %4623 = vmatpush1.bf16.msra.mxu0 %v4409
  %4624 = vmatprep.subr.bf16.mxu0 %v4414
  %4625 = vmatpush1.bf16.msra.mxu0 %v4413
  %4626 = vmatprep.subr.bf16.mxu0 %v4418
  %4627 = vmatpush1.bf16.msra.mxu0 %v4417
  %4628 = vmatprep.subr.bf16.mxu0 %v4422
  %4629 = vmatpush1.bf16.msra.mxu0 %v4421
  %4630 = vmatprep.subr.bf16.mxu0 %v4426
  %4631 = vmatpush1.bf16.msra.mxu0 %v4425
  %4632 = vmatprep.subr.bf16.mxu0 %v4430
  %4633 = vmatpush1.bf16.msra.mxu0 %v4429
  %4634 = vmatprep.subr.bf16.mxu0 %v4434
  %4635 = vmatpush1.bf16.msra.mxu0 %v4433
  %4636 = vmatprep.subr.bf16.mxu0 %v4438
  %4637 = vmatpush1.bf16.msra.mxu0 %v4437
  %4638 = vmatprep.subr.bf16.mxu0 %v4442
  %4639 = vmatpush1.bf16.msra.mxu0 %v4441
  %4640 = vmatprep.subr.bf16.mxu0 %v4446
  %4641 = vmatpush1.bf16.msra.mxu0 %v4445
  %4642 = vmatprep.subr.bf16.mxu0 %v4450
  %4643 = vmatpush1.bf16.msra.mxu0 %v4449
  %4644 = vmatprep.subr.bf16.mxu0 %v4454
  %4645 = vmatpush1.bf16.msra.mxu0 %v4453
  %4646 = vmatprep.subr.bf16.mxu0 %v4458
  %4647 = vmatpush1.bf16.msra.mxu0 %v4457
  %4648 = vmatprep.mubr.bf16.mxu0 %v4106
  %4649 = vmatmul.mubr.bf16.gmra.mrb[0].mxu0 %v4105
  %v4650 = vpop.f32.mrb[0].mxu0
  %v4651 = vadd.f32 %v4194, %v4650
  %v4652 = vpop.f32.mrb[0].mxu0
  %v4653 = vadd.f32 %v4198, %v4652
  %v4654 = vpop.f32.mrb[0].mxu0
  %v4655 = vadd.f32 %v4194, %v4654
  %v4656 = vpop.f32.mrb[0].mxu0
  %v4657 = vadd.f32 %v4198, %v4656
  %4658 = vmatprep.mubr.bf16.mxu0 %v4108
  %4659 = vmatmul.mubr.bf16.gmra.mrb[0].mxu0 %v4107
  %v4660 = vpop.f32.mrb[0].mxu0
  %v4661 = vadd.f32 %v4194, %v4660
  %v4662 = vpop.f32.mrb[0].mxu0
  %v4663 = vadd.f32 %v4198, %v4662
  %v4664 = vpop.f32.mrb[0].mxu0
  %v4665 = vadd.f32 %v4194, %v4664
  %v4666 = vpop.f32.mrb[0].mxu0
  %v4667 = vadd.f32 %v4198, %v4666
  %4668 = vmatprep.mubr.bf16.mxu0 %v4110
  %4669 = vmatmul.mubr.bf16.gmra.mrb[0].mxu0 %v4109
  %v4670 = vpop.f32.mrb[0].mxu0
  %v4671 = vadd.f32 %v4194, %v4670
  %v4672 = vpop.f32.mrb[0].mxu0
  %v4673 = vadd.f32 %v4198, %v4672
  %v4674 = vpop.f32.mrb[0].mxu0
  %v4675 = vadd.f32 %v4194, %v4674
  %v4676 = vpop.f32.mrb[0].mxu0
  %v4677 = vadd.f32 %v4198, %v4676
  %4678 = vmatprep.mubr.bf16.mxu0 %v4112
  %4679 = vmatmul.mubr.bf16.gmra.mrb[0].mxu0 %v4111
  %v4680 = vpop.f32.mrb[0].mxu0
  %v4681 = vadd.f32 %v4194, %v4680
  %v4682 = vpop.f32.mrb[0].mxu0
  %v4683 = vadd.f32 %v4198, %v4682
  %v4684 = vpop.f32.mrb[0].mxu0
  %v4685 = vadd.f32 %v4194, %v4684
  %v4686 = vpop.f32.mrb[0].mxu0
  %v4687 = vadd.f32 %v4198, %v4686
  %4688 = vmatprep.mubr.bf16.mxu0 %v4114
  %4689 = vmatmul.mubr.bf16.gmra.mrb[0].mxu0 %v4113
  %v4690 = vpop.f32.mrb[0].mxu0
  %v4691 = vadd.f32 %v4194, %v4690
  %v4692 = vpop.f32.mrb[0].mxu0
  %v4693 = vadd.f32 %v4198, %v4692
  %v4694 = vpop.f32.mrb[0].mxu0
  %v4695 = vadd.f32 %v4194, %v4694
  %v4696 = vpop.f32.mrb[0].mxu0
  %v4697 = vadd.f32 %v4198, %v4696
  %4698 = vmatprep.mubr.bf16.mxu0 %v4116
  %4699 = vmatmul.mubr.bf16.gmra.mrb[0].mxu0 %v4115
  %v4700 = vpop.f32.mrb[0].mxu0
  %v4701 = vadd.f32 %v4194, %v4700
  %v4702 = vpop.f32.mrb[0].mxu0
  %v4703 = vadd.f32 %v4198, %v4702
  %v4704 = vpop.f32.mrb[0].mxu0
  %v4705 = vadd.f32 %v4194, %v4704
  %v4706 = vpop.f32.mrb[0].mxu0
  %v4707 = vadd.f32 %v4198, %v4706
  %4708 = vdwg.mxu0
  %4709 = vst [vmem:[#allocation4] sm:$0xff] %v4558
  %4710 = vst [vmem:[#allocation4 + $0x8] sm:$0xff] %v4560
  %4711 = vst [vmem:[#allocation4 + $0x10] sm:$0xff] %v4651
  %4712 = vst [vmem:[#allocation4 + $0x18] sm:$0xff] %v4653
  %4713 = vst [vmem:[#allocation4 + $0x20] sm:$0xff] %v4562
  %4714 = vst [vmem:[#allocation4 + $0x28] sm:$0xff] %v4564
  %4715 = vst [vmem:[#allocation4 + $0x30] sm:$0xff] %v4655
  %4716 = vst [vmem:[#allocation4 + $0x38] sm:$0xff] %v4657
  %4717 = vst [vmem:[#allocation4 + $0x40] sm:$0xff] %v4568
  %4718 = vst [vmem:[#allocation4 + $0x48] sm:$0xff] %v4570
  %4719 = vst [vmem:[#allocation4 + $0x50] sm:$0xff] %v4661
  %4720 = vst [vmem:[#allocation4 + $0x58] sm:$0xff] %v4663
  %4721 = vst [vmem:[#allocation4 + $0x60] sm:$0xff] %v4572
  %4722 = vst [vmem:[#allocation4 + $0x68] sm:$0xff] %v4574
  %4723 = vst [vmem:[#allocation4 + $0x70] sm:$0xff] %v4665
  %4724 = vst [vmem:[#allocation4 + $0x78] sm:$0xff] %v4667
  %4725 = vst [vmem:[#allocation4 + $0x80] sm:$0xff] %v4578
  %4726 = vst [vmem:[#allocation4 + $0x88] sm:$0xff] %v4580
  %4727 = vst [vmem:[#allocation4 + $0x90] sm:$0xff] %v4671
  %4728 = vst [vmem:[#allocation4 + $0x98] sm:$0xff] %v4673
  %4729 = vst [vmem:[#allocation4 + $0xa0] sm:$0xff] %v4582
  %4730 = vst [vmem:[#allocation4 + $0xa8] sm:$0xff] %v4584
  %4731 = vst [vmem:[#allocation4 + $0xb0] sm:$0xff] %v4675
  %4732 = vst [vmem:[#allocation4 + $0xb8] sm:$0xff] %v4677
  %4733 = vst [vmem:[#allocation4 + $0xc0] sm:$0xff] %v4588
  %4734 = vst [vmem:[#allocation4 + $0xc8] sm:$0xff] %v4590
  %4735 = vst [vmem:[#allocation4 + $0xd0] sm:$0xff] %v4681
  %4736 = vst [vmem:[#allocation4 + $0xd8] sm:$0xff] %v4683
  %4737 = vst [vmem:[#allocation4 + $0xe0] sm:$0xff] %v4592
  %4738 = vst [vmem:[#allocation4 + $0xe8] sm:$0xff] %v4594
  %4739 = vst [vmem:[#allocation4 + $0xf0] sm:$0xff] %v4685
  %4740 = vst [vmem:[#allocation4 + $0xf8] sm:$0xff] %v4687
  %4741 = vst [vmem:[#allocation4 + $0x100] sm:$0xff] %v4598
  %4742 = vst [vmem:[#allocation4 + $0x108] sm:$0xff] %v4600
  %4743 = vst [vmem:[#allocation4 + $0x110] sm:$0xff] %v4691
  %4744 = vst [vmem:[#allocation4 + $0x118] sm:$0xff] %v4693
  %4745 = vst [vmem:[#allocation4 + $0x120] sm:$0xff] %v4602
  %4746 = vst [vmem:[#allocation4 + $0x128] sm:$0xff] %v4604
  %4747 = vst [vmem:[#allocation4 + $0x130] sm:$0xff] %v4695
  %4748 = vst [vmem:[#allocation4 + $0x138] sm:$0xff] %v4697
  %4749 = vst [vmem:[#allocation4 + $0x140] sm:$0xff] %v4608
  %4750 = vst [vmem:[#allocation4 + $0x148] sm:$0xff] %v4610
  %4751 = vst [vmem:[#allocation4 + $0x150] sm:$0xff] %v4701
  %4752 = vst [vmem:[#allocation4 + $0x158] sm:$0xff] %v4703
  %4753 = vst [vmem:[#allocation4 + $0x160] sm:$0xff] %v4612
  %4754 = vst [vmem:[#allocation4 + $0x168] sm:$0xff] %v4614
  %4755 = vst [vmem:[#allocation4 + $0x170] sm:$0xff] %v4705
  %4756 = vst [vmem:[#allocation4 + $0x178] sm:$0xff] %v4707
  %v4757 = vld [vmem:[%s10] sm:$0xff]
  %v4758 = vld [vmem:[%s10 + $0x8] sm:$0xff]
  %v4759 = vld [vmem:[%s10 + $0x10] sm:$0xff]
  %v4760 = vld [vmem:[%s10 + $0x18] sm:$0xff]
  %v4761 = vld [vmem:[%s10 + $0x20] sm:$0xff]
  %v4762 = vld [vmem:[%s10 + $0x28] sm:$0xff]
  %v4763 = vld [vmem:[%s10 + $0x30] sm:$0xff]
  %v4764 = vld [vmem:[%s10 + $0x38] sm:$0xff]
  %v4765 = vld [vmem:[%s10 + $0x40] sm:$0xff]
  %v4766 = vld [vmem:[%s10 + $0x48] sm:$0xff]
  %v4767 = vld [vmem:[%s10 + $0x50] sm:$0xff]
  %v4768 = vld [vmem:[%s10 + $0x58] sm:$0xff]
  %v4769 = vld [vmem:[%s10 + $0x60] sm:$0xff]
  %v4770 = vld [vmem:[%s10 + $0x68] sm:$0xff]
  %v4771 = vld [vmem:[%s10 + $0x70] sm:$0xff]
  %v4772 = vld [vmem:[%s10 + $0x78] sm:$0xff]
  %v4773 = vld [vmem:[%s10 + $0x80] sm:$0xff]
  %v4774 = vld [vmem:[%s10 + $0x88] sm:$0xff]
  %v4775 = vld [vmem:[%s10 + $0x90] sm:$0xff]
  %v4776 = vld [vmem:[%s10 + $0x98] sm:$0xff]
  %v4777 = vld [vmem:[%s10 + $0xa0] sm:$0xff]
  %v4778 = vld [vmem:[%s10 + $0xa8] sm:$0xff]
  %v4779 = vld [vmem:[%s10 + $0xb0] sm:$0xff]
  %v4780 = vld [vmem:[%s10 + $0xb8] sm:$0xff]
  %v4781 = vld [vmem:[%s10 + $0xc0] sm:$0xff]
  %v4782 = vld [vmem:[%s10 + $0xc8] sm:$0xff]
  %v4783 = vld [vmem:[%s10 + $0xd0] sm:$0xff]
  %v4784 = vld [vmem:[%s10 + $0xd8] sm:$0xff]
  %v4785 = vld [vmem:[%s10 + $0xe0] sm:$0xff]
  %v4786 = vld [vmem:[%s10 + $0xe8] sm:$0xff]
  %v4787 = vld [vmem:[%s10 + $0xf0] sm:$0xff]
  %v4788 = vld [vmem:[%s10 + $0xf8] sm:$0xff]
  %v4789 = vld [vmem:[%s10 + $0x100] sm:$0xff]
  %v4790 = vld [vmem:[%s10 + $0x108] sm:$0xff]
  %v4791 = vld [vmem:[%s10 + $0x110] sm:$0xff]
  %v4792 = vld [vmem:[%s10 + $0x118] sm:$0xff]
  %v4793 = vld [vmem:[%s10 + $0x120] sm:$0xff]
  %v4794 = vld [vmem:[%s10 + $0x128] sm:$0xff]
  %v4795 = vld [vmem:[%s10 + $0x130] sm:$0xff]
  %v4796 = vld [vmem:[%s10 + $0x138] sm:$0xff]
  %v4797 = vld [vmem:[%s10 + $0x140] sm:$0xff]
  %v4798 = vld [vmem:[%s10 + $0x148] sm:$0xff]
  %v4799 = vld [vmem:[%s10 + $0x150] sm:$0xff]
  %v4800 = vld [vmem:[%s10 + $0x158] sm:$0xff]
  %v4801 = vld [vmem:[%s10 + $0x160] sm:$0xff]
  %v4802 = vld [vmem:[%s10 + $0x168] sm:$0xff]
  %v4803 = vld [vmem:[%s10 + $0x170] sm:$0xff]
  %v4804 = vld [vmem:[%s10 + $0x178] sm:$0xff]
  %v4805 = vld [vmem:[%s10 + $0x180] sm:$0xff]
  %v4806 = vld [vmem:[%s10 + $0x188] sm:$0xff]
  %v4807 = vld [vmem:[%s10 + $0x190] sm:$0xff]
  %v4808 = vld [vmem:[%s10 + $0x198] sm:$0xff]
  %v4809 = vld [vmem:[%s10 + $0x1a0] sm:$0xff]
  %v4810 = vld [vmem:[%s10 + $0x1a8] sm:$0xff]
  %v4811 = vld [vmem:[%s10 + $0x1b0] sm:$0xff]
  %v4812 = vld [vmem:[%s10 + $0x1b8] sm:$0xff]
  %v4813 = vld [vmem:[%s10 + $0x1c0] sm:$0xff]
  %v4814 = vld [vmem:[%s10 + $0x1c8] sm:$0xff]
  %v4815 = vld [vmem:[%s10 + $0x1d0] sm:$0xff]
  %v4816 = vld [vmem:[%s10 + $0x1d8] sm:$0xff]
  %v4817 = vld [vmem:[%s10 + $0x1e0] sm:$0xff]
  %v4818 = vld [vmem:[%s10 + $0x1e8] sm:$0xff]
  %v4819 = vld [vmem:[%s10 + $0x1f0] sm:$0xff]
  %v4820 = vld [vmem:[%s10 + $0x1f8] sm:$0xff]
  %v4821 = vld [vmem:[%s12] sm:$0xf]
  %v4823 = vlaneseq
  %v4824 = vshrl.u32 %v4823, 7
  %v4825 = vsub.s32 0, %v4824
  %v4826 = vrot.slane %v4821, %v4825
  %v4827 = vlaneseq
  %v4828 = vshrl.u32 %v4827, 7
  %v4829 = vsub.s32 1, %v4828
  %v4830 = vrot.slane %v4821, %v4829
  %v4831 = vlaneseq
  %v4832 = vshrl.u32 %v4831, 7
  %v4833 = vsub.s32 2, %v4832
  %v4834 = vrot.slane %v4821, %v4833
  %v4835 = vlaneseq
  %v4836 = vshrl.u32 %v4835, 7
  %v4837 = vsub.s32 3, %v4836
  %v4838 = vrot.slane %v4821, %v4837
  %v4907 = vunpack.c.l.b16 %v4757
  %v4908 = vunpack.c.h.b16 %v4757
  %v4909 = vunpack.c.l.b16 %v4758
  %v4910 = vunpack.c.h.b16 %v4758
  %v4911 = vunpack.c.l.b16 %v4759
  %v4912 = vunpack.c.h.b16 %v4759
  %v4913 = vunpack.c.l.b16 %v4760
  %v4914 = vunpack.c.h.b16 %v4760
  %v4915 = vunpack.c.l.b16 %v4761
  %v4916 = vunpack.c.h.b16 %v4761
  %v4917 = vunpack.c.l.b16 %v4762
  %v4918 = vunpack.c.h.b16 %v4762
  %v4919 = vunpack.c.l.b16 %v4763
  %v4920 = vunpack.c.h.b16 %v4763
  %v4921 = vunpack.c.l.b16 %v4764
  %v4922 = vunpack.c.h.b16 %v4764
  %v4923 = vunpack.c.l.b16 %v4765
  %v4924 = vunpack.c.h.b16 %v4765
  %v4925 = vunpack.c.l.b16 %v4766
  %v4926 = vunpack.c.h.b16 %v4766
  %v4927 = vunpack.c.l.b16 %v4767
  %v4928 = vunpack.c.h.b16 %v4767
  %v4929 = vunpack.c.l.b16 %v4768
  %v4930 = vunpack.c.h.b16 %v4768
  %v4931 = vunpack.c.l.b16 %v4769
  %v4932 = vunpack.c.h.b16 %v4769
  %v4933 = vunpack.c.l.b16 %v4770
  %v4934 = vunpack.c.h.b16 %v4770
  %v4935 = vunpack.c.l.b16 %v4771
  %v4936 = vunpack.c.h.b16 %v4771
  %v4937 = vunpack.c.l.b16 %v4772
  %v4938 = vunpack.c.h.b16 %v4772
  %v4939 = vunpack.c.l.b16 %v4773
  %v4940 = vunpack.c.h.b16 %v4773
  %v4941 = vunpack.c.l.b16 %v4774
  %v4942 = vunpack.c.h.b16 %v4774
  %v4943 = vunpack.c.l.b16 %v4775
  %v4944 = vunpack.c.h.b16 %v4775
  %v4945 = vunpack.c.l.b16 %v4776
  %v4946 = vunpack.c.h.b16 %v4776
  %v4947 = vunpack.c.l.b16 %v4777
  %v4948 = vunpack.c.h.b16 %v4777
  %v4949 = vunpack.c.l.b16 %v4778
  %v4950 = vunpack.c.h.b16 %v4778
  %v4951 = vunpack.c.l.b16 %v4779
  %v4952 = vunpack.c.h.b16 %v4779
  %v4953 = vunpack.c.l.b16 %v4780
  %v4954 = vunpack.c.h.b16 %v4780
  %v4955 = vunpack.c.l.b16 %v4781
  %v4956 = vunpack.c.h.b16 %v4781
  %v4957 = vunpack.c.l.b16 %v4782
  %v4958 = vunpack.c.h.b16 %v4782
  %v4959 = vunpack.c.l.b16 %v4783
  %v4960 = vunpack.c.h.b16 %v4783
  %v4961 = vunpack.c.l.b16 %v4784
  %v4962 = vunpack.c.h.b16 %v4784
  %v4963 = vunpack.c.l.b16 %v4785
  %v4964 = vunpack.c.h.b16 %v4785
  %v4965 = vunpack.c.l.b16 %v4786
  %v4966 = vunpack.c.h.b16 %v4786
  %v4967 = vunpack.c.l.b16 %v4787
  %v4968 = vunpack.c.h.b16 %v4787
  %v4969 = vunpack.c.l.b16 %v4788
  %v4970 = vunpack.c.h.b16 %v4788
  %v4971 = vunpack.c.l.b16 %v4789
  %v4972 = vunpack.c.h.b16 %v4789
  %v4973 = vunpack.c.l.b16 %v4790
  %v4974 = vunpack.c.h.b16 %v4790
  %v4975 = vunpack.c.l.b16 %v4791
  %v4976 = vunpack.c.h.b16 %v4791
  %v4977 = vunpack.c.l.b16 %v4792
  %v4978 = vunpack.c.h.b16 %v4792
  %v4979 = vunpack.c.l.b16 %v4793
  %v4980 = vunpack.c.h.b16 %v4793
  %v4981 = vunpack.c.l.b16 %v4794
  %v4982 = vunpack.c.h.b16 %v4794
  %v4983 = vunpack.c.l.b16 %v4795
  %v4984 = vunpack.c.h.b16 %v4795
  %v4985 = vunpack.c.l.b16 %v4796
  %v4986 = vunpack.c.h.b16 %v4796
  %v4987 = vunpack.c.l.b16 %v4797
  %v4988 = vunpack.c.h.b16 %v4797
  %v4989 = vunpack.c.l.b16 %v4798
  %v4990 = vunpack.c.h.b16 %v4798
  %v4991 = vunpack.c.l.b16 %v4799
  %v4992 = vunpack.c.h.b16 %v4799
  %v4993 = vunpack.c.l.b16 %v4800
  %v4994 = vunpack.c.h.b16 %v4800
  %v4995 = vunpack.c.l.b16 %v4801
  %v4996 = vunpack.c.h.b16 %v4801
  %v4997 = vunpack.c.l.b16 %v4802
  %v4998 = vunpack.c.h.b16 %v4802
  %v4999 = vunpack.c.l.b16 %v4803
  %v5000 = vunpack.c.h.b16 %v4803
  %v5001 = vunpack.c.l.b16 %v4804
  %v5002 = vunpack.c.h.b16 %v4804
  %v5003 = vunpack.c.l.b16 %v4805
  %v5004 = vunpack.c.h.b16 %v4805
  %v5005 = vunpack.c.l.b16 %v4806
  %v5006 = vunpack.c.h.b16 %v4806
  %v5007 = vunpack.c.l.b16 %v4807
  %v5008 = vunpack.c.h.b16 %v4807
  %v5009 = vunpack.c.l.b16 %v4808
  %v5010 = vunpack.c.h.b16 %v4808
  %v5011 = vunpack.c.l.b16 %v4809
  %v5012 = vunpack.c.h.b16 %v4809
  %v5013 = vunpack.c.l.b16 %v4810
  %v5014 = vunpack.c.h.b16 %v4810
  %v5015 = vunpack.c.l.b16 %v4811
  %v5016 = vunpack.c.h.b16 %v4811
  %v5017 = vunpack.c.l.b16 %v4812
  %v5018 = vunpack.c.h.b16 %v4812
  %v5019 = vunpack.c.l.b16 %v4813
  %v5020 = vunpack.c.h.b16 %v4813
  %v5021 = vunpack.c.l.b16 %v4814
  %v5022 = vunpack.c.h.b16 %v4814
  %v5023 = vunpack.c.l.b16 %v4815
  %v5024 = vunpack.c.h.b16 %v4815
  %v5025 = vunpack.c.l.b16 %v4816
  %v5026 = vunpack.c.h.b16 %v4816
  %v5027 = vunpack.c.l.b16 %v4817
  %v5028 = vunpack.c.h.b16 %v4817
  %v5029 = vunpack.c.l.b16 %v4818
  %v5030 = vunpack.c.h.b16 %v4818
  %v5031 = vunpack.c.l.b16 %v4819
  %v5032 = vunpack.c.h.b16 %v4819
  %v5033 = vunpack.c.l.b16 %v4820
  %v5034 = vunpack.c.h.b16 %v4820
  %v5035 = vpack.c.b16 %v4911, %v4907
  %v5036 = vpack.c.b16 %v4912, %v4908
  %v5037 = vpack.c.b16 %v4913, %v4909
  %v5038 = vpack.c.b16 %v4914, %v4910
  %v5039 = vpack.c.b16 %v4919, %v4915
  %v5040 = vpack.c.b16 %v4920, %v4916
  %v5041 = vpack.c.b16 %v4921, %v4917
  %v5042 = vpack.c.b16 %v4922, %v4918
  %v5043 = vpack.c.b16 %v4927, %v4923
  %v5044 = vpack.c.b16 %v4928, %v4924
  %v5045 = vpack.c.b16 %v4929, %v4925
  %v5046 = vpack.c.b16 %v4930, %v4926
  %v5047 = vpack.c.b16 %v4935, %v4931
  %v5048 = vpack.c.b16 %v4936, %v4932
  %v5049 = vpack.c.b16 %v4937, %v4933
  %v5050 = vpack.c.b16 %v4938, %v4934
  %v5051 = vpack.c.b16 %v4943, %v4939
  %v5052 = vpack.c.b16 %v4944, %v4940
  %v5053 = vpack.c.b16 %v4945, %v4941
  %v5054 = vpack.c.b16 %v4946, %v4942
  %v5055 = vpack.c.b16 %v4951, %v4947
  %v5056 = vpack.c.b16 %v4952, %v4948
  %v5057 = vpack.c.b16 %v4953, %v4949
  %v5058 = vpack.c.b16 %v4954, %v4950
  %v5059 = vpack.c.b16 %v4959, %v4955
  %v5060 = vpack.c.b16 %v4960, %v4956
  %v5061 = vpack.c.b16 %v4961, %v4957
  %v5062 = vpack.c.b16 %v4962, %v4958
  %v5063 = vpack.c.b16 %v4967, %v4963
  %v5064 = vpack.c.b16 %v4968, %v4964
  %v5065 = vpack.c.b16 %v4969, %v4965
  %v5066 = vpack.c.b16 %v4970, %v4966
  %v5067 = vpack.c.b16 %v4975, %v4971
  %v5068 = vpack.c.b16 %v4976, %v4972
  %v5069 = vpack.c.b16 %v4977, %v4973
  %v5070 = vpack.c.b16 %v4978, %v4974
  %v5071 = vpack.c.b16 %v4983, %v4979
  %v5072 = vpack.c.b16 %v4984, %v4980
  %v5073 = vpack.c.b16 %v4985, %v4981
  %v5074 = vpack.c.b16 %v4986, %v4982
  %v5075 = vpack.c.b16 %v4991, %v4987
  %v5076 = vpack.c.b16 %v4992, %v4988
  %v5077 = vpack.c.b16 %v4993, %v4989
  %v5078 = vpack.c.b16 %v4994, %v4990
  %v5079 = vpack.c.b16 %v4999, %v4995
  %v5080 = vpack.c.b16 %v5000, %v4996
  %v5081 = vpack.c.b16 %v5001, %v4997
  %v5082 = vpack.c.b16 %v5002, %v4998
  %v5083 = vpack.c.b16 %v5007, %v5003
  %v5084 = vpack.c.b16 %v5008, %v5004
  %v5085 = vpack.c.b16 %v5009, %v5005
  %v5086 = vpack.c.b16 %v5010, %v5006
  %v5087 = vpack.c.b16 %v5015, %v5011
  %v5088 = vpack.c.b16 %v5016, %v5012
  %v5089 = vpack.c.b16 %v5017, %v5013
  %v5090 = vpack.c.b16 %v5018, %v5014
  %v5091 = vpack.c.b16 %v5023, %v5019
  %v5092 = vpack.c.b16 %v5024, %v5020
  %v5093 = vpack.c.b16 %v5025, %v5021
  %v5094 = vpack.c.b16 %v5026, %v5022
  %v5095 = vpack.c.b16 %v5031, %v5027
  %v5096 = vpack.c.b16 %v5032, %v5028
  %v5097 = vpack.c.b16 %v5033, %v5029
  %v5098 = vpack.c.b16 %v5034, %v5030
  %5163 = vmatprep.subr.bf16.mxu0 %v5036
  %5164 = vmatpush1.bf16.msra.mxu0 %v5035
  %5165 = vmatprep.subr.bf16.mxu0 %v5040
  %5166 = vmatpush1.bf16.msra.mxu0 %v5039
  %5167 = vmatprep.subr.bf16.mxu0 %v5044
  %5168 = vmatpush1.bf16.msra.mxu0 %v5043
  %5169 = vmatprep.subr.bf16.mxu0 %v5048
  %5170 = vmatpush1.bf16.msra.mxu0 %v5047
  %5171 = vmatprep.subr.bf16.mxu0 %v5052
  %5172 = vmatpush1.bf16.msra.mxu0 %v5051
  %5173 = vmatprep.subr.bf16.mxu0 %v5056
  %5174 = vmatpush1.bf16.msra.mxu0 %v5055
  %5175 = vmatprep.subr.bf16.mxu0 %v5060
  %5176 = vmatpush1.bf16.msra.mxu0 %v5059
  %5177 = vmatprep.subr.bf16.mxu0 %v5064
  %5178 = vmatpush1.bf16.msra.mxu0 %v5063
  %5179 = vmatprep.subr.bf16.mxu0 %v5068
  %5180 = vmatpush1.bf16.msra.mxu0 %v5067
  %5181 = vmatprep.subr.bf16.mxu0 %v5072
  %5182 = vmatpush1.bf16.msra.mxu0 %v5071
  %5183 = vmatprep.subr.bf16.mxu0 %v5076
  %5184 = vmatpush1.bf16.msra.mxu0 %v5075
  %5185 = vmatprep.subr.bf16.mxu0 %v5080
  %5186 = vmatpush1.bf16.msra.mxu0 %v5079
  %5187 = vmatprep.subr.bf16.mxu0 %v5084
  %5188 = vmatpush1.bf16.msra.mxu0 %v5083
  %5189 = vmatprep.subr.bf16.mxu0 %v5088
  %5190 = vmatpush1.bf16.msra.mxu0 %v5087
  %5191 = vmatprep.subr.bf16.mxu0 %v5092
  %5192 = vmatpush1.bf16.msra.mxu0 %v5091
  %5193 = vmatprep.subr.bf16.mxu0 %v5096
  %5194 = vmatpush1.bf16.msra.mxu0 %v5095
  %5195 = vmatprep.mubr.bf16.mxu0 %v4106
  %5196 = vmatmul.mubr.bf16.gmra.mrb[0].mxu0 %v4105
  %v5197 = vpop.f32.mrb[0].mxu0
  %v5198 = vadd.f32 %v4826, %v5197
  %v5199 = vpop.f32.mrb[0].mxu0
  %v5200 = vadd.f32 %v4830, %v5199
  %v5201 = vpop.f32.mrb[0].mxu0
  %v5202 = vadd.f32 %v4826, %v5201
  %v5203 = vpop.f32.mrb[0].mxu0
  %v5204 = vadd.f32 %v4830, %v5203
  %5205 = vmatprep.mubr.bf16.mxu0 %v4108
  %5206 = vmatmul.mubr.bf16.gmra.mrb[0].mxu0 %v4107
  %v5207 = vpop.f32.mrb[0].mxu0
  %v5208 = vadd.f32 %v4826, %v5207
  %v5209 = vpop.f32.mrb[0].mxu0
  %v5210 = vadd.f32 %v4830, %v5209
  %v5211 = vpop.f32.mrb[0].mxu0
  %v5212 = vadd.f32 %v4826, %v5211
  %v5213 = vpop.f32.mrb[0].mxu0
  %v5214 = vadd.f32 %v4830, %v5213
  %5215 = vmatprep.mubr.bf16.mxu0 %v4110
  %5216 = vmatmul.mubr.bf16.gmra.mrb[0].mxu0 %v4109
  %v5217 = vpop.f32.mrb[0].mxu0
  %v5218 = vadd.f32 %v4826, %v5217
  %v5219 = vpop.f32.mrb[0].mxu0
  %v5220 = vadd.f32 %v4830, %v5219
  %v5221 = vpop.f32.mrb[0].mxu0
  %v5222 = vadd.f32 %v4826, %v5221
  %v5223 = vpop.f32.mrb[0].mxu0
  %v5224 = vadd.f32 %v4830, %v5223
  %5225 = vmatprep.mubr.bf16.mxu0 %v4112
  %5226 = vmatmul.mubr.bf16.gmra.mrb[0].mxu0 %v4111
  %v5227 = vpop.f32.mrb[0].mxu0
  %v5228 = vadd.f32 %v4826, %v5227
  %v5229 = vpop.f32.mrb[0].mxu0
  %v5230 = vadd.f32 %v4830, %v5229
  %v5231 = vpop.f32.mrb[0].mxu0
  %v5232 = vadd.f32 %v4826, %v5231
  %v5233 = vpop.f32.mrb[0].mxu0
  %v5234 = vadd.f32 %v4830, %v5233
  %5235 = vmatprep.mubr.bf16.mxu0 %v4114
  %5236 = vmatmul.mubr.bf16.gmra.mrb[0].mxu0 %v4113
  %v5237 = vpop.f32.mrb[0].mxu0
  %v5238 = vadd.f32 %v4826, %v5237
  %v5239 = vpop.f32.mrb[0].mxu0
  %v5240 = vadd.f32 %v4830, %v5239
  %v5241 = vpop.f32.mrb[0].mxu0
  %v5242 = vadd.f32 %v4826, %v5241
  %v5243 = vpop.f32.mrb[0].mxu0
  %v5244 = vadd.f32 %v4830, %v5243
  %5245 = vmatprep.mubr.bf16.mxu0 %v4116
  %5246 = vmatmul.mubr.bf16.gmra.mrb[0].mxu0 %v4115
  %v5247 = vpop.f32.mrb[0].mxu0
  %v5248 = vadd.f32 %v4826, %v5247
  %v5249 = vpop.f32.mrb[0].mxu0
  %v5250 = vadd.f32 %v4830, %v5249
  %v5251 = vpop.f32.mrb[0].mxu0
  %v5252 = vadd.f32 %v4826, %v5251
  %v5253 = vpop.f32.mrb[0].mxu0
  %v5254 = vadd.f32 %v4830, %v5253
  %5255 = vdwg.mxu0
  %5256 = vmatprep.subr.bf16.mxu0 %v5038
  %5257 = vmatpush1.bf16.msra.mxu0 %v5037
  %5258 = vmatprep.subr.bf16.mxu0 %v5042
  %5259 = vmatpush1.bf16.msra.mxu0 %v5041
  %5260 = vmatprep.subr.bf16.mxu0 %v5046
  %5261 = vmatpush1.bf16.msra.mxu0 %v5045
  %5262 = vmatprep.subr.bf16.mxu0 %v5050
  %5263 = vmatpush1.bf16.msra.mxu0 %v5049
  %5264 = vmatprep.subr.bf16.mxu0 %v5054
  %5265 = vmatpush1.bf16.msra.mxu0 %v5053
  %5266 = vmatprep.subr.bf16.mxu0 %v5058
  %5267 = vmatpush1.bf16.msra.mxu0 %v5057
  %5268 = vmatprep.subr.bf16.mxu0 %v5062
  %5269 = vmatpush1.bf16.msra.mxu0 %v5061
  %5270 = vmatprep.subr.bf16.mxu0 %v5066
  %5271 = vmatpush1.bf16.msra.mxu0 %v5065
  %5272 = vmatprep.subr.bf16.mxu0 %v5070
  %5273 = vmatpush1.bf16.msra.mxu0 %v5069
  %5274 = vmatprep.subr.bf16.mxu0 %v5074
  %5275 = vmatpush1.bf16.msra.mxu0 %v5073
  %5276 = vmatprep.subr.bf16.mxu0 %v5078
  %5277 = vmatpush1.bf16.msra.mxu0 %v5077
  %5278 = vmatprep.subr.bf16.mxu0 %v5082
  %5279 = vmatpush1.bf16.msra.mxu0 %v5081
  %5280 = vmatprep.subr.bf16.mxu0 %v5086
  %5281 = vmatpush1.bf16.msra.mxu0 %v5085
  %5282 = vmatprep.subr.bf16.mxu0 %v5090
  %5283 = vmatpush1.bf16.msra.mxu0 %v5089
  %5284 = vmatprep.subr.bf16.mxu0 %v5094
  %5285 = vmatpush1.bf16.msra.mxu0 %v5093
  %5286 = vmatprep.subr.bf16.mxu0 %v5098
  %5287 = vmatpush1.bf16.msra.mxu0 %v5097
  %5288 = vmatprep.mubr.bf16.mxu0 %v4106
  %5289 = vmatmul.mubr.bf16.gmra.mrb[0].mxu0 %v4105
  %v5290 = vpop.f32.mrb[0].mxu0
  %v5291 = vadd.f32 %v4834, %v5290
  %v5292 = vpop.f32.mrb[0].mxu0
  %v5293 = vadd.f32 %v4838, %v5292
  %v5294 = vpop.f32.mrb[0].mxu0
  %v5295 = vadd.f32 %v4834, %v5294
  %v5296 = vpop.f32.mrb[0].mxu0
  %v5297 = vadd.f32 %v4838, %v5296
  %5298 = vmatprep.mubr.bf16.mxu0 %v4108
  %5299 = vmatmul.mubr.bf16.gmra.mrb[0].mxu0 %v4107
  %v5300 = vpop.f32.mrb[0].mxu0
  %v5301 = vadd.f32 %v4834, %v5300
  %v5302 = vpop.f32.mrb[0].mxu0
  %v5303 = vadd.f32 %v4838, %v5302
  %v5304 = vpop.f32.mrb[0].mxu0
  %v5305 = vadd.f32 %v4834, %v5304
  %v5306 = vpop.f32.mrb[0].mxu0
  %v5307 = vadd.f32 %v4838, %v5306
  %5308 = vmatprep.mubr.bf16.mxu0 %v4110
  %5309 = vmatmul.mubr.bf16.gmra.mrb[0].mxu0 %v4109
  %v5310 = vpop.f32.mrb[0].mxu0
  %v5311 = vadd.f32 %v4834, %v5310
  %v5312 = vpop.f32.mrb[0].mxu0
  %v5313 = vadd.f32 %v4838, %v5312
  %v5314 = vpop.f32.mrb[0].mxu0
  %v5315 = vadd.f32 %v4834, %v5314
  %v5316 = vpop.f32.mrb[0].mxu0
  %v5317 = vadd.f32 %v4838, %v5316
  %5318 = vmatprep.mubr.bf16.mxu0 %v4112
  %5319 = vmatmul.mubr.bf16.gmra.mrb[0].mxu0 %v4111
  %v5320 = vpop.f32.mrb[0].mxu0
  %v5321 = vadd.f32 %v4834, %v5320
  %v5322 = vpop.f32.mrb[0].mxu0
  %v5323 = vadd.f32 %v4838, %v5322
  %v5324 = vpop.f32.mrb[0].mxu0
  %v5325 = vadd.f32 %v4834, %v5324
  %v5326 = vpop.f32.mrb[0].mxu0
  %v5327 = vadd.f32 %v4838, %v5326
  %5328 = vmatprep.mubr.bf16.mxu0 %v4114
  %5329 = vmatmul.mubr.bf16.gmra.mrb[0].mxu0 %v4113
  %v5330 = vpop.f32.mrb[0].mxu0
  %v5331 = vadd.f32 %v4834, %v5330
  %v5332 = vpop.f32.mrb[0].mxu0
  %v5333 = vadd.f32 %v4838, %v5332
  %v5334 = vpop.f32.mrb[0].mxu0
  %v5335 = vadd.f32 %v4834, %v5334
  %v5336 = vpop.f32.mrb[0].mxu0
  %v5337 = vadd.f32 %v4838, %v5336
  %5338 = vmatprep.mubr.bf16.mxu0 %v4116
  %5339 = vmatmul.mubr.bf16.gmra.mrb[0].mxu0 %v4115
  %v5340 = vpop.f32.mrb[0].mxu0
  %v5341 = vadd.f32 %v4834, %v5340
  %v5342 = vpop.f32.mrb[0].mxu0
  %v5343 = vadd.f32 %v4838, %v5342
  %v5344 = vpop.f32.mrb[0].mxu0
  %v5345 = vadd.f32 %v4834, %v5344
  %v5346 = vpop.f32.mrb[0].mxu0
  %v5347 = vadd.f32 %v4838, %v5346
  %5348 = vdwg.mxu0
  %5349 = vst [vmem:[#allocation5] sm:$0xff] %v5198
  %5350 = vst [vmem:[#allocation5 + $0x8] sm:$0xff] %v5200
  %5351 = vst [vmem:[#allocation5 + $0x10] sm:$0xff] %v5291
  %5352 = vst [vmem:[#allocation5 + $0x18] sm:$0xff] %v5293
  %5353 = vst [vmem:[#allocation5 + $0x20] sm:$0xff] %v5202
  %5354 = vst [vmem:[#allocation5 + $0x28] sm:$0xff] %v5204
  %5355 = vst [vmem:[#allocation5 + $0x30] sm:$0xff] %v5295
  %5356 = vst [vmem:[#allocation5 + $0x38] sm:$0xff] %v5297
  %5357 = vst [vmem:[#allocation5 + $0x40] sm:$0xff] %v5208
  %5358 = vst [vmem:[#allocation5 + $0x48] sm:$0xff] %v5210
  %5359 = vst [vmem:[#allocation5 + $0x50] sm:$0xff] %v5301
  %5360 = vst [vmem:[#allocation5 + $0x58] sm:$0xff] %v5303
  %5361 = vst [vmem:[#allocation5 + $0x60] sm:$0xff] %v5212
  %5362 = vst [vmem:[#allocation5 + $0x68] sm:$0xff] %v5214
  %5363 = vst [vmem:[#allocation5 + $0x70] sm:$0xff] %v5305
  %5364 = vst [vmem:[#allocation5 + $0x78] sm:$0xff] %v5307
  %5365 = vst [vmem:[#allocation5 + $0x80] sm:$0xff] %v5218
  %5366 = vst [vmem:[#allocation5 + $0x88] sm:$0xff] %v5220
  %5367 = vst [vmem:[#allocation5 + $0x90] sm:$0xff] %v5311
  %5368 = vst [vmem:[#allocation5 + $0x98] sm:$0xff] %v5313
  %5369 = vst [vmem:[#allocation5 + $0xa0] sm:$0xff] %v5222
  %5370 = vst [vmem:[#allocation5 + $0xa8] sm:$0xff] %v5224
  %5371 = vst [vmem:[#allocation5 + $0xb0] sm:$0xff] %v5315
  %5372 = vst [vmem:[#allocation5 + $0xb8] sm:$0xff] %v5317
  %5373 = vst [vmem:[#allocation5 + $0xc0] sm:$0xff] %v5228
  %5374 = vst [vmem:[#allocation5 + $0xc8] sm:$0xff] %v5230
  %5375 = vst [vmem:[#allocation5 + $0xd0] sm:$0xff] %v5321
  %5376 = vst [vmem:[#allocation5 + $0xd8] sm:$0xff] %v5323
  %5377 = vst [vmem:[#allocation5 + $0xe0] sm:$0xff] %v5232
  %5378 = vst [vmem:[#allocation5 + $0xe8] sm:$0xff] %v5234
  %5379 = vst [vmem:[#allocation5 + $0xf0] sm:$0xff] %v5325
  %5380 = vst [vmem:[#allocation5 + $0xf8] sm:$0xff] %v5327
  %5381 = vst [vmem:[#allocation5 + $0x100] sm:$0xff] %v5238
  %5382 = vst [vmem:[#allocation5 + $0x108] sm:$0xff] %v5240
  %5383 = vst [vmem:[#allocation5 + $0x110] sm:$0xff] %v5331
  %5384 = vst [vmem:[#allocation5 + $0x118] sm:$0xff] %v5333
  %5385 = vst [vmem:[#allocation5 + $0x120] sm:$0xff] %v5242
  %5386 = vst [vmem:[#allocation5 + $0x128] sm:$0xff] %v5244
  %5387 = vst [vmem:[#allocation5 + $0x130] sm:$0xff] %v5335
  %5388 = vst [vmem:[#allocation5 + $0x138] sm:$0xff] %v5337
  %5389 = vst [vmem:[#allocation5 + $0x140] sm:$0xff] %v5248
  %5390 = vst [vmem:[#allocation5 + $0x148] sm:$0xff] %v5250
  %5391 = vst [vmem:[#allocation5 + $0x150] sm:$0xff] %v5341
  %5392 = vst [vmem:[#allocation5 + $0x158] sm:$0xff] %v5343
  %5393 = vst [vmem:[#allocation5 + $0x160] sm:$0xff] %v5252
  %5394 = vst [vmem:[#allocation5 + $0x168] sm:$0xff] %v5254
  %5395 = vst [vmem:[#allocation5 + $0x170] sm:$0xff] %v5345
  %5396 = vst [vmem:[#allocation5 + $0x178] sm:$0xff] %v5347
  %v5397 = vld [vmem:[%s8] sm:$0xff]
  %v5398 = vld [vmem:[%s8 + $0x8] sm:$0xff]
  %v5399 = vld [vmem:[%s8 + $0x10] sm:$0xff]
  %v5400 = vld [vmem:[%s8 + $0x18] sm:$0xff]
  %v5401 = vld [vmem:[%s8 + $0x20] sm:$0xff]
  %v5402 = vld [vmem:[%s8 + $0x28] sm:$0xff]
  %v5403 = vld [vmem:[%s8 + $0x30] sm:$0xff]
  %v5404 = vld [vmem:[%s8 + $0x38] sm:$0xff]
  %v5405 = vld [vmem:[%s8 + $0x40] sm:$0xff]
  %v5406 = vld [vmem:[%s8 + $0x48] sm:$0xff]
  %v5407 = vld [vmem:[%s8 + $0x50] sm:$0xff]
  %v5408 = vld [vmem:[%s8 + $0x58] sm:$0xff]
  %v5409 = vld [vmem:[%s8 + $0x60] sm:$0xff]
  %v5410 = vld [vmem:[%s8 + $0x68] sm:$0xff]
  %v5411 = vld [vmem:[%s8 + $0x70] sm:$0xff]
  %v5412 = vld [vmem:[%s8 + $0x78] sm:$0xff]
  %v5413 = vld [vmem:[%s8 + $0x80] sm:$0xff]
  %v5414 = vld [vmem:[%s8 + $0x88] sm:$0xff]
  %v5415 = vld [vmem:[%s8 + $0x90] sm:$0xff]
  %v5416 = vld [vmem:[%s8 + $0x98] sm:$0xff]
  %v5417 = vld [vmem:[%s8 + $0xa0] sm:$0xff]
  %v5418 = vld [vmem:[%s8 + $0xa8] sm:$0xff]
  %v5419 = vld [vmem:[%s8 + $0xb0] sm:$0xff]
  %v5420 = vld [vmem:[%s8 + $0xb8] sm:$0xff]
  %v5421 = vld [vmem:[%s8 + $0xc0] sm:$0xff]
  %v5422 = vld [vmem:[%s8 + $0xc8] sm:$0xff]
  %v5423 = vld [vmem:[%s8 + $0xd0] sm:$0xff]
  %v5424 = vld [vmem:[%s8 + $0xd8] sm:$0xff]
  %v5425 = vld [vmem:[%s8 + $0xe0] sm:$0xff]
  %v5426 = vld [vmem:[%s8 + $0xe8] sm:$0xff]
  %v5427 = vld [vmem:[%s8 + $0xf0] sm:$0xff]
  %v5428 = vld [vmem:[%s8 + $0xf8] sm:$0xff]
  %s5429 = smul.addr %s845, 8
  %s5430 = scalar_lea.vmem [#allocation4], %s5429
  %v5431 = vld [vmem:[%s5430] sm:$0xff]
  %v5432 = vld [vmem:[%s5430 + $0x8] sm:$0xff]
  %v5433 = vld [vmem:[%s5430 + $0x10] sm:$0xff]
  %v5434 = vld [vmem:[%s5430 + $0x18] sm:$0xff]
  %v5467 = vunpack.c.l.b16 %v5397
  %v5468 = vunpack.c.h.b16 %v5397
  %v5469 = vunpack.c.l.b16 %v5398
  %v5470 = vunpack.c.h.b16 %v5398
  %v5471 = vunpack.c.l.b16 %v5399
  %v5472 = vunpack.c.h.b16 %v5399
  %v5473 = vunpack.c.l.b16 %v5400
  %v5474 = vunpack.c.h.b16 %v5400
  %v5475 = vunpack.c.l.b16 %v5401
  %v5476 = vunpack.c.h.b16 %v5401
  %v5477 = vunpack.c.l.b16 %v5402
  %v5478 = vunpack.c.h.b16 %v5402
  %v5479 = vunpack.c.l.b16 %v5403
  %v5480 = vunpack.c.h.b16 %v5403
  %v5481 = vunpack.c.l.b16 %v5404
  %v5482 = vunpack.c.h.b16 %v5404
  %v5483 = vunpack.c.l.b16 %v5405
  %v5484 = vunpack.c.h.b16 %v5405
  %v5485 = vunpack.c.l.b16 %v5406
  %v5486 = vunpack.c.h.b16 %v5406
  %v5487 = vunpack.c.l.b16 %v5407
  %v5488 = vunpack.c.h.b16 %v5407
  %v5489 = vunpack.c.l.b16 %v5408
  %v5490 = vunpack.c.h.b16 %v5408
  %v5491 = vunpack.c.l.b16 %v5409
  %v5492 = vunpack.c.h.b16 %v5409
  %v5493 = vunpack.c.l.b16 %v5410
  %v5494 = vunpack.c.h.b16 %v5410
  %v5495 = vunpack.c.l.b16 %v5411
  %v5496 = vunpack.c.h.b16 %v5411
  %v5497 = vunpack.c.l.b16 %v5412
  %v5498 = vunpack.c.h.b16 %v5412
  %v5499 = vunpack.c.l.b16 %v5413
  %v5500 = vunpack.c.h.b16 %v5413
  %v5501 = vunpack.c.l.b16 %v5414
  %v5502 = vunpack.c.h.b16 %v5414
  %v5503 = vunpack.c.l.b16 %v5415
  %v5504 = vunpack.c.h.b16 %v5415
  %v5505 = vunpack.c.l.b16 %v5416
  %v5506 = vunpack.c.h.b16 %v5416
  %v5507 = vunpack.c.l.b16 %v5417
  %v5508 = vunpack.c.h.b16 %v5417
  %v5509 = vunpack.c.l.b16 %v5418
  %v5510 = vunpack.c.h.b16 %v5418
  %v5511 = vunpack.c.l.b16 %v5419
  %v5512 = vunpack.c.h.b16 %v5419
  %v5513 = vunpack.c.l.b16 %v5420
  %v5514 = vunpack.c.h.b16 %v5420
  %v5515 = vunpack.c.l.b16 %v5421
  %v5516 = vunpack.c.h.b16 %v5421
  %v5517 = vunpack.c.l.b16 %v5422
  %v5518 = vunpack.c.h.b16 %v5422
  %v5519 = vunpack.c.l.b16 %v5423
  %v5520 = vunpack.c.h.b16 %v5423
  %v5521 = vunpack.c.l.b16 %v5424
  %v5522 = vunpack.c.h.b16 %v5424
  %v5523 = vunpack.c.l.b16 %v5425
  %v5524 = vunpack.c.h.b16 %v5425
  %v5525 = vunpack.c.l.b16 %v5426
  %v5526 = vunpack.c.h.b16 %v5426
  %v5527 = vunpack.c.l.b16 %v5427
  %v5528 = vunpack.c.h.b16 %v5427
  %v5529 = vunpack.c.l.b16 %v5428
  %v5530 = vunpack.c.h.b16 %v5428
  %v5531 = vpack.c.b16 %v5471, %v5467
  %v5532 = vpack.c.b16 %v5472, %v5468
  %v5533 = vpack.c.b16 %v5473, %v5469
  %v5534 = vpack.c.b16 %v5474, %v5470
  %v5535 = vpack.c.b16 %v5479, %v5475
  %v5536 = vpack.c.b16 %v5480, %v5476
  %v5537 = vpack.c.b16 %v5481, %v5477
  %v5538 = vpack.c.b16 %v5482, %v5478
  %v5539 = vpack.c.b16 %v5487, %v5483
  %v5540 = vpack.c.b16 %v5488, %v5484
  %v5541 = vpack.c.b16 %v5489, %v5485
  %v5542 = vpack.c.b16 %v5490, %v5486
  %v5543 = vpack.c.b16 %v5495, %v5491
  %v5544 = vpack.c.b16 %v5496, %v5492
  %v5545 = vpack.c.b16 %v5497, %v5493
  %v5546 = vpack.c.b16 %v5498, %v5494
  %v5547 = vpack.c.b16 %v5503, %v5499
  %v5548 = vpack.c.b16 %v5504, %v5500
  %v5549 = vpack.c.b16 %v5505, %v5501
  %v5550 = vpack.c.b16 %v5506, %v5502
  %v5551 = vpack.c.b16 %v5511, %v5507
  %v5552 = vpack.c.b16 %v5512, %v5508
  %v5553 = vpack.c.b16 %v5513, %v5509
  %v5554 = vpack.c.b16 %v5514, %v5510
  %v5555 = vpack.c.b16 %v5519, %v5515
  %v5556 = vpack.c.b16 %v5520, %v5516
  %v5557 = vpack.c.b16 %v5521, %v5517
  %v5558 = vpack.c.b16 %v5522, %v5518
  %v5559 = vpack.c.b16 %v5527, %v5523
  %v5560 = vpack.c.b16 %v5528, %v5524
  %v5561 = vpack.c.b16 %v5529, %v5525
  %v5562 = vpack.c.b16 %v5530, %v5526
  %5595 = vmatprep.subr.bf16.mxu0 %v5532
  %5596 = vmatpush1.bf16.msra.mxu0 %v5531
  %5597 = vmatprep.subr.bf16.mxu0 %v5536
  %5598 = vmatpush1.bf16.msra.mxu0 %v5535
  %5599 = vmatprep.subr.bf16.mxu0 %v5540
  %5600 = vmatpush1.bf16.msra.mxu0 %v5539
  %5601 = vmatprep.subr.bf16.mxu0 %v5544
  %5602 = vmatpush1.bf16.msra.mxu0 %v5543
  %5603 = vmatprep.subr.bf16.mxu0 %v5548
  %5604 = vmatpush1.bf16.msra.mxu0 %v5547
  %5605 = vmatprep.subr.bf16.mxu0 %v5552
  %5606 = vmatpush1.bf16.msra.mxu0 %v5551
  %5607 = vmatprep.subr.bf16.mxu0 %v5556
  %5608 = vmatpush1.bf16.msra.mxu0 %v5555
  %5609 = vmatprep.subr.bf16.mxu0 %v5560
  %5610 = vmatpush1.bf16.msra.mxu0 %v5559
  %5611 = vmatprep.subr.bf16.mxu0 0
  %5612 = vmatpush1.bf16.msra.mxu0 0
  %5613 = vmatprep.subr.bf16.mxu0 0
  %5614 = vmatpush1.bf16.msra.mxu0 0
  %5615 = vmatprep.subr.bf16.mxu0 0
  %5616 = vmatpush1.bf16.msra.mxu0 0
  %5617 = vmatprep.subr.bf16.mxu0 0
  %5618 = vmatpush1.bf16.msra.mxu0 0
  %5619 = vmatprep.subr.bf16.mxu0 0
  %5620 = vmatpush1.bf16.msra.mxu0 0
  %5621 = vmatprep.subr.bf16.mxu0 0
  %5622 = vmatpush1.bf16.msra.mxu0 0
  %5623 = vmatprep.subr.bf16.mxu0 0
  %5624 = vmatpush1.bf16.msra.mxu0 0
  %5625 = vmatprep.subr.bf16.mxu0 0
  %5626 = vmatpush1.bf16.msra.mxu0 0
  %5627 = vmatprep.mubr.bf16.mxu0 0
  %5628 = vmatmul.mubr.bf16.gmra.mrb[0].mxu0 0
  %v5629 = vpop.f32.mrb[0].mxu0
  %v5630 = vadd.f32 0.0, %v5629
  %v5631 = vpop.f32.mrb[0].mxu0
  %v5632 = vadd.f32 0.0, %v5631
  %v5633 = vpop.f32.mrb[0].mxu0
  %v5634 = vpop.f32.mrb[0].mxu0
  %5635 = vdwg.mxu0
  %5636 = vmatprep.subr.bf16.mxu0 %v5534
  %5637 = vmatpush1.bf16.msra.mxu0 %v5533
  %5638 = vmatprep.subr.bf16.mxu0 %v5538
  %5639 = vmatpush1.bf16.msra.mxu0 %v5537
  %5640 = vmatprep.subr.bf16.mxu0 %v5542
  %5641 = vmatpush1.bf16.msra.mxu0 %v5541
  %5642 = vmatprep.subr.bf16.mxu0 %v5546
  %5643 = vmatpush1.bf16.msra.mxu0 %v5545
  %5644 = vmatprep.subr.bf16.mxu0 %v5550
  %5645 = vmatpush1.bf16.msra.mxu0 %v5549
  %5646 = vmatprep.subr.bf16.mxu0 %v5554
  %5647 = vmatpush1.bf16.msra.mxu0 %v5553
  %5648 = vmatprep.subr.bf16.mxu0 %v5558
  %5649 = vmatpush1.bf16.msra.mxu0 %v5557
  %5650 = vmatprep.subr.bf16.mxu0 %v5562
  %5651 = vmatpush1.bf16.msra.mxu0 %v5561
  %5652 = vmatprep.subr.bf16.mxu0 0
  %5653 = vmatpush1.bf16.msra.mxu0 0
  %5654 = vmatprep.subr.bf16.mxu0 0
  %5655 = vmatpush1.bf16.msra.mxu0 0
  %5656 = vmatprep.subr.bf16.mxu0 0
  %5657 = vmatpush1.bf16.msra.mxu0 0
  %5658 = vmatprep.subr.bf16.mxu0 0
  %5659 = vmatpush1.bf16.msra.mxu0 0
  %5660 = vmatprep.subr.bf16.mxu0 0
  %5661 = vmatpush1.bf16.msra.mxu0 0
  %5662 = vmatprep.subr.bf16.mxu0 0
  %5663 = vmatpush1.bf16.msra.mxu0 0
  %5664 = vmatprep.subr.bf16.mxu0 0
  %5665 = vmatpush1.bf16.msra.mxu0 0
  %5666 = vmatprep.subr.bf16.mxu0 0
  %5667 = vmatpush1.bf16.msra.mxu0 0
  %5668 = vmatprep.mubr.bf16.mxu0 0
  %5669 = vmatmul.mubr.bf16.gmra.mrb[0].mxu0 0
  %v5670 = vpop.f32.mrb[0].mxu0
  %v5671 = vadd.f32 0.0, %v5670
  %v5672 = vpop.f32.mrb[0].mxu0
  %v5673 = vadd.f32 0.0, %v5672
  %v5674 = vpop.f32.mrb[0].mxu0
  %v5675 = vpop.f32.mrb[0].mxu0
  %5676 = vdwg.mxu0
  %v5677 = vadd.f32 %v5431, %v5630
  %v5678 = vadd.f32 %v5432, %v5632
  %v5679 = vadd.f32 %v5433, %v5671
  %v5680 = vadd.f32 %v5434, %v5673
  %v5681 = vxor.u32 %v5677, 2147483648
  %v5682 = vmul.f32 %v5681, 1.442695
  %v5683 = vpow.pop %v5682
  %v5684 = vadd.f32 %v5683, 1.0
  %v5685 = vrcp.pop %v5684
  %v5686 = vmul.f32 1.0, %v5685
  %v5687 = vxor.u32 %v5678, 2147483648
  %v5688 = vmul.f32 %v5687, 1.442695
  %v5689 = vpow.pop %v5688
  %v5690 = vadd.f32 %v5689, 1.0
  %v5691 = vrcp.pop %v5690
  %v5692 = vmul.f32 1.0, %v5691
  %v5693 = vtanh.pop %v5679
  %v5694 = vxor.u32 %v5680, 2147483648
  %v5695 = vmul.f32 %v5694, 1.442695
  %v5696 = vpow.pop %v5695
  %v5697 = vadd.f32 %v5696, 1.0
  %v5698 = vrcp.pop %v5697
  %v5699 = vmul.f32 1.0, %v5698
  %v5700 = vmul.f32 %v5692, 0.0
  %v5701 = vmul.f32 %v5686, %v5693
  %v5702 = vadd.f32 %v5700, %v5701
  %v5703 = vtanh.pop %v5702
  %v5704 = vmul.f32 %v5699, %v5703
  %s5705 = smul.addr %s1122, 8
  %s5706 = scalar_lea.vmem %s13, %s5705
  %5707 = vst [vmem:[%s5706] sm:$0xff] %v5704
  %s5708 = smul.addr %s1126, 8
  %s5709 = scalar_lea.vmem [#allocation4], %s5708
  %v5710 = vld [vmem:[%s5709] sm:$0xff]
  %v5711 = vld [vmem:[%s5709 + $0x8] sm:$0xff]
  %v5712 = vld [vmem:[%s5709 + $0x10] sm:$0xff]
  %v5713 = vld [vmem:[%s5709 + $0x18] sm:$0xff]
  %v5714 = vpack.c.bf16 %v5704, %v5704
  %5715 = vmatprep.subr.bf16.mxu0 %v5532
  %5716 = vmatpush1.bf16.msra.mxu0 %v5531
  %5717 = vmatprep.subr.bf16.mxu0 %v5536
  %5718 = vmatpush1.bf16.msra.mxu0 %v5535
  %5719 = vmatprep.subr.bf16.mxu0 %v5540
  %5720 = vmatpush1.bf16.msra.mxu0 %v5539
  %5721 = vmatprep.subr.bf16.mxu0 %v5544
  %5722 = vmatpush1.bf16.msra.mxu0 %v5543
  %5723 = vmatprep.subr.bf16.mxu0 %v5548
  %5724 = vmatpush1.bf16.msra.mxu0 %v5547
  %5725 = vmatprep.subr.bf16.mxu0 %v5552
  %5726 = vmatpush1.bf16.msra.mxu0 %v5551
  %5727 = vmatprep.subr.bf16.mxu0 %v5556
  %5728 = vmatpush1.bf16.msra.mxu0 %v5555
  %5729 = vmatprep.subr.bf16.mxu0 %v5560
  %5730 = vmatpush1.bf16.msra.mxu0 %v5559
  %5731 = vmatprep.subr.bf16.mxu0 0
  %5732 = vmatpush1.bf16.msra.mxu0 0
  %5733 = vmatprep.subr.bf16.mxu0 0
  %5734 = vmatpush1.bf16.msra.mxu0 0
  %5735 = vmatprep.subr.bf16.mxu0 0
  %5736 = vmatpush1.bf16.msra.mxu0 0
  %5737 = vmatprep.subr.bf16.mxu0 0
  %5738 = vmatpush1.bf16.msra.mxu0 0
  %5739 = vmatprep.subr.bf16.mxu0 0
  %5740 = vmatpush1.bf16.msra.mxu0 0
  %5741 = vmatprep.subr.bf16.mxu0 0
  %5742 = vmatpush1.bf16.msra.mxu0 0
  %5743 = vmatprep.subr.bf16.mxu0 0
  %5744 = vmatpush1.bf16.msra.mxu0 0
  %5745 = vmatprep.subr.bf16.mxu0 0
  %5746 = vmatpush1.bf16.msra.mxu0 0
  %5747 = vmatprep.mubr.bf16.mxu0 0
  %5748 = vmatmul.mubr.bf16.gmra.mrb[0].mxu0 %v5714
  %v5749 = vpop.f32.mrb[0].mxu0
  %v5750 = vadd.f32 0.0, %v5749
  %v5751 = vpop.f32.mrb[0].mxu0
  %v5752 = vadd.f32 0.0, %v5751
  %v5753 = vpop.f32.mrb[0].mxu0
  %v5754 = vpop.f32.mrb[0].mxu0
  %5755 = vdwg.mxu0
  %5756 = vmatprep.subr.bf16.mxu0 %v5534
  %5757 = vmatpush1.bf16.msra.mxu0 %v5533
  %5758 = vmatprep.subr.bf16.mxu0 %v5538
  %5759 = vmatpush1.bf16.msra.mxu0 %v5537
  %5760 = vmatprep.subr.bf16.mxu0 %v5542
  %5761 = vmatpush1.bf16.msra.mxu0 %v5541
  %5762 = vmatprep.subr.bf16.mxu0 %v5546
  %5763 = vmatpush1.bf16.msra.mxu0 %v5545
  %5764 = vmatprep.subr.bf16.mxu0 %v5550
  %5765 = vmatpush1.bf16.msra.mxu0 %v5549
  %5766 = vmatprep.subr.bf16.mxu0 %v5554
  %5767 = vmatpush1.bf16.msra.mxu0 %v5553
  %5768 = vmatprep.subr.bf16.mxu0 %v5558
  %5769 = vmatpush1.bf16.msra.mxu0 %v5557
  %5770 = vmatprep.subr.bf16.mxu0 %v5562
  %5771 = vmatpush1.bf16.msra.mxu0 %v5561
  %5772 = vmatprep.subr.bf16.mxu0 0
  %5773 = vmatpush1.bf16.msra.mxu0 0
  %5774 = vmatprep.subr.bf16.mxu0 0
  %5775 = vmatpush1.bf16.msra.mxu0 0
  %5776 = vmatprep.subr.bf16.mxu0 0
  %5777 = vmatpush1.bf16.msra.mxu0 0
  %5778 = vmatprep.subr.bf16.mxu0 0
  %5779 = vmatpush1.bf16.msra.mxu0 0
  %5780 = vmatprep.subr.bf16.mxu0 0
  %5781 = vmatpush1.bf16.msra.mxu0 0
  %5782 = vmatprep.subr.bf16.mxu0 0
  %5783 = vmatpush1.bf16.msra.mxu0 0
  %5784 = vmatprep.subr.bf16.mxu0 0
  %5785 = vmatpush1.bf16.msra.mxu0 0
  %5786 = vmatprep.subr.bf16.mxu0 0
  %5787 = vmatpush1.bf16.msra.mxu0 0
  %5788 = vmatprep.mubr.bf16.mxu0 0
  %5789 = vmatmul.mubr.bf16.gmra.mrb[0].mxu0 %v5714
  %v5790 = vpop.f32.mrb[0].mxu0
  %v5791 = vadd.f32 0.0, %v5790
  %v5792 = vpop.f32.mrb[0].mxu0
  %v5793 = vadd.f32 0.0, %v5792
  %v5794 = vpop.f32.mrb[0].mxu0
  %v5795 = vpop.f32.mrb[0].mxu0
  %5796 = vdwg.mxu0
  %v5797 = vadd.f32 %v5710, %v5750
  %v5798 = vadd.f32 %v5711, %v5752
  %v5799 = vadd.f32 %v5712, %v5791
  %v5800 = vadd.f32 %v5713, %v5793
  %v5801 = vxor.u32 %v5797, 2147483648
  %v5802 = vmul.f32 %v5801, 1.442695
  %v5803 = vpow.pop %v5802
  %v5804 = vadd.f32 %v5803, 1.0
  %v5805 = vrcp.pop %v5804
  %v5806 = vmul.f32 1.0, %v5805
  %v5807 = vxor.u32 %v5798, 2147483648
  %v5808 = vmul.f32 %v5807, 1.442695
  %v5809 = vpow.pop %v5808
  %v5810 = vadd.f32 %v5809, 1.0
  %v5811 = vrcp.pop %v5810
  %v5812 = vmul.f32 1.0, %v5811
  %v5813 = vtanh.pop %v5799
  %v5814 = vxor.u32 %v5800, 2147483648
  %v5815 = vmul.f32 %v5814, 1.442695
  %v5816 = vpow.pop %v5815
  %v5817 = vadd.f32 %v5816, 1.0
  %v5818 = vrcp.pop %v5817
  %v5819 = vmul.f32 1.0, %v5818
  %v5820 = vmul.f32 %v5812, %v5702
  %v5821 = vmul.f32 %v5806, %v5813
  %v5822 = vadd.f32 %v5820, %v5821
  %v5823 = vtanh.pop %v5822
  %v5824 = vmul.f32 %v5819, %v5823
  %s5825 = smul.addr %s1244, 8
  %s5826 = scalar_lea.vmem %s13, %s5825
  %5827 = vst [vmem:[%s5826] sm:$0xff] %v5824
  %s5828 = smul.addr %s1248, 8
  %s5829 = scalar_lea.vmem [#allocation4], %s5828
  %v5830 = vld [vmem:[%s5829] sm:$0xff]
  %v5831 = vld [vmem:[%s5829 + $0x8] sm:$0xff]
  %v5832 = vld [vmem:[%s5829 + $0x10] sm:$0xff]
  %v5833 = vld [vmem:[%s5829 + $0x18] sm:$0xff]
  %v5834 = vpack.c.bf16 %v5824, %v5824
  %5835 = vmatprep.subr.bf16.mxu0 %v5532
  %5836 = vmatpush1.bf16.msra.mxu0 %v5531
  %5837 = vmatprep.subr.bf16.mxu0 %v5536
  %5838 = vmatpush1.bf16.msra.mxu0 %v5535
  %5839 = vmatprep.subr.bf16.mxu0 %v5540
  %5840 = vmatpush1.bf16.msra.mxu0 %v5539
  %5841 = vmatprep.subr.bf16.mxu0 %v5544
  %5842 = vmatpush1.bf16.msra.mxu0 %v5543
  %5843 = vmatprep.subr.bf16.mxu0 %v5548
  %5844 = vmatpush1.bf16.msra.mxu0 %v5547
  %5845 = vmatprep.subr.bf16.mxu0 %v5552
  %5846 = vmatpush1.bf16.msra.mxu0 %v5551
  %5847 = vmatprep.subr.bf16.mxu0 %v5556
  %5848 = vmatpush1.bf16.msra.mxu0 %v5555
  %5849 = vmatprep.subr.bf16.mxu0 %v5560
  %5850 = vmatpush1.bf16.msra.mxu0 %v5559
  %5851 = vmatprep.subr.bf16.mxu0 0
  %5852 = vmatpush1.bf16.msra.mxu0 0
  %5853 = vmatprep.subr.bf16.mxu0 0
  %5854 = vmatpush1.bf16.msra.mxu0 0
  %5855 = vmatprep.subr.bf16.mxu0 0
  %5856 = vmatpush1.bf16.msra.mxu0 0
  %5857 = vmatprep.subr.bf16.mxu0 0
  %5858 = vmatpush1.bf16.msra.mxu0 0
  %5859 = vmatprep.subr.bf16.mxu0 0
  %5860 = vmatpush1.bf16.msra.mxu0 0
  %5861 = vmatprep.subr.bf16.mxu0 0
  %5862 = vmatpush1.bf16.msra.mxu0 0
  %5863 = vmatprep.subr.bf16.mxu0 0
  %5864 = vmatpush1.bf16.msra.mxu0 0
  %5865 = vmatprep.subr.bf16.mxu0 0
  %5866 = vmatpush1.bf16.msra.mxu0 0
  %5867 = vmatprep.mubr.bf16.mxu0 0
  %5868 = vmatmul.mubr.bf16.gmra.mrb[0].mxu0 %v5834
  %v5869 = vpop.f32.mrb[0].mxu0
  %v5870 = vadd.f32 0.0, %v5869
  %v5871 = vpop.f32.mrb[0].mxu0
  %v5872 = vadd.f32 0.0, %v5871
  %v5873 = vpop.f32.mrb[0].mxu0
  %v5874 = vpop.f32.mrb[0].mxu0
  %5875 = vdwg.mxu0
  %5876 = vmatprep.subr.bf16.mxu0 %v5534
  %5877 = vmatpush1.bf16.msra.mxu0 %v5533
  %5878 = vmatprep.subr.bf16.mxu0 %v5538
  %5879 = vmatpush1.bf16.msra.mxu0 %v5537
  %5880 = vmatprep.subr.bf16.mxu0 %v5542
  %5881 = vmatpush1.bf16.msra.mxu0 %v5541
  %5882 = vmatprep.subr.bf16.mxu0 %v5546
  %5883 = vmatpush1.bf16.msra.mxu0 %v5545
  %5884 = vmatprep.subr.bf16.mxu0 %v5550
  %5885 = vmatpush1.bf16.msra.mxu0 %v5549
  %5886 = vmatprep.subr.bf16.mxu0 %v5554
  %5887 = vmatpush1.bf16.msra.mxu0 %v5553
  %5888 = vmatprep.subr.bf16.mxu0 %v5558
  %5889 = vmatpush1.bf16.msra.mxu0 %v5557
  %5890 = vmatprep.subr.bf16.mxu0 %v5562
  %5891 = vmatpush1.bf16.msra.mxu0 %v5561
  %5892 = vmatprep.subr.bf16.mxu0 0
  %5893 = vmatpush1.bf16.msra.mxu0 0
  %5894 = vmatprep.subr.bf16.mxu0 0
  %5895 = vmatpush1.bf16.msra.mxu0 0
  %5896 = vmatprep.subr.bf16.mxu0 0
  %5897 = vmatpush1.bf16.msra.mxu0 0
  %5898 = vmatprep.subr.bf16.mxu0 0
  %5899 = vmatpush1.bf16.msra.mxu0 0
  %5900 = vmatprep.subr.bf16.mxu0 0
  %5901 = vmatpush1.bf16.msra.mxu0 0
  %5902 = vmatprep.subr.bf16.mxu0 0
  %5903 = vmatpush1.bf16.msra.mxu0 0
  %5904 = vmatprep.subr.bf16.mxu0 0
  %5905 = vmatpush1.bf16.msra.mxu0 0
  %5906 = vmatprep.subr.bf16.mxu0 0
  %5907 = vmatpush1.bf16.msra.mxu0 0
  %5908 = vmatprep.mubr.bf16.mxu0 0
  %5909 = vmatmul.mubr.bf16.gmra.mrb[0].mxu0 %v5834
  %v5910 = vpop.f32.mrb[0].mxu0
  %v5911 = vadd.f32 0.0, %v5910
  %v5912 = vpop.f32.mrb[0].mxu0
  %v5913 = vadd.f32 0.0, %v5912
  %v5914 = vpop.f32.mrb[0].mxu0
  %v5915 = vpop.f32.mrb[0].mxu0
  %5916 = vdwg.mxu0
  %v5917 = vadd.f32 %v5830, %v5870
  %v5918 = vadd.f32 %v5831, %v5872
  %v5919 = vadd.f32 %v5832, %v5911
  %v5920 = vadd.f32 %v5833, %v5913
  %v5921 = vxor.u32 %v5917, 2147483648
  %v5922 = vmul.f32 %v5921, 1.442695
  %v5923 = vpow.pop %v5922
  %v5924 = vadd.f32 %v5923, 1.0
  %v5925 = vrcp.pop %v5924
  %v5926 = vmul.f32 1.0, %v5925
  %v5927 = vxor.u32 %v5918, 2147483648
  %v5928 = vmul.f32 %v5927, 1.442695
  %v5929 = vpow.pop %v5928
  %v5930 = vadd.f32 %v5929, 1.0
  %v5931 = vrcp.pop %v5930
  %v5932 = vmul.f32 1.0, %v5931
  %v5933 = vtanh.pop %v5919
  %v5934 = vxor.u32 %v5920, 2147483648
  %v5935 = vmul.f32 %v5934, 1.442695
  %v5936 = vpow.pop %v5935
  %v5937 = vadd.f32 %v5936, 1.0
  %v5938 = vrcp.pop %v5937
  %v5939 = vmul.f32 1.0, %v5938
  %v5940 = vmul.f32 %v5932, %v5822
  %v5941 = vmul.f32 %v5926, %v5933
  %v5942 = vadd.f32 %v5940, %v5941
  %v5943 = vtanh.pop %v5942
  %v5944 = vmul.f32 %v5939, %v5943
  %s5945 = smul.addr %s1366, 8
  %s5946 = scalar_lea.vmem %s13, %s5945
  %5947 = vst [vmem:[%s5946] sm:$0xff] %v5944
  %s5948 = smul.addr %s1370, 8
  %s5949 = scalar_lea.vmem [#allocation4], %s5948
  %v5950 = vld [vmem:[%s5949] sm:$0xff]
  %v5951 = vld [vmem:[%s5949 + $0x8] sm:$0xff]
  %v5952 = vld [vmem:[%s5949 + $0x10] sm:$0xff]
  %v5953 = vld [vmem:[%s5949 + $0x18] sm:$0xff]
  %v5954 = vpack.c.bf16 %v5944, %v5944
  %5955 = vmatprep.subr.bf16.mxu0 %v5532
  %5956 = vmatpush1.bf16.msra.mxu0 %v5531
  %5957 = vmatprep.subr.bf16.mxu0 %v5536
  %5958 = vmatpush1.bf16.msra.mxu0 %v5535
  %5959 = vmatprep.subr.bf16.mxu0 %v5540
  %5960 = vmatpush1.bf16.msra.mxu0 %v5539
  %5961 = vmatprep.subr.bf16.mxu0 %v5544
  %5962 = vmatpush1.bf16.msra.mxu0 %v5543
  %5963 = vmatprep.subr.bf16.mxu0 %v5548
  %5964 = vmatpush1.bf16.msra.mxu0 %v5547
  %5965 = vmatprep.subr.bf16.mxu0 %v5552
  %5966 = vmatpush1.bf16.msra.mxu0 %v5551
  %5967 = vmatprep.subr.bf16.mxu0 %v5556
  %5968 = vmatpush1.bf16.msra.mxu0 %v5555
  %5969 = vmatprep.subr.bf16.mxu0 %v5560
  %5970 = vmatpush1.bf16.msra.mxu0 %v5559
  %5971 = vmatprep.subr.bf16.mxu0 0
  %5972 = vmatpush1.bf16.msra.mxu0 0
  %5973 = vmatprep.subr.bf16.mxu0 0
  %5974 = vmatpush1.bf16.msra.mxu0 0
  %5975 = vmatprep.subr.bf16.mxu0 0
  %5976 = vmatpush1.bf16.msra.mxu0 0
  %5977 = vmatprep.subr.bf16.mxu0 0
  %5978 = vmatpush1.bf16.msra.mxu0 0
  %5979 = vmatprep.subr.bf16.mxu0 0
  %5980 = vmatpush1.bf16.msra.mxu0 0
  %5981 = vmatprep.subr.bf16.mxu0 0
  %5982 = vmatpush1.bf16.msra.mxu0 0
  %5983 = vmatprep.subr.bf16.mxu0 0
  %5984 = vmatpush1.bf16.msra.mxu0 0
  %5985 = vmatprep.subr.bf16.mxu0 0
  %5986 = vmatpush1.bf16.msra.mxu0 0
  %5987 = vmatprep.mubr.bf16.mxu0 0
  %5988 = vmatmul.mubr.bf16.gmra.mrb[0].mxu0 %v5954
  %v5989 = vpop.f32.mrb[0].mxu0
  %v5990 = vadd.f32 0.0, %v5989
  %v5991 = vpop.f32.mrb[0].mxu0
  %v5992 = vadd.f32 0.0, %v5991
  %v5993 = vpop.f32.mrb[0].mxu0
  %v5994 = vpop.f32.mrb[0].mxu0
  %5995 = vdwg.mxu0
  %5996 = vmatprep.subr.bf16.mxu0 %v5534
  %5997 = vmatpush1.bf16.msra.mxu0 %v5533
  %5998 = vmatprep.subr.bf16.mxu0 %v5538
  %5999 = vmatpush1.bf16.msra.mxu0 %v5537
  %6000 = vmatprep.subr.bf16.mxu0 %v5542
  %6001 = vmatpush1.bf16.msra.mxu0 %v5541
  %6002 = vmatprep.subr.bf16.mxu0 %v5546
  %6003 = vmatpush1.bf16.msra.mxu0 %v5545
  %6004 = vmatprep.subr.bf16.mxu0 %v5550
  %6005 = vmatpush1.bf16.msra.mxu0 %v5549
  %6006 = vmatprep.subr.bf16.mxu0 %v5554
  %6007 = vmatpush1.bf16.msra.mxu0 %v5553
  %6008 = vmatprep.subr.bf16.mxu0 %v5558
  %6009 = vmatpush1.bf16.msra.mxu0 %v5557
  %6010 = vmatprep.subr.bf16.mxu0 %v5562
  %6011 = vmatpush1.bf16.msra.mxu0 %v5561
  %6012 = vmatprep.subr.bf16.mxu0 0
  %6013 = vmatpush1.bf16.msra.mxu0 0
  %6014 = vmatprep.subr.bf16.mxu0 0
  %6015 = vmatpush1.bf16.msra.mxu0 0
  %6016 = vmatprep.subr.bf16.mxu0 0
  %6017 = vmatpush1.bf16.msra.mxu0 0
  %6018 = vmatprep.subr.bf16.mxu0 0
  %6019 = vmatpush1.bf16.msra.mxu0 0
  %6020 = vmatprep.subr.bf16.mxu0 0
  %6021 = vmatpush1.bf16.msra.mxu0 0
  %6022 = vmatprep.subr.bf16.mxu0 0
  %6023 = vmatpush1.bf16.msra.mxu0 0
  %6024 = vmatprep.subr.bf16.mxu0 0
  %6025 = vmatpush1.bf16.msra.mxu0 0
  %6026 = vmatprep.subr.bf16.mxu0 0
  %6027 = vmatpush1.bf16.msra.mxu0 0
  %6028 = vmatprep.mubr.bf16.mxu0 0
  %6029 = vmatmul.mubr.bf16.gmra.mrb[0].mxu0 %v5954
  %v6030 = vpop.f32.mrb[0].mxu0
  %v6031 = vadd.f32 0.0, %v6030
  %v6032 = vpop.f32.mrb[0].mxu0
  %v6033 = vadd.f32 0.0, %v6032
  %v6034 = vpop.f32.mrb[0].mxu0
  %v6035 = vpop.f32.mrb[0].mxu0
  %6036 = vdwg.mxu0
  %v6037 = vadd.f32 %v5950, %v5990
  %v6038 = vadd.f32 %v5951, %v5992
  %v6039 = vadd.f32 %v5952, %v6031
  %v6040 = vadd.f32 %v5953, %v6033
  %v6041 = vxor.u32 %v6037, 2147483648
  %v6042 = vmul.f32 %v6041, 1.442695
  %v6043 = vpow.pop %v6042
  %v6044 = vadd.f32 %v6043, 1.0
  %v6045 = vrcp.pop %v6044
  %v6046 = vmul.f32 1.0, %v6045
  %v6047 = vxor.u32 %v6038, 2147483648
  %v6048 = vmul.f32 %v6047, 1.442695
  %v6049 = vpow.pop %v6048
  %v6050 = vadd.f32 %v6049, 1.0
  %v6051 = vrcp.pop %v6050
  %v6052 = vmul.f32 1.0, %v6051
  %v6053 = vtanh.pop %v6039
  %v6054 = vxor.u32 %v6040, 2147483648
  %v6055 = vmul.f32 %v6054, 1.442695
  %v6056 = vpow.pop %v6055
  %v6057 = vadd.f32 %v6056, 1.0
  %v6058 = vrcp.pop %v6057
  %v6059 = vmul.f32 1.0, %v6058
  %v6060 = vmul.f32 %v6052, %v5942
  %v6061 = vmul.f32 %v6046, %v6053
  %v6062 = vadd.f32 %v6060, %v6061
  %v6063 = vtanh.pop %v6062
  %v6064 = vmul.f32 %v6059, %v6063
  %s6065 = smul.addr %s1488, 8
  %s6066 = scalar_lea.vmem %s13, %s6065
  %6067 = vst [vmem:[%s6066] sm:$0xff] %v6064
  %s6068 = smul.addr %s1492, 8
  %s6069 = scalar_lea.vmem [#allocation4], %s6068
  %v6070 = vld [vmem:[%s6069] sm:$0xff]
  %v6071 = vld [vmem:[%s6069 + $0x8] sm:$0xff]
  %v6072 = vld [vmem:[%s6069 + $0x10] sm:$0xff]
  %v6073 = vld [vmem:[%s6069 + $0x18] sm:$0xff]
  %v6074 = vpack.c.bf16 %v6064, %v6064
  %6075 = vmatprep.subr.bf16.mxu0 %v5532
  %6076 = vmatpush1.bf16.msra.mxu0 %v5531
  %6077 = vmatprep.subr.bf16.mxu0 %v5536
  %6078 = vmatpush1.bf16.msra.mxu0 %v5535
  %6079 = vmatprep.subr.bf16.mxu0 %v5540
  %6080 = vmatpush1.bf16.msra.mxu0 %v5539
  %6081 = vmatprep.subr.bf16.mxu0 %v5544
  %6082 = vmatpush1.bf16.msra.mxu0 %v5543
  %6083 = vmatprep.subr.bf16.mxu0 %v5548
  %6084 = vmatpush1.bf16.msra.mxu0 %v5547
  %6085 = vmatprep.subr.bf16.mxu0 %v5552
  %6086 = vmatpush1.bf16.msra.mxu0 %v5551
  %6087 = vmatprep.subr.bf16.mxu0 %v5556
  %6088 = vmatpush1.bf16.msra.mxu0 %v5555
  %6089 = vmatprep.subr.bf16.mxu0 %v5560
  %6090 = vmatpush1.bf16.msra.mxu0 %v5559
  %6091 = vmatprep.subr.bf16.mxu0 0
  %6092 = vmatpush1.bf16.msra.mxu0 0
  %6093 = vmatprep.subr.bf16.mxu0 0
  %6094 = vmatpush1.bf16.msra.mxu0 0
  %6095 = vmatprep.subr.bf16.mxu0 0
  %6096 = vmatpush1.bf16.msra.mxu0 0
  %6097 = vmatprep.subr.bf16.mxu0 0
  %6098 = vmatpush1.bf16.msra.mxu0 0
  %6099 = vmatprep.subr.bf16.mxu0 0
  %6100 = vmatpush1.bf16.msra.mxu0 0
  %6101 = vmatprep.subr.bf16.mxu0 0
  %6102 = vmatpush1.bf16.msra.mxu0 0
  %6103 = vmatprep.subr.bf16.mxu0 0
  %6104 = vmatpush1.bf16.msra.mxu0 0
  %6105 = vmatprep.subr.bf16.mxu0 0
  %6106 = vmatpush1.bf16.msra.mxu0 0
  %6107 = vmatprep.mubr.bf16.mxu0 0
  %6108 = vmatmul.mubr.bf16.gmra.mrb[0].mxu0 %v6074
  %v6109 = vpop.f32.mrb[0].mxu0
  %v6110 = vadd.f32 0.0, %v6109
  %v6111 = vpop.f32.mrb[0].mxu0
  %v6112 = vadd.f32 0.0, %v6111
  %v6113 = vpop.f32.mrb[0].mxu0
  %v6114 = vpop.f32.mrb[0].mxu0
  %6115 = vdwg.mxu0
  %6116 = vmatprep.subr.bf16.mxu0 %v5534
  %6117 = vmatpush1.bf16.msra.mxu0 %v5533
  %6118 = vmatprep.subr.bf16.mxu0 %v5538
  %6119 = vmatpush1.bf16.msra.mxu0 %v5537
  %6120 = vmatprep.subr.bf16.mxu0 %v5542
  %6121 = vmatpush1.bf16.msra.mxu0 %v5541
  %6122 = vmatprep.subr.bf16.mxu0 %v5546
  %6123 = vmatpush1.bf16.msra.mxu0 %v5545
  %6124 = vmatprep.subr.bf16.mxu0 %v5550
  %6125 = vmatpush1.bf16.msra.mxu0 %v5549
  %6126 = vmatprep.subr.bf16.mxu0 %v5554
  %6127 = vmatpush1.bf16.msra.mxu0 %v5553
  %6128 = vmatprep.subr.bf16.mxu0 %v5558
  %6129 = vmatpush1.bf16.msra.mxu0 %v5557
  %6130 = vmatprep.subr.bf16.mxu0 %v5562
  %6131 = vmatpush1.bf16.msra.mxu0 %v5561
  %6132 = vmatprep.subr.bf16.mxu0 0
  %6133 = vmatpush1.bf16.msra.mxu0 0
  %6134 = vmatprep.subr.bf16.mxu0 0
  %6135 = vmatpush1.bf16.msra.mxu0 0
  %6136 = vmatprep.subr.bf16.mxu0 0
  %6137 = vmatpush1.bf16.msra.mxu0 0
  %6138 = vmatprep.subr.bf16.mxu0 0
  %6139 = vmatpush1.bf16.msra.mxu0 0
  %6140 = vmatprep.subr.bf16.mxu0 0
  %6141 = vmatpush1.bf16.msra.mxu0 0
  %6142 = vmatprep.subr.bf16.mxu0 0
  %6143 = vmatpush1.bf16.msra.mxu0 0
  %6144 = vmatprep.subr.bf16.mxu0 0
  %6145 = vmatpush1.bf16.msra.mxu0 0
  %6146 = vmatprep.subr.bf16.mxu0 0
  %6147 = vmatpush1.bf16.msra.mxu0 0
  %6148 = vmatprep.mubr.bf16.mxu0 0
  %6149 = vmatmul.mubr.bf16.gmra.mrb[0].mxu0 %v6074
  %v6150 = vpop.f32.mrb[0].mxu0
  %v6151 = vadd.f32 0.0, %v6150
  %v6152 = vpop.f32.mrb[0].mxu0
  %v6153 = vadd.f32 0.0, %v6152
  %v6154 = vpop.f32.mrb[0].mxu0
  %v6155 = vpop.f32.mrb[0].mxu0
  %6156 = vdwg.mxu0
  %v6157 = vadd.f32 %v6070, %v6110
  %v6158 = vadd.f32 %v6071, %v6112
  %v6159 = vadd.f32 %v6072, %v6151
  %v6160 = vadd.f32 %v6073, %v6153
  %v6161 = vxor.u32 %v6157, 2147483648
  %v6162 = vmul.f32 %v6161, 1.442695
  %v6163 = vpow.pop %v6162
  %v6164 = vadd.f32 %v6163, 1.0
  %v6165 = vrcp.pop %v6164
  %v6166 = vmul.f32 1.0, %v6165
  %v6167 = vxor.u32 %v6158, 2147483648
  %v6168 = vmul.f32 %v6167, 1.442695
  %v6169 = vpow.pop %v6168
  %v6170 = vadd.f32 %v6169, 1.0
  %v6171 = vrcp.pop %v6170
  %v6172 = vmul.f32 1.0, %v6171
  %v6173 = vtanh.pop %v6159
  %v6174 = vxor.u32 %v6160, 2147483648
  %v6175 = vmul.f32 %v6174, 1.442695
  %v6176 = vpow.pop %v6175
  %v6177 = vadd.f32 %v6176, 1.0
  %v6178 = vrcp.pop %v6177
  %v6179 = vmul.f32 1.0, %v6178
  %v6180 = vmul.f32 %v6172, %v6062
  %v6181 = vmul.f32 %v6166, %v6173
  %v6182 = vadd.f32 %v6180, %v6181
  %v6183 = vtanh.pop %v6182
  %v6184 = vmul.f32 %v6179, %v6183
  %s6185 = smul.addr %s1610, 8
  %s6186 = scalar_lea.vmem %s13, %s6185
  %6187 = vst [vmem:[%s6186] sm:$0xff] %v6184
  %s6188 = smul.addr %s1614, 8
  %s6189 = scalar_lea.vmem [#allocation4], %s6188
  %v6190 = vld [vmem:[%s6189] sm:$0xff]
  %v6191 = vld [vmem:[%s6189 + $0x8] sm:$0xff]
  %v6192 = vld [vmem:[%s6189 + $0x10] sm:$0xff]
  %v6193 = vld [vmem:[%s6189 + $0x18] sm:$0xff]
  %v6194 = vpack.c.bf16 %v6184, %v6184
  %6195 = vmatprep.subr.bf16.mxu0 %v5532
  %6196 = vmatpush1.bf16.msra.mxu0 %v5531
  %6197 = vmatprep.subr.bf16.mxu0 %v5536
  %6198 = vmatpush1.bf16.msra.mxu0 %v5535
  %6199 = vmatprep.subr.bf16.mxu0 %v5540
  %6200 = vmatpush1.bf16.msra.mxu0 %v5539
  %6201 = vmatprep.subr.bf16.mxu0 %v5544
  %6202 = vmatpush1.bf16.msra.mxu0 %v5543
  %6203 = vmatprep.subr.bf16.mxu0 %v5548
  %6204 = vmatpush1.bf16.msra.mxu0 %v5547
  %6205 = vmatprep.subr.bf16.mxu0 %v5552
  %6206 = vmatpush1.bf16.msra.mxu0 %v5551
  %6207 = vmatprep.subr.bf16.mxu0 %v5556
  %6208 = vmatpush1.bf16.msra.mxu0 %v5555
  %6209 = vmatprep.subr.bf16.mxu0 %v5560
  %6210 = vmatpush1.bf16.msra.mxu0 %v5559
  %6211 = vmatprep.subr.bf16.mxu0 0
  %6212 = vmatpush1.bf16.msra.mxu0 0
  %6213 = vmatprep.subr.bf16.mxu0 0
  %6214 = vmatpush1.bf16.msra.mxu0 0
  %6215 = vmatprep.subr.bf16.mxu0 0
  %6216 = vmatpush1.bf16.msra.mxu0 0
  %6217 = vmatprep.subr.bf16.mxu0 0
  %6218 = vmatpush1.bf16.msra.mxu0 0
  %6219 = vmatprep.subr.bf16.mxu0 0
  %6220 = vmatpush1.bf16.msra.mxu0 0
  %6221 = vmatprep.subr.bf16.mxu0 0
  %6222 = vmatpush1.bf16.msra.mxu0 0
  %6223 = vmatprep.subr.bf16.mxu0 0
  %6224 = vmatpush1.bf16.msra.mxu0 0
  %6225 = vmatprep.subr.bf16.mxu0 0
  %6226 = vmatpush1.bf16.msra.mxu0 0
  %6227 = vmatprep.mubr.bf16.mxu0 0
  %6228 = vmatmul.mubr.bf16.gmra.mrb[0].mxu0 %v6194
  %v6229 = vpop.f32.mrb[0].mxu0
  %v6230 = vadd.f32 0.0, %v6229
  %v6231 = vpop.f32.mrb[0].mxu0
  %v6232 = vadd.f32 0.0, %v6231
  %v6233 = vpop.f32.mrb[0].mxu0
  %v6234 = vpop.f32.mrb[0].mxu0
  %6235 = vdwg.mxu0
  %6236 = vmatprep.subr.bf16.mxu0 %v5534
  %6237 = vmatpush1.bf16.msra.mxu0 %v5533
  %6238 = vmatprep.subr.bf16.mxu0 %v5538
  %6239 = vmatpush1.bf16.msra.mxu0 %v5537
  %6240 = vmatprep.subr.bf16.mxu0 %v5542
  %6241 = vmatpush1.bf16.msra.mxu0 %v5541
  %6242 = vmatprep.subr.bf16.mxu0 %v5546
  %6243 = vmatpush1.bf16.msra.mxu0 %v5545
  %6244 = vmatprep.subr.bf16.mxu0 %v5550
  %6245 = vmatpush1.bf16.msra.mxu0 %v5549
  %6246 = vmatprep.subr.bf16.mxu0 %v5554
  %6247 = vmatpush1.bf16.msra.mxu0 %v5553
  %6248 = vmatprep.subr.bf16.mxu0 %v5558
  %6249 = vmatpush1.bf16.msra.mxu0 %v5557
  %6250 = vmatprep.subr.bf16.mxu0 %v5562
  %6251 = vmatpush1.bf16.msra.mxu0 %v5561
  %6252 = vmatprep.subr.bf16.mxu0 0
  %6253 = vmatpush1.bf16.msra.mxu0 0
  %6254 = vmatprep.subr.bf16.mxu0 0
  %6255 = vmatpush1.bf16.msra.mxu0 0
  %6256 = vmatprep.subr.bf16.mxu0 0
  %6257 = vmatpush1.bf16.msra.mxu0 0
  %6258 = vmatprep.subr.bf16.mxu0 0
  %6259 = vmatpush1.bf16.msra.mxu0 0
  %6260 = vmatprep.subr.bf16.mxu0 0
  %6261 = vmatpush1.bf16.msra.mxu0 0
  %6262 = vmatprep.subr.bf16.mxu0 0
  %6263 = vmatpush1.bf16.msra.mxu0 0
  %6264 = vmatprep.subr.bf16.mxu0 0
  %6265 = vmatpush1.bf16.msra.mxu0 0
  %6266 = vmatprep.subr.bf16.mxu0 0
  %6267 = vmatpush1.bf16.msra.mxu0 0
  %6268 = vmatprep.mubr.bf16.mxu0 0
  %6269 = vmatmul.mubr.bf16.gmra.mrb[0].mxu0 %v6194
  %v6270 = vpop.f32.mrb[0].mxu0
  %v6271 = vadd.f32 0.0, %v6270
  %v6272 = vpop.f32.mrb[0].mxu0
  %v6273 = vadd.f32 0.0, %v6272
  %v6274 = vpop.f32.mrb[0].mxu0
  %v6275 = vpop.f32.mrb[0].mxu0
  %6276 = vdwg.mxu0
  %v6277 = vadd.f32 %v6190, %v6230
  %v6278 = vadd.f32 %v6191, %v6232
  %v6279 = vadd.f32 %v6192, %v6271
  %v6280 = vadd.f32 %v6193, %v6273
  %v6281 = vxor.u32 %v6277, 2147483648
  %v6282 = vmul.f32 %v6281, 1.442695
  %v6283 = vpow.pop %v6282
  %v6284 = vadd.f32 %v6283, 1.0
  %v6285 = vrcp.pop %v6284
  %v6286 = vmul.f32 1.0, %v6285
  %v6287 = vxor.u32 %v6278, 2147483648
  %v6288 = vmul.f32 %v6287, 1.442695
  %v6289 = vpow.pop %v6288
  %v6290 = vadd.f32 %v6289, 1.0
  %v6291 = vrcp.pop %v6290
  %v6292 = vmul.f32 1.0, %v6291
  %v6293 = vtanh.pop %v6279
  %v6294 = vxor.u32 %v6280, 2147483648
  %v6295 = vmul.f32 %v6294, 1.442695
  %v6296 = vpow.pop %v6295
  %v6297 = vadd.f32 %v6296, 1.0
  %v6298 = vrcp.pop %v6297
  %v6299 = vmul.f32 1.0, %v6298
  %v6300 = vmul.f32 %v6292, %v6182
  %v6301 = vmul.f32 %v6286, %v6293
  %v6302 = vadd.f32 %v6300, %v6301
  %v6303 = vtanh.pop %v6302
  %v6304 = vmul.f32 %v6299, %v6303
  %s6305 = smul.addr %s1732, 8
  %s6306 = scalar_lea.vmem %s13, %s6305
  %6307 = vst [vmem:[%s6306] sm:$0xff] %v6304
  %s6308 = smul.addr %s1736, 8
  %s6309 = scalar_lea.vmem [#allocation4], %s6308
  %v6310 = vld [vmem:[%s6309] sm:$0xff]
  %v6311 = vld [vmem:[%s6309 + $0x8] sm:$0xff]
  %v6312 = vld [vmem:[%s6309 + $0x10] sm:$0xff]
  %v6313 = vld [vmem:[%s6309 + $0x18] sm:$0xff]
  %v6314 = vpack.c.bf16 %v6304, %v6304
  %6315 = vmatprep.subr.bf16.mxu0 %v5532
  %6316 = vmatpush1.bf16.msra.mxu0 %v5531
  %6317 = vmatprep.subr.bf16.mxu0 %v5536
  %6318 = vmatpush1.bf16.msra.mxu0 %v5535
  %6319 = vmatprep.subr.bf16.mxu0 %v5540
  %6320 = vmatpush1.bf16.msra.mxu0 %v5539
  %6321 = vmatprep.subr.bf16.mxu0 %v5544
  %6322 = vmatpush1.bf16.msra.mxu0 %v5543
  %6323 = vmatprep.subr.bf16.mxu0 %v5548
  %6324 = vmatpush1.bf16.msra.mxu0 %v5547
  %6325 = vmatprep.subr.bf16.mxu0 %v5552
  %6326 = vmatpush1.bf16.msra.mxu0 %v5551
  %6327 = vmatprep.subr.bf16.mxu0 %v5556
  %6328 = vmatpush1.bf16.msra.mxu0 %v5555
  %6329 = vmatprep.subr.bf16.mxu0 %v5560
  %6330 = vmatpush1.bf16.msra.mxu0 %v5559
  %6331 = vmatprep.subr.bf16.mxu0 0
  %6332 = vmatpush1.bf16.msra.mxu0 0
  %6333 = vmatprep.subr.bf16.mxu0 0
  %6334 = vmatpush1.bf16.msra.mxu0 0
  %6335 = vmatprep.subr.bf16.mxu0 0
  %6336 = vmatpush1.bf16.msra.mxu0 0
  %6337 = vmatprep.subr.bf16.mxu0 0
  %6338 = vmatpush1.bf16.msra.mxu0 0
  %6339 = vmatprep.subr.bf16.mxu0 0
  %6340 = vmatpush1.bf16.msra.mxu0 0
  %6341 = vmatprep.subr.bf16.mxu0 0
  %6342 = vmatpush1.bf16.msra.mxu0 0
  %6343 = vmatprep.subr.bf16.mxu0 0
  %6344 = vmatpush1.bf16.msra.mxu0 0
  %6345 = vmatprep.subr.bf16.mxu0 0
  %6346 = vmatpush1.bf16.msra.mxu0 0
  %6347 = vmatprep.mubr.bf16.mxu0 0
  %6348 = vmatmul.mubr.bf16.gmra.mrb[0].mxu0 %v6314
  %v6349 = vpop.f32.mrb[0].mxu0
  %v6350 = vadd.f32 0.0, %v6349
  %v6351 = vpop.f32.mrb[0].mxu0
  %v6352 = vadd.f32 0.0, %v6351
  %v6353 = vpop.f32.mrb[0].mxu0
  %v6354 = vpop.f32.mrb[0].mxu0
  %6355 = vdwg.mxu0
  %6356 = vmatprep.subr.bf16.mxu0 %v5534
  %6357 = vmatpush1.bf16.msra.mxu0 %v5533
  %6358 = vmatprep.subr.bf16.mxu0 %v5538
  %6359 = vmatpush1.bf16.msra.mxu0 %v5537
  %6360 = vmatprep.subr.bf16.mxu0 %v5542
  %6361 = vmatpush1.bf16.msra.mxu0 %v5541
  %6362 = vmatprep.subr.bf16.mxu0 %v5546
  %6363 = vmatpush1.bf16.msra.mxu0 %v5545
  %6364 = vmatprep.subr.bf16.mxu0 %v5550
  %6365 = vmatpush1.bf16.msra.mxu0 %v5549
  %6366 = vmatprep.subr.bf16.mxu0 %v5554
  %6367 = vmatpush1.bf16.msra.mxu0 %v5553
  %6368 = vmatprep.subr.bf16.mxu0 %v5558
  %6369 = vmatpush1.bf16.msra.mxu0 %v5557
  %6370 = vmatprep.subr.bf16.mxu0 %v5562
  %6371 = vmatpush1.bf16.msra.mxu0 %v5561
  %6372 = vmatprep.subr.bf16.mxu0 0
  %6373 = vmatpush1.bf16.msra.mxu0 0
  %6374 = vmatprep.subr.bf16.mxu0 0
  %6375 = vmatpush1.bf16.msra.mxu0 0
  %6376 = vmatprep.subr.bf16.mxu0 0
  %6377 = vmatpush1.bf16.msra.mxu0 0
  %6378 = vmatprep.subr.bf16.mxu0 0
  %6379 = vmatpush1.bf16.msra.mxu0 0
  %6380 = vmatprep.subr.bf16.mxu0 0
  %6381 = vmatpush1.bf16.msra.mxu0 0
  %6382 = vmatprep.subr.bf16.mxu0 0
  %6383 = vmatpush1.bf16.msra.mxu0 0
  %6384 = vmatprep.subr.bf16.mxu0 0
  %6385 = vmatpush1.bf16.msra.mxu0 0
  %6386 = vmatprep.subr.bf16.mxu0 0
  %6387 = vmatpush1.bf16.msra.mxu0 0
  %6388 = vmatprep.mubr.bf16.mxu0 0
  %6389 = vmatmul.mubr.bf16.gmra.mrb[0].mxu0 %v6314
  %v6390 = vpop.f32.mrb[0].mxu0
  %v6391 = vadd.f32 0.0, %v6390
  %v6392 = vpop.f32.mrb[0].mxu0
  %v6393 = vadd.f32 0.0, %v6392
  %v6394 = vpop.f32.mrb[0].mxu0
  %v6395 = vpop.f32.mrb[0].mxu0
  %6396 = vdwg.mxu0
  %v6397 = vadd.f32 %v6310, %v6350
  %v6398 = vadd.f32 %v6311, %v6352
  %v6399 = vadd.f32 %v6312, %v6391
  %v6400 = vadd.f32 %v6313, %v6393
  %v6401 = vxor.u32 %v6397, 2147483648
  %v6402 = vmul.f32 %v6401, 1.442695
  %v6403 = vpow.pop %v6402
  %v6404 = vadd.f32 %v6403, 1.0
  %v6405 = vrcp.pop %v6404
  %v6406 = vmul.f32 1.0, %v6405
  %v6407 = vxor.u32 %v6398, 2147483648
  %v6408 = vmul.f32 %v6407, 1.442695
  %v6409 = vpow.pop %v6408
  %v6410 = vadd.f32 %v6409, 1.0
  %v6411 = vrcp.pop %v6410
  %v6412 = vmul.f32 1.0, %v6411
  %v6413 = vtanh.pop %v6399
  %v6414 = vxor.u32 %v6400, 2147483648
  %v6415 = vmul.f32 %v6414, 1.442695
  %v6416 = vpow.pop %v6415
  %v6417 = vadd.f32 %v6416, 1.0
  %v6418 = vrcp.pop %v6417
  %v6419 = vmul.f32 1.0, %v6418
  %v6420 = vmul.f32 %v6412, %v6302
  %v6421 = vmul.f32 %v6406, %v6413
  %v6422 = vadd.f32 %v6420, %v6421
  %v6423 = vtanh.pop %v6422
  %v6424 = vmul.f32 %v6419, %v6423
  %s6425 = smul.addr %s1854, 8
  %s6426 = scalar_lea.vmem %s13, %s6425
  %6427 = vst [vmem:[%s6426] sm:$0xff] %v6424
  %s6428 = smul.addr %s1858, 8
  %s6429 = scalar_lea.vmem [#allocation4], %s6428
  %v6430 = vld [vmem:[%s6429] sm:$0xff]
  %v6431 = vld [vmem:[%s6429 + $0x8] sm:$0xff]
  %v6432 = vld [vmem:[%s6429 + $0x10] sm:$0xff]
  %v6433 = vld [vmem:[%s6429 + $0x18] sm:$0xff]
  %v6434 = vpack.c.bf16 %v6424, %v6424
  %6435 = vmatprep.subr.bf16.mxu0 %v5532
  %6436 = vmatpush1.bf16.msra.mxu0 %v5531
  %6437 = vmatprep.subr.bf16.mxu0 %v5536
  %6438 = vmatpush1.bf16.msra.mxu0 %v5535
  %6439 = vmatprep.subr.bf16.mxu0 %v5540
  %6440 = vmatpush1.bf16.msra.mxu0 %v5539
  %6441 = vmatprep.subr.bf16.mxu0 %v5544
  %6442 = vmatpush1.bf16.msra.mxu0 %v5543
  %6443 = vmatprep.subr.bf16.mxu0 %v5548
  %6444 = vmatpush1.bf16.msra.mxu0 %v5547
  %6445 = vmatprep.subr.bf16.mxu0 %v5552
  %6446 = vmatpush1.bf16.msra.mxu0 %v5551
  %6447 = vmatprep.subr.bf16.mxu0 %v5556
  %6448 = vmatpush1.bf16.msra.mxu0 %v5555
  %6449 = vmatprep.subr.bf16.mxu0 %v5560
  %6450 = vmatpush1.bf16.msra.mxu0 %v5559
  %6451 = vmatprep.subr.bf16.mxu0 0
  %6452 = vmatpush1.bf16.msra.mxu0 0
  %6453 = vmatprep.subr.bf16.mxu0 0
  %6454 = vmatpush1.bf16.msra.mxu0 0
  %6455 = vmatprep.subr.bf16.mxu0 0
  %6456 = vmatpush1.bf16.msra.mxu0 0
  %6457 = vmatprep.subr.bf16.mxu0 0
  %6458 = vmatpush1.bf16.msra.mxu0 0
  %6459 = vmatprep.subr.bf16.mxu0 0
  %6460 = vmatpush1.bf16.msra.mxu0 0
  %6461 = vmatprep.subr.bf16.mxu0 0
  %6462 = vmatpush1.bf16.msra.mxu0 0
  %6463 = vmatprep.subr.bf16.mxu0 0
  %6464 = vmatpush1.bf16.msra.mxu0 0
  %6465 = vmatprep.subr.bf16.mxu0 0
  %6466 = vmatpush1.bf16.msra.mxu0 0
  %6467 = vmatprep.mubr.bf16.mxu0 0
  %6468 = vmatmul.mubr.bf16.gmra.mrb[0].mxu0 %v6434
  %v6469 = vpop.f32.mrb[0].mxu0
  %v6470 = vadd.f32 0.0, %v6469
  %v6471 = vpop.f32.mrb[0].mxu0
  %v6472 = vadd.f32 0.0, %v6471
  %v6473 = vpop.f32.mrb[0].mxu0
  %v6474 = vpop.f32.mrb[0].mxu0
  %6475 = vdwg.mxu0
  %6476 = vmatprep.subr.bf16.mxu0 %v5534
  %6477 = vmatpush1.bf16.msra.mxu0 %v5533
  %6478 = vmatprep.subr.bf16.mxu0 %v5538
  %6479 = vmatpush1.bf16.msra.mxu0 %v5537
  %6480 = vmatprep.subr.bf16.mxu0 %v5542
  %6481 = vmatpush1.bf16.msra.mxu0 %v5541
  %6482 = vmatprep.subr.bf16.mxu0 %v5546
  %6483 = vmatpush1.bf16.msra.mxu0 %v5545
  %6484 = vmatprep.subr.bf16.mxu0 %v5550
  %6485 = vmatpush1.bf16.msra.mxu0 %v5549
  %6486 = vmatprep.subr.bf16.mxu0 %v5554
  %6487 = vmatpush1.bf16.msra.mxu0 %v5553
  %6488 = vmatprep.subr.bf16.mxu0 %v5558
  %6489 = vmatpush1.bf16.msra.mxu0 %v5557
  %6490 = vmatprep.subr.bf16.mxu0 %v5562
  %6491 = vmatpush1.bf16.msra.mxu0 %v5561
  %6492 = vmatprep.subr.bf16.mxu0 0
  %6493 = vmatpush1.bf16.msra.mxu0 0
  %6494 = vmatprep.subr.bf16.mxu0 0
  %6495 = vmatpush1.bf16.msra.mxu0 0
  %6496 = vmatprep.subr.bf16.mxu0 0
  %6497 = vmatpush1.bf16.msra.mxu0 0
  %6498 = vmatprep.subr.bf16.mxu0 0
  %6499 = vmatpush1.bf16.msra.mxu0 0
  %6500 = vmatprep.subr.bf16.mxu0 0
  %6501 = vmatpush1.bf16.msra.mxu0 0
  %6502 = vmatprep.subr.bf16.mxu0 0
  %6503 = vmatpush1.bf16.msra.mxu0 0
  %6504 = vmatprep.subr.bf16.mxu0 0
  %6505 = vmatpush1.bf16.msra.mxu0 0
  %6506 = vmatprep.subr.bf16.mxu0 0
  %6507 = vmatpush1.bf16.msra.mxu0 0
  %6508 = vmatprep.mubr.bf16.mxu0 0
  %6509 = vmatmul.mubr.bf16.gmra.mrb[0].mxu0 %v6434
  %v6510 = vpop.f32.mrb[0].mxu0
  %v6511 = vadd.f32 0.0, %v6510
  %v6512 = vpop.f32.mrb[0].mxu0
  %v6513 = vadd.f32 0.0, %v6512
  %v6514 = vpop.f32.mrb[0].mxu0
  %v6515 = vpop.f32.mrb[0].mxu0
  %6516 = vdwg.mxu0
  %v6517 = vadd.f32 %v6430, %v6470
  %v6518 = vadd.f32 %v6431, %v6472
  %v6519 = vadd.f32 %v6432, %v6511
  %v6520 = vadd.f32 %v6433, %v6513
  %v6521 = vxor.u32 %v6517, 2147483648
  %v6522 = vmul.f32 %v6521, 1.442695
  %v6523 = vpow.pop %v6522
  %v6524 = vadd.f32 %v6523, 1.0
  %v6525 = vrcp.pop %v6524
  %v6526 = vmul.f32 1.0, %v6525
  %v6527 = vxor.u32 %v6518, 2147483648
  %v6528 = vmul.f32 %v6527, 1.442695
  %v6529 = vpow.pop %v6528
  %v6530 = vadd.f32 %v6529, 1.0
  %v6531 = vrcp.pop %v6530
  %v6532 = vmul.f32 1.0, %v6531
  %v6533 = vtanh.pop %v6519
  %v6534 = vxor.u32 %v6520, 2147483648
  %v6535 = vmul.f32 %v6534, 1.442695
  %v6536 = vpow.pop %v6535
  %v6537 = vadd.f32 %v6536, 1.0
  %v6538 = vrcp.pop %v6537
  %v6539 = vmul.f32 1.0, %v6538
  %v6540 = vmul.f32 %v6532, %v6422
  %v6541 = vmul.f32 %v6526, %v6533
  %v6542 = vadd.f32 %v6540, %v6541
  %v6543 = vtanh.pop %v6542
  %v6544 = vmul.f32 %v6539, %v6543
  %s6545 = smul.addr %s1976, 8
  %s6546 = scalar_lea.vmem %s13, %s6545
  %6547 = vst [vmem:[%s6546] sm:$0xff] %v6544
  %s6548 = smul.addr %s1980, 8
  %s6549 = scalar_lea.vmem [#allocation4], %s6548
  %v6550 = vld [vmem:[%s6549] sm:$0xff]
  %v6551 = vld [vmem:[%s6549 + $0x8] sm:$0xff]
  %v6552 = vld [vmem:[%s6549 + $0x10] sm:$0xff]
  %v6553 = vld [vmem:[%s6549 + $0x18] sm:$0xff]
  %v6554 = vpack.c.bf16 %v6544, %v6544
  %6555 = vmatprep.subr.bf16.mxu0 %v5532
  %6556 = vmatpush1.bf16.msra.mxu0 %v5531
  %6557 = vmatprep.subr.bf16.mxu0 %v5536
  %6558 = vmatpush1.bf16.msra.mxu0 %v5535
  %6559 = vmatprep.subr.bf16.mxu0 %v5540
  %6560 = vmatpush1.bf16.msra.mxu0 %v5539
  %6561 = vmatprep.subr.bf16.mxu0 %v5544
  %6562 = vmatpush1.bf16.msra.mxu0 %v5543
  %6563 = vmatprep.subr.bf16.mxu0 %v5548
  %6564 = vmatpush1.bf16.msra.mxu0 %v5547
  %6565 = vmatprep.subr.bf16.mxu0 %v5552
  %6566 = vmatpush1.bf16.msra.mxu0 %v5551
  %6567 = vmatprep.subr.bf16.mxu0 %v5556
  %6568 = vmatpush1.bf16.msra.mxu0 %v5555
  %6569 = vmatprep.subr.bf16.mxu0 %v5560
  %6570 = vmatpush1.bf16.msra.mxu0 %v5559
  %6571 = vmatprep.subr.bf16.mxu0 0
  %6572 = vmatpush1.bf16.msra.mxu0 0
  %6573 = vmatprep.subr.bf16.mxu0 0
  %6574 = vmatpush1.bf16.msra.mxu0 0
  %6575 = vmatprep.subr.bf16.mxu0 0
  %6576 = vmatpush1.bf16.msra.mxu0 0
  %6577 = vmatprep.subr.bf16.mxu0 0
  %6578 = vmatpush1.bf16.msra.mxu0 0
  %6579 = vmatprep.subr.bf16.mxu0 0
  %6580 = vmatpush1.bf16.msra.mxu0 0
  %6581 = vmatprep.subr.bf16.mxu0 0
  %6582 = vmatpush1.bf16.msra.mxu0 0
  %6583 = vmatprep.subr.bf16.mxu0 0
  %6584 = vmatpush1.bf16.msra.mxu0 0
  %6585 = vmatprep.subr.bf16.mxu0 0
  %6586 = vmatpush1.bf16.msra.mxu0 0
  %6587 = vmatprep.mubr.bf16.mxu0 0
  %6588 = vmatmul.mubr.bf16.gmra.mrb[0].mxu0 %v6554
  %v6589 = vpop.f32.mrb[0].mxu0
  %v6590 = vadd.f32 0.0, %v6589
  %v6591 = vpop.f32.mrb[0].mxu0
  %v6592 = vadd.f32 0.0, %v6591
  %v6593 = vpop.f32.mrb[0].mxu0
  %v6594 = vpop.f32.mrb[0].mxu0
  %6595 = vdwg.mxu0
  %6596 = vmatprep.subr.bf16.mxu0 %v5534
  %6597 = vmatpush1.bf16.msra.mxu0 %v5533
  %6598 = vmatprep.subr.bf16.mxu0 %v5538
  %6599 = vmatpush1.bf16.msra.mxu0 %v5537
  %6600 = vmatprep.subr.bf16.mxu0 %v5542
  %6601 = vmatpush1.bf16.msra.mxu0 %v5541
  %6602 = vmatprep.subr.bf16.mxu0 %v5546
  %6603 = vmatpush1.bf16.msra.mxu0 %v5545
  %6604 = vmatprep.subr.bf16.mxu0 %v5550
  %6605 = vmatpush1.bf16.msra.mxu0 %v5549
  %6606 = vmatprep.subr.bf16.mxu0 %v5554
  %6607 = vmatpush1.bf16.msra.mxu0 %v5553
  %6608 = vmatprep.subr.bf16.mxu0 %v5558
  %6609 = vmatpush1.bf16.msra.mxu0 %v5557
  %6610 = vmatprep.subr.bf16.mxu0 %v5562
  %6611 = vmatpush1.bf16.msra.mxu0 %v5561
  %6612 = vmatprep.subr.bf16.mxu0 0
  %6613 = vmatpush1.bf16.msra.mxu0 0
  %6614 = vmatprep.subr.bf16.mxu0 0
  %6615 = vmatpush1.bf16.msra.mxu0 0
  %6616 = vmatprep.subr.bf16.mxu0 0
  %6617 = vmatpush1.bf16.msra.mxu0 0
  %6618 = vmatprep.subr.bf16.mxu0 0
  %6619 = vmatpush1.bf16.msra.mxu0 0
  %6620 = vmatprep.subr.bf16.mxu0 0
  %6621 = vmatpush1.bf16.msra.mxu0 0
  %6622 = vmatprep.subr.bf16.mxu0 0
  %6623 = vmatpush1.bf16.msra.mxu0 0
  %6624 = vmatprep.subr.bf16.mxu0 0
  %6625 = vmatpush1.bf16.msra.mxu0 0
  %6626 = vmatprep.subr.bf16.mxu0 0
  %6627 = vmatpush1.bf16.msra.mxu0 0
  %6628 = vmatprep.mubr.bf16.mxu0 0
  %6629 = vmatmul.mubr.bf16.gmra.mrb[0].mxu0 %v6554
  %v6630 = vpop.f32.mrb[0].mxu0
  %v6631 = vadd.f32 0.0, %v6630
  %v6632 = vpop.f32.mrb[0].mxu0
  %v6633 = vadd.f32 0.0, %v6632
  %v6634 = vpop.f32.mrb[0].mxu0
  %v6635 = vpop.f32.mrb[0].mxu0
  %6636 = vdwg.mxu0
  %v6637 = vadd.f32 %v6550, %v6590
  %v6638 = vadd.f32 %v6551, %v6592
  %v6639 = vadd.f32 %v6552, %v6631
  %v6640 = vadd.f32 %v6553, %v6633
  %v6641 = vxor.u32 %v6637, 2147483648
  %v6642 = vmul.f32 %v6641, 1.442695
  %v6643 = vpow.pop %v6642
  %v6644 = vadd.f32 %v6643, 1.0
  %v6645 = vrcp.pop %v6644
  %v6646 = vmul.f32 1.0, %v6645
  %v6647 = vxor.u32 %v6638, 2147483648
  %v6648 = vmul.f32 %v6647, 1.442695
  %v6649 = vpow.pop %v6648
  %v6650 = vadd.f32 %v6649, 1.0
  %v6651 = vrcp.pop %v6650
  %v6652 = vmul.f32 1.0, %v6651
  %v6653 = vtanh.pop %v6639
  %v6654 = vxor.u32 %v6640, 2147483648
  %v6655 = vmul.f32 %v6654, 1.442695
  %v6656 = vpow.pop %v6655
  %v6657 = vadd.f32 %v6656, 1.0
  %v6658 = vrcp.pop %v6657
  %v6659 = vmul.f32 1.0, %v6658
  %v6660 = vmul.f32 %v6652, %v6542
  %v6661 = vmul.f32 %v6646, %v6653
  %v6662 = vadd.f32 %v6660, %v6661
  %v6663 = vtanh.pop %v6662
  %v6664 = vmul.f32 %v6659, %v6663
  %s6665 = smul.addr %s2098, 8
  %s6666 = scalar_lea.vmem %s13, %s6665
  %6667 = vst [vmem:[%s6666] sm:$0xff] %v6664
  %s6668 = smul.addr %s2102, 8
  %s6669 = scalar_lea.vmem [#allocation4], %s6668
  %v6670 = vld [vmem:[%s6669] sm:$0xff]
  %v6671 = vld [vmem:[%s6669 + $0x8] sm:$0xff]
  %v6672 = vld [vmem:[%s6669 + $0x10] sm:$0xff]
  %v6673 = vld [vmem:[%s6669 + $0x18] sm:$0xff]
  %v6674 = vpack.c.bf16 %v6664, %v6664
  %6675 = vmatprep.subr.bf16.mxu0 %v5532
  %6676 = vmatpush1.bf16.msra.mxu0 %v5531
  %6677 = vmatprep.subr.bf16.mxu0 %v5536
  %6678 = vmatpush1.bf16.msra.mxu0 %v5535
  %6679 = vmatprep.subr.bf16.mxu0 %v5540
  %6680 = vmatpush1.bf16.msra.mxu0 %v5539
  %6681 = vmatprep.subr.bf16.mxu0 %v5544
  %6682 = vmatpush1.bf16.msra.mxu0 %v5543
  %6683 = vmatprep.subr.bf16.mxu0 %v5548
  %6684 = vmatpush1.bf16.msra.mxu0 %v5547
  %6685 = vmatprep.subr.bf16.mxu0 %v5552
  %6686 = vmatpush1.bf16.msra.mxu0 %v5551
  %6687 = vmatprep.subr.bf16.mxu0 %v5556
  %6688 = vmatpush1.bf16.msra.mxu0 %v5555
  %6689 = vmatprep.subr.bf16.mxu0 %v5560
  %6690 = vmatpush1.bf16.msra.mxu0 %v5559
  %6691 = vmatprep.subr.bf16.mxu0 0
  %6692 = vmatpush1.bf16.msra.mxu0 0
  %6693 = vmatprep.subr.bf16.mxu0 0
  %6694 = vmatpush1.bf16.msra.mxu0 0
  %6695 = vmatprep.subr.bf16.mxu0 0
  %6696 = vmatpush1.bf16.msra.mxu0 0
  %6697 = vmatprep.subr.bf16.mxu0 0
  %6698 = vmatpush1.bf16.msra.mxu0 0
  %6699 = vmatprep.subr.bf16.mxu0 0
  %6700 = vmatpush1.bf16.msra.mxu0 0
  %6701 = vmatprep.subr.bf16.mxu0 0
  %6702 = vmatpush1.bf16.msra.mxu0 0
  %6703 = vmatprep.subr.bf16.mxu0 0
  %6704 = vmatpush1.bf16.msra.mxu0 0
  %6705 = vmatprep.subr.bf16.mxu0 0
  %6706 = vmatpush1.bf16.msra.mxu0 0
  %6707 = vmatprep.mubr.bf16.mxu0 0
  %6708 = vmatmul.mubr.bf16.gmra.mrb[0].mxu0 %v6674
  %v6709 = vpop.f32.mrb[0].mxu0
  %v6710 = vadd.f32 0.0, %v6709
  %v6711 = vpop.f32.mrb[0].mxu0
  %v6712 = vadd.f32 0.0, %v6711
  %v6713 = vpop.f32.mrb[0].mxu0
  %v6714 = vpop.f32.mrb[0].mxu0
  %6715 = vdwg.mxu0
  %6716 = vmatprep.subr.bf16.mxu0 %v5534
  %6717 = vmatpush1.bf16.msra.mxu0 %v5533
  %6718 = vmatprep.subr.bf16.mxu0 %v5538
  %6719 = vmatpush1.bf16.msra.mxu0 %v5537
  %6720 = vmatprep.subr.bf16.mxu0 %v5542
  %6721 = vmatpush1.bf16.msra.mxu0 %v5541
  %6722 = vmatprep.subr.bf16.mxu0 %v5546
  %6723 = vmatpush1.bf16.msra.mxu0 %v5545
  %6724 = vmatprep.subr.bf16.mxu0 %v5550
  %6725 = vmatpush1.bf16.msra.mxu0 %v5549
  %6726 = vmatprep.subr.bf16.mxu0 %v5554
  %6727 = vmatpush1.bf16.msra.mxu0 %v5553
  %6728 = vmatprep.subr.bf16.mxu0 %v5558
  %6729 = vmatpush1.bf16.msra.mxu0 %v5557
  %6730 = vmatprep.subr.bf16.mxu0 %v5562
  %6731 = vmatpush1.bf16.msra.mxu0 %v5561
  %6732 = vmatprep.subr.bf16.mxu0 0
  %6733 = vmatpush1.bf16.msra.mxu0 0
  %6734 = vmatprep.subr.bf16.mxu0 0
  %6735 = vmatpush1.bf16.msra.mxu0 0
  %6736 = vmatprep.subr.bf16.mxu0 0
  %6737 = vmatpush1.bf16.msra.mxu0 0
  %6738 = vmatprep.subr.bf16.mxu0 0
  %6739 = vmatpush1.bf16.msra.mxu0 0
  %6740 = vmatprep.subr.bf16.mxu0 0
  %6741 = vmatpush1.bf16.msra.mxu0 0
  %6742 = vmatprep.subr.bf16.mxu0 0
  %6743 = vmatpush1.bf16.msra.mxu0 0
  %6744 = vmatprep.subr.bf16.mxu0 0
  %6745 = vmatpush1.bf16.msra.mxu0 0
  %6746 = vmatprep.subr.bf16.mxu0 0
  %6747 = vmatpush1.bf16.msra.mxu0 0
  %6748 = vmatprep.mubr.bf16.mxu0 0
  %6749 = vmatmul.mubr.bf16.gmra.mrb[0].mxu0 %v6674
  %v6750 = vpop.f32.mrb[0].mxu0
  %v6751 = vadd.f32 0.0, %v6750
  %v6752 = vpop.f32.mrb[0].mxu0
  %v6753 = vadd.f32 0.0, %v6752
  %v6754 = vpop.f32.mrb[0].mxu0
  %v6755 = vpop.f32.mrb[0].mxu0
  %6756 = vdwg.mxu0
  %v6757 = vadd.f32 %v6670, %v6710
  %v6758 = vadd.f32 %v6671, %v6712
  %v6759 = vadd.f32 %v6672, %v6751
  %v6760 = vadd.f32 %v6673, %v6753
  %v6761 = vxor.u32 %v6757, 2147483648
  %v6762 = vmul.f32 %v6761, 1.442695
  %v6763 = vpow.pop %v6762
  %v6764 = vadd.f32 %v6763, 1.0
  %v6765 = vrcp.pop %v6764
  %v6766 = vmul.f32 1.0, %v6765
  %v6767 = vxor.u32 %v6758, 2147483648
  %v6768 = vmul.f32 %v6767, 1.442695
  %v6769 = vpow.pop %v6768
  %v6770 = vadd.f32 %v6769, 1.0
  %v6771 = vrcp.pop %v6770
  %v6772 = vmul.f32 1.0, %v6771
  %v6773 = vtanh.pop %v6759
  %v6774 = vxor.u32 %v6760, 2147483648
  %v6775 = vmul.f32 %v6774, 1.442695
  %v6776 = vpow.pop %v6775
  %v6777 = vadd.f32 %v6776, 1.0
  %v6778 = vrcp.pop %v6777
  %v6779 = vmul.f32 1.0, %v6778
  %v6780 = vmul.f32 %v6772, %v6662
  %v6781 = vmul.f32 %v6766, %v6773
  %v6782 = vadd.f32 %v6780, %v6781
  %v6783 = vtanh.pop %v6782
  %v6784 = vmul.f32 %v6779, %v6783
  %s6785 = smul.addr %s2220, 8
  %s6786 = scalar_lea.vmem %s13, %s6785
  %6787 = vst [vmem:[%s6786] sm:$0xff] %v6784
  %s6788 = smul.addr %s2224, 8
  %s6789 = scalar_lea.vmem [#allocation4], %s6788
  %v6790 = vld [vmem:[%s6789] sm:$0xff]
  %v6791 = vld [vmem:[%s6789 + $0x8] sm:$0xff]
  %v6792 = vld [vmem:[%s6789 + $0x10] sm:$0xff]
  %v6793 = vld [vmem:[%s6789 + $0x18] sm:$0xff]
  %v6794 = vpack.c.bf16 %v6784, %v6784
  %6795 = vmatprep.subr.bf16.mxu0 %v5532
  %6796 = vmatpush1.bf16.msra.mxu0 %v5531
  %6797 = vmatprep.subr.bf16.mxu0 %v5536
  %6798 = vmatpush1.bf16.msra.mxu0 %v5535
  %6799 = vmatprep.subr.bf16.mxu0 %v5540
  %6800 = vmatpush1.bf16.msra.mxu0 %v5539
  %6801 = vmatprep.subr.bf16.mxu0 %v5544
  %6802 = vmatpush1.bf16.msra.mxu0 %v5543
  %6803 = vmatprep.subr.bf16.mxu0 %v5548
  %6804 = vmatpush1.bf16.msra.mxu0 %v5547
  %6805 = vmatprep.subr.bf16.mxu0 %v5552
  %6806 = vmatpush1.bf16.msra.mxu0 %v5551
  %6807 = vmatprep.subr.bf16.mxu0 %v5556
  %6808 = vmatpush1.bf16.msra.mxu0 %v5555
  %6809 = vmatprep.subr.bf16.mxu0 %v5560
  %6810 = vmatpush1.bf16.msra.mxu0 %v5559
  %6811 = vmatprep.subr.bf16.mxu0 0
  %6812 = vmatpush1.bf16.msra.mxu0 0
  %6813 = vmatprep.subr.bf16.mxu0 0
  %6814 = vmatpush1.bf16.msra.mxu0 0
  %6815 = vmatprep.subr.bf16.mxu0 0
  %6816 = vmatpush1.bf16.msra.mxu0 0
  %6817 = vmatprep.subr.bf16.mxu0 0
  %6818 = vmatpush1.bf16.msra.mxu0 0
  %6819 = vmatprep.subr.bf16.mxu0 0
  %6820 = vmatpush1.bf16.msra.mxu0 0
  %6821 = vmatprep.subr.bf16.mxu0 0
  %6822 = vmatpush1.bf16.msra.mxu0 0
  %6823 = vmatprep.subr.bf16.mxu0 0
  %6824 = vmatpush1.bf16.msra.mxu0 0
  %6825 = vmatprep.subr.bf16.mxu0 0
  %6826 = vmatpush1.bf16.msra.mxu0 0
  %6827 = vmatprep.mubr.bf16.mxu0 0
  %6828 = vmatmul.mubr.bf16.gmra.mrb[0].mxu0 %v6794
  %v6829 = vpop.f32.mrb[0].mxu0
  %v6830 = vadd.f32 0.0, %v6829
  %v6831 = vpop.f32.mrb[0].mxu0
  %v6832 = vadd.f32 0.0, %v6831
  %v6833 = vpop.f32.mrb[0].mxu0
  %v6834 = vpop.f32.mrb[0].mxu0
  %6835 = vdwg.mxu0
  %6836 = vmatprep.subr.bf16.mxu0 %v5534
  %6837 = vmatpush1.bf16.msra.mxu0 %v5533
  %6838 = vmatprep.subr.bf16.mxu0 %v5538
  %6839 = vmatpush1.bf16.msra.mxu0 %v5537
  %6840 = vmatprep.subr.bf16.mxu0 %v5542
  %6841 = vmatpush1.bf16.msra.mxu0 %v5541
  %6842 = vmatprep.subr.bf16.mxu0 %v5546
  %6843 = vmatpush1.bf16.msra.mxu0 %v5545
  %6844 = vmatprep.subr.bf16.mxu0 %v5550
  %6845 = vmatpush1.bf16.msra.mxu0 %v5549
  %6846 = vmatprep.subr.bf16.mxu0 %v5554
  %6847 = vmatpush1.bf16.msra.mxu0 %v5553
  %6848 = vmatprep.subr.bf16.mxu0 %v5558
  %6849 = vmatpush1.bf16.msra.mxu0 %v5557
  %6850 = vmatprep.subr.bf16.mxu0 %v5562
  %6851 = vmatpush1.bf16.msra.mxu0 %v5561
  %6852 = vmatprep.subr.bf16.mxu0 0
  %6853 = vmatpush1.bf16.msra.mxu0 0
  %6854 = vmatprep.subr.bf16.mxu0 0
  %6855 = vmatpush1.bf16.msra.mxu0 0
  %6856 = vmatprep.subr.bf16.mxu0 0
  %6857 = vmatpush1.bf16.msra.mxu0 0
  %6858 = vmatprep.subr.bf16.mxu0 0
  %6859 = vmatpush1.bf16.msra.mxu0 0
  %6860 = vmatprep.subr.bf16.mxu0 0
  %6861 = vmatpush1.bf16.msra.mxu0 0
  %6862 = vmatprep.subr.bf16.mxu0 0
  %6863 = vmatpush1.bf16.msra.mxu0 0
  %6864 = vmatprep.subr.bf16.mxu0 0
  %6865 = vmatpush1.bf16.msra.mxu0 0
  %6866 = vmatprep.subr.bf16.mxu0 0
  %6867 = vmatpush1.bf16.msra.mxu0 0
  %6868 = vmatprep.mubr.bf16.mxu0 0
  %6869 = vmatmul.mubr.bf16.gmra.mrb[0].mxu0 %v6794
  %v6870 = vpop.f32.mrb[0].mxu0
  %v6871 = vadd.f32 0.0, %v6870
  %v6872 = vpop.f32.mrb[0].mxu0
  %v6873 = vadd.f32 0.0, %v6872
  %v6874 = vpop.f32.mrb[0].mxu0
  %v6875 = vpop.f32.mrb[0].mxu0
  %6876 = vdwg.mxu0
  %v6877 = vadd.f32 %v6790, %v6830
  %v6878 = vadd.f32 %v6791, %v6832
  %v6879 = vadd.f32 %v6792, %v6871
  %v6880 = vadd.f32 %v6793, %v6873
  %v6881 = vxor.u32 %v6877, 2147483648
  %v6882 = vmul.f32 %v6881, 1.442695
  %v6883 = vpow.pop %v6882
  %v6884 = vadd.f32 %v6883, 1.0
  %v6885 = vrcp.pop %v6884
  %v6886 = vmul.f32 1.0, %v6885
  %v6887 = vxor.u32 %v6878, 2147483648
  %v6888 = vmul.f32 %v6887, 1.442695
  %v6889 = vpow.pop %v6888
  %v6890 = vadd.f32 %v6889, 1.0
  %v6891 = vrcp.pop %v6890
  %v6892 = vmul.f32 1.0, %v6891
  %v6893 = vtanh.pop %v6879
  %v6894 = vxor.u32 %v6880, 2147483648
  %v6895 = vmul.f32 %v6894, 1.442695
  %v6896 = vpow.pop %v6895
  %v6897 = vadd.f32 %v6896, 1.0
  %v6898 = vrcp.pop %v6897
  %v6899 = vmul.f32 1.0, %v6898
  %v6900 = vmul.f32 %v6892, %v6782
  %v6901 = vmul.f32 %v6886, %v6893
  %v6902 = vadd.f32 %v6900, %v6901
  %v6903 = vtanh.pop %v6902
  %v6904 = vmul.f32 %v6899, %v6903
  %s6905 = smul.addr %s2342, 8
  %s6906 = scalar_lea.vmem %s13, %s6905
  %6907 = vst [vmem:[%s6906] sm:$0xff] %v6904
  %s6908 = smul.addr %s2346, 8
  %s6909 = scalar_lea.vmem [#allocation4], %s6908
  %v6910 = vld [vmem:[%s6909] sm:$0xff]
  %v6911 = vld [vmem:[%s6909 + $0x8] sm:$0xff]
  %v6912 = vld [vmem:[%s6909 + $0x10] sm:$0xff]
  %v6913 = vld [vmem:[%s6909 + $0x18] sm:$0xff]
  %v6914 = vpack.c.bf16 %v6904, %v6904
  %6915 = vmatprep.subr.bf16.mxu0 %v5532
  %6916 = vmatpush1.bf16.msra.mxu0 %v5531
  %6917 = vmatprep.subr.bf16.mxu0 %v5536
  %6918 = vmatpush1.bf16.msra.mxu0 %v5535
  %6919 = vmatprep.subr.bf16.mxu0 %v5540
  %6920 = vmatpush1.bf16.msra.mxu0 %v5539
  %6921 = vmatprep.subr.bf16.mxu0 %v5544
  %6922 = vmatpush1.bf16.msra.mxu0 %v5543
  %6923 = vmatprep.subr.bf16.mxu0 %v5548
  %6924 = vmatpush1.bf16.msra.mxu0 %v5547
  %6925 = vmatprep.subr.bf16.mxu0 %v5552
  %6926 = vmatpush1.bf16.msra.mxu0 %v5551
  %6927 = vmatprep.subr.bf16.mxu0 %v5556
  %6928 = vmatpush1.bf16.msra.mxu0 %v5555
  %6929 = vmatprep.subr.bf16.mxu0 %v5560
  %6930 = vmatpush1.bf16.msra.mxu0 %v5559
  %6931 = vmatprep.subr.bf16.mxu0 0
  %6932 = vmatpush1.bf16.msra.mxu0 0
  %6933 = vmatprep.subr.bf16.mxu0 0
  %6934 = vmatpush1.bf16.msra.mxu0 0
  %6935 = vmatprep.subr.bf16.mxu0 0
  %6936 = vmatpush1.bf16.msra.mxu0 0
  %6937 = vmatprep.subr.bf16.mxu0 0
  %6938 = vmatpush1.bf16.msra.mxu0 0
  %6939 = vmatprep.subr.bf16.mxu0 0
  %6940 = vmatpush1.bf16.msra.mxu0 0
  %6941 = vmatprep.subr.bf16.mxu0 0
  %6942 = vmatpush1.bf16.msra.mxu0 0
  %6943 = vmatprep.subr.bf16.mxu0 0
  %6944 = vmatpush1.bf16.msra.mxu0 0
  %6945 = vmatprep.subr.bf16.mxu0 0
  %6946 = vmatpush1.bf16.msra.mxu0 0
  %6947 = vmatprep.mubr.bf16.mxu0 0
  %6948 = vmatmul.mubr.bf16.gmra.mrb[0].mxu0 %v6914
  %v6949 = vpop.f32.mrb[0].mxu0
  %v6950 = vadd.f32 0.0, %v6949
  %v6951 = vpop.f32.mrb[0].mxu0
  %v6952 = vadd.f32 0.0, %v6951
  %v6953 = vpop.f32.mrb[0].mxu0
  %v6954 = vpop.f32.mrb[0].mxu0
  %6955 = vdwg.mxu0
  %6956 = vmatprep.subr.bf16.mxu0 %v5534
  %6957 = vmatpush1.bf16.msra.mxu0 %v5533
  %6958 = vmatprep.subr.bf16.mxu0 %v5538
  %6959 = vmatpush1.bf16.msra.mxu0 %v5537
  %6960 = vmatprep.subr.bf16.mxu0 %v5542
  %6961 = vmatpush1.bf16.msra.mxu0 %v5541
  %6962 = vmatprep.subr.bf16.mxu0 %v5546
  %6963 = vmatpush1.bf16.msra.mxu0 %v5545
  %6964 = vmatprep.subr.bf16.mxu0 %v5550
  %6965 = vmatpush1.bf16.msra.mxu0 %v5549
  %6966 = vmatprep.subr.bf16.mxu0 %v5554
  %6967 = vmatpush1.bf16.msra.mxu0 %v5553
  %6968 = vmatprep.subr.bf16.mxu0 %v5558
  %6969 = vmatpush1.bf16.msra.mxu0 %v5557
  %6970 = vmatprep.subr.bf16.mxu0 %v5562
  %6971 = vmatpush1.bf16.msra.mxu0 %v5561
  %6972 = vmatprep.subr.bf16.mxu0 0
  %6973 = vmatpush1.bf16.msra.mxu0 0
  %6974 = vmatprep.subr.bf16.mxu0 0
  %6975 = vmatpush1.bf16.msra.mxu0 0
  %6976 = vmatprep.subr.bf16.mxu0 0
  %6977 = vmatpush1.bf16.msra.mxu0 0
  %6978 = vmatprep.subr.bf16.mxu0 0
  %6979 = vmatpush1.bf16.msra.mxu0 0
  %6980 = vmatprep.subr.bf16.mxu0 0
  %6981 = vmatpush1.bf16.msra.mxu0 0
  %6982 = vmatprep.subr.bf16.mxu0 0
  %6983 = vmatpush1.bf16.msra.mxu0 0
  %6984 = vmatprep.subr.bf16.mxu0 0
  %6985 = vmatpush1.bf16.msra.mxu0 0
  %6986 = vmatprep.subr.bf16.mxu0 0
  %6987 = vmatpush1.bf16.msra.mxu0 0
  %6988 = vmatprep.mubr.bf16.mxu0 0
  %6989 = vmatmul.mubr.bf16.gmra.mrb[0].mxu0 %v6914
  %v6990 = vpop.f32.mrb[0].mxu0
  %v6991 = vadd.f32 0.0, %v6990
  %v6992 = vpop.f32.mrb[0].mxu0
  %v6993 = vadd.f32 0.0, %v6992
  %v6994 = vpop.f32.mrb[0].mxu0
  %v6995 = vpop.f32.mrb[0].mxu0
  %6996 = vdwg.mxu0
  %v6997 = vadd.f32 %v6910, %v6950
  %v6998 = vadd.f32 %v6911, %v6952
  %v6999 = vadd.f32 %v6912, %v6991
  %v7000 = vadd.f32 %v6913, %v6993
  %v7001 = vxor.u32 %v6997, 2147483648
  %v7002 = vmul.f32 %v7001, 1.442695
  %v7003 = vpow.pop %v7002
  %v7004 = vadd.f32 %v7003, 1.0
  %v7005 = vrcp.pop %v7004
  %v7006 = vmul.f32 1.0, %v7005
  %v7007 = vxor.u32 %v6998, 2147483648
  %v7008 = vmul.f32 %v7007, 1.442695
  %v7009 = vpow.pop %v7008
  %v7010 = vadd.f32 %v7009, 1.0
  %v7011 = vrcp.pop %v7010
  %v7012 = vmul.f32 1.0, %v7011
  %v7013 = vtanh.pop %v6999
  %v7014 = vxor.u32 %v7000, 2147483648
  %v7015 = vmul.f32 %v7014, 1.442695
  %v7016 = vpow.pop %v7015
  %v7017 = vadd.f32 %v7016, 1.0
  %v7018 = vrcp.pop %v7017
  %v7019 = vmul.f32 1.0, %v7018
  %v7020 = vmul.f32 %v7012, %v6902
  %v7021 = vmul.f32 %v7006, %v7013
  %v7022 = vadd.f32 %v7020, %v7021
  %v7023 = vtanh.pop %v7022
  %v7024 = vmul.f32 %v7019, %v7023
  %s7025 = smul.addr %s2464, 8
  %s7026 = scalar_lea.vmem %s13, %s7025
  %7027 = vst [vmem:[%s7026] sm:$0xff] %v7024
  %s7028 = scalar_lea.vmem %s14, 16
  %7029 = vst [vmem:[%s7028] sm:$0xff] %v7024
  %s7030 = scalar_lea.vmem %s15, 16
  %7031 = vst [vmem:[%s7030] sm:$0xff] %v7022
  %v7032 = vld [vmem:[%s11] sm:$0xff]
  %v7033 = vld [vmem:[%s11 + $0x8] sm:$0xff]
  %v7034 = vld [vmem:[%s11 + $0x10] sm:$0xff]
  %v7035 = vld [vmem:[%s11 + $0x18] sm:$0xff]
  %v7036 = vld [vmem:[%s11 + $0x20] sm:$0xff]
  %v7037 = vld [vmem:[%s11 + $0x28] sm:$0xff]
  %v7038 = vld [vmem:[%s11 + $0x30] sm:$0xff]
  %v7039 = vld [vmem:[%s11 + $0x38] sm:$0xff]
  %v7040 = vld [vmem:[%s11 + $0x40] sm:$0xff]
  %v7041 = vld [vmem:[%s11 + $0x48] sm:$0xff]
  %v7042 = vld [vmem:[%s11 + $0x50] sm:$0xff]
  %v7043 = vld [vmem:[%s11 + $0x58] sm:$0xff]
  %v7044 = vld [vmem:[%s11 + $0x60] sm:$0xff]
  %v7045 = vld [vmem:[%s11 + $0x68] sm:$0xff]
  %v7046 = vld [vmem:[%s11 + $0x70] sm:$0xff]
  %v7047 = vld [vmem:[%s11 + $0x78] sm:$0xff]
  %v7048 = vld [vmem:[%s11 + $0x80] sm:$0xff]
  %v7049 = vld [vmem:[%s11 + $0x88] sm:$0xff]
  %v7050 = vld [vmem:[%s11 + $0x90] sm:$0xff]
  %v7051 = vld [vmem:[%s11 + $0x98] sm:$0xff]
  %v7052 = vld [vmem:[%s11 + $0xa0] sm:$0xff]
  %v7053 = vld [vmem:[%s11 + $0xa8] sm:$0xff]
  %v7054 = vld [vmem:[%s11 + $0xb0] sm:$0xff]
  %v7055 = vld [vmem:[%s11 + $0xb8] sm:$0xff]
  %v7056 = vld [vmem:[%s11 + $0xc0] sm:$0xff]
  %v7057 = vld [vmem:[%s11 + $0xc8] sm:$0xff]
  %v7058 = vld [vmem:[%s11 + $0xd0] sm:$0xff]
  %v7059 = vld [vmem:[%s11 + $0xd8] sm:$0xff]
  %v7060 = vld [vmem:[%s11 + $0xe0] sm:$0xff]
  %v7061 = vld [vmem:[%s11 + $0xe8] sm:$0xff]
  %v7062 = vld [vmem:[%s11 + $0xf0] sm:$0xff]
  %v7063 = vld [vmem:[%s11 + $0xf8] sm:$0xff]
  %s7064 = smul.addr %s2346, 8
  %s7065 = scalar_lea.vmem [#allocation5], %s7064
  %v7066 = vld [vmem:[%s7065] sm:$0xff]
  %v7067 = vld [vmem:[%s7065 + $0x8] sm:$0xff]
  %v7068 = vld [vmem:[%s7065 + $0x10] sm:$0xff]
  %v7069 = vld [vmem:[%s7065 + $0x18] sm:$0xff]
  %v7102 = vunpack.c.l.b16 %v7032
  %v7103 = vunpack.c.h.b16 %v7032
  %v7104 = vunpack.c.l.b16 %v7033
  %v7105 = vunpack.c.h.b16 %v7033
  %v7106 = vunpack.c.l.b16 %v7034
  %v7107 = vunpack.c.h.b16 %v7034
  %v7108 = vunpack.c.l.b16 %v7035
  %v7109 = vunpack.c.h.b16 %v7035
  %v7110 = vunpack.c.l.b16 %v7036
  %v7111 = vunpack.c.h.b16 %v7036
  %v7112 = vunpack.c.l.b16 %v7037
  %v7113 = vunpack.c.h.b16 %v7037
  %v7114 = vunpack.c.l.b16 %v7038
  %v7115 = vunpack.c.h.b16 %v7038
  %v7116 = vunpack.c.l.b16 %v7039
  %v7117 = vunpack.c.h.b16 %v7039
  %v7118 = vunpack.c.l.b16 %v7040
  %v7119 = vunpack.c.h.b16 %v7040
  %v7120 = vunpack.c.l.b16 %v7041
  %v7121 = vunpack.c.h.b16 %v7041
  %v7122 = vunpack.c.l.b16 %v7042
  %v7123 = vunpack.c.h.b16 %v7042
  %v7124 = vunpack.c.l.b16 %v7043
  %v7125 = vunpack.c.h.b16 %v7043
  %v7126 = vunpack.c.l.b16 %v7044
  %v7127 = vunpack.c.h.b16 %v7044
  %v7128 = vunpack.c.l.b16 %v7045
  %v7129 = vunpack.c.h.b16 %v7045
  %v7130 = vunpack.c.l.b16 %v7046
  %v7131 = vunpack.c.h.b16 %v7046
  %v7132 = vunpack.c.l.b16 %v7047
  %v7133 = vunpack.c.h.b16 %v7047
  %v7134 = vunpack.c.l.b16 %v7048
  %v7135 = vunpack.c.h.b16 %v7048
  %v7136 = vunpack.c.l.b16 %v7049
  %v7137 = vunpack.c.h.b16 %v7049
  %v7138 = vunpack.c.l.b16 %v7050
  %v7139 = vunpack.c.h.b16 %v7050
  %v7140 = vunpack.c.l.b16 %v7051
  %v7141 = vunpack.c.h.b16 %v7051
  %v7142 = vunpack.c.l.b16 %v7052
  %v7143 = vunpack.c.h.b16 %v7052
  %v7144 = vunpack.c.l.b16 %v7053
  %v7145 = vunpack.c.h.b16 %v7053
  %v7146 = vunpack.c.l.b16 %v7054
  %v7147 = vunpack.c.h.b16 %v7054
  %v7148 = vunpack.c.l.b16 %v7055
  %v7149 = vunpack.c.h.b16 %v7055
  %v7150 = vunpack.c.l.b16 %v7056
  %v7151 = vunpack.c.h.b16 %v7056
  %v7152 = vunpack.c.l.b16 %v7057
  %v7153 = vunpack.c.h.b16 %v7057
  %v7154 = vunpack.c.l.b16 %v7058
  %v7155 = vunpack.c.h.b16 %v7058
  %v7156 = vunpack.c.l.b16 %v7059
  %v7157 = vunpack.c.h.b16 %v7059
  %v7158 = vunpack.c.l.b16 %v7060
  %v7159 = vunpack.c.h.b16 %v7060
  %v7160 = vunpack.c.l.b16 %v7061
  %v7161 = vunpack.c.h.b16 %v7061
  %v7162 = vunpack.c.l.b16 %v7062
  %v7163 = vunpack.c.h.b16 %v7062
  %v7164 = vunpack.c.l.b16 %v7063
  %v7165 = vunpack.c.h.b16 %v7063
  %v7166 = vpack.c.b16 %v7106, %v7102
  %v7167 = vpack.c.b16 %v7107, %v7103
  %v7168 = vpack.c.b16 %v7108, %v7104
  %v7169 = vpack.c.b16 %v7109, %v7105
  %v7170 = vpack.c.b16 %v7114, %v7110
  %v7171 = vpack.c.b16 %v7115, %v7111
  %v7172 = vpack.c.b16 %v7116, %v7112
  %v7173 = vpack.c.b16 %v7117, %v7113
  %v7174 = vpack.c.b16 %v7122, %v7118
  %v7175 = vpack.c.b16 %v7123, %v7119
  %v7176 = vpack.c.b16 %v7124, %v7120
  %v7177 = vpack.c.b16 %v7125, %v7121
  %v7178 = vpack.c.b16 %v7130, %v7126
  %v7179 = vpack.c.b16 %v7131, %v7127
  %v7180 = vpack.c.b16 %v7132, %v7128
  %v7181 = vpack.c.b16 %v7133, %v7129
  %v7182 = vpack.c.b16 %v7138, %v7134
  %v7183 = vpack.c.b16 %v7139, %v7135
  %v7184 = vpack.c.b16 %v7140, %v7136
  %v7185 = vpack.c.b16 %v7141, %v7137
  %v7186 = vpack.c.b16 %v7146, %v7142
  %v7187 = vpack.c.b16 %v7147, %v7143
  %v7188 = vpack.c.b16 %v7148, %v7144
  %v7189 = vpack.c.b16 %v7149, %v7145
  %v7190 = vpack.c.b16 %v7154, %v7150
  %v7191 = vpack.c.b16 %v7155, %v7151
  %v7192 = vpack.c.b16 %v7156, %v7152
  %v7193 = vpack.c.b16 %v7157, %v7153
  %v7194 = vpack.c.b16 %v7162, %v7158
  %v7195 = vpack.c.b16 %v7163, %v7159
  %v7196 = vpack.c.b16 %v7164, %v7160
  %v7197 = vpack.c.b16 %v7165, %v7161
  %7230 = vmatprep.subr.bf16.mxu0 %v7167
  %7231 = vmatpush1.bf16.msra.mxu0 %v7166
  %7232 = vmatprep.subr.bf16.mxu0 %v7171
  %7233 = vmatpush1.bf16.msra.mxu0 %v7170
  %7234 = vmatprep.subr.bf16.mxu0 %v7175
  %7235 = vmatpush1.bf16.msra.mxu0 %v7174
  %7236 = vmatprep.subr.bf16.mxu0 %v7179
  %7237 = vmatpush1.bf16.msra.mxu0 %v7178
  %7238 = vmatprep.subr.bf16.mxu0 %v7183
  %7239 = vmatpush1.bf16.msra.mxu0 %v7182
  %7240 = vmatprep.subr.bf16.mxu0 %v7187
  %7241 = vmatpush1.bf16.msra.mxu0 %v7186
  %7242 = vmatprep.subr.bf16.mxu0 %v7191
  %7243 = vmatpush1.bf16.msra.mxu0 %v7190
  %7244 = vmatprep.subr.bf16.mxu0 %v7195
  %7245 = vmatpush1.bf16.msra.mxu0 %v7194
  %7246 = vmatprep.subr.bf16.mxu0 0
  %7247 = vmatpush1.bf16.msra.mxu0 0
  %7248 = vmatprep.subr.bf16.mxu0 0
  %7249 = vmatpush1.bf16.msra.mxu0 0
  %7250 = vmatprep.subr.bf16.mxu0 0
  %7251 = vmatpush1.bf16.msra.mxu0 0
  %7252 = vmatprep.subr.bf16.mxu0 0
  %7253 = vmatpush1.bf16.msra.mxu0 0
  %7254 = vmatprep.subr.bf16.mxu0 0
  %7255 = vmatpush1.bf16.msra.mxu0 0
  %7256 = vmatprep.subr.bf16.mxu0 0
  %7257 = vmatpush1.bf16.msra.mxu0 0
  %7258 = vmatprep.subr.bf16.mxu0 0
  %7259 = vmatpush1.bf16.msra.mxu0 0
  %7260 = vmatprep.subr.bf16.mxu0 0
  %7261 = vmatpush1.bf16.msra.mxu0 0
  %7262 = vmatprep.mubr.bf16.mxu0 0
  %7263 = vmatmul.mubr.bf16.gmra.mrb[0].mxu0 0
  %v7264 = vpop.f32.mrb[0].mxu0
  %v7265 = vadd.f32 0.0, %v7264
  %v7266 = vpop.f32.mrb[0].mxu0
  %v7267 = vadd.f32 0.0, %v7266
  %v7268 = vpop.f32.mrb[0].mxu0
  %v7269 = vpop.f32.mrb[0].mxu0
  %7270 = vdwg.mxu0
  %7271 = vmatprep.subr.bf16.mxu0 %v7169
  %7272 = vmatpush1.bf16.msra.mxu0 %v7168
  %7273 = vmatprep.subr.bf16.mxu0 %v7173
  %7274 = vmatpush1.bf16.msra.mxu0 %v7172
  %7275 = vmatprep.subr.bf16.mxu0 %v7177
  %7276 = vmatpush1.bf16.msra.mxu0 %v7176
  %7277 = vmatprep.subr.bf16.mxu0 %v7181
  %7278 = vmatpush1.bf16.msra.mxu0 %v7180
  %7279 = vmatprep.subr.bf16.mxu0 %v7185
  %7280 = vmatpush1.bf16.msra.mxu0 %v7184
  %7281 = vmatprep.subr.bf16.mxu0 %v7189
  %7282 = vmatpush1.bf16.msra.mxu0 %v7188
  %7283 = vmatprep.subr.bf16.mxu0 %v7193
  %7284 = vmatpush1.bf16.msra.mxu0 %v7192
  %7285 = vmatprep.subr.bf16.mxu0 %v7197
  %7286 = vmatpush1.bf16.msra.mxu0 %v7196
  %7287 = vmatprep.subr.bf16.mxu0 0
  %7288 = vmatpush1.bf16.msra.mxu0 0
  %7289 = vmatprep.subr.bf16.mxu0 0
  %7290 = vmatpush1.bf16.msra.mxu0 0
  %7291 = vmatprep.subr.bf16.mxu0 0
  %7292 = vmatpush1.bf16.msra.mxu0 0
  %7293 = vmatprep.subr.bf16.mxu0 0
  %7294 = vmatpush1.bf16.msra.mxu0 0
  %7295 = vmatprep.subr.bf16.mxu0 0
  %7296 = vmatpush1.bf16.msra.mxu0 0
  %7297 = vmatprep.subr.bf16.mxu0 0
  %7298 = vmatpush1.bf16.msra.mxu0 0
  %7299 = vmatprep.subr.bf16.mxu0 0
  %7300 = vmatpush1.bf16.msra.mxu0 0
  %7301 = vmatprep.subr.bf16.mxu0 0
  %7302 = vmatpush1.bf16.msra.mxu0 0
  %7303 = vmatprep.mubr.bf16.mxu0 0
  %7304 = vmatmul.mubr.bf16.gmra.mrb[0].mxu0 0
  %v7305 = vpop.f32.mrb[0].mxu0
  %v7306 = vadd.f32 0.0, %v7305
  %v7307 = vpop.f32.mrb[0].mxu0
  %v7308 = vadd.f32 0.0, %v7307
  %v7309 = vpop.f32.mrb[0].mxu0
  %v7310 = vpop.f32.mrb[0].mxu0
  %7311 = vdwg.mxu0
  %v7312 = vadd.f32 %v7066, %v7265
  %v7313 = vadd.f32 %v7067, %v7267
  %v7314 = vadd.f32 %v7068, %v7306
  %v7315 = vadd.f32 %v7069, %v7308
  %v7316 = vxor.u32 %v7312, 2147483648
  %v7317 = vmul.f32 %v7316, 1.442695
  %v7318 = vpow.pop %v7317
  %v7319 = vadd.f32 %v7318, 1.0
  %v7320 = vrcp.pop %v7319
  %v7321 = vmul.f32 1.0, %v7320
  %v7322 = vxor.u32 %v7313, 2147483648
  %v7323 = vmul.f32 %v7322, 1.442695
  %v7324 = vpow.pop %v7323
  %v7325 = vadd.f32 %v7324, 1.0
  %v7326 = vrcp.pop %v7325
  %v7327 = vmul.f32 1.0, %v7326
  %v7328 = vtanh.pop %v7314
  %v7329 = vxor.u32 %v7315, 2147483648
  %v7330 = vmul.f32 %v7329, 1.442695
  %v7331 = vpow.pop %v7330
  %v7332 = vadd.f32 %v7331, 1.0
  %v7333 = vrcp.pop %v7332
  %v7334 = vmul.f32 1.0, %v7333
  %v7335 = vmul.f32 %v7327, 0.0
  %v7336 = vmul.f32 %v7321, %v7328
  %v7337 = vadd.f32 %v7335, %v7336
  %v7338 = vtanh.pop %v7337
  %v7339 = vmul.f32 %v7334, %v7338
  %7340 = vst [vmem:[%s7026 + $0x8] sm:$0xff] %v7339
  %s7341 = smul.addr %s2224, 8
  %s7342 = scalar_lea.vmem [#allocation5], %s7341
  %v7343 = vld [vmem:[%s7342] sm:$0xff]
  %v7344 = vld [vmem:[%s7342 + $0x8] sm:$0xff]
  %v7345 = vld [vmem:[%s7342 + $0x10] sm:$0xff]
  %v7346 = vld [vmem:[%s7342 + $0x18] sm:$0xff]
  %v7347 = vpack.c.bf16 %v7339, %v7339
  %7348 = vmatprep.subr.bf16.mxu0 %v7167
  %7349 = vmatpush1.bf16.msra.mxu0 %v7166
  %7350 = vmatprep.subr.bf16.mxu0 %v7171
  %7351 = vmatpush1.bf16.msra.mxu0 %v7170
  %7352 = vmatprep.subr.bf16.mxu0 %v7175
  %7353 = vmatpush1.bf16.msra.mxu0 %v7174
  %7354 = vmatprep.subr.bf16.mxu0 %v7179
  %7355 = vmatpush1.bf16.msra.mxu0 %v7178
  %7356 = vmatprep.subr.bf16.mxu0 %v7183
  %7357 = vmatpush1.bf16.msra.mxu0 %v7182
  %7358 = vmatprep.subr.bf16.mxu0 %v7187
  %7359 = vmatpush1.bf16.msra.mxu0 %v7186
  %7360 = vmatprep.subr.bf16.mxu0 %v7191
  %7361 = vmatpush1.bf16.msra.mxu0 %v7190
  %7362 = vmatprep.subr.bf16.mxu0 %v7195
  %7363 = vmatpush1.bf16.msra.mxu0 %v7194
  %7364 = vmatprep.subr.bf16.mxu0 0
  %7365 = vmatpush1.bf16.msra.mxu0 0
  %7366 = vmatprep.subr.bf16.mxu0 0
  %7367 = vmatpush1.bf16.msra.mxu0 0
  %7368 = vmatprep.subr.bf16.mxu0 0
  %7369 = vmatpush1.bf16.msra.mxu0 0
  %7370 = vmatprep.subr.bf16.mxu0 0
  %7371 = vmatpush1.bf16.msra.mxu0 0
  %7372 = vmatprep.subr.bf16.mxu0 0
  %7373 = vmatpush1.bf16.msra.mxu0 0
  %7374 = vmatprep.subr.bf16.mxu0 0
  %7375 = vmatpush1.bf16.msra.mxu0 0
  %7376 = vmatprep.subr.bf16.mxu0 0
  %7377 = vmatpush1.bf16.msra.mxu0 0
  %7378 = vmatprep.subr.bf16.mxu0 0
  %7379 = vmatpush1.bf16.msra.mxu0 0
  %7380 = vmatprep.mubr.bf16.mxu0 0
  %7381 = vmatmul.mubr.bf16.gmra.mrb[0].mxu0 %v7347
  %v7382 = vpop.f32.mrb[0].mxu0
  %v7383 = vadd.f32 0.0, %v7382
  %v7384 = vpop.f32.mrb[0].mxu0
  %v7385 = vadd.f32 0.0, %v7384
  %v7386 = vpop.f32.mrb[0].mxu0
  %v7387 = vpop.f32.mrb[0].mxu0
  %7388 = vdwg.mxu0
  %7389 = vmatprep.subr.bf16.mxu0 %v7169
  %7390 = vmatpush1.bf16.msra.mxu0 %v7168
  %7391 = vmatprep.subr.bf16.mxu0 %v7173
  %7392 = vmatpush1.bf16.msra.mxu0 %v7172
  %7393 = vmatprep.subr.bf16.mxu0 %v7177
  %7394 = vmatpush1.bf16.msra.mxu0 %v7176
  %7395 = vmatprep.subr.bf16.mxu0 %v7181
  %7396 = vmatpush1.bf16.msra.mxu0 %v7180
  %7397 = vmatprep.subr.bf16.mxu0 %v7185
  %7398 = vmatpush1.bf16.msra.mxu0 %v7184
  %7399 = vmatprep.subr.bf16.mxu0 %v7189
  %7400 = vmatpush1.bf16.msra.mxu0 %v7188
  %7401 = vmatprep.subr.bf16.mxu0 %v7193
  %7402 = vmatpush1.bf16.msra.mxu0 %v7192
  %7403 = vmatprep.subr.bf16.mxu0 %v7197
  %7404 = vmatpush1.bf16.msra.mxu0 %v7196
  %7405 = vmatprep.subr.bf16.mxu0 0
  %7406 = vmatpush1.bf16.msra.mxu0 0
  %7407 = vmatprep.subr.bf16.mxu0 0
  %7408 = vmatpush1.bf16.msra.mxu0 0
  %7409 = vmatprep.subr.bf16.mxu0 0
  %7410 = vmatpush1.bf16.msra.mxu0 0
  %7411 = vmatprep.subr.bf16.mxu0 0
  %7412 = vmatpush1.bf16.msra.mxu0 0
  %7413 = vmatprep.subr.bf16.mxu0 0
  %7414 = vmatpush1.bf16.msra.mxu0 0
  %7415 = vmatprep.subr.bf16.mxu0 0
  %7416 = vmatpush1.bf16.msra.mxu0 0
  %7417 = vmatprep.subr.bf16.mxu0 0
  %7418 = vmatpush1.bf16.msra.mxu0 0
  %7419 = vmatprep.subr.bf16.mxu0 0
  %7420 = vmatpush1.bf16.msra.mxu0 0
  %7421 = vmatprep.mubr.bf16.mxu0 0
  %7422 = vmatmul.mubr.bf16.gmra.mrb[0].mxu0 %v7347
  %v7423 = vpop.f32.mrb[0].mxu0
  %v7424 = vadd.f32 0.0, %v7423
  %v7425 = vpop.f32.mrb[0].mxu0
  %v7426 = vadd.f32 0.0, %v7425
  %v7427 = vpop.f32.mrb[0].mxu0
  %v7428 = vpop.f32.mrb[0].mxu0
  %7429 = vdwg.mxu0
  %v7430 = vadd.f32 %v7343, %v7383
  %v7431 = vadd.f32 %v7344, %v7385
  %v7432 = vadd.f32 %v7345, %v7424
  %v7433 = vadd.f32 %v7346, %v7426
  %v7434 = vxor.u32 %v7430, 2147483648
  %v7435 = vmul.f32 %v7434, 1.442695
  %v7436 = vpow.pop %v7435
  %v7437 = vadd.f32 %v7436, 1.0
  %v7438 = vrcp.pop %v7437
  %v7439 = vmul.f32 1.0, %v7438
  %v7440 = vxor.u32 %v7431, 2147483648
  %v7441 = vmul.f32 %v7440, 1.442695
  %v7442 = vpow.pop %v7441
  %v7443 = vadd.f32 %v7442, 1.0
  %v7444 = vrcp.pop %v7443
  %v7445 = vmul.f32 1.0, %v7444
  %v7446 = vtanh.pop %v7432
  %v7447 = vxor.u32 %v7433, 2147483648
  %v7448 = vmul.f32 %v7447, 1.442695
  %v7449 = vpow.pop %v7448
  %v7450 = vadd.f32 %v7449, 1.0
  %v7451 = vrcp.pop %v7450
  %v7452 = vmul.f32 1.0, %v7451
  %v7453 = vmul.f32 %v7445, %v7337
  %v7454 = vmul.f32 %v7439, %v7446
  %v7455 = vadd.f32 %v7453, %v7454
  %v7456 = vtanh.pop %v7455
  %v7457 = vmul.f32 %v7452, %v7456
  %7458 = vst [vmem:[%s6906 + $0x8] sm:$0xff] %v7457
  %s7459 = smul.addr %s2102, 8
  %s7460 = scalar_lea.vmem [#allocation5], %s7459
  %v7461 = vld [vmem:[%s7460] sm:$0xff]
  %v7462 = vld [vmem:[%s7460 + $0x8] sm:$0xff]
  %v7463 = vld [vmem:[%s7460 + $0x10] sm:$0xff]
  %v7464 = vld [vmem:[%s7460 + $0x18] sm:$0xff]
  %v7465 = vpack.c.bf16 %v7457, %v7457
  %7466 = vmatprep.subr.bf16.mxu0 %v7167
  %7467 = vmatpush1.bf16.msra.mxu0 %v7166
  %7468 = vmatprep.subr.bf16.mxu0 %v7171
  %7469 = vmatpush1.bf16.msra.mxu0 %v7170
  %7470 = vmatprep.subr.bf16.mxu0 %v7175
  %7471 = vmatpush1.bf16.msra.mxu0 %v7174
  %7472 = vmatprep.subr.bf16.mxu0 %v7179
  %7473 = vmatpush1.bf16.msra.mxu0 %v7178
  %7474 = vmatprep.subr.bf16.mxu0 %v7183
  %7475 = vmatpush1.bf16.msra.mxu0 %v7182
  %7476 = vmatprep.subr.bf16.mxu0 %v7187
  %7477 = vmatpush1.bf16.msra.mxu0 %v7186
  %7478 = vmatprep.subr.bf16.mxu0 %v7191
  %7479 = vmatpush1.bf16.msra.mxu0 %v7190
  %7480 = vmatprep.subr.bf16.mxu0 %v7195
  %7481 = vmatpush1.bf16.msra.mxu0 %v7194
  %7482 = vmatprep.subr.bf16.mxu0 0
  %7483 = vmatpush1.bf16.msra.mxu0 0
  %7484 = vmatprep.subr.bf16.mxu0 0
  %7485 = vmatpush1.bf16.msra.mxu0 0
  %7486 = vmatprep.subr.bf16.mxu0 0
  %7487 = vmatpush1.bf16.msra.mxu0 0
  %7488 = vmatprep.subr.bf16.mxu0 0
  %7489 = vmatpush1.bf16.msra.mxu0 0
  %7490 = vmatprep.subr.bf16.mxu0 0
  %7491 = vmatpush1.bf16.msra.mxu0 0
  %7492 = vmatprep.subr.bf16.mxu0 0
  %7493 = vmatpush1.bf16.msra.mxu0 0
  %7494 = vmatprep.subr.bf16.mxu0 0
  %7495 = vmatpush1.bf16.msra.mxu0 0
  %7496 = vmatprep.subr.bf16.mxu0 0
  %7497 = vmatpush1.bf16.msra.mxu0 0
  %7498 = vmatprep.mubr.bf16.mxu0 0
  %7499 = vmatmul.mubr.bf16.gmra.mrb[0].mxu0 %v7465
  %v7500 = vpop.f32.mrb[0].mxu0
  %v7501 = vadd.f32 0.0, %v7500
  %v7502 = vpop.f32.mrb[0].mxu0
  %v7503 = vadd.f32 0.0, %v7502
  %v7504 = vpop.f32.mrb[0].mxu0
  %v7505 = vpop.f32.mrb[0].mxu0
  %7506 = vdwg.mxu0
  %7507 = vmatprep.subr.bf16.mxu0 %v7169
  %7508 = vmatpush1.bf16.msra.mxu0 %v7168
  %7509 = vmatprep.subr.bf16.mxu0 %v7173
  %7510 = vmatpush1.bf16.msra.mxu0 %v7172
  %7511 = vmatprep.subr.bf16.mxu0 %v7177
  %7512 = vmatpush1.bf16.msra.mxu0 %v7176
  %7513 = vmatprep.subr.bf16.mxu0 %v7181
  %7514 = vmatpush1.bf16.msra.mxu0 %v7180
  %7515 = vmatprep.subr.bf16.mxu0 %v7185
  %7516 = vmatpush1.bf16.msra.mxu0 %v7184
  %7517 = vmatprep.subr.bf16.mxu0 %v7189
  %7518 = vmatpush1.bf16.msra.mxu0 %v7188
  %7519 = vmatprep.subr.bf16.mxu0 %v7193
  %7520 = vmatpush1.bf16.msra.mxu0 %v7192
  %7521 = vmatprep.subr.bf16.mxu0 %v7197
  %7522 = vmatpush1.bf16.msra.mxu0 %v7196
  %7523 = vmatprep.subr.bf16.mxu0 0
  %7524 = vmatpush1.bf16.msra.mxu0 0
  %7525 = vmatprep.subr.bf16.mxu0 0
  %7526 = vmatpush1.bf16.msra.mxu0 0
  %7527 = vmatprep.subr.bf16.mxu0 0
  %7528 = vmatpush1.bf16.msra.mxu0 0
  %7529 = vmatprep.subr.bf16.mxu0 0
  %7530 = vmatpush1.bf16.msra.mxu0 0
  %7531 = vmatprep.subr.bf16.mxu0 0
  %7532 = vmatpush1.bf16.msra.mxu0 0
  %7533 = vmatprep.subr.bf16.mxu0 0
  %7534 = vmatpush1.bf16.msra.mxu0 0
  %7535 = vmatprep.subr.bf16.mxu0 0
  %7536 = vmatpush1.bf16.msra.mxu0 0
  %7537 = vmatprep.subr.bf16.mxu0 0
  %7538 = vmatpush1.bf16.msra.mxu0 0
  %7539 = vmatprep.mubr.bf16.mxu0 0
  %7540 = vmatmul.mubr.bf16.gmra.mrb[0].mxu0 %v7465
  %v7541 = vpop.f32.mrb[0].mxu0
  %v7542 = vadd.f32 0.0, %v7541
  %v7543 = vpop.f32.mrb[0].mxu0
  %v7544 = vadd.f32 0.0, %v7543
  %v7545 = vpop.f32.mrb[0].mxu0
  %v7546 = vpop.f32.mrb[0].mxu0
  %7547 = vdwg.mxu0
  %v7548 = vadd.f32 %v7461, %v7501
  %v7549 = vadd.f32 %v7462, %v7503
  %v7550 = vadd.f32 %v7463, %v7542
  %v7551 = vadd.f32 %v7464, %v7544
  %v7552 = vxor.u32 %v7548, 2147483648
  %v7553 = vmul.f32 %v7552, 1.442695
  %v7554 = vpow.pop %v7553
  %v7555 = vadd.f32 %v7554, 1.0
  %v7556 = vrcp.pop %v7555
  %v7557 = vmul.f32 1.0, %v7556
  %v7558 = vxor.u32 %v7549, 2147483648
  %v7559 = vmul.f32 %v7558, 1.442695
  %v7560 = vpow.pop %v7559
  %v7561 = vadd.f32 %v7560, 1.0
  %v7562 = vrcp.pop %v7561
  %v7563 = vmul.f32 1.0, %v7562
  %v7564 = vtanh.pop %v7550
  %v7565 = vxor.u32 %v7551, 2147483648
  %v7566 = vmul.f32 %v7565, 1.442695
  %v7567 = vpow.pop %v7566
  %v7568 = vadd.f32 %v7567, 1.0
  %v7569 = vrcp.pop %v7568
  %v7570 = vmul.f32 1.0, %v7569
  %v7571 = vmul.f32 %v7563, %v7455
  %v7572 = vmul.f32 %v7557, %v7564
  %v7573 = vadd.f32 %v7571, %v7572
  %v7574 = vtanh.pop %v7573
  %v7575 = vmul.f32 %v7570, %v7574
  %7576 = vst [vmem:[%s6786 + $0x8] sm:$0xff] %v7575
  %s7577 = smul.addr %s1980, 8
  %s7578 = scalar_lea.vmem [#allocation5], %s7577
  %v7579 = vld [vmem:[%s7578] sm:$0xff]
  %v7580 = vld [vmem:[%s7578 + $0x8] sm:$0xff]
  %v7581 = vld [vmem:[%s7578 + $0x10] sm:$0xff]
  %v7582 = vld [vmem:[%s7578 + $0x18] sm:$0xff]
  %v7583 = vpack.c.bf16 %v7575, %v7575
  %7584 = vmatprep.subr.bf16.mxu0 %v7167
  %7585 = vmatpush1.bf16.msra.mxu0 %v7166
  %7586 = vmatprep.subr.bf16.mxu0 %v7171
  %7587 = vmatpush1.bf16.msra.mxu0 %v7170
  %7588 = vmatprep.subr.bf16.mxu0 %v7175
  %7589 = vmatpush1.bf16.msra.mxu0 %v7174
  %7590 = vmatprep.subr.bf16.mxu0 %v7179
  %7591 = vmatpush1.bf16.msra.mxu0 %v7178
  %7592 = vmatprep.subr.bf16.mxu0 %v7183
  %7593 = vmatpush1.bf16.msra.mxu0 %v7182
  %7594 = vmatprep.subr.bf16.mxu0 %v7187
  %7595 = vmatpush1.bf16.msra.mxu0 %v7186
  %7596 = vmatprep.subr.bf16.mxu0 %v7191
  %7597 = vmatpush1.bf16.msra.mxu0 %v7190
  %7598 = vmatprep.subr.bf16.mxu0 %v7195
  %7599 = vmatpush1.bf16.msra.mxu0 %v7194
  %7600 = vmatprep.subr.bf16.mxu0 0
  %7601 = vmatpush1.bf16.msra.mxu0 0
  %7602 = vmatprep.subr.bf16.mxu0 0
  %7603 = vmatpush1.bf16.msra.mxu0 0
  %7604 = vmatprep.subr.bf16.mxu0 0
  %7605 = vmatpush1.bf16.msra.mxu0 0
  %7606 = vmatprep.subr.bf16.mxu0 0
  %7607 = vmatpush1.bf16.msra.mxu0 0
  %7608 = vmatprep.subr.bf16.mxu0 0
  %7609 = vmatpush1.bf16.msra.mxu0 0
  %7610 = vmatprep.subr.bf16.mxu0 0
  %7611 = vmatpush1.bf16.msra.mxu0 0
  %7612 = vmatprep.subr.bf16.mxu0 0
  %7613 = vmatpush1.bf16.msra.mxu0 0
  %7614 = vmatprep.subr.bf16.mxu0 0
  %7615 = vmatpush1.bf16.msra.mxu0 0
  %7616 = vmatprep.mubr.bf16.mxu0 0
  %7617 = vmatmul.mubr.bf16.gmra.mrb[0].mxu0 %v7583
  %v7618 = vpop.f32.mrb[0].mxu0
  %v7619 = vadd.f32 0.0, %v7618
  %v7620 = vpop.f32.mrb[0].mxu0
  %v7621 = vadd.f32 0.0, %v7620
  %v7622 = vpop.f32.mrb[0].mxu0
  %v7623 = vpop.f32.mrb[0].mxu0
  %7624 = vdwg.mxu0
  %7625 = vmatprep.subr.bf16.mxu0 %v7169
  %7626 = vmatpush1.bf16.msra.mxu0 %v7168
  %7627 = vmatprep.subr.bf16.mxu0 %v7173
  %7628 = vmatpush1.bf16.msra.mxu0 %v7172
  %7629 = vmatprep.subr.bf16.mxu0 %v7177
  %7630 = vmatpush1.bf16.msra.mxu0 %v7176
  %7631 = vmatprep.subr.bf16.mxu0 %v7181
  %7632 = vmatpush1.bf16.msra.mxu0 %v7180
  %7633 = vmatprep.subr.bf16.mxu0 %v7185
  %7634 = vmatpush1.bf16.msra.mxu0 %v7184
  %7635 = vmatprep.subr.bf16.mxu0 %v7189
  %7636 = vmatpush1.bf16.msra.mxu0 %v7188
  %7637 = vmatprep.subr.bf16.mxu0 %v7193
  %7638 = vmatpush1.bf16.msra.mxu0 %v7192
  %7639 = vmatprep.subr.bf16.mxu0 %v7197
  %7640 = vmatpush1.bf16.msra.mxu0 %v7196
  %7641 = vmatprep.subr.bf16.mxu0 0
  %7642 = vmatpush1.bf16.msra.mxu0 0
  %7643 = vmatprep.subr.bf16.mxu0 0
  %7644 = vmatpush1.bf16.msra.mxu0 0
  %7645 = vmatprep.subr.bf16.mxu0 0
  %7646 = vmatpush1.bf16.msra.mxu0 0
  %7647 = vmatprep.subr.bf16.mxu0 0
  %7648 = vmatpush1.bf16.msra.mxu0 0
  %7649 = vmatprep.subr.bf16.mxu0 0
  %7650 = vmatpush1.bf16.msra.mxu0 0
  %7651 = vmatprep.subr.bf16.mxu0 0
  %7652 = vmatpush1.bf16.msra.mxu0 0
  %7653 = vmatprep.subr.bf16.mxu0 0
  %7654 = vmatpush1.bf16.msra.mxu0 0
  %7655 = vmatprep.subr.bf16.mxu0 0
  %7656 = vmatpush1.bf16.msra.mxu0 0
  %7657 = vmatprep.mubr.bf16.mxu0 0
  %7658 = vmatmul.mubr.bf16.gmra.mrb[0].mxu0 %v7583
  %v7659 = vpop.f32.mrb[0].mxu0
  %v7660 = vadd.f32 0.0, %v7659
  %v7661 = vpop.f32.mrb[0].mxu0
  %v7662 = vadd.f32 0.0, %v7661
  %v7663 = vpop.f32.mrb[0].mxu0
  %v7664 = vpop.f32.mrb[0].mxu0
  %7665 = vdwg.mxu0
  %v7666 = vadd.f32 %v7579, %v7619
  %v7667 = vadd.f32 %v7580, %v7621
  %v7668 = vadd.f32 %v7581, %v7660
  %v7669 = vadd.f32 %v7582, %v7662
  %v7670 = vxor.u32 %v7666, 2147483648
  %v7671 = vmul.f32 %v7670, 1.442695
  %v7672 = vpow.pop %v7671
  %v7673 = vadd.f32 %v7672, 1.0
  %v7674 = vrcp.pop %v7673
  %v7675 = vmul.f32 1.0, %v7674
  %v7676 = vxor.u32 %v7667, 2147483648
  %v7677 = vmul.f32 %v7676, 1.442695
  %v7678 = vpow.pop %v7677
  %v7679 = vadd.f32 %v7678, 1.0
  %v7680 = vrcp.pop %v7679
  %v7681 = vmul.f32 1.0, %v7680
  %v7682 = vtanh.pop %v7668
  %v7683 = vxor.u32 %v7669, 2147483648
  %v7684 = vmul.f32 %v7683, 1.442695
  %v7685 = vpow.pop %v7684
  %v7686 = vadd.f32 %v7685, 1.0
  %v7687 = vrcp.pop %v7686
  %v7688 = vmul.f32 1.0, %v7687
  %v7689 = vmul.f32 %v7681, %v7573
  %v7690 = vmul.f32 %v7675, %v7682
  %v7691 = vadd.f32 %v7689, %v7690
  %v7692 = vtanh.pop %v7691
  %v7693 = vmul.f32 %v7688, %v7692
  %7694 = vst [vmem:[%s6666 + $0x8] sm:$0xff] %v7693
  %s7695 = smul.addr %s1858, 8
  %s7696 = scalar_lea.vmem [#allocation5], %s7695
  %v7697 = vld [vmem:[%s7696] sm:$0xff]
  %v7698 = vld [vmem:[%s7696 + $0x8] sm:$0xff]
  %v7699 = vld [vmem:[%s7696 + $0x10] sm:$0xff]
  %v7700 = vld [vmem:[%s7696 + $0x18] sm:$0xff]
  %v7701 = vpack.c.bf16 %v7693, %v7693
  %7702 = vmatprep.subr.bf16.mxu0 %v7167
  %7703 = vmatpush1.bf16.msra.mxu0 %v7166
  %7704 = vmatprep.subr.bf16.mxu0 %v7171
  %7705 = vmatpush1.bf16.msra.mxu0 %v7170
  %7706 = vmatprep.subr.bf16.mxu0 %v7175
  %7707 = vmatpush1.bf16.msra.mxu0 %v7174
  %7708 = vmatprep.subr.bf16.mxu0 %v7179
  %7709 = vmatpush1.bf16.msra.mxu0 %v7178
  %7710 = vmatprep.subr.bf16.mxu0 %v7183
  %7711 = vmatpush1.bf16.msra.mxu0 %v7182
  %7712 = vmatprep.subr.bf16.mxu0 %v7187
  %7713 = vmatpush1.bf16.msra.mxu0 %v7186
  %7714 = vmatprep.subr.bf16.mxu0 %v7191
  %7715 = vmatpush1.bf16.msra.mxu0 %v7190
  %7716 = vmatprep.subr.bf16.mxu0 %v7195
  %7717 = vmatpush1.bf16.msra.mxu0 %v7194
  %7718 = vmatprep.subr.bf16.mxu0 0
  %7719 = vmatpush1.bf16.msra.mxu0 0
  %7720 = vmatprep.subr.bf16.mxu0 0
  %7721 = vmatpush1.bf16.msra.mxu0 0
  %7722 = vmatprep.subr.bf16.mxu0 0
  %7723 = vmatpush1.bf16.msra.mxu0 0
  %7724 = vmatprep.subr.bf16.mxu0 0
  %7725 = vmatpush1.bf16.msra.mxu0 0
  %7726 = vmatprep.subr.bf16.mxu0 0
  %7727 = vmatpush1.bf16.msra.mxu0 0
  %7728 = vmatprep.subr.bf16.mxu0 0
  %7729 = vmatpush1.bf16.msra.mxu0 0
  %7730 = vmatprep.subr.bf16.mxu0 0
  %7731 = vmatpush1.bf16.msra.mxu0 0
  %7732 = vmatprep.subr.bf16.mxu0 0
  %7733 = vmatpush1.bf16.msra.mxu0 0
  %7734 = vmatprep.mubr.bf16.mxu0 0
  %7735 = vmatmul.mubr.bf16.gmra.mrb[0].mxu0 %v7701
  %v7736 = vpop.f32.mrb[0].mxu0
  %v7737 = vadd.f32 0.0, %v7736
  %v7738 = vpop.f32.mrb[0].mxu0
  %v7739 = vadd.f32 0.0, %v7738
  %v7740 = vpop.f32.mrb[0].mxu0
  %v7741 = vpop.f32.mrb[0].mxu0
  %7742 = vdwg.mxu0
  %7743 = vmatprep.subr.bf16.mxu0 %v7169
  %7744 = vmatpush1.bf16.msra.mxu0 %v7168
  %7745 = vmatprep.subr.bf16.mxu0 %v7173
  %7746 = vmatpush1.bf16.msra.mxu0 %v7172
  %7747 = vmatprep.subr.bf16.mxu0 %v7177
  %7748 = vmatpush1.bf16.msra.mxu0 %v7176
  %7749 = vmatprep.subr.bf16.mxu0 %v7181
  %7750 = vmatpush1.bf16.msra.mxu0 %v7180
  %7751 = vmatprep.subr.bf16.mxu0 %v7185
  %7752 = vmatpush1.bf16.msra.mxu0 %v7184
  %7753 = vmatprep.subr.bf16.mxu0 %v7189
  %7754 = vmatpush1.bf16.msra.mxu0 %v7188
  %7755 = vmatprep.subr.bf16.mxu0 %v7193
  %7756 = vmatpush1.bf16.msra.mxu0 %v7192
  %7757 = vmatprep.subr.bf16.mxu0 %v7197
  %7758 = vmatpush1.bf16.msra.mxu0 %v7196
  %7759 = vmatprep.subr.bf16.mxu0 0
  %7760 = vmatpush1.bf16.msra.mxu0 0
  %7761 = vmatprep.subr.bf16.mxu0 0
  %7762 = vmatpush1.bf16.msra.mxu0 0
  %7763 = vmatprep.subr.bf16.mxu0 0
  %7764 = vmatpush1.bf16.msra.mxu0 0
  %7765 = vmatprep.subr.bf16.mxu0 0
  %7766 = vmatpush1.bf16.msra.mxu0 0
  %7767 = vmatprep.subr.bf16.mxu0 0
  %7768 = vmatpush1.bf16.msra.mxu0 0
  %7769 = vmatprep.subr.bf16.mxu0 0
  %7770 = vmatpush1.bf16.msra.mxu0 0
  %7771 = vmatprep.subr.bf16.mxu0 0
  %7772 = vmatpush1.bf16.msra.mxu0 0
  %7773 = vmatprep.subr.bf16.mxu0 0
  %7774 = vmatpush1.bf16.msra.mxu0 0
  %7775 = vmatprep.mubr.bf16.mxu0 0
  %7776 = vmatmul.mubr.bf16.gmra.mrb[0].mxu0 %v7701
  %v7777 = vpop.f32.mrb[0].mxu0
  %v7778 = vadd.f32 0.0, %v7777
  %v7779 = vpop.f32.mrb[0].mxu0
  %v7780 = vadd.f32 0.0, %v7779
  %v7781 = vpop.f32.mrb[0].mxu0
  %v7782 = vpop.f32.mrb[0].mxu0
  %7783 = vdwg.mxu0
  %v7784 = vadd.f32 %v7697, %v7737
  %v7785 = vadd.f32 %v7698, %v7739
  %v7786 = vadd.f32 %v7699, %v7778
  %v7787 = vadd.f32 %v7700, %v7780
  %v7788 = vxor.u32 %v7784, 2147483648
  %v7789 = vmul.f32 %v7788, 1.442695
  %v7790 = vpow.pop %v7789
  %v7791 = vadd.f32 %v7790, 1.0
  %v7792 = vrcp.pop %v7791
  %v7793 = vmul.f32 1.0, %v7792
  %v7794 = vxor.u32 %v7785, 2147483648
  %v7795 = vmul.f32 %v7794, 1.442695
  %v7796 = vpow.pop %v7795
  %v7797 = vadd.f32 %v7796, 1.0
  %v7798 = vrcp.pop %v7797
  %v7799 = vmul.f32 1.0, %v7798
  %v7800 = vtanh.pop %v7786
  %v7801 = vxor.u32 %v7787, 2147483648
  %v7802 = vmul.f32 %v7801, 1.442695
  %v7803 = vpow.pop %v7802
  %v7804 = vadd.f32 %v7803, 1.0
  %v7805 = vrcp.pop %v7804
  %v7806 = vmul.f32 1.0, %v7805
  %v7807 = vmul.f32 %v7799, %v7691
  %v7808 = vmul.f32 %v7793, %v7800
  %v7809 = vadd.f32 %v7807, %v7808
  %v7810 = vtanh.pop %v7809
  %v7811 = vmul.f32 %v7806, %v7810
  %7812 = vst [vmem:[%s6546 + $0x8] sm:$0xff] %v7811
  %s7813 = smul.addr %s1736, 8
  %s7814 = scalar_lea.vmem [#allocation5], %s7813
  %v7815 = vld [vmem:[%s7814] sm:$0xff]
  %v7816 = vld [vmem:[%s7814 + $0x8] sm:$0xff]
  %v7817 = vld [vmem:[%s7814 + $0x10] sm:$0xff]
  %v7818 = vld [vmem:[%s7814 + $0x18] sm:$0xff]
  %v7819 = vpack.c.bf16 %v7811, %v7811
  %7820 = vmatprep.subr.bf16.mxu0 %v7167
  %7821 = vmatpush1.bf16.msra.mxu0 %v7166
  %7822 = vmatprep.subr.bf16.mxu0 %v7171
  %7823 = vmatpush1.bf16.msra.mxu0 %v7170
  %7824 = vmatprep.subr.bf16.mxu0 %v7175
  %7825 = vmatpush1.bf16.msra.mxu0 %v7174
  %7826 = vmatprep.subr.bf16.mxu0 %v7179
  %7827 = vmatpush1.bf16.msra.mxu0 %v7178
  %7828 = vmatprep.subr.bf16.mxu0 %v7183
  %7829 = vmatpush1.bf16.msra.mxu0 %v7182
  %7830 = vmatprep.subr.bf16.mxu0 %v7187
  %7831 = vmatpush1.bf16.msra.mxu0 %v7186
  %7832 = vmatprep.subr.bf16.mxu0 %v7191
  %7833 = vmatpush1.bf16.msra.mxu0 %v7190
  %7834 = vmatprep.subr.bf16.mxu0 %v7195
  %7835 = vmatpush1.bf16.msra.mxu0 %v7194
  %7836 = vmatprep.subr.bf16.mxu0 0
  %7837 = vmatpush1.bf16.msra.mxu0 0
  %7838 = vmatprep.subr.bf16.mxu0 0
  %7839 = vmatpush1.bf16.msra.mxu0 0
  %7840 = vmatprep.subr.bf16.mxu0 0
  %7841 = vmatpush1.bf16.msra.mxu0 0
  %7842 = vmatprep.subr.bf16.mxu0 0
  %7843 = vmatpush1.bf16.msra.mxu0 0
  %7844 = vmatprep.subr.bf16.mxu0 0
  %7845 = vmatpush1.bf16.msra.mxu0 0
  %7846 = vmatprep.subr.bf16.mxu0 0
  %7847 = vmatpush1.bf16.msra.mxu0 0
  %7848 = vmatprep.subr.bf16.mxu0 0
  %7849 = vmatpush1.bf16.msra.mxu0 0
  %7850 = vmatprep.subr.bf16.mxu0 0
  %7851 = vmatpush1.bf16.msra.mxu0 0
  %7852 = vmatprep.mubr.bf16.mxu0 0
  %7853 = vmatmul.mubr.bf16.gmra.mrb[0].mxu0 %v7819
  %v7854 = vpop.f32.mrb[0].mxu0
  %v7855 = vadd.f32 0.0, %v7854
  %v7856 = vpop.f32.mrb[0].mxu0
  %v7857 = vadd.f32 0.0, %v7856
  %v7858 = vpop.f32.mrb[0].mxu0
  %v7859 = vpop.f32.mrb[0].mxu0
  %7860 = vdwg.mxu0
  %7861 = vmatprep.subr.bf16.mxu0 %v7169
  %7862 = vmatpush1.bf16.msra.mxu0 %v7168
  %7863 = vmatprep.subr.bf16.mxu0 %v7173
  %7864 = vmatpush1.bf16.msra.mxu0 %v7172
  %7865 = vmatprep.subr.bf16.mxu0 %v7177
  %7866 = vmatpush1.bf16.msra.mxu0 %v7176
  %7867 = vmatprep.subr.bf16.mxu0 %v7181
  %7868 = vmatpush1.bf16.msra.mxu0 %v7180
  %7869 = vmatprep.subr.bf16.mxu0 %v7185
  %7870 = vmatpush1.bf16.msra.mxu0 %v7184
  %7871 = vmatprep.subr.bf16.mxu0 %v7189
  %7872 = vmatpush1.bf16.msra.mxu0 %v7188
  %7873 = vmatprep.subr.bf16.mxu0 %v7193
  %7874 = vmatpush1.bf16.msra.mxu0 %v7192
  %7875 = vmatprep.subr.bf16.mxu0 %v7197
  %7876 = vmatpush1.bf16.msra.mxu0 %v7196
  %7877 = vmatprep.subr.bf16.mxu0 0
  %7878 = vmatpush1.bf16.msra.mxu0 0
  %7879 = vmatprep.subr.bf16.mxu0 0
  %7880 = vmatpush1.bf16.msra.mxu0 0
  %7881 = vmatprep.subr.bf16.mxu0 0
  %7882 = vmatpush1.bf16.msra.mxu0 0
  %7883 = vmatprep.subr.bf16.mxu0 0
  %7884 = vmatpush1.bf16.msra.mxu0 0
  %7885 = vmatprep.subr.bf16.mxu0 0
  %7886 = vmatpush1.bf16.msra.mxu0 0
  %7887 = vmatprep.subr.bf16.mxu0 0
  %7888 = vmatpush1.bf16.msra.mxu0 0
  %7889 = vmatprep.subr.bf16.mxu0 0
  %7890 = vmatpush1.bf16.msra.mxu0 0
  %7891 = vmatprep.subr.bf16.mxu0 0
  %7892 = vmatpush1.bf16.msra.mxu0 0
  %7893 = vmatprep.mubr.bf16.mxu0 0
  %7894 = vmatmul.mubr.bf16.gmra.mrb[0].mxu0 %v7819
  %v7895 = vpop.f32.mrb[0].mxu0
  %v7896 = vadd.f32 0.0, %v7895
  %v7897 = vpop.f32.mrb[0].mxu0
  %v7898 = vadd.f32 0.0, %v7897
  %v7899 = vpop.f32.mrb[0].mxu0
  %v7900 = vpop.f32.mrb[0].mxu0
  %7901 = vdwg.mxu0
  %v7902 = vadd.f32 %v7815, %v7855
  %v7903 = vadd.f32 %v7816, %v7857
  %v7904 = vadd.f32 %v7817, %v7896
  %v7905 = vadd.f32 %v7818, %v7898
  %v7906 = vxor.u32 %v7902, 2147483648
  %v7907 = vmul.f32 %v7906, 1.442695
  %v7908 = vpow.pop %v7907
  %v7909 = vadd.f32 %v7908, 1.0
  %v7910 = vrcp.pop %v7909
  %v7911 = vmul.f32 1.0, %v7910
  %v7912 = vxor.u32 %v7903, 2147483648
  %v7913 = vmul.f32 %v7912, 1.442695
  %v7914 = vpow.pop %v7913
  %v7915 = vadd.f32 %v7914, 1.0
  %v7916 = vrcp.pop %v7915
  %v7917 = vmul.f32 1.0, %v7916
  %v7918 = vtanh.pop %v7904
  %v7919 = vxor.u32 %v7905, 2147483648
  %v7920 = vmul.f32 %v7919, 1.442695
  %v7921 = vpow.pop %v7920
  %v7922 = vadd.f32 %v7921, 1.0
  %v7923 = vrcp.pop %v7922
  %v7924 = vmul.f32 1.0, %v7923
  %v7925 = vmul.f32 %v7917, %v7809
  %v7926 = vmul.f32 %v7911, %v7918
  %v7927 = vadd.f32 %v7925, %v7926
  %v7928 = vtanh.pop %v7927
  %v7929 = vmul.f32 %v7924, %v7928
  %7930 = vst [vmem:[%s6426 + $0x8] sm:$0xff] %v7929
  %s7931 = smul.addr %s1614, 8
  %s7932 = scalar_lea.vmem [#allocation5], %s7931
  %v7933 = vld [vmem:[%s7932] sm:$0xff]
  %v7934 = vld [vmem:[%s7932 + $0x8] sm:$0xff]
  %v7935 = vld [vmem:[%s7932 + $0x10] sm:$0xff]
  %v7936 = vld [vmem:[%s7932 + $0x18] sm:$0xff]
  %v7937 = vpack.c.bf16 %v7929, %v7929
  %7938 = vmatprep.subr.bf16.mxu0 %v7167
  %7939 = vmatpush1.bf16.msra.mxu0 %v7166
  %7940 = vmatprep.subr.bf16.mxu0 %v7171
  %7941 = vmatpush1.bf16.msra.mxu0 %v7170
  %7942 = vmatprep.subr.bf16.mxu0 %v7175
  %7943 = vmatpush1.bf16.msra.mxu0 %v7174
  %7944 = vmatprep.subr.bf16.mxu0 %v7179
  %7945 = vmatpush1.bf16.msra.mxu0 %v7178
  %7946 = vmatprep.subr.bf16.mxu0 %v7183
  %7947 = vmatpush1.bf16.msra.mxu0 %v7182
  %7948 = vmatprep.subr.bf16.mxu0 %v7187
  %7949 = vmatpush1.bf16.msra.mxu0 %v7186
  %7950 = vmatprep.subr.bf16.mxu0 %v7191
  %7951 = vmatpush1.bf16.msra.mxu0 %v7190
  %7952 = vmatprep.subr.bf16.mxu0 %v7195
  %7953 = vmatpush1.bf16.msra.mxu0 %v7194
  %7954 = vmatprep.subr.bf16.mxu0 0
  %7955 = vmatpush1.bf16.msra.mxu0 0
  %7956 = vmatprep.subr.bf16.mxu0 0
  %7957 = vmatpush1.bf16.msra.mxu0 0
  %7958 = vmatprep.subr.bf16.mxu0 0
  %7959 = vmatpush1.bf16.msra.mxu0 0
  %7960 = vmatprep.subr.bf16.mxu0 0
  %7961 = vmatpush1.bf16.msra.mxu0 0
  %7962 = vmatprep.subr.bf16.mxu0 0
  %7963 = vmatpush1.bf16.msra.mxu0 0
  %7964 = vmatprep.subr.bf16.mxu0 0
  %7965 = vmatpush1.bf16.msra.mxu0 0
  %7966 = vmatprep.subr.bf16.mxu0 0
  %7967 = vmatpush1.bf16.msra.mxu0 0
  %7968 = vmatprep.subr.bf16.mxu0 0
  %7969 = vmatpush1.bf16.msra.mxu0 0
  %7970 = vmatprep.mubr.bf16.mxu0 0
  %7971 = vmatmul.mubr.bf16.gmra.mrb[0].mxu0 %v7937
  %v7972 = vpop.f32.mrb[0].mxu0
  %v7973 = vadd.f32 0.0, %v7972
  %v7974 = vpop.f32.mrb[0].mxu0
  %v7975 = vadd.f32 0.0, %v7974
  %v7976 = vpop.f32.mrb[0].mxu0
  %v7977 = vpop.f32.mrb[0].mxu0
  %7978 = vdwg.mxu0
  %7979 = vmatprep.subr.bf16.mxu0 %v7169
  %7980 = vmatpush1.bf16.msra.mxu0 %v7168
  %7981 = vmatprep.subr.bf16.mxu0 %v7173
  %7982 = vmatpush1.bf16.msra.mxu0 %v7172
  %7983 = vmatprep.subr.bf16.mxu0 %v7177
  %7984 = vmatpush1.bf16.msra.mxu0 %v7176
  %7985 = vmatprep.subr.bf16.mxu0 %v7181
  %7986 = vmatpush1.bf16.msra.mxu0 %v7180
  %7987 = vmatprep.subr.bf16.mxu0 %v7185
  %7988 = vmatpush1.bf16.msra.mxu0 %v7184
  %7989 = vmatprep.subr.bf16.mxu0 %v7189
  %7990 = vmatpush1.bf16.msra.mxu0 %v7188
  %7991 = vmatprep.subr.bf16.mxu0 %v7193
  %7992 = vmatpush1.bf16.msra.mxu0 %v7192
  %7993 = vmatprep.subr.bf16.mxu0 %v7197
  %7994 = vmatpush1.bf16.msra.mxu0 %v7196
  %7995 = vmatprep.subr.bf16.mxu0 0
  %7996 = vmatpush1.bf16.msra.mxu0 0
  %7997 = vmatprep.subr.bf16.mxu0 0
  %7998 = vmatpush1.bf16.msra.mxu0 0
  %7999 = vmatprep.subr.bf16.mxu0 0
  %8000 = vmatpush1.bf16.msra.mxu0 0
  %8001 = vmatprep.subr.bf16.mxu0 0
  %8002 = vmatpush1.bf16.msra.mxu0 0
  %8003 = vmatprep.subr.bf16.mxu0 0
  %8004 = vmatpush1.bf16.msra.mxu0 0
  %8005 = vmatprep.subr.bf16.mxu0 0
  %8006 = vmatpush1.bf16.msra.mxu0 0
  %8007 = vmatprep.subr.bf16.mxu0 0
  %8008 = vmatpush1.bf16.msra.mxu0 0
  %8009 = vmatprep.subr.bf16.mxu0 0
  %8010 = vmatpush1.bf16.msra.mxu0 0
  %8011 = vmatprep.mubr.bf16.mxu0 0
  %8012 = vmatmul.mubr.bf16.gmra.mrb[0].mxu0 %v7937
  %v8013 = vpop.f32.mrb[0].mxu0
  %v8014 = vadd.f32 0.0, %v8013
  %v8015 = vpop.f32.mrb[0].mxu0
  %v8016 = vadd.f32 0.0, %v8015
  %v8017 = vpop.f32.mrb[0].mxu0
  %v8018 = vpop.f32.mrb[0].mxu0
  %8019 = vdwg.mxu0
  %v8020 = vadd.f32 %v7933, %v7973
  %v8021 = vadd.f32 %v7934, %v7975
  %v8022 = vadd.f32 %v7935, %v8014
  %v8023 = vadd.f32 %v7936, %v8016
  %v8024 = vxor.u32 %v8020, 2147483648
  %v8025 = vmul.f32 %v8024, 1.442695
  %v8026 = vpow.pop %v8025
  %v8027 = vadd.f32 %v8026, 1.0
  %v8028 = vrcp.pop %v8027
  %v8029 = vmul.f32 1.0, %v8028
  %v8030 = vxor.u32 %v8021, 2147483648
  %v8031 = vmul.f32 %v8030, 1.442695
  %v8032 = vpow.pop %v8031
  %v8033 = vadd.f32 %v8032, 1.0
  %v8034 = vrcp.pop %v8033
  %v8035 = vmul.f32 1.0, %v8034
  %v8036 = vtanh.pop %v8022
  %v8037 = vxor.u32 %v8023, 2147483648
  %v8038 = vmul.f32 %v8037, 1.442695
  %v8039 = vpow.pop %v8038
  %v8040 = vadd.f32 %v8039, 1.0
  %v8041 = vrcp.pop %v8040
  %v8042 = vmul.f32 1.0, %v8041
  %v8043 = vmul.f32 %v8035, %v7927
  %v8044 = vmul.f32 %v8029, %v8036
  %v8045 = vadd.f32 %v8043, %v8044
  %v8046 = vtanh.pop %v8045
  %v8047 = vmul.f32 %v8042, %v8046
  %8048 = vst [vmem:[%s6306 + $0x8] sm:$0xff] %v8047
  %s8049 = smul.addr %s1492, 8
  %s8050 = scalar_lea.vmem [#allocation5], %s8049
  %v8051 = vld [vmem:[%s8050] sm:$0xff]
  %v8052 = vld [vmem:[%s8050 + $0x8] sm:$0xff]
  %v8053 = vld [vmem:[%s8050 + $0x10] sm:$0xff]
  %v8054 = vld [vmem:[%s8050 + $0x18] sm:$0xff]
  %v8055 = vpack.c.bf16 %v8047, %v8047
  %8056 = vmatprep.subr.bf16.mxu0 %v7167
  %8057 = vmatpush1.bf16.msra.mxu0 %v7166
  %8058 = vmatprep.subr.bf16.mxu0 %v7171
  %8059 = vmatpush1.bf16.msra.mxu0 %v7170
  %8060 = vmatprep.subr.bf16.mxu0 %v7175
  %8061 = vmatpush1.bf16.msra.mxu0 %v7174
  %8062 = vmatprep.subr.bf16.mxu0 %v7179
  %8063 = vmatpush1.bf16.msra.mxu0 %v7178
  %8064 = vmatprep.subr.bf16.mxu0 %v7183
  %8065 = vmatpush1.bf16.msra.mxu0 %v7182
  %8066 = vmatprep.subr.bf16.mxu0 %v7187
  %8067 = vmatpush1.bf16.msra.mxu0 %v7186
  %8068 = vmatprep.subr.bf16.mxu0 %v7191
  %8069 = vmatpush1.bf16.msra.mxu0 %v7190
  %8070 = vmatprep.subr.bf16.mxu0 %v7195
  %8071 = vmatpush1.bf16.msra.mxu0 %v7194
  %8072 = vmatprep.subr.bf16.mxu0 0
  %8073 = vmatpush1.bf16.msra.mxu0 0
  %8074 = vmatprep.subr.bf16.mxu0 0
  %8075 = vmatpush1.bf16.msra.mxu0 0
  %8076 = vmatprep.subr.bf16.mxu0 0
  %8077 = vmatpush1.bf16.msra.mxu0 0
  %8078 = vmatprep.subr.bf16.mxu0 0
  %8079 = vmatpush1.bf16.msra.mxu0 0
  %8080 = vmatprep.subr.bf16.mxu0 0
  %8081 = vmatpush1.bf16.msra.mxu0 0
  %8082 = vmatprep.subr.bf16.mxu0 0
  %8083 = vmatpush1.bf16.msra.mxu0 0
  %8084 = vmatprep.subr.bf16.mxu0 0
  %8085 = vmatpush1.bf16.msra.mxu0 0
  %8086 = vmatprep.subr.bf16.mxu0 0
  %8087 = vmatpush1.bf16.msra.mxu0 0
  %8088 = vmatprep.mubr.bf16.mxu0 0
  %8089 = vmatmul.mubr.bf16.gmra.mrb[0].mxu0 %v8055
  %v8090 = vpop.f32.mrb[0].mxu0
  %v8091 = vadd.f32 0.0, %v8090
  %v8092 = vpop.f32.mrb[0].mxu0
  %v8093 = vadd.f32 0.0, %v8092
  %v8094 = vpop.f32.mrb[0].mxu0
  %v8095 = vpop.f32.mrb[0].mxu0
  %8096 = vdwg.mxu0
  %8097 = vmatprep.subr.bf16.mxu0 %v7169
  %8098 = vmatpush1.bf16.msra.mxu0 %v7168
  %8099 = vmatprep.subr.bf16.mxu0 %v7173
  %8100 = vmatpush1.bf16.msra.mxu0 %v7172
  %8101 = vmatprep.subr.bf16.mxu0 %v7177
  %8102 = vmatpush1.bf16.msra.mxu0 %v7176
  %8103 = vmatprep.subr.bf16.mxu0 %v7181
  %8104 = vmatpush1.bf16.msra.mxu0 %v7180
  %8105 = vmatprep.subr.bf16.mxu0 %v7185
  %8106 = vmatpush1.bf16.msra.mxu0 %v7184
  %8107 = vmatprep.subr.bf16.mxu0 %v7189
  %8108 = vmatpush1.bf16.msra.mxu0 %v7188
  %8109 = vmatprep.subr.bf16.mxu0 %v7193
  %8110 = vmatpush1.bf16.msra.mxu0 %v7192
  %8111 = vmatprep.subr.bf16.mxu0 %v7197
  %8112 = vmatpush1.bf16.msra.mxu0 %v7196
  %8113 = vmatprep.subr.bf16.mxu0 0
  %8114 = vmatpush1.bf16.msra.mxu0 0
  %8115 = vmatprep.subr.bf16.mxu0 0
  %8116 = vmatpush1.bf16.msra.mxu0 0
  %8117 = vmatprep.subr.bf16.mxu0 0
  %8118 = vmatpush1.bf16.msra.mxu0 0
  %8119 = vmatprep.subr.bf16.mxu0 0
  %8120 = vmatpush1.bf16.msra.mxu0 0
  %8121 = vmatprep.subr.bf16.mxu0 0
  %8122 = vmatpush1.bf16.msra.mxu0 0
  %8123 = vmatprep.subr.bf16.mxu0 0
  %8124 = vmatpush1.bf16.msra.mxu0 0
  %8125 = vmatprep.subr.bf16.mxu0 0
  %8126 = vmatpush1.bf16.msra.mxu0 0
  %8127 = vmatprep.subr.bf16.mxu0 0
  %8128 = vmatpush1.bf16.msra.mxu0 0
  %8129 = vmatprep.mubr.bf16.mxu0 0
  %8130 = vmatmul.mubr.bf16.gmra.mrb[0].mxu0 %v8055
  %v8131 = vpop.f32.mrb[0].mxu0
  %v8132 = vadd.f32 0.0, %v8131
  %v8133 = vpop.f32.mrb[0].mxu0
  %v8134 = vadd.f32 0.0, %v8133
  %v8135 = vpop.f32.mrb[0].mxu0
  %v8136 = vpop.f32.mrb[0].mxu0
  %8137 = vdwg.mxu0
  %v8138 = vadd.f32 %v8051, %v8091
  %v8139 = vadd.f32 %v8052, %v8093
  %v8140 = vadd.f32 %v8053, %v8132
  %v8141 = vadd.f32 %v8054, %v8134
  %v8142 = vxor.u32 %v8138, 2147483648
  %v8143 = vmul.f32 %v8142, 1.442695
  %v8144 = vpow.pop %v8143
  %v8145 = vadd.f32 %v8144, 1.0
  %v8146 = vrcp.pop %v8145
  %v8147 = vmul.f32 1.0, %v8146
  %v8148 = vxor.u32 %v8139, 2147483648
  %v8149 = vmul.f32 %v8148, 1.442695
  %v8150 = vpow.pop %v8149
  %v8151 = vadd.f32 %v8150, 1.0
  %v8152 = vrcp.pop %v8151
  %v8153 = vmul.f32 1.0, %v8152
  %v8154 = vtanh.pop %v8140
  %v8155 = vxor.u32 %v8141, 2147483648
  %v8156 = vmul.f32 %v8155, 1.442695
  %v8157 = vpow.pop %v8156
  %v8158 = vadd.f32 %v8157, 1.0
  %v8159 = vrcp.pop %v8158
  %v8160 = vmul.f32 1.0, %v8159
  %v8161 = vmul.f32 %v8153, %v8045
  %v8162 = vmul.f32 %v8147, %v8154
  %v8163 = vadd.f32 %v8161, %v8162
  %v8164 = vtanh.pop %v8163
  %v8165 = vmul.f32 %v8160, %v8164
  %8166 = vst [vmem:[%s6186 + $0x8] sm:$0xff] %v8165
  %s8167 = smul.addr %s1370, 8
  %s8168 = scalar_lea.vmem [#allocation5], %s8167
  %v8169 = vld [vmem:[%s8168] sm:$0xff]
  %v8170 = vld [vmem:[%s8168 + $0x8] sm:$0xff]
  %v8171 = vld [vmem:[%s8168 + $0x10] sm:$0xff]
  %v8172 = vld [vmem:[%s8168 + $0x18] sm:$0xff]
  %v8173 = vpack.c.bf16 %v8165, %v8165
  %8174 = vmatprep.subr.bf16.mxu0 %v7167
  %8175 = vmatpush1.bf16.msra.mxu0 %v7166
  %8176 = vmatprep.subr.bf16.mxu0 %v7171
  %8177 = vmatpush1.bf16.msra.mxu0 %v7170
  %8178 = vmatprep.subr.bf16.mxu0 %v7175
  %8179 = vmatpush1.bf16.msra.mxu0 %v7174
  %8180 = vmatprep.subr.bf16.mxu0 %v7179
  %8181 = vmatpush1.bf16.msra.mxu0 %v7178
  %8182 = vmatprep.subr.bf16.mxu0 %v7183
  %8183 = vmatpush1.bf16.msra.mxu0 %v7182
  %8184 = vmatprep.subr.bf16.mxu0 %v7187
  %8185 = vmatpush1.bf16.msra.mxu0 %v7186
  %8186 = vmatprep.subr.bf16.mxu0 %v7191
  %8187 = vmatpush1.bf16.msra.mxu0 %v7190
  %8188 = vmatprep.subr.bf16.mxu0 %v7195
  %8189 = vmatpush1.bf16.msra.mxu0 %v7194
  %8190 = vmatprep.subr.bf16.mxu0 0
  %8191 = vmatpush1.bf16.msra.mxu0 0
  %8192 = vmatprep.subr.bf16.mxu0 0
  %8193 = vmatpush1.bf16.msra.mxu0 0
  %8194 = vmatprep.subr.bf16.mxu0 0
  %8195 = vmatpush1.bf16.msra.mxu0 0
  %8196 = vmatprep.subr.bf16.mxu0 0
  %8197 = vmatpush1.bf16.msra.mxu0 0
  %8198 = vmatprep.subr.bf16.mxu0 0
  %8199 = vmatpush1.bf16.msra.mxu0 0
  %8200 = vmatprep.subr.bf16.mxu0 0
  %8201 = vmatpush1.bf16.msra.mxu0 0
  %8202 = vmatprep.subr.bf16.mxu0 0
  %8203 = vmatpush1.bf16.msra.mxu0 0
  %8204 = vmatprep.subr.bf16.mxu0 0
  %8205 = vmatpush1.bf16.msra.mxu0 0
  %8206 = vmatprep.mubr.bf16.mxu0 0
  %8207 = vmatmul.mubr.bf16.gmra.mrb[0].mxu0 %v8173
  %v8208 = vpop.f32.mrb[0].mxu0
  %v8209 = vadd.f32 0.0, %v8208
  %v8210 = vpop.f32.mrb[0].mxu0
  %v8211 = vadd.f32 0.0, %v8210
  %v8212 = vpop.f32.mrb[0].mxu0
  %v8213 = vpop.f32.mrb[0].mxu0
  %8214 = vdwg.mxu0
  %8215 = vmatprep.subr.bf16.mxu0 %v7169
  %8216 = vmatpush1.bf16.msra.mxu0 %v7168
  %8217 = vmatprep.subr.bf16.mxu0 %v7173
  %8218 = vmatpush1.bf16.msra.mxu0 %v7172
  %8219 = vmatprep.subr.bf16.mxu0 %v7177
  %8220 = vmatpush1.bf16.msra.mxu0 %v7176
  %8221 = vmatprep.subr.bf16.mxu0 %v7181
  %8222 = vmatpush1.bf16.msra.mxu0 %v7180
  %8223 = vmatprep.subr.bf16.mxu0 %v7185
  %8224 = vmatpush1.bf16.msra.mxu0 %v7184
  %8225 = vmatprep.subr.bf16.mxu0 %v7189
  %8226 = vmatpush1.bf16.msra.mxu0 %v7188
  %8227 = vmatprep.subr.bf16.mxu0 %v7193
  %8228 = vmatpush1.bf16.msra.mxu0 %v7192
  %8229 = vmatprep.subr.bf16.mxu0 %v7197
  %8230 = vmatpush1.bf16.msra.mxu0 %v7196
  %8231 = vmatprep.subr.bf16.mxu0 0
  %8232 = vmatpush1.bf16.msra.mxu0 0
  %8233 = vmatprep.subr.bf16.mxu0 0
  %8234 = vmatpush1.bf16.msra.mxu0 0
  %8235 = vmatprep.subr.bf16.mxu0 0
  %8236 = vmatpush1.bf16.msra.mxu0 0
  %8237 = vmatprep.subr.bf16.mxu0 0
  %8238 = vmatpush1.bf16.msra.mxu0 0
  %8239 = vmatprep.subr.bf16.mxu0 0
  %8240 = vmatpush1.bf16.msra.mxu0 0
  %8241 = vmatprep.subr.bf16.mxu0 0
  %8242 = vmatpush1.bf16.msra.mxu0 0
  %8243 = vmatprep.subr.bf16.mxu0 0
  %8244 = vmatpush1.bf16.msra.mxu0 0
  %8245 = vmatprep.subr.bf16.mxu0 0
  %8246 = vmatpush1.bf16.msra.mxu0 0
  %8247 = vmatprep.mubr.bf16.mxu0 0
  %8248 = vmatmul.mubr.bf16.gmra.mrb[0].mxu0 %v8173
  %v8249 = vpop.f32.mrb[0].mxu0
  %v8250 = vadd.f32 0.0, %v8249
  %v8251 = vpop.f32.mrb[0].mxu0
  %v8252 = vadd.f32 0.0, %v8251
  %v8253 = vpop.f32.mrb[0].mxu0
  %v8254 = vpop.f32.mrb[0].mxu0
  %8255 = vdwg.mxu0
  %v8256 = vadd.f32 %v8169, %v8209
  %v8257 = vadd.f32 %v8170, %v8211
  %v8258 = vadd.f32 %v8171, %v8250
  %v8259 = vadd.f32 %v8172, %v8252
  %v8260 = vxor.u32 %v8256, 2147483648
  %v8261 = vmul.f32 %v8260, 1.442695
  %v8262 = vpow.pop %v8261
  %v8263 = vadd.f32 %v8262, 1.0
  %v8264 = vrcp.pop %v8263
  %v8265 = vmul.f32 1.0, %v8264
  %v8266 = vxor.u32 %v8257, 2147483648
  %v8267 = vmul.f32 %v8266, 1.442695
  %v8268 = vpow.pop %v8267
  %v8269 = vadd.f32 %v8268, 1.0
  %v8270 = vrcp.pop %v8269
  %v8271 = vmul.f32 1.0, %v8270
  %v8272 = vtanh.pop %v8258
  %v8273 = vxor.u32 %v8259, 2147483648
  %v8274 = vmul.f32 %v8273, 1.442695
  %v8275 = vpow.pop %v8274
  %v8276 = vadd.f32 %v8275, 1.0
  %v8277 = vrcp.pop %v8276
  %v8278 = vmul.f32 1.0, %v8277
  %v8279 = vmul.f32 %v8271, %v8163
  %v8280 = vmul.f32 %v8265, %v8272
  %v8281 = vadd.f32 %v8279, %v8280
  %v8282 = vtanh.pop %v8281
  %v8283 = vmul.f32 %v8278, %v8282
  %8284 = vst [vmem:[%s6066 + $0x8] sm:$0xff] %v8283
  %s8285 = smul.addr %s1248, 8
  %s8286 = scalar_lea.vmem [#allocation5], %s8285
  %v8287 = vld [vmem:[%s8286] sm:$0xff]
  %v8288 = vld [vmem:[%s8286 + $0x8] sm:$0xff]
  %v8289 = vld [vmem:[%s8286 + $0x10] sm:$0xff]
  %v8290 = vld [vmem:[%s8286 + $0x18] sm:$0xff]
  %v8291 = vpack.c.bf16 %v8283, %v8283
  %8292 = vmatprep.subr.bf16.mxu0 %v7167
  %8293 = vmatpush1.bf16.msra.mxu0 %v7166
  %8294 = vmatprep.subr.bf16.mxu0 %v7171
  %8295 = vmatpush1.bf16.msra.mxu0 %v7170
  %8296 = vmatprep.subr.bf16.mxu0 %v7175
  %8297 = vmatpush1.bf16.msra.mxu0 %v7174
  %8298 = vmatprep.subr.bf16.mxu0 %v7179
  %8299 = vmatpush1.bf16.msra.mxu0 %v7178
  %8300 = vmatprep.subr.bf16.mxu0 %v7183
  %8301 = vmatpush1.bf16.msra.mxu0 %v7182
  %8302 = vmatprep.subr.bf16.mxu0 %v7187
  %8303 = vmatpush1.bf16.msra.mxu0 %v7186
  %8304 = vmatprep.subr.bf16.mxu0 %v7191
  %8305 = vmatpush1.bf16.msra.mxu0 %v7190
  %8306 = vmatprep.subr.bf16.mxu0 %v7195
  %8307 = vmatpush1.bf16.msra.mxu0 %v7194
  %8308 = vmatprep.subr.bf16.mxu0 0
  %8309 = vmatpush1.bf16.msra.mxu0 0
  %8310 = vmatprep.subr.bf16.mxu0 0
  %8311 = vmatpush1.bf16.msra.mxu0 0
  %8312 = vmatprep.subr.bf16.mxu0 0
  %8313 = vmatpush1.bf16.msra.mxu0 0
  %8314 = vmatprep.subr.bf16.mxu0 0
  %8315 = vmatpush1.bf16.msra.mxu0 0
  %8316 = vmatprep.subr.bf16.mxu0 0
  %8317 = vmatpush1.bf16.msra.mxu0 0
  %8318 = vmatprep.subr.bf16.mxu0 0
  %8319 = vmatpush1.bf16.msra.mxu0 0
  %8320 = vmatprep.subr.bf16.mxu0 0
  %8321 = vmatpush1.bf16.msra.mxu0 0
  %8322 = vmatprep.subr.bf16.mxu0 0
  %8323 = vmatpush1.bf16.msra.mxu0 0
  %8324 = vmatprep.mubr.bf16.mxu0 0
  %8325 = vmatmul.mubr.bf16.gmra.mrb[0].mxu0 %v8291
  %v8326 = vpop.f32.mrb[0].mxu0
  %v8327 = vadd.f32 0.0, %v8326
  %v8328 = vpop.f32.mrb[0].mxu0
  %v8329 = vadd.f32 0.0, %v8328
  %v8330 = vpop.f32.mrb[0].mxu0
  %v8331 = vpop.f32.mrb[0].mxu0
  %8332 = vdwg.mxu0
  %8333 = vmatprep.subr.bf16.mxu0 %v7169
  %8334 = vmatpush1.bf16.msra.mxu0 %v7168
  %8335 = vmatprep.subr.bf16.mxu0 %v7173
  %8336 = vmatpush1.bf16.msra.mxu0 %v7172
  %8337 = vmatprep.subr.bf16.mxu0 %v7177
  %8338 = vmatpush1.bf16.msra.mxu0 %v7176
  %8339 = vmatprep.subr.bf16.mxu0 %v7181
  %8340 = vmatpush1.bf16.msra.mxu0 %v7180
  %8341 = vmatprep.subr.bf16.mxu0 %v7185
  %8342 = vmatpush1.bf16.msra.mxu0 %v7184
  %8343 = vmatprep.subr.bf16.mxu0 %v7189
  %8344 = vmatpush1.bf16.msra.mxu0 %v7188
  %8345 = vmatprep.subr.bf16.mxu0 %v7193
  %8346 = vmatpush1.bf16.msra.mxu0 %v7192
  %8347 = vmatprep.subr.bf16.mxu0 %v7197
  %8348 = vmatpush1.bf16.msra.mxu0 %v7196
  %8349 = vmatprep.subr.bf16.mxu0 0
  %8350 = vmatpush1.bf16.msra.mxu0 0
  %8351 = vmatprep.subr.bf16.mxu0 0
  %8352 = vmatpush1.bf16.msra.mxu0 0
  %8353 = vmatprep.subr.bf16.mxu0 0
  %8354 = vmatpush1.bf16.msra.mxu0 0
  %8355 = vmatprep.subr.bf16.mxu0 0
  %8356 = vmatpush1.bf16.msra.mxu0 0
  %8357 = vmatprep.subr.bf16.mxu0 0
  %8358 = vmatpush1.bf16.msra.mxu0 0
  %8359 = vmatprep.subr.bf16.mxu0 0
  %8360 = vmatpush1.bf16.msra.mxu0 0
  %8361 = vmatprep.subr.bf16.mxu0 0
  %8362 = vmatpush1.bf16.msra.mxu0 0
  %8363 = vmatprep.subr.bf16.mxu0 0
  %8364 = vmatpush1.bf16.msra.mxu0 0
  %8365 = vmatprep.mubr.bf16.mxu0 0
  %8366 = vmatmul.mubr.bf16.gmra.mrb[0].mxu0 %v8291
  %v8367 = vpop.f32.mrb[0].mxu0
  %v8368 = vadd.f32 0.0, %v8367
  %v8369 = vpop.f32.mrb[0].mxu0
  %v8370 = vadd.f32 0.0, %v8369
  %v8371 = vpop.f32.mrb[0].mxu0
  %v8372 = vpop.f32.mrb[0].mxu0
  %8373 = vdwg.mxu0
  %v8374 = vadd.f32 %v8287, %v8327
  %v8375 = vadd.f32 %v8288, %v8329
  %v8376 = vadd.f32 %v8289, %v8368
  %v8377 = vadd.f32 %v8290, %v8370
  %v8378 = vxor.u32 %v8374, 2147483648
  %v8379 = vmul.f32 %v8378, 1.442695
  %v8380 = vpow.pop %v8379
  %v8381 = vadd.f32 %v8380, 1.0
  %v8382 = vrcp.pop %v8381
  %v8383 = vmul.f32 1.0, %v8382
  %v8384 = vxor.u32 %v8375, 2147483648
  %v8385 = vmul.f32 %v8384, 1.442695
  %v8386 = vpow.pop %v8385
  %v8387 = vadd.f32 %v8386, 1.0
  %v8388 = vrcp.pop %v8387
  %v8389 = vmul.f32 1.0, %v8388
  %v8390 = vtanh.pop %v8376
  %v8391 = vxor.u32 %v8377, 2147483648
  %v8392 = vmul.f32 %v8391, 1.442695
  %v8393 = vpow.pop %v8392
  %v8394 = vadd.f32 %v8393, 1.0
  %v8395 = vrcp.pop %v8394
  %v8396 = vmul.f32 1.0, %v8395
  %v8397 = vmul.f32 %v8389, %v8281
  %v8398 = vmul.f32 %v8383, %v8390
  %v8399 = vadd.f32 %v8397, %v8398
  %v8400 = vtanh.pop %v8399
  %v8401 = vmul.f32 %v8396, %v8400
  %8402 = vst [vmem:[%s5946 + $0x8] sm:$0xff] %v8401
  %s8403 = smul.addr %s1126, 8
  %s8404 = scalar_lea.vmem [#allocation5], %s8403
  %v8405 = vld [vmem:[%s8404] sm:$0xff]
  %v8406 = vld [vmem:[%s8404 + $0x8] sm:$0xff]
  %v8407 = vld [vmem:[%s8404 + $0x10] sm:$0xff]
  %v8408 = vld [vmem:[%s8404 + $0x18] sm:$0xff]
  %v8409 = vpack.c.bf16 %v8401, %v8401
  %8410 = vmatprep.subr.bf16.mxu0 %v7167
  %8411 = vmatpush1.bf16.msra.mxu0 %v7166
  %8412 = vmatprep.subr.bf16.mxu0 %v7171
  %8413 = vmatpush1.bf16.msra.mxu0 %v7170
  %8414 = vmatprep.subr.bf16.mxu0 %v7175
  %8415 = vmatpush1.bf16.msra.mxu0 %v7174
  %8416 = vmatprep.subr.bf16.mxu0 %v7179
  %8417 = vmatpush1.bf16.msra.mxu0 %v7178
  %8418 = vmatprep.subr.bf16.mxu0 %v7183
  %8419 = vmatpush1.bf16.msra.mxu0 %v7182
  %8420 = vmatprep.subr.bf16.mxu0 %v7187
  %8421 = vmatpush1.bf16.msra.mxu0 %v7186
  %8422 = vmatprep.subr.bf16.mxu0 %v7191
  %8423 = vmatpush1.bf16.msra.mxu0 %v7190
  %8424 = vmatprep.subr.bf16.mxu0 %v7195
  %8425 = vmatpush1.bf16.msra.mxu0 %v7194
  %8426 = vmatprep.subr.bf16.mxu0 0
  %8427 = vmatpush1.bf16.msra.mxu0 0
  %8428 = vmatprep.subr.bf16.mxu0 0
  %8429 = vmatpush1.bf16.msra.mxu0 0
  %8430 = vmatprep.subr.bf16.mxu0 0
  %8431 = vmatpush1.bf16.msra.mxu0 0
  %8432 = vmatprep.subr.bf16.mxu0 0
  %8433 = vmatpush1.bf16.msra.mxu0 0
  %8434 = vmatprep.subr.bf16.mxu0 0
  %8435 = vmatpush1.bf16.msra.mxu0 0
  %8436 = vmatprep.subr.bf16.mxu0 0
  %8437 = vmatpush1.bf16.msra.mxu0 0
  %8438 = vmatprep.subr.bf16.mxu0 0
  %8439 = vmatpush1.bf16.msra.mxu0 0
  %8440 = vmatprep.subr.bf16.mxu0 0
  %8441 = vmatpush1.bf16.msra.mxu0 0
  %8442 = vmatprep.mubr.bf16.mxu0 0
  %8443 = vmatmul.mubr.bf16.gmra.mrb[0].mxu0 %v8409
  %v8444 = vpop.f32.mrb[0].mxu0
  %v8445 = vadd.f32 0.0, %v8444
  %v8446 = vpop.f32.mrb[0].mxu0
  %v8447 = vadd.f32 0.0, %v8446
  %v8448 = vpop.f32.mrb[0].mxu0
  %v8449 = vpop.f32.mrb[0].mxu0
  %8450 = vdwg.mxu0
  %8451 = vmatprep.subr.bf16.mxu0 %v7169
  %8452 = vmatpush1.bf16.msra.mxu0 %v7168
  %8453 = vmatprep.subr.bf16.mxu0 %v7173
  %8454 = vmatpush1.bf16.msra.mxu0 %v7172
  %8455 = vmatprep.subr.bf16.mxu0 %v7177
  %8456 = vmatpush1.bf16.msra.mxu0 %v7176
  %8457 = vmatprep.subr.bf16.mxu0 %v7181
  %8458 = vmatpush1.bf16.msra.mxu0 %v7180
  %8459 = vmatprep.subr.bf16.mxu0 %v7185
  %8460 = vmatpush1.bf16.msra.mxu0 %v7184
  %8461 = vmatprep.subr.bf16.mxu0 %v7189
  %8462 = vmatpush1.bf16.msra.mxu0 %v7188
  %8463 = vmatprep.subr.bf16.mxu0 %v7193
  %8464 = vmatpush1.bf16.msra.mxu0 %v7192
  %8465 = vmatprep.subr.bf16.mxu0 %v7197
  %8466 = vmatpush1.bf16.msra.mxu0 %v7196
  %8467 = vmatprep.subr.bf16.mxu0 0
  %8468 = vmatpush1.bf16.msra.mxu0 0
  %8469 = vmatprep.subr.bf16.mxu0 0
  %8470 = vmatpush1.bf16.msra.mxu0 0
  %8471 = vmatprep.subr.bf16.mxu0 0
  %8472 = vmatpush1.bf16.msra.mxu0 0
  %8473 = vmatprep.subr.bf16.mxu0 0
  %8474 = vmatpush1.bf16.msra.mxu0 0
  %8475 = vmatprep.subr.bf16.mxu0 0
  %8476 = vmatpush1.bf16.msra.mxu0 0
  %8477 = vmatprep.subr.bf16.mxu0 0
  %8478 = vmatpush1.bf16.msra.mxu0 0
  %8479 = vmatprep.subr.bf16.mxu0 0
  %8480 = vmatpush1.bf16.msra.mxu0 0
  %8481 = vmatprep.subr.bf16.mxu0 0
  %8482 = vmatpush1.bf16.msra.mxu0 0
  %8483 = vmatprep.mubr.bf16.mxu0 0
  %8484 = vmatmul.mubr.bf16.gmra.mrb[0].mxu0 %v8409
  %v8485 = vpop.f32.mrb[0].mxu0
  %v8486 = vadd.f32 0.0, %v8485
  %v8487 = vpop.f32.mrb[0].mxu0
  %v8488 = vadd.f32 0.0, %v8487
  %v8489 = vpop.f32.mrb[0].mxu0
  %v8490 = vpop.f32.mrb[0].mxu0
  %8491 = vdwg.mxu0
  %v8492 = vadd.f32 %v8405, %v8445
  %v8493 = vadd.f32 %v8406, %v8447
  %v8494 = vadd.f32 %v8407, %v8486
  %v8495 = vadd.f32 %v8408, %v8488
  %v8496 = vxor.u32 %v8492, 2147483648
  %v8497 = vmul.f32 %v8496, 1.442695
  %v8498 = vpow.pop %v8497
  %v8499 = vadd.f32 %v8498, 1.0
  %v8500 = vrcp.pop %v8499
  %v8501 = vmul.f32 1.0, %v8500
  %v8502 = vxor.u32 %v8493, 2147483648
  %v8503 = vmul.f32 %v8502, 1.442695
  %v8504 = vpow.pop %v8503
  %v8505 = vadd.f32 %v8504, 1.0
  %v8506 = vrcp.pop %v8505
  %v8507 = vmul.f32 1.0, %v8506
  %v8508 = vtanh.pop %v8494
  %v8509 = vxor.u32 %v8495, 2147483648
  %v8510 = vmul.f32 %v8509, 1.442695
  %v8511 = vpow.pop %v8510
  %v8512 = vadd.f32 %v8511, 1.0
  %v8513 = vrcp.pop %v8512
  %v8514 = vmul.f32 1.0, %v8513
  %v8515 = vmul.f32 %v8507, %v8399
  %v8516 = vmul.f32 %v8501, %v8508
  %v8517 = vadd.f32 %v8515, %v8516
  %v8518 = vtanh.pop %v8517
  %v8519 = vmul.f32 %v8514, %v8518
  %8520 = vst [vmem:[%s5826 + $0x8] sm:$0xff] %v8519
  %s8521 = smul.addr %s845, 8
  %s8522 = scalar_lea.vmem [#allocation5], %s8521
  %v8523 = vld [vmem:[%s8522] sm:$0xff]
  %v8524 = vld [vmem:[%s8522 + $0x8] sm:$0xff]
  %v8525 = vld [vmem:[%s8522 + $0x10] sm:$0xff]
  %v8526 = vld [vmem:[%s8522 + $0x18] sm:$0xff]
  %v8527 = vpack.c.bf16 %v8519, %v8519
  %8528 = vmatprep.subr.bf16.mxu0 %v7167
  %8529 = vmatpush1.bf16.msra.mxu0 %v7166
  %8530 = vmatprep.subr.bf16.mxu0 %v7171
  %8531 = vmatpush1.bf16.msra.mxu0 %v7170
  %8532 = vmatprep.subr.bf16.mxu0 %v7175
  %8533 = vmatpush1.bf16.msra.mxu0 %v7174
  %8534 = vmatprep.subr.bf16.mxu0 %v7179
  %8535 = vmatpush1.bf16.msra.mxu0 %v7178
  %8536 = vmatprep.subr.bf16.mxu0 %v7183
  %8537 = vmatpush1.bf16.msra.mxu0 %v7182
  %8538 = vmatprep.subr.bf16.mxu0 %v7187
  %8539 = vmatpush1.bf16.msra.mxu0 %v7186
  %8540 = vmatprep.subr.bf16.mxu0 %v7191
  %8541 = vmatpush1.bf16.msra.mxu0 %v7190
  %8542 = vmatprep.subr.bf16.mxu0 %v7195
  %8543 = vmatpush1.bf16.msra.mxu0 %v7194
  %8544 = vmatprep.subr.bf16.mxu0 0
  %8545 = vmatpush1.bf16.msra.mxu0 0
  %8546 = vmatprep.subr.bf16.mxu0 0
  %8547 = vmatpush1.bf16.msra.mxu0 0
  %8548 = vmatprep.subr.bf16.mxu0 0
  %8549 = vmatpush1.bf16.msra.mxu0 0
  %8550 = vmatprep.subr.bf16.mxu0 0
  %8551 = vmatpush1.bf16.msra.mxu0 0
  %8552 = vmatprep.subr.bf16.mxu0 0
  %8553 = vmatpush1.bf16.msra.mxu0 0
  %8554 = vmatprep.subr.bf16.mxu0 0
  %8555 = vmatpush1.bf16.msra.mxu0 0
  %8556 = vmatprep.subr.bf16.mxu0 0
  %8557 = vmatpush1.bf16.msra.mxu0 0
  %8558 = vmatprep.subr.bf16.mxu0 0
  %8559 = vmatpush1.bf16.msra.mxu0 0
  %8560 = vmatprep.mubr.bf16.mxu0 0
  %8561 = vmatmul.mubr.bf16.gmra.mrb[0].mxu0 %v8527
  %v8562 = vpop.f32.mrb[0].mxu0
  %v8563 = vadd.f32 0.0, %v8562
  %v8564 = vpop.f32.mrb[0].mxu0
  %v8565 = vadd.f32 0.0, %v8564
  %v8566 = vpop.f32.mrb[0].mxu0
  %v8567 = vpop.f32.mrb[0].mxu0
  %8568 = vdwg.mxu0
  %8569 = vmatprep.subr.bf16.mxu0 %v7169
  %8570 = vmatpush1.bf16.msra.mxu0 %v7168
  %8571 = vmatprep.subr.bf16.mxu0 %v7173
  %8572 = vmatpush1.bf16.msra.mxu0 %v7172
  %8573 = vmatprep.subr.bf16.mxu0 %v7177
  %8574 = vmatpush1.bf16.msra.mxu0 %v7176
  %8575 = vmatprep.subr.bf16.mxu0 %v7181
  %8576 = vmatpush1.bf16.msra.mxu0 %v7180
  %8577 = vmatprep.subr.bf16.mxu0 %v7185
  %8578 = vmatpush1.bf16.msra.mxu0 %v7184
  %8579 = vmatprep.subr.bf16.mxu0 %v7189
  %8580 = vmatpush1.bf16.msra.mxu0 %v7188
  %8581 = vmatprep.subr.bf16.mxu0 %v7193
  %8582 = vmatpush1.bf16.msra.mxu0 %v7192
  %8583 = vmatprep.subr.bf16.mxu0 %v7197
  %8584 = vmatpush1.bf16.msra.mxu0 %v7196
  %8585 = vmatprep.subr.bf16.mxu0 0
  %8586 = vmatpush1.bf16.msra.mxu0 0
  %8587 = vmatprep.subr.bf16.mxu0 0
  %8588 = vmatpush1.bf16.msra.mxu0 0
  %8589 = vmatprep.subr.bf16.mxu0 0
  %8590 = vmatpush1.bf16.msra.mxu0 0
  %8591 = vmatprep.subr.bf16.mxu0 0
  %8592 = vmatpush1.bf16.msra.mxu0 0
  %8593 = vmatprep.subr.bf16.mxu0 0
  %8594 = vmatpush1.bf16.msra.mxu0 0
  %8595 = vmatprep.subr.bf16.mxu0 0
  %8596 = vmatpush1.bf16.msra.mxu0 0
  %8597 = vmatprep.subr.bf16.mxu0 0
  %8598 = vmatpush1.bf16.msra.mxu0 0
  %8599 = vmatprep.subr.bf16.mxu0 0
  %8600 = vmatpush1.bf16.msra.mxu0 0
  %8601 = vmatprep.mubr.bf16.mxu0 0
  %8602 = vmatmul.mubr.bf16.gmra.mrb[0].mxu0 %v8527
  %v8603 = vpop.f32.mrb[0].mxu0
  %v8604 = vadd.f32 0.0, %v8603
  %v8605 = vpop.f32.mrb[0].mxu0
  %v8606 = vadd.f32 0.0, %v8605
  %v8607 = vpop.f32.mrb[0].mxu0
  %v8608 = vpop.f32.mrb[0].mxu0
  %8609 = vdwg.mxu0
  %v8610 = vadd.f32 %v8523, %v8563
  %v8611 = vadd.f32 %v8524, %v8565
  %v8612 = vadd.f32 %v8525, %v8604
  %v8613 = vadd.f32 %v8526, %v8606
  %v8614 = vxor.u32 %v8610, 2147483648
  %v8615 = vmul.f32 %v8614, 1.442695
  %v8616 = vpow.pop %v8615
  %v8617 = vadd.f32 %v8616, 1.0
  %v8618 = vrcp.pop %v8617
  %v8619 = vmul.f32 1.0, %v8618
  %v8620 = vxor.u32 %v8611, 2147483648
  %v8621 = vmul.f32 %v8620, 1.442695
  %v8622 = vpow.pop %v8621
  %v8623 = vadd.f32 %v8622, 1.0
  %v8624 = vrcp.pop %v8623
  %v8625 = vmul.f32 1.0, %v8624
  %v8626 = vtanh.pop %v8612
  %v8627 = vxor.u32 %v8613, 2147483648
  %v8628 = vmul.f32 %v8627, 1.442695
  %v8629 = vpow.pop %v8628
  %v8630 = vadd.f32 %v8629, 1.0
  %v8631 = vrcp.pop %v8630
  %v8632 = vmul.f32 1.0, %v8631
  %v8633 = vmul.f32 %v8625, %v8517
  %v8634 = vmul.f32 %v8619, %v8626
  %v8635 = vadd.f32 %v8633, %v8634
  %v8636 = vtanh.pop %v8635
  %v8637 = vmul.f32 %v8632, %v8636
  %8638 = vst [vmem:[%s5706 + $0x8] sm:$0xff] %v8637
  %s8639 = scalar_lea.vmem %s14, 24
  %8640 = vst [vmem:[%s8639] sm:$0xff] %v8637
  %s8641 = scalar_lea.vmem %s15, 24
  %8642 = vst [vmem:[%s8641] sm:$0xff] %v8635
  // Predicated region
  $region54: #{bidirectional_lstm_forward.1} parent=0 // pred_check
    _
  $region55: #{bidirectional_lstm_forward.1} parent=0 // pred_check_branch
    %8644 = sbr.rel (0) target = $region57
  $region56: #{bidirectional_lstm_forward.1} parent=0 // pred_region
    _
  $region57: #{bidirectional_lstm_forward.1} parent=0 // pred_fallthru
    _
  // Predicated region
  $region58: #{bidirectional_lstm_forward.1} parent=0 // pred_check
    _
  $region59: #{bidirectional_lstm_forward.1} parent=0 // pred_check_branch
    %8646 = sbr.rel (0) target = $region61
  $region60: #{bidirectional_lstm_forward.1} parent=0 // pred_region
    _
  $region61: #{bidirectional_lstm_forward.1} parent=0 // pred_fallthru
    _
  // Predicated region
  $region62: #{bidirectional_lstm_forward.1} parent=0 // pred_check
    _
  $region63: #{bidirectional_lstm_forward.1} parent=0 // pred_check_branch
    %8648 = sbr.rel (0) target = $region65
  $region64: #{bidirectional_lstm_forward.1} parent=0 // pred_region
    _
  $region65: #{bidirectional_lstm_forward.1} parent=0 // pred_fallthru
    _
  // Predicated region
  $region66: #{bidirectional_lstm_forward.1} parent=0 // pred_check
    _
  $region67: #{bidirectional_lstm_forward.1} parent=0 // pred_check_branch
    %8650 = sbr.rel (0) target = $region69
  $region68: #{bidirectional_lstm_forward.1} parent=0 // pred_region
    _
  $region69: #{bidirectional_lstm_forward.1} parent=0 // pred_fallthru
    _
  // Predicated region
  $region70: #{bidirectional_lstm_forward.1} parent=0 // pred_check
    _
  $region71: #{bidirectional_lstm_forward.1} parent=0 // pred_check_branch
    %8652 = sbr.rel (0) target = $region73
  $region72: #{bidirectional_lstm_forward.1} parent=0 // pred_region
    _
  $region73: #{bidirectional_lstm_forward.1} parent=0 // pred_fallthru
    _
  // Predicated region
  $region74: #{bidirectional_lstm_forward.1} parent=0 // pred_check
    _
  $region75: #{bidirectional_lstm_forward.1} parent=0 // pred_check_branch
    %8654 = sbr.rel (0) target = $region77
  $region76: #{bidirectional_lstm_forward.1} parent=0 // pred_region
    _
  $region77: #{bidirectional_lstm_forward.1} parent=0 // pred_fallthru
    _

</llo_original>
